<compile_context>
chip_gen: v7x
topology: tpu7x:2x2x1
jax: 0.10.0
libtpu: 0.0.40
codegen_flags: <defaults>
</compile_context>

<pallas_src>
import math

import jax
import jax.numpy as jnp
from jax import lax
from jax.experimental import pallas as pl
from jax.experimental.pallas import tpu as pltpu


def make_kernel(T, Vp, Z, H, L, BB, pad_value):
    """Builds the Pallas kernel body for static sizes (one batch block per grid step)."""

    def kernel(*refs):
        it = iter(refs)
        # ---- inputs ----
        x_ref = next(it)            # (T, BB)  int32 padded tokens (time-major)
        len_ref = next(it)          # (1, BB)  int32 sequence lengths
        z_ref = next(it)            # (BB, Z)  latent
        wlat_ref = next(it)         # (Z, H)   decoder_latent.weight.T   (bf16)
        blat_ref = next(it)         # (1, H)   decoder_latent.bias       (f32)
        layers = []
        for l in range(L):
            if l == 0:
                wtok = [next(it) for _ in range(3)]   # 3 x (Vp, H) bf16
                wlat0 = [next(it) for _ in range(3)]  # 3 x (Z, H)  bf16
                wih = (wtok, wlat0)
            else:
                wih = [next(it) for _ in range(3)]    # 3 x (H, H)  bf16
            whh = [next(it) for _ in range(3)]        # 3 x (H, H)  bf16
            bih = [next(it) for _ in range(3)]        # 3 x (1, H)  f32
            bhh = [next(it) for _ in range(3)]        # 3 x (1, H)  f32
            layers.append((wih, whh, bih, bhh))
        wfin_ref = next(it)         # (H, Vp)  final.weight.T (zero-padded cols) bf16
        bfin_ref = next(it)         # (1, Vp)  final.bias (padded cols = -1e30)  f32
        # ---- outputs ----
        logits_ref = next(it)       # (T, BB, Vp) f32
        num_ref = next(it)          # (1, 1) f32   sum of masked NLL for this block
        den_ref = next(it)          # (1, 1) f32   number of valid targets
        # ---- scratch ----
        g_scr = [next(it) for _ in range(3)]          # 3 x (T, BB, H) gate pre-acts
        seq_scr = [next(it), next(it)]                # 2 x (T, BB, H) hidden ping-pong

        ids = x_ref[...]                              # (T, BB) int32
        z = z_ref[...]                                # (BB, Z) f32
        z16 = z.astype(jnp.bfloat16)

        # h0 = decoder_latent(z), replicated as the initial state of every layer.
        h0 = jnp.dot(z16, wlat_ref[...],
                     preferred_element_type=jnp.float32) + blat_ref[...]      # (BB, H)

        # identity embedding -> one-hot tokens over the lane-padded vocab (Vp % 128 == 0).
        v_iota = lax.broadcasted_iota(jnp.int32, (T, BB, Vp), 2)
        onehot = ids[:, :, None] == v_iota                                    # bool
        oh16 = (onehot.astype(jnp.float32)
                .reshape(T * BB, Vp).astype(jnp.bfloat16))                    # (T*BB, Vp)

        # ---- per-layer input projections (one matmul per gate, gate-major storage) ----
        def project_layer0():
            (wtok, wlat0), _, bih, _ = layers[0]
            for g in range(3):
                gx = jnp.dot(oh16, wtok[g][...],
                             preferred_element_type=jnp.float32)              # (T*BB, H)
                gz = jnp.dot(z16, wlat0[g][...],
                             preferred_element_type=jnp.float32)              # (BB, H)
                g_scr[g][...] = gx.reshape(T, BB, H) + gz[None] + bih[g][...][None]

        def project_layer(l, prev_ref):
            wih, _, bih, _ = layers[l]
            prev16 = prev_ref[...].reshape(T * BB, H).astype(jnp.bfloat16)
            for g in range(3):
                gx = jnp.dot(prev16, wih[g][...],
                             preferred_element_type=jnp.float32)              # (T*BB, H)
                g_scr[g][...] = gx.reshape(T, BB, H) + bih[g][...][None]

        # ---- GRU recurrence (PyTorch gate order r, z, n), fully unrolled ----
        def run_recurrence(l, out_ref):
            _, whh, _, bhh = layers[l]
            whh_r = whh[0][...]; whh_z = whh[1][...]; whh_n = whh[2][...]
            bhh_r = bhh[0][...]; bhh_z = bhh[1][...]; bhh_n = bhh[2][...]

            def step(t, h):
                h16 = h.astype(jnp.bfloat16)
                gh_r = jnp.dot(h16, whh_r, preferred_element_type=jnp.float32) + bhh_r
                gh_z = jnp.dot(h16, whh_z, preferred_element_type=jnp.float32) + bhh_z
                gh_n = jnp.dot(h16, whh_n, preferred_element_type=jnp.float32) + bhh_n
                r = jax.nn.sigmoid(g_scr[0][t] + gh_r)
                zg = jax.nn.sigmoid(g_scr[1][t] + gh_z)
                n = jnp.tanh(g_scr[2][t] + r * gh_n)
                h_new = (1.0 - zg) * n + zg * h
                out_ref[t] = h_new
                return h_new

            lax.fori_loop(0, T, step, h0, unroll=True)

        project_layer0()
        run_recurrence(0, seq_scr[0])
        for l in range(1, L):
            project_layer(l, seq_scr[(l - 1) % 2])
            run_recurrence(l, seq_scr[l % 2])

        hseq = seq_scr[(L - 1) % 2][...]                                      # (T, BB, H)

        # pad_packed_sequence semantics: zero hidden outputs past each length.
        t_iota = lax.broadcasted_iota(jnp.int32, (T, BB), 0)
        mask = (t_iota < len_ref[...]).astype(jnp.float32)                    # (T, BB)
        h16 = ((hseq * mask[:, :, None]).reshape(T * BB, H)).astype(jnp.bfloat16)

        # final projection; Vp is a multiple of 128 -> lane-dense store.
        logits = (jnp.dot(h16, wfin_ref[...], preferred_element_type=jnp.float32)
                  + bfin_ref[...]).reshape(T, BB, Vp)
        logits_ref[...] = logits

        # ---- masked cross entropy: logits[:-1] vs tokens[1:], ignore pad ----
        lg = logits[:T - 1]                                                   # (T-1,BB,Vp)
        m = jnp.max(lg, axis=-1, keepdims=True)
        lse = jnp.log(jnp.sum(jnp.exp(lg - m), axis=-1, keepdims=True)) + m   # (T-1,BB,1)
        # reuse the already-built one-hot as the target one-hot
        picked = jnp.sum(jnp.where(onehot[1:], lg, 0.0), axis=-1)             # (T-1,BB)
        nll = lse[..., 0] - picked
        tgt = ids[1:, :]
        validf = (tgt != pad_value).astype(jnp.float32)
        num_ref[...] = jnp.sum(nll * validf, keepdims=True)
        den_ref[...] = jnp.sum(validf, keepdims=True)

    return kernel


def rnn_decoder_forward(x_pad, lengths, z, params, pad_value, block_b=8):
    """Wrapper: padded ids (B, T), latent z (B, Z) -> (logits (B, T, V), scalar loss)."""
    B, T = x_pad.shape
    V = params["wfin"].shape[0]
    Z = z.shape[1]
    H = params["wlat"].shape[0]
    L = len(params["layers"])

    f32, bf16 = jnp.float32, jnp.bfloat16
    BB = block_b
    Bp = ((B + BB - 1) // BB) * BB            # batch padded to a multiple of 8
    G = Bp // BB                              # batch-block grid ("parallel" -> 2 TCs on v7x)
    Vp = ((V + 127) // 128) * 128             # lane-padded vocab -> dense logits stores

    # --- batch padding: fake rows get pad tokens / zero length so they drop out ---
    x_tb = jnp.full((T, Bp), pad_value, jnp.int32).at[:, :B].set(
        jnp.transpose(x_pad.astype(jnp.int32), (1, 0)))
    len2d = jnp.zeros((1, Bp), jnp.int32).at[0, :B].set(lengths.astype(jnp.int32))
    z_p = jnp.zeros((Bp, Z), f32).at[:B].set(z.astype(f32))

    # --- weight prep: gate split (r,z,n), token/latent split of W_ih0, transposes,
    #     lane padding of the output projection, bf16 cast of matmul operands ---
    inputs = [x_tb, len2d, z_p,
              params["wlat"].T.astype(bf16), params["blat"].astype(f32)]
    for l, (wih, whh, bih, bhh) in enumerate(params["layers"]):
        gs = [slice(g * H, (g + 1) * H) for g in range(3)]
        if l == 0:
            for s in gs:  # token part, padded with zero rows up to Vp
                wtok = jnp.zeros((Vp, H), f32).at[:V].set(wih[s, :V].T)
                inputs.append(wtok.astype(bf16))
            for s in gs:  # latent part
                inputs.append(wih[s, V:].T.astype(bf16))
        else:
            for s in gs:
                inputs.append(wih[s, :].T.astype(bf16))
        for s in gs:
            inputs.append(whh[s, :].T.astype(bf16))
        for s in gs:
            inputs.append(bih[:, s].astype(f32))
        for s in gs:
            inputs.append(bhh[:, s].astype(f32))
    wfin_T = jnp.zeros((H, Vp), f32).at[:, :V].set(params["wfin"].T)
    bfin_p = jnp.full((1, Vp), -1e30, f32).at[:, :V].set(params["bfin"])  # -1e30 -> exp()=0
    inputs.extend([wfin_T.astype(bf16), bfin_p])

    in_specs = [pl.BlockSpec((T, BB), lambda i: (0, i)),
                pl.BlockSpec((1, BB), lambda i: (0, i)),
                pl.BlockSpec((BB, Z), lambda i: (i, 0))]
    in_specs += [pl.BlockSpec(a.shape, lambda i: (0, 0)) for a in inputs[3:]]

    out_shape = (jax.ShapeDtypeStruct((T, Bp, Vp), f32),
                 jax.ShapeDtypeStruct((G, 1), f32),
                 jax.ShapeDtypeStruct((G, 1), f32))
    out_specs = (pl.BlockSpec((T, BB, Vp), lambda i: (0, i, 0)),
                 pl.BlockSpec((1, 1), lambda i: (i, 0)),
                 pl.BlockSpec((1, 1), lambda i: (i, 0)))

    kernel = make_kernel(T, Vp, Z, H, L, BB, pad_value)
    logits_p, num, den = pl.pallas_call(
        kernel,
        grid=(G,),
        out_shape=out_shape,
        in_specs=in_specs,
        out_specs=out_specs,
        scratch_shapes=[pltpu.VMEM((T, BB, H), f32) for _ in range(5)],
        compiler_params=pltpu.CompilerParams(
            dimension_semantics=("parallel",),
            vmem_limit_bytes=32 * 1024 * 1024),
    )(*inputs)

    logits = jnp.transpose(logits_p, (1, 0, 2))[:B, :, :V]       # (B, T, V)
    loss = jnp.sum(num) / jnp.maximum(jnp.sum(den), 1.0)          # trivial scalar glue
    return logits, loss


# ----------------------- pure-JAX f32 reference (for verification) -----------------------
def ref_forward(x_pad, lengths, z, params, pad_value):
    B, T = x_pad.shape
    V = params["wfin"].shape[0]
    H = params["wlat"].shape[0]
    onehot = jax.nn.one_hot(x_pad, V, dtype=jnp.float32)                 # (B, T, V)
    zrep = jnp.broadcast_to(z[:, None, :], (B, T, z.shape[1]))
    seq = jnp.concatenate([onehot, zrep], axis=-1)
    h0 = z @ params["wlat"].T + params["blat"]
    for (wih, whh, bih, bhh) in params["layers"]:
        def step(h, x_t, wih=wih, whh=whh, bih=bih, bhh=bhh):
            gi = x_t @ wih.T + bih
            gh = h @ whh.T + bhh
            r = jax.nn.sigmoid(gi[:, :H] + gh[:, :H])
            zg = jax.nn.sigmoid(gi[:, H:2 * H] + gh[:, H:2 * H])
            n = jnp.tanh(gi[:, 2 * H:] + r * gh[:, 2 * H:])
            hn = (1.0 - zg) * n + zg * h
            return hn, hn
        _, outs = lax.scan(step, h0, jnp.swapaxes(seq, 0, 1))
        seq = jnp.swapaxes(outs, 0, 1)
    mask = (jnp.arange(T)[None, :] < lengths[:, None]).astype(jnp.float32)
    seq = seq * mask[:, :, None]
    logits = seq @ params["wfin"].T + params["bfin"]
    lg = logits[:, :-1].reshape(-1, V)
    tg = x_pad[:, 1:].reshape(-1)
    validf = (tg != pad_value).astype(jnp.float32)
    logp = jax.nn.log_softmax(lg, axis=-1)
    picked = jnp.take_along_axis(logp, tg[:, None], axis=1)[:, 0]
    loss = -jnp.sum(picked * validf) / jnp.maximum(jnp.sum(validf), 1.0)
    return logits, loss


def init_params(key, V, Z, H, L):
    def u(k, shape, scale):
        return jax.random.uniform(k, shape, jnp.float32, -scale, scale)

    ks = jax.random.split(key, 4 + L)
    p = {}
    sl = 1.0 / math.sqrt(Z)
    sh = 1.0 / math.sqrt(H)
    p["wlat"] = u(ks[0], (H, Z), sl)
    p["blat"] = u(ks[1], (1, H), sl)
    p["wfin"] = u(ks[2], (V, H), sh)
    p["bfin"] = u(ks[3], (1, V), sh)
    layers = []
    for l in range(L):
        in_dim = (V + Z) if l == 0 else H
        k0, k1, k2, k3 = jax.random.split(ks[4 + l], 4)
        layers.append((u(k0, (3 * H, in_dim), sh),   # weight_ih_l{l}
                       u(k1, (3 * H, H), sh),        # weight_hh_l{l}
                       u(k2, (1, 3 * H), sh),        # bias_ih_l{l}
                       u(k3, (1, 3 * H), sh)))       # bias_hh_l{l}
    p["layers"] = layers
    return p


if __name__ == "__main__":
    # config: vocab=16 (one-hot embedding), z_dim=16, decoder_hid_dim=32,
    # decoder_num_layers=2, batch=4, max_seq_len=10
    vocab = ["<pad>", "<bos>", "<eos>", "<unk>"] + list("CcNOno()12=#")
    c2i = {c: i for i, c in enumerate(vocab)}
    PAD = c2i["<pad>"]
    V = len(vocab)          # 16
    Z = 16
    H = 32
    L = 2
    B = 4
    T = 10

    key = jax.random.PRNGKey(0)
    kx, kz, kp = jax.random.split(key, 3)

    # ragged input list -> pad_sequence (lengths sorted descending, as required by
    # pack_padded_sequence(enforce_sorted=True))
    lengths = jnp.array([10, 8, 7, 5], dtype=jnp.int32)
    full = jax.random.randint(kx, (B, T), 1, V, dtype=jnp.int32)
    tmask = jnp.arange(T)[None, :] < lengths[:, None]
    x_pad = jnp.where(tmask, full, PAD)                                  # (B, T)
    z = jax.random.normal(kz, (B, Z), jnp.float32)

    params = init_params(kp, V, Z, H, L)

    logits, loss = rnn_decoder_forward(x_pad, lengths, z, params, PAD)
    jax.block_until_ready((logits, loss))

    ref_logits, ref_loss = ref_forward(x_pad, lengths, z, params, PAD)
    assert logits.shape == (B, T, V)
    # kernel matmuls use bf16 operands (f32 accumulation); reference is full f32,
    # hence the relaxed tolerance.
    assert jnp.allclose(logits, ref_logits, atol=5e-2, rtol=5e-2), "logits mismatch"
    assert jnp.allclose(loss, ref_loss, atol=5e-2, rtol=5e-2), "loss mismatch"

    print("KERNEL_OK")
</pallas_src>

<mosaic_0001>
module attributes {stable_mosaic.version = 11 : i64} {
  func.func @kernel(%arg0: i32, %arg1: memref<10x8xi32, #tpu.memory_space<vmem>>, %arg2: memref<1x8xi32, #tpu.memory_space<vmem>>, %arg3: memref<8x16xf32, #tpu.memory_space<vmem>>, %arg4: memref<16x32xbf16, #tpu.memory_space<vmem>>, %arg5: memref<1x32xf32, #tpu.memory_space<vmem>>, %arg6: memref<128x32xbf16, #tpu.memory_space<vmem>>, %arg7: memref<128x32xbf16, #tpu.memory_space<vmem>>, %arg8: memref<128x32xbf16, #tpu.memory_space<vmem>>, %arg9: memref<16x32xbf16, #tpu.memory_space<vmem>>, %arg10: memref<16x32xbf16, #tpu.memory_space<vmem>>, %arg11: memref<16x32xbf16, #tpu.memory_space<vmem>>, %arg12: memref<32x32xbf16, #tpu.memory_space<vmem>>, %arg13: memref<32x32xbf16, #tpu.memory_space<vmem>>, %arg14: memref<32x32xbf16, #tpu.memory_space<vmem>>, %arg15: memref<1x32xf32, #tpu.memory_space<vmem>>, %arg16: memref<1x32xf32, #tpu.memory_space<vmem>>, %arg17: memref<1x32xf32, #tpu.memory_space<vmem>>, %arg18: memref<1x32xf32, #tpu.memory_space<vmem>>, %arg19: memref<1x32xf32, #tpu.memory_space<vmem>>, %arg20: memref<1x32xf32, #tpu.memory_space<vmem>>, %arg21: memref<32x32xbf16, #tpu.memory_space<vmem>>, %arg22: memref<32x32xbf16, #tpu.memory_space<vmem>>, %arg23: memref<32x32xbf16, #tpu.memory_space<vmem>>, %arg24: memref<32x32xbf16, #tpu.memory_space<vmem>>, %arg25: memref<32x32xbf16, #tpu.memory_space<vmem>>, %arg26: memref<32x32xbf16, #tpu.memory_space<vmem>>, %arg27: memref<1x32xf32, #tpu.memory_space<vmem>>, %arg28: memref<1x32xf32, #tpu.memory_space<vmem>>, %arg29: memref<1x32xf32, #tpu.memory_space<vmem>>, %arg30: memref<1x32xf32, #tpu.memory_space<vmem>>, %arg31: memref<1x32xf32, #tpu.memory_space<vmem>>, %arg32: memref<1x32xf32, #tpu.memory_space<vmem>>, %arg33: memref<32x128xbf16, #tpu.memory_space<vmem>>, %arg34: memref<1x128xf32, #tpu.memory_space<vmem>>, %arg35: memref<10x8x128xf32, #tpu.memory_space<vmem>>, %arg36: memref<1x1xf32, #tpu.memory_space<vmem>>, %arg37: memref<1x1xf32, #tpu.memory_space<vmem>>, %arg38: memref<10x8x32xf32, #tpu.memory_space<vmem>>, %arg39: memref<10x8x32xf32, #tpu.memory_space<vmem>>, %arg40: memref<10x8x32xf32, #tpu.memory_space<vmem>>, %arg41: memref<10x8x32xf32, #tpu.memory_space<vmem>>, %arg42: memref<10x8x32xf32, #tpu.memory_space<vmem>>) attributes {dimension_semantics = [#tpu.dimension_semantics<parallel>], iteration_bounds = array<i64: 1>, scalar_prefetch = 0 : i64, scratch_operands = 5 : i64, tpu.core_type = #tpu.core_type<tc>, window_params = [{transform_indices = @transform_0, window_bounds = array<i64: 10, 8>}, {transform_indices = @transform_1, window_bounds = array<i64: 1, 8>}, {transform_indices = @transform_2, window_bounds = array<i64: 8, 16>}, {pipeline_mode = #tpu.pipeline_mode<synchronous>, transform_indices = @transform_3, window_bounds = array<i64: 16, 32>}, {pipeline_mode = #tpu.pipeline_mode<synchronous>, transform_indices = @transform_4, window_bounds = array<i64: 1, 32>}, {pipeline_mode = #tpu.pipeline_mode<synchronous>, transform_indices = @transform_5, window_bounds = array<i64: 128, 32>}, {pipeline_mode = #tpu.pipeline_mode<synchronous>, transform_indices = @transform_6, window_bounds = array<i64: 128, 32>}, {pipeline_mode = #tpu.pipeline_mode<synchronous>, transform_indices = @transform_7, window_bounds = array<i64: 128, 32>}, {pipeline_mode = #tpu.pipeline_mode<synchronous>, transform_indices = @transform_8, window_bounds = array<i64: 16, 32>}, {pipeline_mode = #tpu.pipeline_mode<synchronous>, transform_indices = @transform_9, window_bounds = array<i64: 16, 32>}, {pipeline_mode = #tpu.pipeline_mode<synchronous>, transform_indices = @transform_10, window_bounds = array<i64: 16, 32>}, {pipeline_mode = #tpu.pipeline_mode<synchronous>, transform_indices = @transform_11, window_bounds = array<i64: 32, 32>}, {pipeline_mode = #tpu.pipeline_mode<synchronous>, transform_indices = @transform_12, window_bounds = array<i64: 32, 32>}, {pipeline_mode = #tpu.pipeline_mode<synchronous>, transform_indices = @transform_13, window_bounds = array<i64: 32, 32>}, {pipeline_mode = #tpu.pipeline_mode<synchronous>, transform_indices = @transform_14, window_bounds = array<i64: 1, 32>}, {pipeline_mode = #tpu.pipeline_mode<synchronous>, transform_indices = @transform_15, window_bounds = array<i64: 1, 32>}, {pipeline_mode = #tpu.pipeline_mode<synchronous>, transform_indices = @transform_16, window_bounds = array<i64: 1, 32>}, {pipeline_mode = #tpu.pipeline_mode<synchronous>, transform_indices = @transform_17, window_bounds = array<i64: 1, 32>}, {pipeline_mode = #tpu.pipeline_mode<synchronous>, transform_indices = @transform_18, window_bounds = array<i64: 1, 32>}, {pipeline_mode = #tpu.pipeline_mode<synchronous>, transform_indices = @transform_19, window_bounds = array<i64: 1, 32>}, {pipeline_mode = #tpu.pipeline_mode<synchronous>, transform_indices = @transform_20, window_bounds = array<i64: 32, 32>}, {pipeline_mode = #tpu.pipeline_mode<synchronous>, transform_indices = @transform_21, window_bounds = array<i64: 32, 32>}, {pipeline_mode = #tpu.pipeline_mode<synchronous>, transform_indices = @transform_22, window_bounds = array<i64: 32, 32>}, {pipeline_mode = #tpu.pipeline_mode<synchronous>, transform_indices = @transform_23, window_bounds = array<i64: 32, 32>}, {pipeline_mode = #tpu.pipeline_mode<synchronous>, transform_indices = @transform_24, window_bounds = array<i64: 32, 32>}, {pipeline_mode = #tpu.pipeline_mode<synchronous>, transform_indices = @transform_25, window_bounds = array<i64: 32, 32>}, {pipeline_mode = #tpu.pipeline_mode<synchronous>, transform_indices = @transform_26, window_bounds = array<i64: 1, 32>}, {pipeline_mode = #tpu.pipeline_mode<synchronous>, transform_indices = @transform_27, window_bounds = array<i64: 1, 32>}, {pipeline_mode = #tpu.pipeline_mode<synchronous>, transform_indices = @transform_28, window_bounds = array<i64: 1, 32>}, {pipeline_mode = #tpu.pipeline_mode<synchronous>, transform_indices = @transform_29, window_bounds = array<i64: 1, 32>}, {pipeline_mode = #tpu.pipeline_mode<synchronous>, transform_indices = @transform_30, window_bounds = array<i64: 1, 32>}, {pipeline_mode = #tpu.pipeline_mode<synchronous>, transform_indices = @transform_31, window_bounds = array<i64: 1, 32>}, {pipeline_mode = #tpu.pipeline_mode<synchronous>, transform_indices = @transform_32, window_bounds = array<i64: 32, 128>}, {pipeline_mode = #tpu.pipeline_mode<synchronous>, transform_indices = @transform_33, window_bounds = array<i64: 1, 128>}, {transform_indices = @transform_34, window_bounds = array<i64: 10, 8, 128>}, {transform_indices = @transform_35, window_bounds = array<i64: 1, 1>}, {transform_indices = @transform_36, window_bounds = array<i64: 1, 1>}]} {
    %c0 = arith.constant 0 : index
    %c0_0 = arith.constant 0 : index
    %0 = vector.load %arg1[%c0, %c0_0] : memref<10x8xi32, #tpu.memory_space<vmem>>, vector<10x8xi32>
    %c0_1 = arith.constant 0 : index
    %c0_2 = arith.constant 0 : index
    %1 = vector.load %arg3[%c0_1, %c0_2] : memref<8x16xf32, #tpu.memory_space<vmem>>, vector<8x16xf32>
    %2 = arith.truncf %1 : vector<8x16xf32> to vector<8x16xbf16>
    %c0_3 = arith.constant 0 : index
    %c0_4 = arith.constant 0 : index
    %3 = vector.load %arg4[%c0_3, %c0_4] : memref<16x32xbf16, #tpu.memory_space<vmem>>, vector<16x32xbf16>
    %cst = arith.constant dense<0.000000e+00> : vector<8x32xf32>
    %4 = tpu.matmul %2, %3, %cst {dimension_numbers = #tpu.dot_dimension_numbers<[1], [0], [0], [1], [0, 0, 1, 1], [], []>} : vector<8x16xbf16>, vector<16x32xbf16>, vector<8x32xf32> -> vector<8x32xf32>
    %c0_5 = arith.constant 0 : index
    %c0_6 = arith.constant 0 : index
    %5 = vector.load %arg5[%c0_5, %c0_6] : memref<1x32xf32, #tpu.memory_space<vmem>>, vector<1x32xf32>
    %6 = vector.broadcast %5 : vector<1x32xf32> to vector<8x32xf32>
    %7 = arith.addf %4, %6 : vector<8x32xf32>
    %8 = tpu.iota {dimensions = array<i32: 2>} : vector<10x8x128xi32>
    %9 = vector.shape_cast %0 : vector<10x8xi32> to vector<10x8x1xi32>
    %10 = vector.broadcast %9 : vector<10x8x1xi32> to vector<10x8x128xi32>
    %11 = arith.cmpi eq, %10, %8 : vector<10x8x128xi32>
    %12 = arith.extui %11 : vector<10x8x128xi1> to vector<10x8x128xi32>
    %13 = arith.sitofp %12 : vector<10x8x128xi32> to vector<10x8x128xf32>
    %14 = vector.shape_cast %13 : vector<10x8x128xf32> to vector<80x128xf32>
    %15 = arith.truncf %14 : vector<80x128xf32> to vector<80x128xbf16>
    %c0_7 = arith.constant 0 : index
    %c0_8 = arith.constant 0 : index
    %16 = vector.load %arg6[%c0_7, %c0_8] : memref<128x32xbf16, #tpu.memory_space<vmem>>, vector<128x32xbf16>
    %cst_9 = arith.constant dense<0.000000e+00> : vector<80x32xf32>
    %17 = tpu.matmul %15, %16, %cst_9 {dimension_numbers = #tpu.dot_dimension_numbers<[1], [0], [0], [1], [0, 0, 1, 1], [], []>} : vector<80x128xbf16>, vector<128x32xbf16>, vector<80x32xf32> -> vector<80x32xf32>
    %c0_10 = arith.constant 0 : index
    %c0_11 = arith.constant 0 : index
    %18 = vector.load %arg9[%c0_10, %c0_11] : memref<16x32xbf16, #tpu.memory_space<vmem>>, vector<16x32xbf16>
    %cst_12 = arith.constant dense<0.000000e+00> : vector<8x32xf32>
    %19 = tpu.matmul %2, %18, %cst_12 {dimension_numbers = #tpu.dot_dimension_numbers<[1], [0], [0], [1], [0, 0, 1, 1], [], []>} : vector<8x16xbf16>, vector<16x32xbf16>, vector<8x32xf32> -> vector<8x32xf32>
    %20 = vector.shape_cast %17 : vector<80x32xf32> to vector<10x8x32xf32>
    %21 = vector.shape_cast %19 : vector<8x32xf32> to vector<1x8x32xf32>
    %22 = vector.broadcast %21 : vector<1x8x32xf32> to vector<10x8x32xf32>
    %23 = arith.addf %20, %22 : vector<10x8x32xf32>
    %c0_13 = arith.constant 0 : index
    %c0_14 = arith.constant 0 : index
    %24 = vector.load %arg15[%c0_13, %c0_14] : memref<1x32xf32, #tpu.memory_space<vmem>>, vector<1x32xf32>
    %25 = vector.shape_cast %24 : vector<1x32xf32> to vector<1x1x32xf32>
    %26 = vector.broadcast %25 : vector<1x1x32xf32> to vector<10x8x32xf32>
    %27 = arith.addf %23, %26 : vector<10x8x32xf32>
    %c0_15 = arith.constant 0 : index
    %c0_16 = arith.constant 0 : index
    %c0_17 = arith.constant 0 : index
    %28 = vector.load %arg38[%c0_15, %c0_16, %c0_17] : memref<10x8x32xf32, #tpu.memory_space<vmem>>, vector<10x8x32xf32>
    tpu.vector_store %arg38[%c0_15, %c0_16, %c0_17], %27 {strides = array<i32>} : memref<10x8x32xf32, #tpu.memory_space<vmem>>, vector<10x8x32xf32>,
    %c0_18 = arith.constant 0 : index
    %c0_19 = arith.constant 0 : index
    %29 = vector.load %arg7[%c0_18, %c0_19] : memref<128x32xbf16, #tpu.memory_space<vmem>>, vector<128x32xbf16>
    %cst_20 = arith.constant dense<0.000000e+00> : vector<80x32xf32>
    %30 = tpu.matmul %15, %29, %cst_20 {dimension_numbers = #tpu.dot_dimension_numbers<[1], [0], [0], [1], [0, 0, 1, 1], [], []>} : vector<80x128xbf16>, vector<128x32xbf16>, vector<80x32xf32> -> vector<80x32xf32>
    %c0_21 = arith.constant 0 : index
    %c0_22 = arith.constant 0 : index
    %31 = vector.load %arg10[%c0_21, %c0_22] : memref<16x32xbf16, #tpu.memory_space<vmem>>, vector<16x32xbf16>
    %cst_23 = arith.constant dense<0.000000e+00> : vector<8x32xf32>
    %32 = tpu.matmul %2, %31, %cst_23 {dimension_numbers = #tpu.dot_dimension_numbers<[1], [0], [0], [1], [0, 0, 1, 1], [], []>} : vector<8x16xbf16>, vector<16x32xbf16>, vector<8x32xf32> -> vector<8x32xf32>
    %33 = vector.shape_cast %30 : vector<80x32xf32> to vector<10x8x32xf32>
    %34 = vector.shape_cast %32 : vector<8x32xf32> to vector<1x8x32xf32>
    %35 = vector.broadcast %34 : vector<1x8x32xf32> to vector<10x8x32xf32>
    %36 = arith.addf %33, %35 : vector<10x8x32xf32>
    %c0_24 = arith.constant 0 : index
    %c0_25 = arith.constant 0 : index
    %37 = vector.load %arg16[%c0_24, %c0_25] : memref<1x32xf32, #tpu.memory_space<vmem>>, vector<1x32xf32>
    %38 = vector.shape_cast %37 : vector<1x32xf32> to vector<1x1x32xf32>
    %39 = vector.broadcast %38 : vector<1x1x32xf32> to vector<10x8x32xf32>
    %40 = arith.addf %36, %39 : vector<10x8x32xf32>
    %c0_26 = arith.constant 0 : index
    %c0_27 = arith.constant 0 : index
    %c0_28 = arith.constant 0 : index
    %41 = vector.load %arg39[%c0_26, %c0_27, %c0_28] : memref<10x8x32xf32, #tpu.memory_space<vmem>>, vector<10x8x32xf32>
    tpu.vector_store %arg39[%c0_26, %c0_27, %c0_28], %40 {strides = array<i32>} : memref<10x8x32xf32, #tpu.memory_space<vmem>>, vector<10x8x32xf32>,
    %c0_29 = arith.constant 0 : index
    %c0_30 = arith.constant 0 : index
    %42 = vector.load %arg8[%c0_29, %c0_30] : memref<128x32xbf16, #tpu.memory_space<vmem>>, vector<128x32xbf16>
    %cst_31 = arith.constant dense<0.000000e+00> : vector<80x32xf32>
    %43 = tpu.matmul %15, %42, %cst_31 {dimension_numbers = #tpu.dot_dimension_numbers<[1], [0], [0], [1], [0, 0, 1, 1], [], []>} : vector<80x128xbf16>, vector<128x32xbf16>, vector<80x32xf32> -> vector<80x32xf32>
    %c0_32 = arith.constant 0 : index
    %c0_33 = arith.constant 0 : index
    %44 = vector.load %arg11[%c0_32, %c0_33] : memref<16x32xbf16, #tpu.memory_space<vmem>>, vector<16x32xbf16>
    %cst_34 = arith.constant dense<0.000000e+00> : vector<8x32xf32>
    %45 = tpu.matmul %2, %44, %cst_34 {dimension_numbers = #tpu.dot_dimension_numbers<[1], [0], [0], [1], [0, 0, 1, 1], [], []>} : vector<8x16xbf16>, vector<16x32xbf16>, vector<8x32xf32> -> vector<8x32xf32>
    %46 = vector.shape_cast %43 : vector<80x32xf32> to vector<10x8x32xf32>
    %47 = vector.shape_cast %45 : vector<8x32xf32> to vector<1x8x32xf32>
    %48 = vector.broadcast %47 : vector<1x8x32xf32> to vector<10x8x32xf32>
    %49 = arith.addf %46, %48 : vector<10x8x32xf32>
    %c0_35 = arith.constant 0 : index
    %c0_36 = arith.constant 0 : index
    %50 = vector.load %arg17[%c0_35, %c0_36] : memref<1x32xf32, #tpu.memory_space<vmem>>, vector<1x32xf32>
    %51 = vector.shape_cast %50 : vector<1x32xf32> to vector<1x1x32xf32>
    %52 = vector.broadcast %51 : vector<1x1x32xf32> to vector<10x8x32xf32>
    %53 = arith.addf %49, %52 : vector<10x8x32xf32>
    %c0_37 = arith.constant 0 : index
    %c0_38 = arith.constant 0 : index
    %c0_39 = arith.constant 0 : index
    %54 = vector.load %arg40[%c0_37, %c0_38, %c0_39] : memref<10x8x32xf32, #tpu.memory_space<vmem>>, vector<10x8x32xf32>
    tpu.vector_store %arg40[%c0_37, %c0_38, %c0_39], %53 {strides = array<i32>} : memref<10x8x32xf32, #tpu.memory_space<vmem>>, vector<10x8x32xf32>,
    %c0_40 = arith.constant 0 : index
    %c0_41 = arith.constant 0 : index
    %55 = vector.load %arg12[%c0_40, %c0_41] : memref<32x32xbf16, #tpu.memory_space<vmem>>, vector<32x32xbf16>
    %c0_42 = arith.constant 0 : index
    %c0_43 = arith.constant 0 : index
    %56 = vector.load %arg13[%c0_42, %c0_43] : memref<32x32xbf16, #tpu.memory_space<vmem>>, vector<32x32xbf16>
    %c0_44 = arith.constant 0 : index
    %c0_45 = arith.constant 0 : index
    %57 = vector.load %arg14[%c0_44, %c0_45] : memref<32x32xbf16, #tpu.memory_space<vmem>>, vector<32x32xbf16>
    %c0_46 = arith.constant 0 : index
    %c0_47 = arith.constant 0 : index
    %58 = vector.load %arg18[%c0_46, %c0_47] : memref<1x32xf32, #tpu.memory_space<vmem>>, vector<1x32xf32>
    %c0_48 = arith.constant 0 : index
    %c0_49 = arith.constant 0 : index
    %59 = vector.load %arg19[%c0_48, %c0_49] : memref<1x32xf32, #tpu.memory_space<vmem>>, vector<1x32xf32>
    %c0_50 = arith.constant 0 : index
    %c0_51 = arith.constant 0 : index
    %60 = vector.load %arg20[%c0_50, %c0_51] : memref<1x32xf32, #tpu.memory_space<vmem>>, vector<1x32xf32>
    %c0_i32 = arith.constant 0 : i32
    %61 = arith.truncf %7 : vector<8x32xf32> to vector<8x32xbf16>
    %cst_52 = arith.constant dense<0.000000e+00> : vector<8x32xf32>
    %62 = tpu.matmul %61, %55, %cst_52 {dimension_numbers = #tpu.dot_dimension_numbers<[1], [0], [0], [1], [0, 0, 1, 1], [], []>} : vector<8x32xbf16>, vector<32x32xbf16>, vector<8x32xf32> -> vector<8x32xf32>
    %63 = vector.broadcast %58 : vector<1x32xf32> to vector<8x32xf32>
    %64 = arith.addf %62, %63 : vector<8x32xf32>
    %cst_53 = arith.constant dense<0.000000e+00> : vector<8x32xf32>
    %65 = tpu.matmul %61, %56, %cst_53 {dimension_numbers = #tpu.dot_dimension_numbers<[1], [0], [0], [1], [0, 0, 1, 1], [], []>} : vector<8x32xbf16>, vector<32x32xbf16>, vector<8x32xf32> -> vector<8x32xf32>
    %66 = vector.broadcast %59 : vector<1x32xf32> to vector<8x32xf32>
    %67 = arith.addf %65, %66 : vector<8x32xf32>
    %cst_54 = arith.constant dense<0.000000e+00> : vector<8x32xf32>
    %68 = tpu.matmul %61, %57, %cst_54 {dimension_numbers = #tpu.dot_dimension_numbers<[1], [0], [0], [1], [0, 0, 1, 1], [], []>} : vector<8x32xbf16>, vector<32x32xbf16>, vector<8x32xf32> -> vector<8x32xf32>
    %69 = vector.broadcast %60 : vector<1x32xf32> to vector<8x32xf32>
    %70 = arith.addf %68, %69 : vector<8x32xf32>
    %71 = arith.index_cast %c0_i32 : i32 to index
    %c0_55 = arith.constant 0 : index
    %c0_56 = arith.constant 0 : index
    %72 = vector.load %arg38[%71, %c0_55, %c0_56] : memref<10x8x32xf32, #tpu.memory_space<vmem>>, vector<1x8x32xf32>
    %73 = vector.shape_cast %72 : vector<1x8x32xf32> to vector<8x32xf32>
    %74 = arith.addf %73, %64 : vector<8x32xf32>
    %75 = arith.negf %74 : vector<8x32xf32>
    %76 = math.exp %75 : vector<8x32xf32>
    %cst_57 = arith.constant 1.000000e+00 : f32
    %77 = vector.broadcast %cst_57 : f32 to vector<8x32xf32>
    %78 = arith.addf %77, %76 : vector<8x32xf32>
    %79 = arith.divf %77, %78 : vector<8x32xf32>
    %80 = arith.index_cast %c0_i32 : i32 to index
    %c0_58 = arith.constant 0 : index
    %c0_59 = arith.constant 0 : index
    %81 = vector.load %arg39[%80, %c0_58, %c0_59] : memref<10x8x32xf32, #tpu.memory_space<vmem>>, vector<1x8x32xf32>
    %82 = vector.shape_cast %81 : vector<1x8x32xf32> to vector<8x32xf32>
    %83 = arith.addf %82, %67 : vector<8x32xf32>
    %84 = arith.negf %83 : vector<8x32xf32>
    %85 = math.exp %84 : vector<8x32xf32>
    %cst_60 = arith.constant 1.000000e+00 : f32
    %86 = vector.broadcast %cst_60 : f32 to vector<8x32xf32>
    %87 = arith.addf %86, %85 : vector<8x32xf32>
    %88 = arith.divf %86, %87 : vector<8x32xf32>
    %89 = arith.index_cast %c0_i32 : i32 to index
    %c0_61 = arith.constant 0 : index
    %c0_62 = arith.constant 0 : index
    %90 = vector.load %arg40[%89, %c0_61, %c0_62] : memref<10x8x32xf32, #tpu.memory_space<vmem>>, vector<1x8x32xf32>
    %91 = vector.shape_cast %90 : vector<1x8x32xf32> to vector<8x32xf32>
    %92 = arith.mulf %79, %70 : vector<8x32xf32>
    %93 = arith.addf %91, %92 : vector<8x32xf32>
    %94 = math.tanh %93 : vector<8x32xf32>
    %cst_63 = arith.constant 1.000000e+00 : f32
    %95 = vector.broadcast %cst_63 : f32 to vector<8x32xf32>
    %96 = arith.subf %95, %88 : vector<8x32xf32>
    %97 = arith.mulf %96, %94 : vector<8x32xf32>
    %98 = arith.mulf %88, %7 : vector<8x32xf32>
    %99 = arith.addf %97, %98 : vector<8x32xf32>
    %100 = arith.index_cast %c0_i32 : i32 to index
    %c0_64 = arith.constant 0 : index
    %c0_65 = arith.constant 0 : index
    %101 = vector.load %arg41[%100, %c0_64, %c0_65] : memref<10x8x32xf32, #tpu.memory_space<vmem>>, vector<1x8x32xf32>
    %102 = vector.shape_cast %101 : vector<1x8x32xf32> to vector<8x32xf32>
    %103 = vector.shape_cast %99 : vector<8x32xf32> to vector<1x8x32xf32>
    tpu.vector_store %arg41[%100, %c0_64, %c0_65], %103 {strides = array<i32>} : memref<10x8x32xf32, #tpu.memory_space<vmem>>, vector<1x8x32xf32>,
    %c1_i32 = arith.constant 1 : i32
    %104 = arith.truncf %99 : vector<8x32xf32> to vector<8x32xbf16>
    %cst_66 = arith.constant dense<0.000000e+00> : vector<8x32xf32>
    %105 = tpu.matmul %104, %55, %cst_66 {dimension_numbers = #tpu.dot_dimension_numbers<[1], [0], [0], [1], [0, 0, 1, 1], [], []>} : vector<8x32xbf16>, vector<32x32xbf16>, vector<8x32xf32> -> vector<8x32xf32>
    %106 = vector.broadcast %58 : vector<1x32xf32> to vector<8x32xf32>
    %107 = arith.addf %105, %106 : vector<8x32xf32>
    %cst_67 = arith.constant dense<0.000000e+00> : vector<8x32xf32>
    %108 = tpu.matmul %104, %56, %cst_67 {dimension_numbers = #tpu.dot_dimension_numbers<[1], [0], [0], [1], [0, 0, 1, 1], [], []>} : vector<8x32xbf16>, vector<32x32xbf16>, vector<8x32xf32> -> vector<8x32xf32>
    %109 = vector.broadcast %59 : vector<1x32xf32> to vector<8x32xf32>
    %110 = arith.addf %108, %109 : vector<8x32xf32>
    %cst_68 = arith.constant dense<0.000000e+00> : vector<8x32xf32>
    %111 = tpu.matmul %104, %57, %cst_68 {dimension_numbers = #tpu.dot_dimension_numbers<[1], [0], [0], [1], [0, 0, 1, 1], [], []>} : vector<8x32xbf16>, vector<32x32xbf16>, vector<8x32xf32> -> vector<8x32xf32>
    %112 = vector.broadcast %60 : vector<1x32xf32> to vector<8x32xf32>
    %113 = arith.addf %111, %112 : vector<8x32xf32>
    %114 = arith.index_cast %c1_i32 : i32 to index
    %c0_69 = arith.constant 0 : index
    %c0_70 = arith.constant 0 : index
    %115 = vector.load %arg38[%114, %c0_69, %c0_70] : memref<10x8x32xf32, #tpu.memory_space<vmem>>, vector<1x8x32xf32>
    %116 = vector.shape_cast %115 : vector<1x8x32xf32> to vector<8x32xf32>
    %117 = arith.addf %116, %107 : vector<8x32xf32>
    %118 = arith.negf %117 : vector<8x32xf32>
    %119 = math.exp %118 : vector<8x32xf32>
    %cst_71 = arith.constant 1.000000e+00 : f32
    %120 = vector.broadcast %cst_71 : f32 to vector<8x32xf32>
    %121 = arith.addf %120, %119 : vector<8x32xf32>
    %122 = arith.divf %120, %121 : vector<8x32xf32>
    %123 = arith.index_cast %c1_i32 : i32 to index
    %c0_72 = arith.constant 0 : index
    %c0_73 = arith.constant 0 : index
    %124 = vector.load %arg39[%123, %c0_72, %c0_73] : memref<10x8x32xf32, #tpu.memory_space<vmem>>, vector<1x8x32xf32>
    %125 = vector.shape_cast %124 : vector<1x8x32xf32> to vector<8x32xf32>
    %126 = arith.addf %125, %110 : vector<8x32xf32>
    %127 = arith.negf %126 : vector<8x32xf32>
    %128 = math.exp %127 : vector<8x32xf32>
    %cst_74 = arith.constant 1.000000e+00 : f32
    %129 = vector.broadcast %cst_74 : f32 to vector<8x32xf32>
    %130 = arith.addf %129, %128 : vector<8x32xf32>
    %131 = arith.divf %129, %130 : vector<8x32xf32>
    %132 = arith.index_cast %c1_i32 : i32 to index
    %c0_75 = arith.constant 0 : index
    %c0_76 = arith.constant 0 : index
    %133 = vector.load %arg40[%132, %c0_75, %c0_76] : memref<10x8x32xf32, #tpu.memory_space<vmem>>, vector<1x8x32xf32>
    %134 = vector.shape_cast %133 : vector<1x8x32xf32> to vector<8x32xf32>
    %135 = arith.mulf %122, %113 : vector<8x32xf32>
    %136 = arith.addf %134, %135 : vector<8x32xf32>
    %137 = math.tanh %136 : vector<8x32xf32>
    %cst_77 = arith.constant 1.000000e+00 : f32
    %138 = vector.broadcast %cst_77 : f32 to vector<8x32xf32>
    %139 = arith.subf %138, %131 : vector<8x32xf32>
    %140 = arith.mulf %139, %137 : vector<8x32xf32>
    %141 = arith.mulf %131, %99 : vector<8x32xf32>
    %142 = arith.addf %140, %141 : vector<8x32xf32>
    %143 = arith.index_cast %c1_i32 : i32 to index
    %c0_78 = arith.constant 0 : index
    %c0_79 = arith.constant 0 : index
    %144 = vector.load %arg41[%143, %c0_78, %c0_79] : memref<10x8x32xf32, #tpu.memory_space<vmem>>, vector<1x8x32xf32>
    %145 = vector.shape_cast %144 : vector<1x8x32xf32> to vector<8x32xf32>
    %146 = vector.shape_cast %142 : vector<8x32xf32> to vector<1x8x32xf32>
    tpu.vector_store %arg41[%143, %c0_78, %c0_79], %146 {strides = array<i32>} : memref<10x8x32xf32, #tpu.memory_space<vmem>>, vector<1x8x32xf32>,
    %c2_i32 = arith.constant 2 : i32
    %147 = arith.truncf %142 : vector<8x32xf32> to vector<8x32xbf16>
    %cst_80 = arith.constant dense<0.000000e+00> : vector<8x32xf32>
    %148 = tpu.matmul %147, %55, %cst_80 {dimension_numbers = #tpu.dot_dimension_numbers<[1], [0], [0], [1], [0, 0, 1, 1], [], []>} : vector<8x32xbf16>, vector<32x32xbf16>, vector<8x32xf32> -> vector<8x32xf32>
    %149 = vector.broadcast %58 : vector<1x32xf32> to vector<8x32xf32>
    %150 = arith.addf %148, %149 : vector<8x32xf32>
    %cst_81 = arith.constant dense<0.000000e+00> : vector<8x32xf32>
    %151 = tpu.matmul %147, %56, %cst_81 {dimension_numbers = #tpu.dot_dimension_numbers<[1], [0], [0], [1], [0, 0, 1, 1], [], []>} : vector<8x32xbf16>, vector<32x32xbf16>, vector<8x32xf32> -> vector<8x32xf32>
    %152 = vector.broadcast %59 : vector<1x32xf32> to vector<8x32xf32>
    %153 = arith.addf %151, %152 : vector<8x32xf32>
    %cst_82 = arith.constant dense<0.000000e+00> : vector<8x32xf32>
    %154 = tpu.matmul %147, %57, %cst_82 {dimension_numbers = #tpu.dot_dimension_numbers<[1], [0], [0], [1], [0, 0, 1, 1], [], []>} : vector<8x32xbf16>, vector<32x32xbf16>, vector<8x32xf32> -> vector<8x32xf32>
    %155 = vector.broadcast %60 : vector<1x32xf32> to vector<8x32xf32>
    %156 = arith.addf %154, %155 : vector<8x32xf32>
    %157 = arith.index_cast %c2_i32 : i32 to index
    %c0_83 = arith.constant 0 : index
    %c0_84 = arith.constant 0 : index
    %158 = vector.load %arg38[%157, %c0_83, %c0_84] : memref<10x8x32xf32, #tpu.memory_space<vmem>>, vector<1x8x32xf32>
    %159 = vector.shape_cast %158 : vector<1x8x32xf32> to vector<8x32xf32>
    %160 = arith.addf %159, %150 : vector<8x32xf32>
    %161 = arith.negf %160 : vector<8x32xf32>
    %162 = math.exp %161 : vector<8x32xf32>
    %cst_85 = arith.constant 1.000000e+00 : f32
    %163 = vector.broadcast %cst_85 : f32 to vector<8x32xf32>
    %164 = arith.addf %163, %162 : vector<8x32xf32>
    %165 = arith.divf %163, %164 : vector<8x32xf32>
    %166 = arith.index_cast %c2_i32 : i32 to index
    %c0_86 = arith.constant 0 : index
    %c0_87 = arith.constant 0 : index
    %167 = vector.load %arg39[%166, %c0_86, %c0_87] : memref<10x8x32xf32, #tpu.memory_space<vmem>>, vector<1x8x32xf32>
    %168 = vector.shape_cast %167 : vector<1x8x32xf32> to vector<8x32xf32>
    %169 = arith.addf %168, %153 : vector<8x32xf32>
    %170 = arith.negf %169 : vector<8x32xf32>
    %171 = math.exp %170 : vector<8x32xf32>
    %cst_88 = arith.constant 1.000000e+00 : f32
    %172 = vector.broadcast %cst_88 : f32 to vector<8x32xf32>
    %173 = arith.addf %172, %171 : vector<8x32xf32>
    %174 = arith.divf %172, %173 : vector<8x32xf32>
    %175 = arith.index_cast %c2_i32 : i32 to index
    %c0_89 = arith.constant 0 : index
    %c0_90 = arith.constant 0 : index
    %176 = vector.load %arg40[%175, %c0_89, %c0_90] : memref<10x8x32xf32, #tpu.memory_space<vmem>>, vector<1x8x32xf32>
    %177 = vector.shape_cast %176 : vector<1x8x32xf32> to vector<8x32xf32>
    %178 = arith.mulf %165, %156 : vector<8x32xf32>
    %179 = arith.addf %177, %178 : vector<8x32xf32>
    %180 = math.tanh %179 : vector<8x32xf32>
    %cst_91 = arith.constant 1.000000e+00 : f32
    %181 = vector.broadcast %cst_91 : f32 to vector<8x32xf32>
    %182 = arith.subf %181, %174 : vector<8x32xf32>
    %183 = arith.mulf %182, %180 : vector<8x32xf32>
    %184 = arith.mulf %174, %142 : vector<8x32xf32>
    %185 = arith.addf %183, %184 : vector<8x32xf32>
    %186 = arith.index_cast %c2_i32 : i32 to index
    %c0_92 = arith.constant 0 : index
    %c0_93 = arith.constant 0 : index
    %187 = vector.load %arg41[%186, %c0_92, %c0_93] : memref<10x8x32xf32, #tpu.memory_space<vmem>>, vector<1x8x32xf32>
    %188 = vector.shape_cast %187 : vector<1x8x32xf32> to vector<8x32xf32>
    %189 = vector.shape_cast %185 : vector<8x32xf32> to vector<1x8x32xf32>
    tpu.vector_store %arg41[%186, %c0_92, %c0_93], %189 {strides = array<i32>} : memref<10x8x32xf32, #tpu.memory_space<vmem>>, vector<1x8x32xf32>,
    %c3_i32 = arith.constant 3 : i32
    %190 = arith.truncf %185 : vector<8x32xf32> to vector<8x32xbf16>
    %cst_94 = arith.constant dense<0.000000e+00> : vector<8x32xf32>
    %191 = tpu.matmul %190, %55, %cst_94 {dimension_numbers = #tpu.dot_dimension_numbers<[1], [0], [0], [1], [0, 0, 1, 1], [], []>} : vector<8x32xbf16>, vector<32x32xbf16>, vector<8x32xf32> -> vector<8x32xf32>
    %192 = vector.broadcast %58 : vector<1x32xf32> to vector<8x32xf32>
    %193 = arith.addf %191, %192 : vector<8x32xf32>
    %cst_95 = arith.constant dense<0.000000e+00> : vector<8x32xf32>
    %194 = tpu.matmul %190, %56, %cst_95 {dimension_numbers = #tpu.dot_dimension_numbers<[1], [0], [0], [1], [0, 0, 1, 1], [], []>} : vector<8x32xbf16>, vector<32x32xbf16>, vector<8x32xf32> -> vector<8x32xf32>
    %195 = vector.broadcast %59 : vector<1x32xf32> to vector<8x32xf32>
    %196 = arith.addf %194, %195 : vector<8x32xf32>
    %cst_96 = arith.constant dense<0.000000e+00> : vector<8x32xf32>
    %197 = tpu.matmul %190, %57, %cst_96 {dimension_numbers = #tpu.dot_dimension_numbers<[1], [0], [0], [1], [0, 0, 1, 1], [], []>} : vector<8x32xbf16>, vector<32x32xbf16>, vector<8x32xf32> -> vector<8x32xf32>
    %198 = vector.broadcast %60 : vector<1x32xf32> to vector<8x32xf32>
    %199 = arith.addf %197, %198 : vector<8x32xf32>
    %200 = arith.index_cast %c3_i32 : i32 to index
    %c0_97 = arith.constant 0 : index
    %c0_98 = arith.constant 0 : index
    %201 = vector.load %arg38[%200, %c0_97, %c0_98] : memref<10x8x32xf32, #tpu.memory_space<vmem>>, vector<1x8x32xf32>
    %202 = vector.shape_cast %201 : vector<1x8x32xf32> to vector<8x32xf32>
    %203 = arith.addf %202, %193 : vector<8x32xf32>
    %204 = arith.negf %203 : vector<8x32xf32>
    %205 = math.exp %204 : vector<8x32xf32>
    %cst_99 = arith.constant 1.000000e+00 : f32
    %206 = vector.broadcast %cst_99 : f32 to vector<8x32xf32>
    %207 = arith.addf %206, %205 : vector<8x32xf32>
    %208 = arith.divf %206, %207 : vector<8x32xf32>
    %209 = arith.index_cast %c3_i32 : i32 to index
    %c0_100 = arith.constant 0 : index
    %c0_101 = arith.constant 0 : index
    %210 = vector.load %arg39[%209, %c0_100, %c0_101] : memref<10x8x32xf32, #tpu.memory_space<vmem>>, vector<1x8x32xf32>
    %211 = vector.shape_cast %210 : vector<1x8x32xf32> to vector<8x32xf32>
    %212 = arith.addf %211, %196 : vector<8x32xf32>
    %213 = arith.negf %212 : vector<8x32xf32>
    %214 = math.exp %213 : vector<8x32xf32>
    %cst_102 = arith.constant 1.000000e+00 : f32
    %215 = vector.broadcast %cst_102 : f32 to vector<8x32xf32>
    %216 = arith.addf %215, %214 : vector<8x32xf32>
    %217 = arith.divf %215, %216 : vector<8x32xf32>
    %218 = arith.index_cast %c3_i32 : i32 to index
    %c0_103 = arith.constant 0 : index
    %c0_104 = arith.constant 0 : index
    %219 = vector.load %arg40[%218, %c0_103, %c0_104] : memref<10x8x32xf32, #tpu.memory_space<vmem>>, vector<1x8x32xf32>
    %220 = vector.shape_cast %219 : vector<1x8x32xf32> to vector<8x32xf32>
    %221 = arith.mulf %208, %199 : vector<8x32xf32>
    %222 = arith.addf %220, %221 : vector<8x32xf32>
    %223 = math.tanh %222 : vector<8x32xf32>
    %cst_105 = arith.constant 1.000000e+00 : f32
    %224 = vector.broadcast %cst_105 : f32 to vector<8x32xf32>
    %225 = arith.subf %224, %217 : vector<8x32xf32>
    %226 = arith.mulf %225, %223 : vector<8x32xf32>
    %227 = arith.mulf %217, %185 : vector<8x32xf32>
    %228 = arith.addf %226, %227 : vector<8x32xf32>
    %229 = arith.index_cast %c3_i32 : i32 to index
    %c0_106 = arith.constant 0 : index
    %c0_107 = arith.constant 0 : index
    %230 = vector.load %arg41[%229, %c0_106, %c0_107] : memref<10x8x32xf32, #tpu.memory_space<vmem>>, vector<1x8x32xf32>
    %231 = vector.shape_cast %230 : vector<1x8x32xf32> to vector<8x32xf32>
    %232 = vector.shape_cast %228 : vector<8x32xf32> to vector<1x8x32xf32>
    tpu.vector_store %arg41[%229, %c0_106, %c0_107], %232 {strides = array<i32>} : memref<10x8x32xf32, #tpu.memory_space<vmem>>, vector<1x8x32xf32>,
    %c4_i32 = arith.constant 4 : i32
    %233 = arith.truncf %228 : vector<8x32xf32> to vector<8x32xbf16>
    %cst_108 = arith.constant dense<0.000000e+00> : vector<8x32xf32>
    %234 = tpu.matmul %233, %55, %cst_108 {dimension_numbers = #tpu.dot_dimension_numbers<[1], [0], [0], [1], [0, 0, 1, 1], [], []>} : vector<8x32xbf16>, vector<32x32xbf16>, vector<8x32xf32> -> vector<8x32xf32>
    %235 = vector.broadcast %58 : vector<1x32xf32> to vector<8x32xf32>
    %236 = arith.addf %234, %235 : vector<8x32xf32>
    %cst_109 = arith.constant dense<0.000000e+00> : vector<8x32xf32>
    %237 = tpu.matmul %233, %56, %cst_109 {dimension_numbers = #tpu.dot_dimension_numbers<[1], [0], [0], [1], [0, 0, 1, 1], [], []>} : vector<8x32xbf16>, vector<32x32xbf16>, vector<8x32xf32> -> vector<8x32xf32>
    %238 = vector.broadcast %59 : vector<1x32xf32> to vector<8x32xf32>
    %239 = arith.addf %237, %238 : vector<8x32xf32>
    %cst_110 = arith.constant dense<0.000000e+00> : vector<8x32xf32>
    %240 = tpu.matmul %233, %57, %cst_110 {dimension_numbers = #tpu.dot_dimension_numbers<[1], [0], [0], [1], [0, 0, 1, 1], [], []>} : vector<8x32xbf16>, vector<32x32xbf16>, vector<8x32xf32> -> vector<8x32xf32>
    %241 = vector.broadcast %60 : vector<1x32xf32> to vector<8x32xf32>
    %242 = arith.addf %240, %241 : vector<8x32xf32>
    %243 = arith.index_cast %c4_i32 : i32 to index
    %c0_111 = arith.constant 0 : index
    %c0_112 = arith.constant 0 : index
    %244 = vector.load %arg38[%243, %c0_111, %c0_112] : memref<10x8x32xf32, #tpu.memory_space<vmem>>, vector<1x8x32xf32>
    %245 = vector.shape_cast %244 : vector<1x8x32xf32> to vector<8x32xf32>
    %246 = arith.addf %245, %236 : vector<8x32xf32>
    %247 = arith.negf %246 : vector<8x32xf32>
    %248 = math.exp %247 : vector<8x32xf32>
    %cst_113 = arith.constant 1.000000e+00 : f32
    %249 = vector.broadcast %cst_113 : f32 to vector<8x32xf32>
    %250 = arith.addf %249, %248 : vector<8x32xf32>
    %251 = arith.divf %249, %250 : vector<8x32xf32>
    %252 = arith.index_cast %c4_i32 : i32 to index
    %c0_114 = arith.constant 0 : index
    %c0_115 = arith.constant 0 : index
    %253 = vector.load %arg39[%252, %c0_114, %c0_115] : memref<10x8x32xf32, #tpu.memory_space<vmem>>, vector<1x8x32xf32>
    %254 = vector.shape_cast %253 : vector<1x8x32xf32> to vector<8x32xf32>
    %255 = arith.addf %254, %239 : vector<8x32xf32>
    %256 = arith.negf %255 : vector<8x32xf32>
    %257 = math.exp %256 : vector<8x32xf32>
    %cst_116 = arith.constant 1.000000e+00 : f32
    %258 = vector.broadcast %cst_116 : f32 to vector<8x32xf32>
    %259 = arith.addf %258, %257 : vector<8x32xf32>
    %260 = arith.divf %258, %259 : vector<8x32xf32>
    %261 = arith.index_cast %c4_i32 : i32 to index
    %c0_117 = arith.constant 0 : index
    %c0_118 = arith.constant 0 : index
    %262 = vector.load %arg40[%261, %c0_117, %c0_118] : memref<10x8x32xf32, #tpu.memory_space<vmem>>, vector<1x8x32xf32>
    %263 = vector.shape_cast %262 : vector<1x8x32xf32> to vector<8x32xf32>
    %264 = arith.mulf %251, %242 : vector<8x32xf32>
    %265 = arith.addf %263, %264 : vector<8x32xf32>
    %266 = math.tanh %265 : vector<8x32xf32>
    %cst_119 = arith.constant 1.000000e+00 : f32
    %267 = vector.broadcast %cst_119 : f32 to vector<8x32xf32>
    %268 = arith.subf %267, %260 : vector<8x32xf32>
    %269 = arith.mulf %268, %266 : vector<8x32xf32>
    %270 = arith.mulf %260, %228 : vector<8x32xf32>
    %271 = arith.addf %269, %270 : vector<8x32xf32>
    %272 = arith.index_cast %c4_i32 : i32 to index
    %c0_120 = arith.constant 0 : index
    %c0_121 = arith.constant 0 : index
    %273 = vector.load %arg41[%272, %c0_120, %c0_121] : memref<10x8x32xf32, #tpu.memory_space<vmem>>, vector<1x8x32xf32>
    %274 = vector.shape_cast %273 : vector<1x8x32xf32> to vector<8x32xf32>
    %275 = vector.shape_cast %271 : vector<8x32xf32> to vector<1x8x32xf32>
    tpu.vector_store %arg41[%272, %c0_120, %c0_121], %275 {strides = array<i32>} : memref<10x8x32xf32, #tpu.memory_space<vmem>>, vector<1x8x32xf32>,
    %c5_i32 = arith.constant 5 : i32
    %276 = arith.truncf %271 : vector<8x32xf32> to vector<8x32xbf16>
    %cst_122 = arith.constant dense<0.000000e+00> : vector<8x32xf32>
    %277 = tpu.matmul %276, %55, %cst_122 {dimension_numbers = #tpu.dot_dimension_numbers<[1], [0], [0], [1], [0, 0, 1, 1], [], []>} : vector<8x32xbf16>, vector<32x32xbf16>, vector<8x32xf32> -> vector<8x32xf32>
    %278 = vector.broadcast %58 : vector<1x32xf32> to vector<8x32xf32>
    %279 = arith.addf %277, %278 : vector<8x32xf32>
    %cst_123 = arith.constant dense<0.000000e+00> : vector<8x32xf32>
    %280 = tpu.matmul %276, %56, %cst_123 {dimension_numbers = #tpu.dot_dimension_numbers<[1], [0], [0], [1], [0, 0, 1, 1], [], []>} : vector<8x32xbf16>, vector<32x32xbf16>, vector<8x32xf32> -> vector<8x32xf32>
    %281 = vector.broadcast %59 : vector<1x32xf32> to vector<8x32xf32>
    %282 = arith.addf %280, %281 : vector<8x32xf32>
    %cst_124 = arith.constant dense<0.000000e+00> : vector<8x32xf32>
    %283 = tpu.matmul %276, %57, %cst_124 {dimension_numbers = #tpu.dot_dimension_numbers<[1], [0], [0], [1], [0, 0, 1, 1], [], []>} : vector<8x32xbf16>, vector<32x32xbf16>, vector<8x32xf32> -> vector<8x32xf32>
    %284 = vector.broadcast %60 : vector<1x32xf32> to vector<8x32xf32>
    %285 = arith.addf %283, %284 : vector<8x32xf32>
    %286 = arith.index_cast %c5_i32 : i32 to index
    %c0_125 = arith.constant 0 : index
    %c0_126 = arith.constant 0 : index
    %287 = vector.load %arg38[%286, %c0_125, %c0_126] : memref<10x8x32xf32, #tpu.memory_space<vmem>>, vector<1x8x32xf32>
    %288 = vector.shape_cast %287 : vector<1x8x32xf32> to vector<8x32xf32>
    %289 = arith.addf %288, %279 : vector<8x32xf32>
    %290 = arith.negf %289 : vector<8x32xf32>
    %291 = math.exp %290 : vector<8x32xf32>
    %cst_127 = arith.constant 1.000000e+00 : f32
    %292 = vector.broadcast %cst_127 : f32 to vector<8x32xf32>
    %293 = arith.addf %292, %291 : vector<8x32xf32>
    %294 = arith.divf %292, %293 : vector<8x32xf32>
    %295 = arith.index_cast %c5_i32 : i32 to index
    %c0_128 = arith.constant 0 : index
    %c0_129 = arith.constant 0 : index
    %296 = vector.load %arg39[%295, %c0_128, %c0_129] : memref<10x8x32xf32, #tpu.memory_space<vmem>>, vector<1x8x32xf32>
    %297 = vector.shape_cast %296 : vector<1x8x32xf32> to vector<8x32xf32>
    %298 = arith.addf %297, %282 : vector<8x32xf32>
    %299 = arith.negf %298 : vector<8x32xf32>
    %300 = math.exp %299 : vector<8x32xf32>
    %cst_130 = arith.constant 1.000000e+00 : f32
    %301 = vector.broadcast %cst_130 : f32 to vector<8x32xf32>
    %302 = arith.addf %301, %300 : vector<8x32xf32>
    %303 = arith.divf %301, %302 : vector<8x32xf32>
    %304 = arith.index_cast %c5_i32 : i32 to index
    %c0_131 = arith.constant 0 : index
    %c0_132 = arith.constant 0 : index
    %305 = vector.load %arg40[%304, %c0_131, %c0_132] : memref<10x8x32xf32, #tpu.memory_space<vmem>>, vector<1x8x32xf32>
    %306 = vector.shape_cast %305 : vector<1x8x32xf32> to vector<8x32xf32>
    %307 = arith.mulf %294, %285 : vector<8x32xf32>
    %308 = arith.addf %306, %307 : vector<8x32xf32>
    %309 = math.tanh %308 : vector<8x32xf32>
    %cst_133 = arith.constant 1.000000e+00 : f32
    %310 = vector.broadcast %cst_133 : f32 to vector<8x32xf32>
    %311 = arith.subf %310, %303 : vector<8x32xf32>
    %312 = arith.mulf %311, %309 : vector<8x32xf32>
    %313 = arith.mulf %303, %271 : vector<8x32xf32>
    %314 = arith.addf %312, %313 : vector<8x32xf32>
    %315 = arith.index_cast %c5_i32 : i32 to index
    %c0_134 = arith.constant 0 : index
    %c0_135 = arith.constant 0 : index
    %316 = vector.load %arg41[%315, %c0_134, %c0_135] : memref<10x8x32xf32, #tpu.memory_space<vmem>>, vector<1x8x32xf32>
    %317 = vector.shape_cast %316 : vector<1x8x32xf32> to vector<8x32xf32>
    %318 = vector.shape_cast %314 : vector<8x32xf32> to vector<1x8x32xf32>
    tpu.vector_store %arg41[%315, %c0_134, %c0_135], %318 {strides = array<i32>} : memref<10x8x32xf32, #tpu.memory_space<vmem>>, vector<1x8x32xf32>,
    %c6_i32 = arith.constant 6 : i32
    %319 = arith.truncf %314 : vector<8x32xf32> to vector<8x32xbf16>
    %cst_136 = arith.constant dense<0.000000e+00> : vector<8x32xf32>
    %320 = tpu.matmul %319, %55, %cst_136 {dimension_numbers = #tpu.dot_dimension_numbers<[1], [0], [0], [1], [0, 0, 1, 1], [], []>} : vector<8x32xbf16>, vector<32x32xbf16>, vector<8x32xf32> -> vector<8x32xf32>
    %321 = vector.broadcast %58 : vector<1x32xf32> to vector<8x32xf32>
    %322 = arith.addf %320, %321 : vector<8x32xf32>
    %cst_137 = arith.constant dense<0.000000e+00> : vector<8x32xf32>
    %323 = tpu.matmul %319, %56, %cst_137 {dimension_numbers = #tpu.dot_dimension_numbers<[1], [0], [0], [1], [0, 0, 1, 1], [], []>} : vector<8x32xbf16>, vector<32x32xbf16>, vector<8x32xf32> -> vector<8x32xf32>
    %324 = vector.broadcast %59 : vector<1x32xf32> to vector<8x32xf32>
    %325 = arith.addf %323, %324 : vector<8x32xf32>
    %cst_138 = arith.constant dense<0.000000e+00> : vector<8x32xf32>
    %326 = tpu.matmul %319, %57, %cst_138 {dimension_numbers = #tpu.dot_dimension_numbers<[1], [0], [0], [1], [0, 0, 1, 1], [], []>} : vector<8x32xbf16>, vector<32x32xbf16>, vector<8x32xf32> -> vector<8x32xf32>
    %327 = vector.broadcast %60 : vector<1x32xf32> to vector<8x32xf32>
    %328 = arith.addf %326, %327 : vector<8x32xf32>
    %329 = arith.index_cast %c6_i32 : i32 to index
    %c0_139 = arith.constant 0 : index
    %c0_140 = arith.constant 0 : index
    %330 = vector.load %arg38[%329, %c0_139, %c0_140] : memref<10x8x32xf32, #tpu.memory_space<vmem>>, vector<1x8x32xf32>
    %331 = vector.shape_cast %330 : vector<1x8x32xf32> to vector<8x32xf32>
    %332 = arith.addf %331, %322 : vector<8x32xf32>
    %333 = arith.negf %332 : vector<8x32xf32>
    %334 = math.exp %333 : vector<8x32xf32>
    %cst_141 = arith.constant 1.000000e+00 : f32
    %335 = vector.broadcast %cst_141 : f32 to vector<8x32xf32>
    %336 = arith.addf %335, %334 : vector<8x32xf32>
    %337 = arith.divf %335, %336 : vector<8x32xf32>
    %338 = arith.index_cast %c6_i32 : i32 to index
    %c0_142 = arith.constant 0 : index
    %c0_143 = arith.constant 0 : index
    %339 = vector.load %arg39[%338, %c0_142, %c0_143] : memref<10x8x32xf32, #tpu.memory_space<vmem>>, vector<1x8x32xf32>
    %340 = vector.shape_cast %339 : vector<1x8x32xf32> to vector<8x32xf32>
    %341 = arith.addf %340, %325 : vector<8x32xf32>
    %342 = arith.negf %341 : vector<8x32xf32>
    %343 = math.exp %342 : vector<8x32xf32>
    %cst_144 = arith.constant 1.000000e+00 : f32
    %344 = vector.broadcast %cst_144 : f32 to vector<8x32xf32>
    %345 = arith.addf %344, %343 : vector<8x32xf32>
    %346 = arith.divf %344, %345 : vector<8x32xf32>
    %347 = arith.index_cast %c6_i32 : i32 to index
    %c0_145 = arith.constant 0 : index
    %c0_146 = arith.constant 0 : index
    %348 = vector.load %arg40[%347, %c0_145, %c0_146] : memref<10x8x32xf32, #tpu.memory_space<vmem>>, vector<1x8x32xf32>
    %349 = vector.shape_cast %348 : vector<1x8x32xf32> to vector<8x32xf32>
    %350 = arith.mulf %337, %328 : vector<8x32xf32>
    %351 = arith.addf %349, %350 : vector<8x32xf32>
    %352 = math.tanh %351 : vector<8x32xf32>
    %cst_147 = arith.constant 1.000000e+00 : f32
    %353 = vector.broadcast %cst_147 : f32 to vector<8x32xf32>
    %354 = arith.subf %353, %346 : vector<8x32xf32>
    %355 = arith.mulf %354, %352 : vector<8x32xf32>
    %356 = arith.mulf %346, %314 : vector<8x32xf32>
    %357 = arith.addf %355, %356 : vector<8x32xf32>
    %358 = arith.index_cast %c6_i32 : i32 to index
    %c0_148 = arith.constant 0 : index
    %c0_149 = arith.constant 0 : index
    %359 = vector.load %arg41[%358, %c0_148, %c0_149] : memref<10x8x32xf32, #tpu.memory_space<vmem>>, vector<1x8x32xf32>
    %360 = vector.shape_cast %359 : vector<1x8x32xf32> to vector<8x32xf32>
    %361 = vector.shape_cast %357 : vector<8x32xf32> to vector<1x8x32xf32>
    tpu.vector_store %arg41[%358, %c0_148, %c0_149], %361 {strides = array<i32>} : memref<10x8x32xf32, #tpu.memory_space<vmem>>, vector<1x8x32xf32>,
    %c7_i32 = arith.constant 7 : i32
    %362 = arith.truncf %357 : vector<8x32xf32> to vector<8x32xbf16>
    %cst_150 = arith.constant dense<0.000000e+00> : vector<8x32xf32>
    %363 = tpu.matmul %362, %55, %cst_150 {dimension_numbers = #tpu.dot_dimension_numbers<[1], [0], [0], [1], [0, 0, 1, 1], [], []>} : vector<8x32xbf16>, vector<32x32xbf16>, vector<8x32xf32> -> vector<8x32xf32>
    %364 = vector.broadcast %58 : vector<1x32xf32> to vector<8x32xf32>
    %365 = arith.addf %363, %364 : vector<8x32xf32>
    %cst_151 = arith.constant dense<0.000000e+00> : vector<8x32xf32>
    %366 = tpu.matmul %362, %56, %cst_151 {dimension_numbers = #tpu.dot_dimension_numbers<[1], [0], [0], [1], [0, 0, 1, 1], [], []>} : vector<8x32xbf16>, vector<32x32xbf16>, vector<8x32xf32> -> vector<8x32xf32>
    %367 = vector.broadcast %59 : vector<1x32xf32> to vector<8x32xf32>
    %368 = arith.addf %366, %367 : vector<8x32xf32>
    %cst_152 = arith.constant dense<0.000000e+00> : vector<8x32xf32>
    %369 = tpu.matmul %362, %57, %cst_152 {dimension_numbers = #tpu.dot_dimension_numbers<[1], [0], [0], [1], [0, 0, 1, 1], [], []>} : vector<8x32xbf16>, vector<32x32xbf16>, vector<8x32xf32> -> vector<8x32xf32>
    %370 = vector.broadcast %60 : vector<1x32xf32> to vector<8x32xf32>
    %371 = arith.addf %369, %370 : vector<8x32xf32>
    %372 = arith.index_cast %c7_i32 : i32 to index
    %c0_153 = arith.constant 0 : index
    %c0_154 = arith.constant 0 : index
    %373 = vector.load %arg38[%372, %c0_153, %c0_154] : memref<10x8x32xf32, #tpu.memory_space<vmem>>, vector<1x8x32xf32>
    %374 = vector.shape_cast %373 : vector<1x8x32xf32> to vector<8x32xf32>
    %375 = arith.addf %374, %365 : vector<8x32xf32>
    %376 = arith.negf %375 : vector<8x32xf32>
    %377 = math.exp %376 : vector<8x32xf32>
    %cst_155 = arith.constant 1.000000e+00 : f32
    %378 = vector.broadcast %cst_155 : f32 to vector<8x32xf32>
    %379 = arith.addf %378, %377 : vector<8x32xf32>
    %380 = arith.divf %378, %379 : vector<8x32xf32>
    %381 = arith.index_cast %c7_i32 : i32 to index
    %c0_156 = arith.constant 0 : index
    %c0_157 = arith.constant 0 : index
    %382 = vector.load %arg39[%381, %c0_156, %c0_157] : memref<10x8x32xf32, #tpu.memory_space<vmem>>, vector<1x8x32xf32>
    %383 = vector.shape_cast %382 : vector<1x8x32xf32> to vector<8x32xf32>
    %384 = arith.addf %383, %368 : vector<8x32xf32>
    %385 = arith.negf %384 : vector<8x32xf32>
    %386 = math.exp %385 : vector<8x32xf32>
    %cst_158 = arith.constant 1.000000e+00 : f32
    %387 = vector.broadcast %cst_158 : f32 to vector<8x32xf32>
    %388 = arith.addf %387, %386 : vector<8x32xf32>
    %389 = arith.divf %387, %388 : vector<8x32xf32>
    %390 = arith.index_cast %c7_i32 : i32 to index
    %c0_159 = arith.constant 0 : index
    %c0_160 = arith.constant 0 : index
    %391 = vector.load %arg40[%390, %c0_159, %c0_160] : memref<10x8x32xf32, #tpu.memory_space<vmem>>, vector<1x8x32xf32>
    %392 = vector.shape_cast %391 : vector<1x8x32xf32> to vector<8x32xf32>
    %393 = arith.mulf %380, %371 : vector<8x32xf32>
    %394 = arith.addf %392, %393 : vector<8x32xf32>
    %395 = math.tanh %394 : vector<8x32xf32>
    %cst_161 = arith.constant 1.000000e+00 : f32
    %396 = vector.broadcast %cst_161 : f32 to vector<8x32xf32>
    %397 = arith.subf %396, %389 : vector<8x32xf32>
    %398 = arith.mulf %397, %395 : vector<8x32xf32>
    %399 = arith.mulf %389, %357 : vector<8x32xf32>
    %400 = arith.addf %398, %399 : vector<8x32xf32>
    %401 = arith.index_cast %c7_i32 : i32 to index
    %c0_162 = arith.constant 0 : index
    %c0_163 = arith.constant 0 : index
    %402 = vector.load %arg41[%401, %c0_162, %c0_163] : memref<10x8x32xf32, #tpu.memory_space<vmem>>, vector<1x8x32xf32>
    %403 = vector.shape_cast %402 : vector<1x8x32xf32> to vector<8x32xf32>
    %404 = vector.shape_cast %400 : vector<8x32xf32> to vector<1x8x32xf32>
    tpu.vector_store %arg41[%401, %c0_162, %c0_163], %404 {strides = array<i32>} : memref<10x8x32xf32, #tpu.memory_space<vmem>>, vector<1x8x32xf32>,
    %c8_i32 = arith.constant 8 : i32
    %405 = arith.truncf %400 : vector<8x32xf32> to vector<8x32xbf16>
    %cst_164 = arith.constant dense<0.000000e+00> : vector<8x32xf32>
    %406 = tpu.matmul %405, %55, %cst_164 {dimension_numbers = #tpu.dot_dimension_numbers<[1], [0], [0], [1], [0, 0, 1, 1], [], []>} : vector<8x32xbf16>, vector<32x32xbf16>, vector<8x32xf32> -> vector<8x32xf32>
    %407 = vector.broadcast %58 : vector<1x32xf32> to vector<8x32xf32>
    %408 = arith.addf %406, %407 : vector<8x32xf32>
    %cst_165 = arith.constant dense<0.000000e+00> : vector<8x32xf32>
    %409 = tpu.matmul %405, %56, %cst_165 {dimension_numbers = #tpu.dot_dimension_numbers<[1], [0], [0], [1], [0, 0, 1, 1], [], []>} : vector<8x32xbf16>, vector<32x32xbf16>, vector<8x32xf32> -> vector<8x32xf32>
    %410 = vector.broadcast %59 : vector<1x32xf32> to vector<8x32xf32>
    %411 = arith.addf %409, %410 : vector<8x32xf32>
    %cst_166 = arith.constant dense<0.000000e+00> : vector<8x32xf32>
    %412 = tpu.matmul %405, %57, %cst_166 {dimension_numbers = #tpu.dot_dimension_numbers<[1], [0], [0], [1], [0, 0, 1, 1], [], []>} : vector<8x32xbf16>, vector<32x32xbf16>, vector<8x32xf32> -> vector<8x32xf32>
    %413 = vector.broadcast %60 : vector<1x32xf32> to vector<8x32xf32>
    %414 = arith.addf %412, %413 : vector<8x32xf32>
    %415 = arith.index_cast %c8_i32 : i32 to index
    %c0_167 = arith.constant 0 : index
    %c0_168 = arith.constant 0 : index
    %416 = vector.load %arg38[%415, %c0_167, %c0_168] : memref<10x8x32xf32, #tpu.memory_space<vmem>>, vector<1x8x32xf32>
    %417 = vector.shape_cast %416 : vector<1x8x32xf32> to vector<8x32xf32>
    %418 = arith.addf %417, %408 : vector<8x32xf32>
    %419 = arith.negf %418 : vector<8x32xf32>
    %420 = math.exp %419 : vector<8x32xf32>
    %cst_169 = arith.constant 1.000000e+00 : f32
    %421 = vector.broadcast %cst_169 : f32 to vector<8x32xf32>
    %422 = arith.addf %421, %420 : vector<8x32xf32>
    %423 = arith.divf %421, %422 : vector<8x32xf32>
    %424 = arith.index_cast %c8_i32 : i32 to index
    %c0_170 = arith.constant 0 : index
    %c0_171 = arith.constant 0 : index
    %425 = vector.load %arg39[%424, %c0_170, %c0_171] : memref<10x8x32xf32, #tpu.memory_space<vmem>>, vector<1x8x32xf32>
    %426 = vector.shape_cast %425 : vector<1x8x32xf32> to vector<8x32xf32>
    %427 = arith.addf %426, %411 : vector<8x32xf32>
    %428 = arith.negf %427 : vector<8x32xf32>
    %429 = math.exp %428 : vector<8x32xf32>
    %cst_172 = arith.constant 1.000000e+00 : f32
    %430 = vector.broadcast %cst_172 : f32 to vector<8x32xf32>
    %431 = arith.addf %430, %429 : vector<8x32xf32>
    %432 = arith.divf %430, %431 : vector<8x32xf32>
    %433 = arith.index_cast %c8_i32 : i32 to index
    %c0_173 = arith.constant 0 : index
    %c0_174 = arith.constant 0 : index
    %434 = vector.load %arg40[%433, %c0_173, %c0_174] : memref<10x8x32xf32, #tpu.memory_space<vmem>>, vector<1x8x32xf32>
    %435 = vector.shape_cast %434 : vector<1x8x32xf32> to vector<8x32xf32>
    %436 = arith.mulf %423, %414 : vector<8x32xf32>
    %437 = arith.addf %435, %436 : vector<8x32xf32>
    %438 = math.tanh %437 : vector<8x32xf32>
    %cst_175 = arith.constant 1.000000e+00 : f32
    %439 = vector.broadcast %cst_175 : f32 to vector<8x32xf32>
    %440 = arith.subf %439, %432 : vector<8x32xf32>
    %441 = arith.mulf %440, %438 : vector<8x32xf32>
    %442 = arith.mulf %432, %400 : vector<8x32xf32>
    %443 = arith.addf %441, %442 : vector<8x32xf32>
    %444 = arith.index_cast %c8_i32 : i32 to index
    %c0_176 = arith.constant 0 : index
    %c0_177 = arith.constant 0 : index
    %445 = vector.load %arg41[%444, %c0_176, %c0_177] : memref<10x8x32xf32, #tpu.memory_space<vmem>>, vector<1x8x32xf32>
    %446 = vector.shape_cast %445 : vector<1x8x32xf32> to vector<8x32xf32>
    %447 = vector.shape_cast %443 : vector<8x32xf32> to vector<1x8x32xf32>
    tpu.vector_store %arg41[%444, %c0_176, %c0_177], %447 {strides = array<i32>} : memref<10x8x32xf32, #tpu.memory_space<vmem>>, vector<1x8x32xf32>,
    %c9_i32 = arith.constant 9 : i32
    %448 = arith.truncf %443 : vector<8x32xf32> to vector<8x32xbf16>
    %cst_178 = arith.constant dense<0.000000e+00> : vector<8x32xf32>
    %449 = tpu.matmul %448, %55, %cst_178 {dimension_numbers = #tpu.dot_dimension_numbers<[1], [0], [0], [1], [0, 0, 1, 1], [], []>} : vector<8x32xbf16>, vector<32x32xbf16>, vector<8x32xf32> -> vector<8x32xf32>
    %450 = vector.broadcast %58 : vector<1x32xf32> to vector<8x32xf32>
    %451 = arith.addf %449, %450 : vector<8x32xf32>
    %cst_179 = arith.constant dense<0.000000e+00> : vector<8x32xf32>
    %452 = tpu.matmul %448, %56, %cst_179 {dimension_numbers = #tpu.dot_dimension_numbers<[1], [0], [0], [1], [0, 0, 1, 1], [], []>} : vector<8x32xbf16>, vector<32x32xbf16>, vector<8x32xf32> -> vector<8x32xf32>
    %453 = vector.broadcast %59 : vector<1x32xf32> to vector<8x32xf32>
    %454 = arith.addf %452, %453 : vector<8x32xf32>
    %cst_180 = arith.constant dense<0.000000e+00> : vector<8x32xf32>
    %455 = tpu.matmul %448, %57, %cst_180 {dimension_numbers = #tpu.dot_dimension_numbers<[1], [0], [0], [1], [0, 0, 1, 1], [], []>} : vector<8x32xbf16>, vector<32x32xbf16>, vector<8x32xf32> -> vector<8x32xf32>
    %456 = vector.broadcast %60 : vector<1x32xf32> to vector<8x32xf32>
    %457 = arith.addf %455, %456 : vector<8x32xf32>
    %458 = arith.index_cast %c9_i32 : i32 to index
    %c0_181 = arith.constant 0 : index
    %c0_182 = arith.constant 0 : index
    %459 = vector.load %arg38[%458, %c0_181, %c0_182] : memref<10x8x32xf32, #tpu.memory_space<vmem>>, vector<1x8x32xf32>
    %460 = vector.shape_cast %459 : vector<1x8x32xf32> to vector<8x32xf32>
    %461 = arith.addf %460, %451 : vector<8x32xf32>
    %462 = arith.negf %461 : vector<8x32xf32>
    %463 = math.exp %462 : vector<8x32xf32>
    %cst_183 = arith.constant 1.000000e+00 : f32
    %464 = vector.broadcast %cst_183 : f32 to vector<8x32xf32>
    %465 = arith.addf %464, %463 : vector<8x32xf32>
    %466 = arith.divf %464, %465 : vector<8x32xf32>
    %467 = arith.index_cast %c9_i32 : i32 to index
    %c0_184 = arith.constant 0 : index
    %c0_185 = arith.constant 0 : index
    %468 = vector.load %arg39[%467, %c0_184, %c0_185] : memref<10x8x32xf32, #tpu.memory_space<vmem>>, vector<1x8x32xf32>
    %469 = vector.shape_cast %468 : vector<1x8x32xf32> to vector<8x32xf32>
    %470 = arith.addf %469, %454 : vector<8x32xf32>
    %471 = arith.negf %470 : vector<8x32xf32>
    %472 = math.exp %471 : vector<8x32xf32>
    %cst_186 = arith.constant 1.000000e+00 : f32
    %473 = vector.broadcast %cst_186 : f32 to vector<8x32xf32>
    %474 = arith.addf %473, %472 : vector<8x32xf32>
    %475 = arith.divf %473, %474 : vector<8x32xf32>
    %476 = arith.index_cast %c9_i32 : i32 to index
    %c0_187 = arith.constant 0 : index
    %c0_188 = arith.constant 0 : index
    %477 = vector.load %arg40[%476, %c0_187, %c0_188] : memref<10x8x32xf32, #tpu.memory_space<vmem>>, vector<1x8x32xf32>
    %478 = vector.shape_cast %477 : vector<1x8x32xf32> to vector<8x32xf32>
    %479 = arith.mulf %466, %457 : vector<8x32xf32>
    %480 = arith.addf %478, %479 : vector<8x32xf32>
    %481 = math.tanh %480 : vector<8x32xf32>
    %cst_189 = arith.constant 1.000000e+00 : f32
    %482 = vector.broadcast %cst_189 : f32 to vector<8x32xf32>
    %483 = arith.subf %482, %475 : vector<8x32xf32>
    %484 = arith.mulf %483, %481 : vector<8x32xf32>
    %485 = arith.mulf %475, %443 : vector<8x32xf32>
    %486 = arith.addf %484, %485 : vector<8x32xf32>
    %487 = arith.index_cast %c9_i32 : i32 to index
    %c0_190 = arith.constant 0 : index
    %c0_191 = arith.constant 0 : index
    %488 = vector.load %arg41[%487, %c0_190, %c0_191] : memref<10x8x32xf32, #tpu.memory_space<vmem>>, vector<1x8x32xf32>
    %489 = vector.shape_cast %488 : vector<1x8x32xf32> to vector<8x32xf32>
    %490 = vector.shape_cast %486 : vector<8x32xf32> to vector<1x8x32xf32>
    tpu.vector_store %arg41[%487, %c0_190, %c0_191], %490 {strides = array<i32>} : memref<10x8x32xf32, #tpu.memory_space<vmem>>, vector<1x8x32xf32>,
    %c10_i32 = arith.constant 10 : i32
    %c0_192 = arith.constant 0 : index
    %c0_193 = arith.constant 0 : index
    %c0_194 = arith.constant 0 : index
    %491 = vector.load %arg41[%c0_192, %c0_193, %c0_194] : memref<10x8x32xf32, #tpu.memory_space<vmem>>, vector<10x8x32xf32>
    %492 = vector.shape_cast %491 : vector<10x8x32xf32> to vector<80x32xf32>
    %493 = arith.truncf %492 : vector<80x32xf32> to vector<80x32xbf16>
    %c0_195 = arith.constant 0 : index
    %c0_196 = arith.constant 0 : index
    %494 = vector.load %arg21[%c0_195, %c0_196] : memref<32x32xbf16, #tpu.memory_space<vmem>>, vector<32x32xbf16>
    %cst_197 = arith.constant dense<0.000000e+00> : vector<80x32xf32>
    %495 = tpu.matmul %493, %494, %cst_197 {dimension_numbers = #tpu.dot_dimension_numbers<[1], [0], [0], [1], [0, 0, 1, 1], [], []>} : vector<80x32xbf16>, vector<32x32xbf16>, vector<80x32xf32> -> vector<80x32xf32>
    %496 = vector.shape_cast %495 : vector<80x32xf32> to vector<10x8x32xf32>
    %c0_198 = arith.constant 0 : index
    %c0_199 = arith.constant 0 : index
    %497 = vector.load %arg27[%c0_198, %c0_199] : memref<1x32xf32, #tpu.memory_space<vmem>>, vector<1x32xf32>
    %498 = vector.shape_cast %497 : vector<1x32xf32> to vector<1x1x32xf32>
    %499 = vector.broadcast %498 : vector<1x1x32xf32> to vector<10x8x32xf32>
    %500 = arith.addf %496, %499 : vector<10x8x32xf32>
    %c0_200 = arith.constant 0 : index
    %c0_201 = arith.constant 0 : index
    %c0_202 = arith.constant 0 : index
    %501 = vector.load %arg38[%c0_200, %c0_201, %c0_202] : memref<10x8x32xf32, #tpu.memory_space<vmem>>, vector<10x8x32xf32>
    tpu.vector_store %arg38[%c0_200, %c0_201, %c0_202], %500 {strides = array<i32>} : memref<10x8x32xf32, #tpu.memory_space<vmem>>, vector<10x8x32xf32>,
    %c0_203 = arith.constant 0 : index
    %c0_204 = arith.constant 0 : index
    %502 = vector.load %arg22[%c0_203, %c0_204] : memref<32x32xbf16, #tpu.memory_space<vmem>>, vector<32x32xbf16>
    %cst_205 = arith.constant dense<0.000000e+00> : vector<80x32xf32>
    %503 = tpu.matmul %493, %502, %cst_205 {dimension_numbers = #tpu.dot_dimension_numbers<[1], [0], [0], [1], [0, 0, 1, 1], [], []>} : vector<80x32xbf16>, vector<32x32xbf16>, vector<80x32xf32> -> vector<80x32xf32>
    %504 = vector.shape_cast %503 : vector<80x32xf32> to vector<10x8x32xf32>
    %c0_206 = arith.constant 0 : index
    %c0_207 = arith.constant 0 : index
    %505 = vector.load %arg28[%c0_206, %c0_207] : memref<1x32xf32, #tpu.memory_space<vmem>>, vector<1x32xf32>
    %506 = vector.shape_cast %505 : vector<1x32xf32> to vector<1x1x32xf32>
    %507 = vector.broadcast %506 : vector<1x1x32xf32> to vector<10x8x32xf32>
    %508 = arith.addf %504, %507 : vector<10x8x32xf32>
    %c0_208 = arith.constant 0 : index
    %c0_209 = arith.constant 0 : index
    %c0_210 = arith.constant 0 : index
    %509 = vector.load %arg39[%c0_208, %c0_209, %c0_210] : memref<10x8x32xf32, #tpu.memory_space<vmem>>, vector<10x8x32xf32>
    tpu.vector_store %arg39[%c0_208, %c0_209, %c0_210], %508 {strides = array<i32>} : memref<10x8x32xf32, #tpu.memory_space<vmem>>, vector<10x8x32xf32>,
    %c0_211 = arith.constant 0 : index
    %c0_212 = arith.constant 0 : index
    %510 = vector.load %arg23[%c0_211, %c0_212] : memref<32x32xbf16, #tpu.memory_space<vmem>>, vector<32x32xbf16>
    %cst_213 = arith.constant dense<0.000000e+00> : vector<80x32xf32>
    %511 = tpu.matmul %493, %510, %cst_213 {dimension_numbers = #tpu.dot_dimension_numbers<[1], [0], [0], [1], [0, 0, 1, 1], [], []>} : vector<80x32xbf16>, vector<32x32xbf16>, vector<80x32xf32> -> vector<80x32xf32>
    %512 = vector.shape_cast %511 : vector<80x32xf32> to vector<10x8x32xf32>
    %c0_214 = arith.constant 0 : index
    %c0_215 = arith.constant 0 : index
    %513 = vector.load %arg29[%c0_214, %c0_215] : memref<1x32xf32, #tpu.memory_space<vmem>>, vector<1x32xf32>
    %514 = vector.shape_cast %513 : vector<1x32xf32> to vector<1x1x32xf32>
    %515 = vector.broadcast %514 : vector<1x1x32xf32> to vector<10x8x32xf32>
    %516 = arith.addf %512, %515 : vector<10x8x32xf32>
    %c0_216 = arith.constant 0 : index
    %c0_217 = arith.constant 0 : index
    %c0_218 = arith.constant 0 : index
    %517 = vector.load %arg40[%c0_216, %c0_217, %c0_218] : memref<10x8x32xf32, #tpu.memory_space<vmem>>, vector<10x8x32xf32>
    tpu.vector_store %arg40[%c0_216, %c0_217, %c0_218], %516 {strides = array<i32>} : memref<10x8x32xf32, #tpu.memory_space<vmem>>, vector<10x8x32xf32>,
    %c0_219 = arith.constant 0 : index
    %c0_220 = arith.constant 0 : index
    %518 = vector.load %arg24[%c0_219, %c0_220] : memref<32x32xbf16, #tpu.memory_space<vmem>>, vector<32x32xbf16>
    %c0_221 = arith.constant 0 : index
    %c0_222 = arith.constant 0 : index
    %519 = vector.load %arg25[%c0_221, %c0_222] : memref<32x32xbf16, #tpu.memory_space<vmem>>, vector<32x32xbf16>
    %c0_223 = arith.constant 0 : index
    %c0_224 = arith.constant 0 : index
    %520 = vector.load %arg26[%c0_223, %c0_224] : memref<32x32xbf16, #tpu.memory_space<vmem>>, vector<32x32xbf16>
    %c0_225 = arith.constant 0 : index
    %c0_226 = arith.constant 0 : index
    %521 = vector.load %arg30[%c0_225, %c0_226] : memref<1x32xf32, #tpu.memory_space<vmem>>, vector<1x32xf32>
    %c0_227 = arith.constant 0 : index
    %c0_228 = arith.constant 0 : index
    %522 = vector.load %arg31[%c0_227, %c0_228] : memref<1x32xf32, #tpu.memory_space<vmem>>, vector<1x32xf32>
    %c0_229 = arith.constant 0 : index
    %c0_230 = arith.constant 0 : index
    %523 = vector.load %arg32[%c0_229, %c0_230] : memref<1x32xf32, #tpu.memory_space<vmem>>, vector<1x32xf32>
    %c0_i32_231 = arith.constant 0 : i32
    %524 = arith.truncf %7 : vector<8x32xf32> to vector<8x32xbf16>
    %cst_232 = arith.constant dense<0.000000e+00> : vector<8x32xf32>
    %525 = tpu.matmul %524, %518, %cst_232 {dimension_numbers = #tpu.dot_dimension_numbers<[1], [0], [0], [1], [0, 0, 1, 1], [], []>} : vector<8x32xbf16>, vector<32x32xbf16>, vector<8x32xf32> -> vector<8x32xf32>
    %526 = vector.broadcast %521 : vector<1x32xf32> to vector<8x32xf32>
    %527 = arith.addf %525, %526 : vector<8x32xf32>
    %cst_233 = arith.constant dense<0.000000e+00> : vector<8x32xf32>
    %528 = tpu.matmul %524, %519, %cst_233 {dimension_numbers = #tpu.dot_dimension_numbers<[1], [0], [0], [1], [0, 0, 1, 1], [], []>} : vector<8x32xbf16>, vector<32x32xbf16>, vector<8x32xf32> -> vector<8x32xf32>
    %529 = vector.broadcast %522 : vector<1x32xf32> to vector<8x32xf32>
    %530 = arith.addf %528, %529 : vector<8x32xf32>
    %cst_234 = arith.constant dense<0.000000e+00> : vector<8x32xf32>
    %531 = tpu.matmul %524, %520, %cst_234 {dimension_numbers = #tpu.dot_dimension_numbers<[1], [0], [0], [1], [0, 0, 1, 1], [], []>} : vector<8x32xbf16>, vector<32x32xbf16>, vector<8x32xf32> -> vector<8x32xf32>
    %532 = vector.broadcast %523 : vector<1x32xf32> to vector<8x32xf32>
    %533 = arith.addf %531, %532 : vector<8x32xf32>
    %534 = arith.index_cast %c0_i32_231 : i32 to index
    %c0_235 = arith.constant 0 : index
    %c0_236 = arith.constant 0 : index
    %535 = vector.load %arg38[%534, %c0_235, %c0_236] : memref<10x8x32xf32, #tpu.memory_space<vmem>>, vector<1x8x32xf32>
    %536 = vector.shape_cast %535 : vector<1x8x32xf32> to vector<8x32xf32>
    %537 = arith.addf %536, %527 : vector<8x32xf32>
    %538 = arith.negf %537 : vector<8x32xf32>
    %539 = math.exp %538 : vector<8x32xf32>
    %cst_237 = arith.constant 1.000000e+00 : f32
    %540 = vector.broadcast %cst_237 : f32 to vector<8x32xf32>
    %541 = arith.addf %540, %539 : vector<8x32xf32>
    %542 = arith.divf %540, %541 : vector<8x32xf32>
    %543 = arith.index_cast %c0_i32_231 : i32 to index
    %c0_238 = arith.constant 0 : index
    %c0_239 = arith.constant 0 : index
    %544 = vector.load %arg39[%543, %c0_238, %c0_239] : memref<10x8x32xf32, #tpu.memory_space<vmem>>, vector<1x8x32xf32>
    %545 = vector.shape_cast %544 : vector<1x8x32xf32> to vector<8x32xf32>
    %546 = arith.addf %545, %530 : vector<8x32xf32>
    %547 = arith.negf %546 : vector<8x32xf32>
    %548 = math.exp %547 : vector<8x32xf32>
    %cst_240 = arith.constant 1.000000e+00 : f32
    %549 = vector.broadcast %cst_240 : f32 to vector<8x32xf32>
    %550 = arith.addf %549, %548 : vector<8x32xf32>
    %551 = arith.divf %549, %550 : vector<8x32xf32>
    %552 = arith.index_cast %c0_i32_231 : i32 to index
    %c0_241 = arith.constant 0 : index
    %c0_242 = arith.constant 0 : index
    %553 = vector.load %arg40[%552, %c0_241, %c0_242] : memref<10x8x32xf32, #tpu.memory_space<vmem>>, vector<1x8x32xf32>
    %554 = vector.shape_cast %553 : vector<1x8x32xf32> to vector<8x32xf32>
    %555 = arith.mulf %542, %533 : vector<8x32xf32>
    %556 = arith.addf %554, %555 : vector<8x32xf32>
    %557 = math.tanh %556 : vector<8x32xf32>
    %cst_243 = arith.constant 1.000000e+00 : f32
    %558 = vector.broadcast %cst_243 : f32 to vector<8x32xf32>
    %559 = arith.subf %558, %551 : vector<8x32xf32>
    %560 = arith.mulf %559, %557 : vector<8x32xf32>
    %561 = arith.mulf %551, %7 : vector<8x32xf32>
    %562 = arith.addf %560, %561 : vector<8x32xf32>
    %563 = arith.index_cast %c0_i32_231 : i32 to index
    %c0_244 = arith.constant 0 : index
    %c0_245 = arith.constant 0 : index
    %564 = vector.load %arg42[%563, %c0_244, %c0_245] : memref<10x8x32xf32, #tpu.memory_space<vmem>>, vector<1x8x32xf32>
    %565 = vector.shape_cast %564 : vector<1x8x32xf32> to vector<8x32xf32>
    %566 = vector.shape_cast %562 : vector<8x32xf32> to vector<1x8x32xf32>
    tpu.vector_store %arg42[%563, %c0_244, %c0_245], %566 {strides = array<i32>} : memref<10x8x32xf32, #tpu.memory_space<vmem>>, vector<1x8x32xf32>,
    %c1_i32_246 = arith.constant 1 : i32
    %567 = arith.truncf %562 : vector<8x32xf32> to vector<8x32xbf16>
    %cst_247 = arith.constant dense<0.000000e+00> : vector<8x32xf32>
    %568 = tpu.matmul %567, %518, %cst_247 {dimension_numbers = #tpu.dot_dimension_numbers<[1], [0], [0], [1], [0, 0, 1, 1], [], []>} : vector<8x32xbf16>, vector<32x32xbf16>, vector<8x32xf32> -> vector<8x32xf32>
    %569 = vector.broadcast %521 : vector<1x32xf32> to vector<8x32xf32>
    %570 = arith.addf %568, %569 : vector<8x32xf32>
    %cst_248 = arith.constant dense<0.000000e+00> : vector<8x32xf32>
    %571 = tpu.matmul %567, %519, %cst_248 {dimension_numbers = #tpu.dot_dimension_numbers<[1], [0], [0], [1], [0, 0, 1, 1], [], []>} : vector<8x32xbf16>, vector<32x32xbf16>, vector<8x32xf32> -> vector<8x32xf32>
    %572 = vector.broadcast %522 : vector<1x32xf32> to vector<8x32xf32>
    %573 = arith.addf %571, %572 : vector<8x32xf32>
    %cst_249 = arith.constant dense<0.000000e+00> : vector<8x32xf32>
    %574 = tpu.matmul %567, %520, %cst_249 {dimension_numbers = #tpu.dot_dimension_numbers<[1], [0], [0], [1], [0, 0, 1, 1], [], []>} : vector<8x32xbf16>, vector<32x32xbf16>, vector<8x32xf32> -> vector<8x32xf32>
    %575 = vector.broadcast %523 : vector<1x32xf32> to vector<8x32xf32>
    %576 = arith.addf %574, %575 : vector<8x32xf32>
    %577 = arith.index_cast %c1_i32_246 : i32 to index
    %c0_250 = arith.constant 0 : index
    %c0_251 = arith.constant 0 : index
    %578 = vector.load %arg38[%577, %c0_250, %c0_251] : memref<10x8x32xf32, #tpu.memory_space<vmem>>, vector<1x8x32xf32>
    %579 = vector.shape_cast %578 : vector<1x8x32xf32> to vector<8x32xf32>
    %580 = arith.addf %579, %570 : vector<8x32xf32>
    %581 = arith.negf %580 : vector<8x32xf32>
    %582 = math.exp %581 : vector<8x32xf32>
    %cst_252 = arith.constant 1.000000e+00 : f32
    %583 = vector.broadcast %cst_252 : f32 to vector<8x32xf32>
    %584 = arith.addf %583, %582 : vector<8x32xf32>
    %585 = arith.divf %583, %584 : vector<8x32xf32>
    %586 = arith.index_cast %c1_i32_246 : i32 to index
    %c0_253 = arith.constant 0 : index
    %c0_254 = arith.constant 0 : index
    %587 = vector.load %arg39[%586, %c0_253, %c0_254] : memref<10x8x32xf32, #tpu.memory_space<vmem>>, vector<1x8x32xf32>
    %588 = vector.shape_cast %587 : vector<1x8x32xf32> to vector<8x32xf32>
    %589 = arith.addf %588, %573 : vector<8x32xf32>
    %590 = arith.negf %589 : vector<8x32xf32>
    %591 = math.exp %590 : vector<8x32xf32>
    %cst_255 = arith.constant 1.000000e+00 : f32
    %592 = vector.broadcast %cst_255 : f32 to vector<8x32xf32>
    %593 = arith.addf %592, %591 : vector<8x32xf32>
    %594 = arith.divf %592, %593 : vector<8x32xf32>
    %595 = arith.index_cast %c1_i32_246 : i32 to index
    %c0_256 = arith.constant 0 : index
    %c0_257 = arith.constant 0 : index
    %596 = vector.load %arg40[%595, %c0_256, %c0_257] : memref<10x8x32xf32, #tpu.memory_space<vmem>>, vector<1x8x32xf32>
    %597 = vector.shape_cast %596 : vector<1x8x32xf32> to vector<8x32xf32>
    %598 = arith.mulf %585, %576 : vector<8x32xf32>
    %599 = arith.addf %597, %598 : vector<8x32xf32>
    %600 = math.tanh %599 : vector<8x32xf32>
    %cst_258 = arith.constant 1.000000e+00 : f32
    %601 = vector.broadcast %cst_258 : f32 to vector<8x32xf32>
    %602 = arith.subf %601, %594 : vector<8x32xf32>
    %603 = arith.mulf %602, %600 : vector<8x32xf32>
    %604 = arith.mulf %594, %562 : vector<8x32xf32>
    %605 = arith.addf %603, %604 : vector<8x32xf32>
    %606 = arith.index_cast %c1_i32_246 : i32 to index
    %c0_259 = arith.constant 0 : index
    %c0_260 = arith.constant 0 : index
    %607 = vector.load %arg42[%606, %c0_259, %c0_260] : memref<10x8x32xf32, #tpu.memory_space<vmem>>, vector<1x8x32xf32>
    %608 = vector.shape_cast %607 : vector<1x8x32xf32> to vector<8x32xf32>
    %609 = vector.shape_cast %605 : vector<8x32xf32> to vector<1x8x32xf32>
    tpu.vector_store %arg42[%606, %c0_259, %c0_260], %609 {strides = array<i32>} : memref<10x8x32xf32, #tpu.memory_space<vmem>>, vector<1x8x32xf32>,
    %c2_i32_261 = arith.constant 2 : i32
    %610 = arith.truncf %605 : vector<8x32xf32> to vector<8x32xbf16>
    %cst_262 = arith.constant dense<0.000000e+00> : vector<8x32xf32>
    %611 = tpu.matmul %610, %518, %cst_262 {dimension_numbers = #tpu.dot_dimension_numbers<[1], [0], [0], [1], [0, 0, 1, 1], [], []>} : vector<8x32xbf16>, vector<32x32xbf16>, vector<8x32xf32> -> vector<8x32xf32>
    %612 = vector.broadcast %521 : vector<1x32xf32> to vector<8x32xf32>
    %613 = arith.addf %611, %612 : vector<8x32xf32>
    %cst_263 = arith.constant dense<0.000000e+00> : vector<8x32xf32>
    %614 = tpu.matmul %610, %519, %cst_263 {dimension_numbers = #tpu.dot_dimension_numbers<[1], [0], [0], [1], [0, 0, 1, 1], [], []>} : vector<8x32xbf16>, vector<32x32xbf16>, vector<8x32xf32> -> vector<8x32xf32>
    %615 = vector.broadcast %522 : vector<1x32xf32> to vector<8x32xf32>
    %616 = arith.addf %614, %615 : vector<8x32xf32>
    %cst_264 = arith.constant dense<0.000000e+00> : vector<8x32xf32>
    %617 = tpu.matmul %610, %520, %cst_264 {dimension_numbers = #tpu.dot_dimension_numbers<[1], [0], [0], [1], [0, 0, 1, 1], [], []>} : vector<8x32xbf16>, vector<32x32xbf16>, vector<8x32xf32> -> vector<8x32xf32>
    %618 = vector.broadcast %523 : vector<1x32xf32> to vector<8x32xf32>
    %619 = arith.addf %617, %618 : vector<8x32xf32>
    %620 = arith.index_cast %c2_i32_261 : i32 to index
    %c0_265 = arith.constant 0 : index
    %c0_266 = arith.constant 0 : index
    %621 = vector.load %arg38[%620, %c0_265, %c0_266] : memref<10x8x32xf32, #tpu.memory_space<vmem>>, vector<1x8x32xf32>
    %622 = vector.shape_cast %621 : vector<1x8x32xf32> to vector<8x32xf32>
    %623 = arith.addf %622, %613 : vector<8x32xf32>
    %624 = arith.negf %623 : vector<8x32xf32>
    %625 = math.exp %624 : vector<8x32xf32>
    %cst_267 = arith.constant 1.000000e+00 : f32
    %626 = vector.broadcast %cst_267 : f32 to vector<8x32xf32>
    %627 = arith.addf %626, %625 : vector<8x32xf32>
    %628 = arith.divf %626, %627 : vector<8x32xf32>
    %629 = arith.index_cast %c2_i32_261 : i32 to index
    %c0_268 = arith.constant 0 : index
    %c0_269 = arith.constant 0 : index
    %630 = vector.load %arg39[%629, %c0_268, %c0_269] : memref<10x8x32xf32, #tpu.memory_space<vmem>>, vector<1x8x32xf32>
    %631 = vector.shape_cast %630 : vector<1x8x32xf32> to vector<8x32xf32>
    %632 = arith.addf %631, %616 : vector<8x32xf32>
    %633 = arith.negf %632 : vector<8x32xf32>
    %634 = math.exp %633 : vector<8x32xf32>
    %cst_270 = arith.constant 1.000000e+00 : f32
    %635 = vector.broadcast %cst_270 : f32 to vector<8x32xf32>
    %636 = arith.addf %635, %634 : vector<8x32xf32>
    %637 = arith.divf %635, %636 : vector<8x32xf32>
    %638 = arith.index_cast %c2_i32_261 : i32 to index
    %c0_271 = arith.constant 0 : index
    %c0_272 = arith.constant 0 : index
    %639 = vector.load %arg40[%638, %c0_271, %c0_272] : memref<10x8x32xf32, #tpu.memory_space<vmem>>, vector<1x8x32xf32>
    %640 = vector.shape_cast %639 : vector<1x8x32xf32> to vector<8x32xf32>
    %641 = arith.mulf %628, %619 : vector<8x32xf32>
    %642 = arith.addf %640, %641 : vector<8x32xf32>
    %643 = math.tanh %642 : vector<8x32xf32>
    %cst_273 = arith.constant 1.000000e+00 : f32
    %644 = vector.broadcast %cst_273 : f32 to vector<8x32xf32>
    %645 = arith.subf %644, %637 : vector<8x32xf32>
    %646 = arith.mulf %645, %643 : vector<8x32xf32>
    %647 = arith.mulf %637, %605 : vector<8x32xf32>
    %648 = arith.addf %646, %647 : vector<8x32xf32>
    %649 = arith.index_cast %c2_i32_261 : i32 to index
    %c0_274 = arith.constant 0 : index
    %c0_275 = arith.constant 0 : index
    %650 = vector.load %arg42[%649, %c0_274, %c0_275] : memref<10x8x32xf32, #tpu.memory_space<vmem>>, vector<1x8x32xf32>
    %651 = vector.shape_cast %650 : vector<1x8x32xf32> to vector<8x32xf32>
    %652 = vector.shape_cast %648 : vector<8x32xf32> to vector<1x8x32xf32>
    tpu.vector_store %arg42[%649, %c0_274, %c0_275], %652 {strides = array<i32>} : memref<10x8x32xf32, #tpu.memory_space<vmem>>, vector<1x8x32xf32>,
    %c3_i32_276 = arith.constant 3 : i32
    %653 = arith.truncf %648 : vector<8x32xf32> to vector<8x32xbf16>
    %cst_277 = arith.constant dense<0.000000e+00> : vector<8x32xf32>
    %654 = tpu.matmul %653, %518, %cst_277 {dimension_numbers = #tpu.dot_dimension_numbers<[1], [0], [0], [1], [0, 0, 1, 1], [], []>} : vector<8x32xbf16>, vector<32x32xbf16>, vector<8x32xf32> -> vector<8x32xf32>
    %655 = vector.broadcast %521 : vector<1x32xf32> to vector<8x32xf32>
    %656 = arith.addf %654, %655 : vector<8x32xf32>
    %cst_278 = arith.constant dense<0.000000e+00> : vector<8x32xf32>
    %657 = tpu.matmul %653, %519, %cst_278 {dimension_numbers = #tpu.dot_dimension_numbers<[1], [0], [0], [1], [0, 0, 1, 1], [], []>} : vector<8x32xbf16>, vector<32x32xbf16>, vector<8x32xf32> -> vector<8x32xf32>
    %658 = vector.broadcast %522 : vector<1x32xf32> to vector<8x32xf32>
    %659 = arith.addf %657, %658 : vector<8x32xf32>
    %cst_279 = arith.constant dense<0.000000e+00> : vector<8x32xf32>
    %660 = tpu.matmul %653, %520, %cst_279 {dimension_numbers = #tpu.dot_dimension_numbers<[1], [0], [0], [1], [0, 0, 1, 1], [], []>} : vector<8x32xbf16>, vector<32x32xbf16>, vector<8x32xf32> -> vector<8x32xf32>
    %661 = vector.broadcast %523 : vector<1x32xf32> to vector<8x32xf32>
    %662 = arith.addf %660, %661 : vector<8x32xf32>
    %663 = arith.index_cast %c3_i32_276 : i32 to index
    %c0_280 = arith.constant 0 : index
    %c0_281 = arith.constant 0 : index
    %664 = vector.load %arg38[%663, %c0_280, %c0_281] : memref<10x8x32xf32, #tpu.memory_space<vmem>>, vector<1x8x32xf32>
    %665 = vector.shape_cast %664 : vector<1x8x32xf32> to vector<8x32xf32>
    %666 = arith.addf %665, %656 : vector<8x32xf32>
    %667 = arith.negf %666 : vector<8x32xf32>
    %668 = math.exp %667 : vector<8x32xf32>
    %cst_282 = arith.constant 1.000000e+00 : f32
    %669 = vector.broadcast %cst_282 : f32 to vector<8x32xf32>
    %670 = arith.addf %669, %668 : vector<8x32xf32>
    %671 = arith.divf %669, %670 : vector<8x32xf32>
    %672 = arith.index_cast %c3_i32_276 : i32 to index
    %c0_283 = arith.constant 0 : index
    %c0_284 = arith.constant 0 : index
    %673 = vector.load %arg39[%672, %c0_283, %c0_284] : memref<10x8x32xf32, #tpu.memory_space<vmem>>, vector<1x8x32xf32>
    %674 = vector.shape_cast %673 : vector<1x8x32xf32> to vector<8x32xf32>
    %675 = arith.addf %674, %659 : vector<8x32xf32>
    %676 = arith.negf %675 : vector<8x32xf32>
    %677 = math.exp %676 : vector<8x32xf32>
    %cst_285 = arith.constant 1.000000e+00 : f32
    %678 = vector.broadcast %cst_285 : f32 to vector<8x32xf32>
    %679 = arith.addf %678, %677 : vector<8x32xf32>
    %680 = arith.divf %678, %679 : vector<8x32xf32>
    %681 = arith.index_cast %c3_i32_276 : i32 to index
    %c0_286 = arith.constant 0 : index
    %c0_287 = arith.constant 0 : index
    %682 = vector.load %arg40[%681, %c0_286, %c0_287] : memref<10x8x32xf32, #tpu.memory_space<vmem>>, vector<1x8x32xf32>
    %683 = vector.shape_cast %682 : vector<1x8x32xf32> to vector<8x32xf32>
    %684 = arith.mulf %671, %662 : vector<8x32xf32>
    %685 = arith.addf %683, %684 : vector<8x32xf32>
    %686 = math.tanh %685 : vector<8x32xf32>
    %cst_288 = arith.constant 1.000000e+00 : f32
    %687 = vector.broadcast %cst_288 : f32 to vector<8x32xf32>
    %688 = arith.subf %687, %680 : vector<8x32xf32>
    %689 = arith.mulf %688, %686 : vector<8x32xf32>
    %690 = arith.mulf %680, %648 : vector<8x32xf32>
    %691 = arith.addf %689, %690 : vector<8x32xf32>
    %692 = arith.index_cast %c3_i32_276 : i32 to index
    %c0_289 = arith.constant 0 : index
    %c0_290 = arith.constant 0 : index
    %693 = vector.load %arg42[%692, %c0_289, %c0_290] : memref<10x8x32xf32, #tpu.memory_space<vmem>>, vector<1x8x32xf32>
    %694 = vector.shape_cast %693 : vector<1x8x32xf32> to vector<8x32xf32>
    %695 = vector.shape_cast %691 : vector<8x32xf32> to vector<1x8x32xf32>
    tpu.vector_store %arg42[%692, %c0_289, %c0_290], %695 {strides = array<i32>} : memref<10x8x32xf32, #tpu.memory_space<vmem>>, vector<1x8x32xf32>,
    %c4_i32_291 = arith.constant 4 : i32
    %696 = arith.truncf %691 : vector<8x32xf32> to vector<8x32xbf16>
    %cst_292 = arith.constant dense<0.000000e+00> : vector<8x32xf32>
    %697 = tpu.matmul %696, %518, %cst_292 {dimension_numbers = #tpu.dot_dimension_numbers<[1], [0], [0], [1], [0, 0, 1, 1], [], []>} : vector<8x32xbf16>, vector<32x32xbf16>, vector<8x32xf32> -> vector<8x32xf32>
    %698 = vector.broadcast %521 : vector<1x32xf32> to vector<8x32xf32>
    %699 = arith.addf %697, %698 : vector<8x32xf32>
    %cst_293 = arith.constant dense<0.000000e+00> : vector<8x32xf32>
    %700 = tpu.matmul %696, %519, %cst_293 {dimension_numbers = #tpu.dot_dimension_numbers<[1], [0], [0], [1], [0, 0, 1, 1], [], []>} : vector<8x32xbf16>, vector<32x32xbf16>, vector<8x32xf32> -> vector<8x32xf32>
    %701 = vector.broadcast %522 : vector<1x32xf32> to vector<8x32xf32>
    %702 = arith.addf %700, %701 : vector<8x32xf32>
    %cst_294 = arith.constant dense<0.000000e+00> : vector<8x32xf32>
    %703 = tpu.matmul %696, %520, %cst_294 {dimension_numbers = #tpu.dot_dimension_numbers<[1], [0], [0], [1], [0, 0, 1, 1], [], []>} : vector<8x32xbf16>, vector<32x32xbf16>, vector<8x32xf32> -> vector<8x32xf32>
    %704 = vector.broadcast %523 : vector<1x32xf32> to vector<8x32xf32>
    %705 = arith.addf %703, %704 : vector<8x32xf32>
    %706 = arith.index_cast %c4_i32_291 : i32 to index
    %c0_295 = arith.constant 0 : index
    %c0_296 = arith.constant 0 : index
    %707 = vector.load %arg38[%706, %c0_295, %c0_296] : memref<10x8x32xf32, #tpu.memory_space<vmem>>, vector<1x8x32xf32>
    %708 = vector.shape_cast %707 : vector<1x8x32xf32> to vector<8x32xf32>
    %709 = arith.addf %708, %699 : vector<8x32xf32>
    %710 = arith.negf %709 : vector<8x32xf32>
    %711 = math.exp %710 : vector<8x32xf32>
    %cst_297 = arith.constant 1.000000e+00 : f32
    %712 = vector.broadcast %cst_297 : f32 to vector<8x32xf32>
    %713 = arith.addf %712, %711 : vector<8x32xf32>
    %714 = arith.divf %712, %713 : vector<8x32xf32>
    %715 = arith.index_cast %c4_i32_291 : i32 to index
    %c0_298 = arith.constant 0 : index
    %c0_299 = arith.constant 0 : index
    %716 = vector.load %arg39[%715, %c0_298, %c0_299] : memref<10x8x32xf32, #tpu.memory_space<vmem>>, vector<1x8x32xf32>
    %717 = vector.shape_cast %716 : vector<1x8x32xf32> to vector<8x32xf32>
    %718 = arith.addf %717, %702 : vector<8x32xf32>
    %719 = arith.negf %718 : vector<8x32xf32>
    %720 = math.exp %719 : vector<8x32xf32>
    %cst_300 = arith.constant 1.000000e+00 : f32
    %721 = vector.broadcast %cst_300 : f32 to vector<8x32xf32>
    %722 = arith.addf %721, %720 : vector<8x32xf32>
    %723 = arith.divf %721, %722 : vector<8x32xf32>
    %724 = arith.index_cast %c4_i32_291 : i32 to index
    %c0_301 = arith.constant 0 : index
    %c0_302 = arith.constant 0 : index
    %725 = vector.load %arg40[%724, %c0_301, %c0_302] : memref<10x8x32xf32, #tpu.memory_space<vmem>>, vector<1x8x32xf32>
    %726 = vector.shape_cast %725 : vector<1x8x32xf32> to vector<8x32xf32>
    %727 = arith.mulf %714, %705 : vector<8x32xf32>
    %728 = arith.addf %726, %727 : vector<8x32xf32>
    %729 = math.tanh %728 : vector<8x32xf32>
    %cst_303 = arith.constant 1.000000e+00 : f32
    %730 = vector.broadcast %cst_303 : f32 to vector<8x32xf32>
    %731 = arith.subf %730, %723 : vector<8x32xf32>
    %732 = arith.mulf %731, %729 : vector<8x32xf32>
    %733 = arith.mulf %723, %691 : vector<8x32xf32>
    %734 = arith.addf %732, %733 : vector<8x32xf32>
    %735 = arith.index_cast %c4_i32_291 : i32 to index
    %c0_304 = arith.constant 0 : index
    %c0_305 = arith.constant 0 : index
    %736 = vector.load %arg42[%735, %c0_304, %c0_305] : memref<10x8x32xf32, #tpu.memory_space<vmem>>, vector<1x8x32xf32>
    %737 = vector.shape_cast %736 : vector<1x8x32xf32> to vector<8x32xf32>
    %738 = vector.shape_cast %734 : vector<8x32xf32> to vector<1x8x32xf32>
    tpu.vector_store %arg42[%735, %c0_304, %c0_305], %738 {strides = array<i32>} : memref<10x8x32xf32, #tpu.memory_space<vmem>>, vector<1x8x32xf32>,
    %c5_i32_306 = arith.constant 5 : i32
    %739 = arith.truncf %734 : vector<8x32xf32> to vector<8x32xbf16>
    %cst_307 = arith.constant dense<0.000000e+00> : vector<8x32xf32>
    %740 = tpu.matmul %739, %518, %cst_307 {dimension_numbers = #tpu.dot_dimension_numbers<[1], [0], [0], [1], [0, 0, 1, 1], [], []>} : vector<8x32xbf16>, vector<32x32xbf16>, vector<8x32xf32> -> vector<8x32xf32>
    %741 = vector.broadcast %521 : vector<1x32xf32> to vector<8x32xf32>
    %742 = arith.addf %740, %741 : vector<8x32xf32>
    %cst_308 = arith.constant dense<0.000000e+00> : vector<8x32xf32>
    %743 = tpu.matmul %739, %519, %cst_308 {dimension_numbers = #tpu.dot_dimension_numbers<[1], [0], [0], [1], [0, 0, 1, 1], [], []>} : vector<8x32xbf16>, vector<32x32xbf16>, vector<8x32xf32> -> vector<8x32xf32>
    %744 = vector.broadcast %522 : vector<1x32xf32> to vector<8x32xf32>
    %745 = arith.addf %743, %744 : vector<8x32xf32>
    %cst_309 = arith.constant dense<0.000000e+00> : vector<8x32xf32>
    %746 = tpu.matmul %739, %520, %cst_309 {dimension_numbers = #tpu.dot_dimension_numbers<[1], [0], [0], [1], [0, 0, 1, 1], [], []>} : vector<8x32xbf16>, vector<32x32xbf16>, vector<8x32xf32> -> vector<8x32xf32>
    %747 = vector.broadcast %523 : vector<1x32xf32> to vector<8x32xf32>
    %748 = arith.addf %746, %747 : vector<8x32xf32>
    %749 = arith.index_cast %c5_i32_306 : i32 to index
    %c0_310 = arith.constant 0 : index
    %c0_311 = arith.constant 0 : index
    %750 = vector.load %arg38[%749, %c0_310, %c0_311] : memref<10x8x32xf32, #tpu.memory_space<vmem>>, vector<1x8x32xf32>
    %751 = vector.shape_cast %750 : vector<1x8x32xf32> to vector<8x32xf32>
    %752 = arith.addf %751, %742 : vector<8x32xf32>
    %753 = arith.negf %752 : vector<8x32xf32>
    %754 = math.exp %753 : vector<8x32xf32>
    %cst_312 = arith.constant 1.000000e+00 : f32
    %755 = vector.broadcast %cst_312 : f32 to vector<8x32xf32>
    %756 = arith.addf %755, %754 : vector<8x32xf32>
    %757 = arith.divf %755, %756 : vector<8x32xf32>
    %758 = arith.index_cast %c5_i32_306 : i32 to index
    %c0_313 = arith.constant 0 : index
    %c0_314 = arith.constant 0 : index
    %759 = vector.load %arg39[%758, %c0_313, %c0_314] : memref<10x8x32xf32, #tpu.memory_space<vmem>>, vector<1x8x32xf32>
    %760 = vector.shape_cast %759 : vector<1x8x32xf32> to vector<8x32xf32>
    %761 = arith.addf %760, %745 : vector<8x32xf32>
    %762 = arith.negf %761 : vector<8x32xf32>
    %763 = math.exp %762 : vector<8x32xf32>
    %cst_315 = arith.constant 1.000000e+00 : f32
    %764 = vector.broadcast %cst_315 : f32 to vector<8x32xf32>
    %765 = arith.addf %764, %763 : vector<8x32xf32>
    %766 = arith.divf %764, %765 : vector<8x32xf32>
    %767 = arith.index_cast %c5_i32_306 : i32 to index
    %c0_316 = arith.constant 0 : index
    %c0_317 = arith.constant 0 : index
    %768 = vector.load %arg40[%767, %c0_316, %c0_317] : memref<10x8x32xf32, #tpu.memory_space<vmem>>, vector<1x8x32xf32>
    %769 = vector.shape_cast %768 : vector<1x8x32xf32> to vector<8x32xf32>
    %770 = arith.mulf %757, %748 : vector<8x32xf32>
    %771 = arith.addf %769, %770 : vector<8x32xf32>
    %772 = math.tanh %771 : vector<8x32xf32>
    %cst_318 = arith.constant 1.000000e+00 : f32
    %773 = vector.broadcast %cst_318 : f32 to vector<8x32xf32>
    %774 = arith.subf %773, %766 : vector<8x32xf32>
    %775 = arith.mulf %774, %772 : vector<8x32xf32>
    %776 = arith.mulf %766, %734 : vector<8x32xf32>
    %777 = arith.addf %775, %776 : vector<8x32xf32>
    %778 = arith.index_cast %c5_i32_306 : i32 to index
    %c0_319 = arith.constant 0 : index
    %c0_320 = arith.constant 0 : index
    %779 = vector.load %arg42[%778, %c0_319, %c0_320] : memref<10x8x32xf32, #tpu.memory_space<vmem>>, vector<1x8x32xf32>
    %780 = vector.shape_cast %779 : vector<1x8x32xf32> to vector<8x32xf32>
    %781 = vector.shape_cast %777 : vector<8x32xf32> to vector<1x8x32xf32>
    tpu.vector_store %arg42[%778, %c0_319, %c0_320], %781 {strides = array<i32>} : memref<10x8x32xf32, #tpu.memory_space<vmem>>, vector<1x8x32xf32>,
    %c6_i32_321 = arith.constant 6 : i32
    %782 = arith.truncf %777 : vector<8x32xf32> to vector<8x32xbf16>
    %cst_322 = arith.constant dense<0.000000e+00> : vector<8x32xf32>
    %783 = tpu.matmul %782, %518, %cst_322 {dimension_numbers = #tpu.dot_dimension_numbers<[1], [0], [0], [1], [0, 0, 1, 1], [], []>} : vector<8x32xbf16>, vector<32x32xbf16>, vector<8x32xf32> -> vector<8x32xf32>
    %784 = vector.broadcast %521 : vector<1x32xf32> to vector<8x32xf32>
    %785 = arith.addf %783, %784 : vector<8x32xf32>
    %cst_323 = arith.constant dense<0.000000e+00> : vector<8x32xf32>
    %786 = tpu.matmul %782, %519, %cst_323 {dimension_numbers = #tpu.dot_dimension_numbers<[1], [0], [0], [1], [0, 0, 1, 1], [], []>} : vector<8x32xbf16>, vector<32x32xbf16>, vector<8x32xf32> -> vector<8x32xf32>
    %787 = vector.broadcast %522 : vector<1x32xf32> to vector<8x32xf32>
    %788 = arith.addf %786, %787 : vector<8x32xf32>
    %cst_324 = arith.constant dense<0.000000e+00> : vector<8x32xf32>
    %789 = tpu.matmul %782, %520, %cst_324 {dimension_numbers = #tpu.dot_dimension_numbers<[1], [0], [0], [1], [0, 0, 1, 1], [], []>} : vector<8x32xbf16>, vector<32x32xbf16>, vector<8x32xf32> -> vector<8x32xf32>
    %790 = vector.broadcast %523 : vector<1x32xf32> to vector<8x32xf32>
    %791 = arith.addf %789, %790 : vector<8x32xf32>
    %792 = arith.index_cast %c6_i32_321 : i32 to index
    %c0_325 = arith.constant 0 : index
    %c0_326 = arith.constant 0 : index
    %793 = vector.load %arg38[%792, %c0_325, %c0_326] : memref<10x8x32xf32, #tpu.memory_space<vmem>>, vector<1x8x32xf32>
    %794 = vector.shape_cast %793 : vector<1x8x32xf32> to vector<8x32xf32>
    %795 = arith.addf %794, %785 : vector<8x32xf32>
    %796 = arith.negf %795 : vector<8x32xf32>
    %797 = math.exp %796 : vector<8x32xf32>
    %cst_327 = arith.constant 1.000000e+00 : f32
    %798 = vector.broadcast %cst_327 : f32 to vector<8x32xf32>
    %799 = arith.addf %798, %797 : vector<8x32xf32>
    %800 = arith.divf %798, %799 : vector<8x32xf32>
    %801 = arith.index_cast %c6_i32_321 : i32 to index
    %c0_328 = arith.constant 0 : index
    %c0_329 = arith.constant 0 : index
    %802 = vector.load %arg39[%801, %c0_328, %c0_329] : memref<10x8x32xf32, #tpu.memory_space<vmem>>, vector<1x8x32xf32>
    %803 = vector.shape_cast %802 : vector<1x8x32xf32> to vector<8x32xf32>
    %804 = arith.addf %803, %788 : vector<8x32xf32>
    %805 = arith.negf %804 : vector<8x32xf32>
    %806 = math.exp %805 : vector<8x32xf32>
    %cst_330 = arith.constant 1.000000e+00 : f32
    %807 = vector.broadcast %cst_330 : f32 to vector<8x32xf32>
    %808 = arith.addf %807, %806 : vector<8x32xf32>
    %809 = arith.divf %807, %808 : vector<8x32xf32>
    %810 = arith.index_cast %c6_i32_321 : i32 to index
    %c0_331 = arith.constant 0 : index
    %c0_332 = arith.constant 0 : index
    %811 = vector.load %arg40[%810, %c0_331, %c0_332] : memref<10x8x32xf32, #tpu.memory_space<vmem>>, vector<1x8x32xf32>
    %812 = vector.shape_cast %811 : vector<1x8x32xf32> to vector<8x32xf32>
    %813 = arith.mulf %800, %791 : vector<8x32xf32>
    %814 = arith.addf %812, %813 : vector<8x32xf32>
    %815 = math.tanh %814 : vector<8x32xf32>
    %cst_333 = arith.constant 1.000000e+00 : f32
    %816 = vector.broadcast %cst_333 : f32 to vector<8x32xf32>
    %817 = arith.subf %816, %809 : vector<8x32xf32>
    %818 = arith.mulf %817, %815 : vector<8x32xf32>
    %819 = arith.mulf %809, %777 : vector<8x32xf32>
    %820 = arith.addf %818, %819 : vector<8x32xf32>
    %821 = arith.index_cast %c6_i32_321 : i32 to index
    %c0_334 = arith.constant 0 : index
    %c0_335 = arith.constant 0 : index
    %822 = vector.load %arg42[%821, %c0_334, %c0_335] : memref<10x8x32xf32, #tpu.memory_space<vmem>>, vector<1x8x32xf32>
    %823 = vector.shape_cast %822 : vector<1x8x32xf32> to vector<8x32xf32>
    %824 = vector.shape_cast %820 : vector<8x32xf32> to vector<1x8x32xf32>
    tpu.vector_store %arg42[%821, %c0_334, %c0_335], %824 {strides = array<i32>} : memref<10x8x32xf32, #tpu.memory_space<vmem>>, vector<1x8x32xf32>,
    %c7_i32_336 = arith.constant 7 : i32
    %825 = arith.truncf %820 : vector<8x32xf32> to vector<8x32xbf16>
    %cst_337 = arith.constant dense<0.000000e+00> : vector<8x32xf32>
    %826 = tpu.matmul %825, %518, %cst_337 {dimension_numbers = #tpu.dot_dimension_numbers<[1], [0], [0], [1], [0, 0, 1, 1], [], []>} : vector<8x32xbf16>, vector<32x32xbf16>, vector<8x32xf32> -> vector<8x32xf32>
    %827 = vector.broadcast %521 : vector<1x32xf32> to vector<8x32xf32>
    %828 = arith.addf %826, %827 : vector<8x32xf32>
    %cst_338 = arith.constant dense<0.000000e+00> : vector<8x32xf32>
    %829 = tpu.matmul %825, %519, %cst_338 {dimension_numbers = #tpu.dot_dimension_numbers<[1], [0], [0], [1], [0, 0, 1, 1], [], []>} : vector<8x32xbf16>, vector<32x32xbf16>, vector<8x32xf32> -> vector<8x32xf32>
    %830 = vector.broadcast %522 : vector<1x32xf32> to vector<8x32xf32>
    %831 = arith.addf %829, %830 : vector<8x32xf32>
    %cst_339 = arith.constant dense<0.000000e+00> : vector<8x32xf32>
    %832 = tpu.matmul %825, %520, %cst_339 {dimension_numbers = #tpu.dot_dimension_numbers<[1], [0], [0], [1], [0, 0, 1, 1], [], []>} : vector<8x32xbf16>, vector<32x32xbf16>, vector<8x32xf32> -> vector<8x32xf32>
    %833 = vector.broadcast %523 : vector<1x32xf32> to vector<8x32xf32>
    %834 = arith.addf %832, %833 : vector<8x32xf32>
    %835 = arith.index_cast %c7_i32_336 : i32 to index
    %c0_340 = arith.constant 0 : index
    %c0_341 = arith.constant 0 : index
    %836 = vector.load %arg38[%835, %c0_340, %c0_341] : memref<10x8x32xf32, #tpu.memory_space<vmem>>, vector<1x8x32xf32>
    %837 = vector.shape_cast %836 : vector<1x8x32xf32> to vector<8x32xf32>
    %838 = arith.addf %837, %828 : vector<8x32xf32>
    %839 = arith.negf %838 : vector<8x32xf32>
    %840 = math.exp %839 : vector<8x32xf32>
    %cst_342 = arith.constant 1.000000e+00 : f32
    %841 = vector.broadcast %cst_342 : f32 to vector<8x32xf32>
    %842 = arith.addf %841, %840 : vector<8x32xf32>
    %843 = arith.divf %841, %842 : vector<8x32xf32>
    %844 = arith.index_cast %c7_i32_336 : i32 to index
    %c0_343 = arith.constant 0 : index
    %c0_344 = arith.constant 0 : index
    %845 = vector.load %arg39[%844, %c0_343, %c0_344] : memref<10x8x32xf32, #tpu.memory_space<vmem>>, vector<1x8x32xf32>
    %846 = vector.shape_cast %845 : vector<1x8x32xf32> to vector<8x32xf32>
    %847 = arith.addf %846, %831 : vector<8x32xf32>
    %848 = arith.negf %847 : vector<8x32xf32>
    %849 = math.exp %848 : vector<8x32xf32>
    %cst_345 = arith.constant 1.000000e+00 : f32
    %850 = vector.broadcast %cst_345 : f32 to vector<8x32xf32>
    %851 = arith.addf %850, %849 : vector<8x32xf32>
    %852 = arith.divf %850, %851 : vector<8x32xf32>
    %853 = arith.index_cast %c7_i32_336 : i32 to index
    %c0_346 = arith.constant 0 : index
    %c0_347 = arith.constant 0 : index
    %854 = vector.load %arg40[%853, %c0_346, %c0_347] : memref<10x8x32xf32, #tpu.memory_space<vmem>>, vector<1x8x32xf32>
    %855 = vector.shape_cast %854 : vector<1x8x32xf32> to vector<8x32xf32>
    %856 = arith.mulf %843, %834 : vector<8x32xf32>
    %857 = arith.addf %855, %856 : vector<8x32xf32>
    %858 = math.tanh %857 : vector<8x32xf32>
    %cst_348 = arith.constant 1.000000e+00 : f32
    %859 = vector.broadcast %cst_348 : f32 to vector<8x32xf32>
    %860 = arith.subf %859, %852 : vector<8x32xf32>
    %861 = arith.mulf %860, %858 : vector<8x32xf32>
    %862 = arith.mulf %852, %820 : vector<8x32xf32>
    %863 = arith.addf %861, %862 : vector<8x32xf32>
    %864 = arith.index_cast %c7_i32_336 : i32 to index
    %c0_349 = arith.constant 0 : index
    %c0_350 = arith.constant 0 : index
    %865 = vector.load %arg42[%864, %c0_349, %c0_350] : memref<10x8x32xf32, #tpu.memory_space<vmem>>, vector<1x8x32xf32>
    %866 = vector.shape_cast %865 : vector<1x8x32xf32> to vector<8x32xf32>
    %867 = vector.shape_cast %863 : vector<8x32xf32> to vector<1x8x32xf32>
    tpu.vector_store %arg42[%864, %c0_349, %c0_350], %867 {strides = array<i32>} : memref<10x8x32xf32, #tpu.memory_space<vmem>>, vector<1x8x32xf32>,
    %c8_i32_351 = arith.constant 8 : i32
    %868 = arith.truncf %863 : vector<8x32xf32> to vector<8x32xbf16>
    %cst_352 = arith.constant dense<0.000000e+00> : vector<8x32xf32>
    %869 = tpu.matmul %868, %518, %cst_352 {dimension_numbers = #tpu.dot_dimension_numbers<[1], [0], [0], [1], [0, 0, 1, 1], [], []>} : vector<8x32xbf16>, vector<32x32xbf16>, vector<8x32xf32> -> vector<8x32xf32>
    %870 = vector.broadcast %521 : vector<1x32xf32> to vector<8x32xf32>
    %871 = arith.addf %869, %870 : vector<8x32xf32>
    %cst_353 = arith.constant dense<0.000000e+00> : vector<8x32xf32>
    %872 = tpu.matmul %868, %519, %cst_353 {dimension_numbers = #tpu.dot_dimension_numbers<[1], [0], [0], [1], [0, 0, 1, 1], [], []>} : vector<8x32xbf16>, vector<32x32xbf16>, vector<8x32xf32> -> vector<8x32xf32>
    %873 = vector.broadcast %522 : vector<1x32xf32> to vector<8x32xf32>
    %874 = arith.addf %872, %873 : vector<8x32xf32>
    %cst_354 = arith.constant dense<0.000000e+00> : vector<8x32xf32>
    %875 = tpu.matmul %868, %520, %cst_354 {dimension_numbers = #tpu.dot_dimension_numbers<[1], [0], [0], [1], [0, 0, 1, 1], [], []>} : vector<8x32xbf16>, vector<32x32xbf16>, vector<8x32xf32> -> vector<8x32xf32>
    %876 = vector.broadcast %523 : vector<1x32xf32> to vector<8x32xf32>
    %877 = arith.addf %875, %876 : vector<8x32xf32>
    %878 = arith.index_cast %c8_i32_351 : i32 to index
    %c0_355 = arith.constant 0 : index
    %c0_356 = arith.constant 0 : index
    %879 = vector.load %arg38[%878, %c0_355, %c0_356] : memref<10x8x32xf32, #tpu.memory_space<vmem>>, vector<1x8x32xf32>
    %880 = vector.shape_cast %879 : vector<1x8x32xf32> to vector<8x32xf32>
    %881 = arith.addf %880, %871 : vector<8x32xf32>
    %882 = arith.negf %881 : vector<8x32xf32>
    %883 = math.exp %882 : vector<8x32xf32>
    %cst_357 = arith.constant 1.000000e+00 : f32
    %884 = vector.broadcast %cst_357 : f32 to vector<8x32xf32>
    %885 = arith.addf %884, %883 : vector<8x32xf32>
    %886 = arith.divf %884, %885 : vector<8x32xf32>
    %887 = arith.index_cast %c8_i32_351 : i32 to index
    %c0_358 = arith.constant 0 : index
    %c0_359 = arith.constant 0 : index
    %888 = vector.load %arg39[%887, %c0_358, %c0_359] : memref<10x8x32xf32, #tpu.memory_space<vmem>>, vector<1x8x32xf32>
    %889 = vector.shape_cast %888 : vector<1x8x32xf32> to vector<8x32xf32>
    %890 = arith.addf %889, %874 : vector<8x32xf32>
    %891 = arith.negf %890 : vector<8x32xf32>
    %892 = math.exp %891 : vector<8x32xf32>
    %cst_360 = arith.constant 1.000000e+00 : f32
    %893 = vector.broadcast %cst_360 : f32 to vector<8x32xf32>
    %894 = arith.addf %893, %892 : vector<8x32xf32>
    %895 = arith.divf %893, %894 : vector<8x32xf32>
    %896 = arith.index_cast %c8_i32_351 : i32 to index
    %c0_361 = arith.constant 0 : index
    %c0_362 = arith.constant 0 : index
    %897 = vector.load %arg40[%896, %c0_361, %c0_362] : memref<10x8x32xf32, #tpu.memory_space<vmem>>, vector<1x8x32xf32>
    %898 = vector.shape_cast %897 : vector<1x8x32xf32> to vector<8x32xf32>
    %899 = arith.mulf %886, %877 : vector<8x32xf32>
    %900 = arith.addf %898, %899 : vector<8x32xf32>
    %901 = math.tanh %900 : vector<8x32xf32>
    %cst_363 = arith.constant 1.000000e+00 : f32
    %902 = vector.broadcast %cst_363 : f32 to vector<8x32xf32>
    %903 = arith.subf %902, %895 : vector<8x32xf32>
    %904 = arith.mulf %903, %901 : vector<8x32xf32>
    %905 = arith.mulf %895, %863 : vector<8x32xf32>
    %906 = arith.addf %904, %905 : vector<8x32xf32>
    %907 = arith.index_cast %c8_i32_351 : i32 to index
    %c0_364 = arith.constant 0 : index
    %c0_365 = arith.constant 0 : index
    %908 = vector.load %arg42[%907, %c0_364, %c0_365] : memref<10x8x32xf32, #tpu.memory_space<vmem>>, vector<1x8x32xf32>
    %909 = vector.shape_cast %908 : vector<1x8x32xf32> to vector<8x32xf32>
    %910 = vector.shape_cast %906 : vector<8x32xf32> to vector<1x8x32xf32>
    tpu.vector_store %arg42[%907, %c0_364, %c0_365], %910 {strides = array<i32>} : memref<10x8x32xf32, #tpu.memory_space<vmem>>, vector<1x8x32xf32>,
    %c9_i32_366 = arith.constant 9 : i32
    %911 = arith.truncf %906 : vector<8x32xf32> to vector<8x32xbf16>
    %cst_367 = arith.constant dense<0.000000e+00> : vector<8x32xf32>
    %912 = tpu.matmul %911, %518, %cst_367 {dimension_numbers = #tpu.dot_dimension_numbers<[1], [0], [0], [1], [0, 0, 1, 1], [], []>} : vector<8x32xbf16>, vector<32x32xbf16>, vector<8x32xf32> -> vector<8x32xf32>
    %913 = vector.broadcast %521 : vector<1x32xf32> to vector<8x32xf32>
    %914 = arith.addf %912, %913 : vector<8x32xf32>
    %cst_368 = arith.constant dense<0.000000e+00> : vector<8x32xf32>
    %915 = tpu.matmul %911, %519, %cst_368 {dimension_numbers = #tpu.dot_dimension_numbers<[1], [0], [0], [1], [0, 0, 1, 1], [], []>} : vector<8x32xbf16>, vector<32x32xbf16>, vector<8x32xf32> -> vector<8x32xf32>
    %916 = vector.broadcast %522 : vector<1x32xf32> to vector<8x32xf32>
    %917 = arith.addf %915, %916 : vector<8x32xf32>
    %cst_369 = arith.constant dense<0.000000e+00> : vector<8x32xf32>
    %918 = tpu.matmul %911, %520, %cst_369 {dimension_numbers = #tpu.dot_dimension_numbers<[1], [0], [0], [1], [0, 0, 1, 1], [], []>} : vector<8x32xbf16>, vector<32x32xbf16>, vector<8x32xf32> -> vector<8x32xf32>
    %919 = vector.broadcast %523 : vector<1x32xf32> to vector<8x32xf32>
    %920 = arith.addf %918, %919 : vector<8x32xf32>
    %921 = arith.index_cast %c9_i32_366 : i32 to index
    %c0_370 = arith.constant 0 : index
    %c0_371 = arith.constant 0 : index
    %922 = vector.load %arg38[%921, %c0_370, %c0_371] : memref<10x8x32xf32, #tpu.memory_space<vmem>>, vector<1x8x32xf32>
    %923 = vector.shape_cast %922 : vector<1x8x32xf32> to vector<8x32xf32>
    %924 = arith.addf %923, %914 : vector<8x32xf32>
    %925 = arith.negf %924 : vector<8x32xf32>
    %926 = math.exp %925 : vector<8x32xf32>
    %cst_372 = arith.constant 1.000000e+00 : f32
    %927 = vector.broadcast %cst_372 : f32 to vector<8x32xf32>
    %928 = arith.addf %927, %926 : vector<8x32xf32>
    %929 = arith.divf %927, %928 : vector<8x32xf32>
    %930 = arith.index_cast %c9_i32_366 : i32 to index
    %c0_373 = arith.constant 0 : index
    %c0_374 = arith.constant 0 : index
    %931 = vector.load %arg39[%930, %c0_373, %c0_374] : memref<10x8x32xf32, #tpu.memory_space<vmem>>, vector<1x8x32xf32>
    %932 = vector.shape_cast %931 : vector<1x8x32xf32> to vector<8x32xf32>
    %933 = arith.addf %932, %917 : vector<8x32xf32>
    %934 = arith.negf %933 : vector<8x32xf32>
    %935 = math.exp %934 : vector<8x32xf32>
    %cst_375 = arith.constant 1.000000e+00 : f32
    %936 = vector.broadcast %cst_375 : f32 to vector<8x32xf32>
    %937 = arith.addf %936, %935 : vector<8x32xf32>
    %938 = arith.divf %936, %937 : vector<8x32xf32>
    %939 = arith.index_cast %c9_i32_366 : i32 to index
    %c0_376 = arith.constant 0 : index
    %c0_377 = arith.constant 0 : index
    %940 = vector.load %arg40[%939, %c0_376, %c0_377] : memref<10x8x32xf32, #tpu.memory_space<vmem>>, vector<1x8x32xf32>
    %941 = vector.shape_cast %940 : vector<1x8x32xf32> to vector<8x32xf32>
    %942 = arith.mulf %929, %920 : vector<8x32xf32>
    %943 = arith.addf %941, %942 : vector<8x32xf32>
    %944 = math.tanh %943 : vector<8x32xf32>
    %cst_378 = arith.constant 1.000000e+00 : f32
    %945 = vector.broadcast %cst_378 : f32 to vector<8x32xf32>
    %946 = arith.subf %945, %938 : vector<8x32xf32>
    %947 = arith.mulf %946, %944 : vector<8x32xf32>
    %948 = arith.mulf %938, %906 : vector<8x32xf32>
    %949 = arith.addf %947, %948 : vector<8x32xf32>
    %950 = arith.index_cast %c9_i32_366 : i32 to index
    %c0_379 = arith.constant 0 : index
    %c0_380 = arith.constant 0 : index
    %951 = vector.load %arg42[%950, %c0_379, %c0_380] : memref<10x8x32xf32, #tpu.memory_space<vmem>>, vector<1x8x32xf32>
    %952 = vector.shape_cast %951 : vector<1x8x32xf32> to vector<8x32xf32>
    %953 = vector.shape_cast %949 : vector<8x32xf32> to vector<1x8x32xf32>
    tpu.vector_store %arg42[%950, %c0_379, %c0_380], %953 {strides = array<i32>} : memref<10x8x32xf32, #tpu.memory_space<vmem>>, vector<1x8x32xf32>,
    %c10_i32_381 = arith.constant 10 : i32
    %c0_382 = arith.constant 0 : index
    %c0_383 = arith.constant 0 : index
    %c0_384 = arith.constant 0 : index
    %954 = vector.load %arg42[%c0_382, %c0_383, %c0_384] : memref<10x8x32xf32, #tpu.memory_space<vmem>>, vector<10x8x32xf32>
    %955 = tpu.iota {dimensions = array<i32: 0>} : vector<10x8xi32>
    %c0_385 = arith.constant 0 : index
    %c0_386 = arith.constant 0 : index
    %956 = vector.load %arg2[%c0_385, %c0_386] : memref<1x8xi32, #tpu.memory_space<vmem>>, vector<1x8xi32>
    %957 = vector.broadcast %956 : vector<1x8xi32> to vector<10x8xi32>
    %958 = arith.cmpi slt, %955, %957 : vector<10x8xi32>
    %959 = arith.extui %958 : vector<10x8xi1> to vector<10x8xi32>
    %960 = arith.sitofp %959 : vector<10x8xi32> to vector<10x8xf32>
    %961 = vector.shape_cast %960 : vector<10x8xf32> to vector<10x8x1xf32>
    %962 = vector.broadcast %961 : vector<10x8x1xf32> to vector<10x8x32xf32>
    %963 = arith.mulf %954, %962 : vector<10x8x32xf32>
    %964 = vector.shape_cast %963 : vector<10x8x32xf32> to vector<80x32xf32>
    %965 = arith.truncf %964 : vector<80x32xf32> to vector<80x32xbf16>
    %c0_387 = arith.constant 0 : index
    %c0_388 = arith.constant 0 : index
    %966 = vector.load %arg33[%c0_387, %c0_388] : memref<32x128xbf16, #tpu.memory_space<vmem>>, vector<32x128xbf16>
    %cst_389 = arith.constant dense<0.000000e+00> : vector<80x128xf32>
    %967 = tpu.matmul %965, %966, %cst_389 {dimension_numbers = #tpu.dot_dimension_numbers<[1], [0], [0], [1], [0, 0, 1, 1], [], []>} : vector<80x32xbf16>, vector<32x128xbf16>, vector<80x128xf32> -> vector<80x128xf32>
    %c0_390 = arith.constant 0 : index
    %c0_391 = arith.constant 0 : index
    %968 = vector.load %arg34[%c0_390, %c0_391] : memref<1x128xf32, #tpu.memory_space<vmem>>, vector<1x128xf32>
    %969 = vector.broadcast %968 : vector<1x128xf32> to vector<80x128xf32>
    %970 = arith.addf %967, %969 : vector<80x128xf32>
    %971 = vector.shape_cast %970 : vector<80x128xf32> to vector<10x8x128xf32>
    %c0_392 = arith.constant 0 : index
    %c0_393 = arith.constant 0 : index
    %c0_394 = arith.constant 0 : index
    %972 = vector.load %arg35[%c0_392, %c0_393, %c0_394] : memref<10x8x128xf32, #tpu.memory_space<vmem>>, vector<10x8x128xf32>
    tpu.vector_store %arg35[%c0_392, %c0_393, %c0_394], %971 {strides = array<i32>} : memref<10x8x128xf32, #tpu.memory_space<vmem>>, vector<10x8x128xf32>,
    %973 = vector.extract_strided_slice %971 {offsets = [0, 0, 0], sizes = [9, 8, 128], strides = [1, 1, 1]} : vector<10x8x128xf32> to vector<9x8x128xf32>
    %cst_395 = arith.constant dense<0xFF800000> : vector<9x8xf32>
    %974 = vector.multi_reduction <maximumf>, %973, %cst_395 [2] : vector<9x8x128xf32> to vector<9x8xf32>
    %975 = vector.shape_cast %974 : vector<9x8xf32> to vector<9x8x1xf32>
    %976 = vector.broadcast %975 : vector<9x8x1xf32> to vector<9x8x128xf32>
    %977 = arith.subf %973, %976 : vector<9x8x128xf32>
    %978 = math.exp %977 : vector<9x8x128xf32>
    %cst_396 = arith.constant dense<0.000000e+00> : vector<9x8xf32>
    %979 = vector.multi_reduction <add>, %978, %cst_396 [2] : vector<9x8x128xf32> to vector<9x8xf32>
    %980 = vector.shape_cast %979 : vector<9x8xf32> to vector<9x8x1xf32>
    %981 = math.log %980 : vector<9x8x1xf32>
    %982 = arith.addf %981, %975 : vector<9x8x1xf32>
    %983 = vector.extract_strided_slice %11 {offsets = [1, 0, 0], sizes = [9, 8, 128], strides = [1, 1, 1]} : vector<10x8x128xi1> to vector<9x8x128xi1>
    %cst_397 = arith.constant 0.000000e+00 : f32
    %984 = vector.broadcast %cst_397 : f32 to vector<9x8x128xf32>
    %985 = arith.select %983, %973, %984 : vector<9x8x128xi1>, vector<9x8x128xf32>
    %cst_398 = arith.constant dense<0.000000e+00> : vector<9x8xf32>
    %986 = vector.multi_reduction <add>, %985, %cst_398 [2] : vector<9x8x128xf32> to vector<9x8xf32>
    %987 = vector.shape_cast %982 : vector<9x8x1xf32> to vector<9x8xf32>
    %988 = arith.subf %987, %986 : vector<9x8xf32>
    %989 = vector.extract_strided_slice %0 {offsets = [1, 0], sizes = [9, 8], strides = [1, 1]} : vector<10x8xi32> to vector<9x8xi32>
    %c0_i32_399 = arith.constant 0 : i32
    %990 = vector.broadcast %c0_i32_399 : i32 to vector<9x8xi32>
    %991 = arith.cmpi ne, %989, %990 : vector<9x8xi32>
    %992 = arith.extui %991 : vector<9x8xi1> to vector<9x8xi32>
    %993 = arith.sitofp %992 : vector<9x8xi32> to vector<9x8xf32>
    %994 = arith.mulf %988, %993 : vector<9x8xf32>
    %995 = vector.shape_cast %994 : vector<9x8xf32> to vector<1x9x8xf32>
    %cst_400 = arith.constant dense<0.000000e+00> : vector<1xf32>
    %996 = vector.multi_reduction <add>, %995, %cst_400 [1, 2] : vector<1x9x8xf32> to vector<1xf32>
    %997 = vector.shape_cast %996 : vector<1xf32> to vector<1x1x1xf32>
    %998 = vector.extract %997[0, 0, 0] : f32 from vector<1x1x1xf32>
    %999 = vector.broadcast %998 : f32 to vector<1x1xf32>
    %c0_401 = arith.constant 0 : index
    %c0_402 = arith.constant 0 : index
    %1000 = vector.load %arg36[%c0_401, %c0_402] : memref<1x1xf32, #tpu.memory_space<vmem>>, vector<1x1xf32>
    tpu.vector_store %arg36[%c0_401, %c0_402], %999 {strides = array<i32>} : memref<1x1xf32, #tpu.memory_space<vmem>>, vector<1x1xf32>,
    %1001 = vector.shape_cast %993 : vector<9x8xf32> to vector<1x9x8xf32>
    %cst_403 = arith.constant dense<0.000000e+00> : vector<1xf32>
    %1002 = vector.multi_reduction <add>, %1001, %cst_403 [1, 2] : vector<1x9x8xf32> to vector<1xf32>
    %1003 = vector.shape_cast %1002 : vector<1xf32> to vector<1x1x1xf32>
    %1004 = vector.extract %1003[0, 0, 0] : f32 from vector<1x1x1xf32>
    %1005 = vector.broadcast %1004 : f32 to vector<1x1xf32>
    %c0_404 = arith.constant 0 : index
    %c0_405 = arith.constant 0 : index
    %1006 = vector.load %arg37[%c0_404, %c0_405] : memref<1x1xf32, #tpu.memory_space<vmem>>, vector<1x1xf32>
    tpu.vector_store %arg37[%c0_404, %c0_405], %1005 {strides = array<i32>} : memref<1x1xf32, #tpu.memory_space<vmem>>, vector<1x1xf32>,
    return
  }
  func.func @transform_0(%arg0: i32) -> (i32, i32) {
    %c0_i32 = arith.constant 0 : i32
    %c0_i32_0 = arith.constant 0 : i32
    return %c0_i32, %arg0 : i32, i32
  }
  func.func @transform_1(%arg0: i32) -> (i32, i32) {
    %c0_i32 = arith.constant 0 : i32
    %c0_i32_0 = arith.constant 0 : i32
    return %c0_i32, %arg0 : i32, i32
  }
  func.func @transform_2(%arg0: i32) -> (i32, i32) {
    %c0_i32 = arith.constant 0 : i32
    %c0_i32_0 = arith.constant 0 : i32
    return %arg0, %c0_i32 : i32, i32
  }
  func.func @transform_3(%arg0: i32) -> (i32, i32) {
    %c0_i32 = arith.constant 0 : i32
    %c0_i32_0 = arith.constant 0 : i32
    %c0_i32_1 = arith.constant 0 : i32
    return %c0_i32, %c0_i32_0 : i32, i32
  }
  func.func @transform_4(%arg0: i32) -> (i32, i32) {
    %c0_i32 = arith.constant 0 : i32
    %c0_i32_0 = arith.constant 0 : i32
    %c0_i32_1 = arith.constant 0 : i32
    return %c0_i32, %c0_i32_0 : i32, i32
  }
  func.func @transform_5(%arg0: i32) -> (i32, i32) {
    %c0_i32 = arith.constant 0 : i32
    %c0_i32_0 = arith.constant 0 : i32
    %c0_i32_1 = arith.constant 0 : i32
    return %c0_i32, %c0_i32_0 : i32, i32
  }
  func.func @transform_6(%arg0: i32) -> (i32, i32) {
    %c0_i32 = arith.constant 0 : i32
    %c0_i32_0 = arith.constant 0 : i32
    %c0_i32_1 = arith.constant 0 : i32
    return %c0_i32, %c0_i32_0 : i32, i32
  }
  func.func @transform_7(%arg0: i32) -> (i32, i32) {
    %c0_i32 = arith.constant 0 : i32
    %c0_i32_0 = arith.constant 0 : i32
    %c0_i32_1 = arith.constant 0 : i32
    return %c0_i32, %c0_i32_0 : i32, i32
  }
  func.func @transform_8(%arg0: i32) -> (i32, i32) {
    %c0_i32 = arith.constant 0 : i32
    %c0_i32_0 = arith.constant 0 : i32
    %c0_i32_1 = arith.constant 0 : i32
    return %c0_i32, %c0_i32_0 : i32, i32
  }
  func.func @transform_9(%arg0: i32) -> (i32, i32) {
    %c0_i32 = arith.constant 0 : i32
    %c0_i32_0 = arith.constant 0 : i32
    %c0_i32_1 = arith.constant 0 : i32
    return %c0_i32, %c0_i32_0 : i32, i32
  }
  func.func @transform_10(%arg0: i32) -> (i32, i32) {
    %c0_i32 = arith.constant 0 : i32
    %c0_i32_0 = arith.constant 0 : i32
    %c0_i32_1 = arith.constant 0 : i32
    return %c0_i32, %c0_i32_0 : i32, i32
  }
  func.func @transform_11(%arg0: i32) -> (i32, i32) {
    %c0_i32 = arith.constant 0 : i32
    %c0_i32_0 = arith.constant 0 : i32
    %c0_i32_1 = arith.constant 0 : i32
    return %c0_i32, %c0_i32_0 : i32, i32
  }
  func.func @transform_12(%arg0: i32) -> (i32, i32) {
    %c0_i32 = arith.constant 0 : i32
    %c0_i32_0 = arith.constant 0 : i32
    %c0_i32_1 = arith.constant 0 : i32
    return %c0_i32, %c0_i32_0 : i32, i32
  }
  func.func @transform_13(%arg0: i32) -> (i32, i32) {
    %c0_i32 = arith.constant 0 : i32
    %c0_i32_0 = arith.constant 0 : i32
    %c0_i32_1 = arith.constant 0 : i32
    return %c0_i32, %c0_i32_0 : i32, i32
  }
  func.func @transform_14(%arg0: i32) -> (i32, i32) {
    %c0_i32 = arith.constant 0 : i32
    %c0_i32_0 = arith.constant 0 : i32
    %c0_i32_1 = arith.constant 0 : i32
    return %c0_i32, %c0_i32_0 : i32, i32
  }
  func.func @transform_15(%arg0: i32) -> (i32, i32) {
    %c0_i32 = arith.constant 0 : i32
    %c0_i32_0 = arith.constant 0 : i32
    %c0_i32_1 = arith.constant 0 : i32
    return %c0_i32, %c0_i32_0 : i32, i32
  }
  func.func @transform_16(%arg0: i32) -> (i32, i32) {
    %c0_i32 = arith.constant 0 : i32
    %c0_i32_0 = arith.constant 0 : i32
    %c0_i32_1 = arith.constant 0 : i32
    return %c0_i32, %c0_i32_0 : i32, i32
  }
  func.func @transform_17(%arg0: i32) -> (i32, i32) {
    %c0_i32 = arith.constant 0 : i32
    %c0_i32_0 = arith.constant 0 : i32
    %c0_i32_1 = arith.constant 0 : i32
    return %c0_i32, %c0_i32_0 : i32, i32
  }
  func.func @transform_18(%arg0: i32) -> (i32, i32) {
    %c0_i32 = arith.constant 0 : i32
    %c0_i32_0 = arith.constant 0 : i32
    %c0_i32_1 = arith.constant 0 : i32
    return %c0_i32, %c0_i32_0 : i32, i32
  }
  func.func @transform_19(%arg0: i32) -> (i32, i32) {
    %c0_i32 = arith.constant 0 : i32
    %c0_i32_0 = arith.constant 0 : i32
    %c0_i32_1 = arith.constant 0 : i32
    return %c0_i32, %c0_i32_0 : i32, i32
  }
  func.func @transform_20(%arg0: i32) -> (i32, i32) {
    %c0_i32 = arith.constant 0 : i32
    %c0_i32_0 = arith.constant 0 : i32
    %c0_i32_1 = arith.constant 0 : i32
    return %c0_i32, %c0_i32_0 : i32, i32
  }
  func.func @transform_21(%arg0: i32) -> (i32, i32) {
    %c0_i32 = arith.constant 0 : i32
    %c0_i32_0 = arith.constant 0 : i32
    %c0_i32_1 = arith.constant 0 : i32
    return %c0_i32, %c0_i32_0 : i32, i32
  }
  func.func @transform_22(%arg0: i32) -> (i32, i32) {
    %c0_i32 = arith.constant 0 : i32
    %c0_i32_0 = arith.constant 0 : i32
    %c0_i32_1 = arith.constant 0 : i32
    return %c0_i32, %c0_i32_0 : i32, i32
  }
  func.func @transform_23(%arg0: i32) -> (i32, i32) {
    %c0_i32 = arith.constant 0 : i32
    %c0_i32_0 = arith.constant 0 : i32
    %c0_i32_1 = arith.constant 0 : i32
    return %c0_i32, %c0_i32_0 : i32, i32
  }
  func.func @transform_24(%arg0: i32) -> (i32, i32) {
    %c0_i32 = arith.constant 0 : i32
    %c0_i32_0 = arith.constant 0 : i32
    %c0_i32_1 = arith.constant 0 : i32
    return %c0_i32, %c0_i32_0 : i32, i32
  }
  func.func @transform_25(%arg0: i32) -> (i32, i32) {
    %c0_i32 = arith.constant 0 : i32
    %c0_i32_0 = arith.constant 0 : i32
    %c0_i32_1 = arith.constant 0 : i32
    return %c0_i32, %c0_i32_0 : i32, i32
  }
  func.func @transform_26(%arg0: i32) -> (i32, i32) {
    %c0_i32 = arith.constant 0 : i32
    %c0_i32_0 = arith.constant 0 : i32
    %c0_i32_1 = arith.constant 0 : i32
    return %c0_i32, %c0_i32_0 : i32, i32
  }
  func.func @transform_27(%arg0: i32) -> (i32, i32) {
    %c0_i32 = arith.constant 0 : i32
    %c0_i32_0 = arith.constant 0 : i32
    %c0_i32_1 = arith.constant 0 : i32
    return %c0_i32, %c0_i32_0 : i32, i32
  }
  func.func @transform_28(%arg0: i32) -> (i32, i32) {
    %c0_i32 = arith.constant 0 : i32
    %c0_i32_0 = arith.constant 0 : i32
    %c0_i32_1 = arith.constant 0 : i32
    return %c0_i32, %c0_i32_0 : i32, i32
  }
  func.func @transform_29(%arg0: i32) -> (i32, i32) {
    %c0_i32 = arith.constant 0 : i32
    %c0_i32_0 = arith.constant 0 : i32
    %c0_i32_1 = arith.constant 0 : i32
    return %c0_i32, %c0_i32_0 : i32, i32
  }
  func.func @transform_30(%arg0: i32) -> (i32, i32) {
    %c0_i32 = arith.constant 0 : i32
    %c0_i32_0 = arith.constant 0 : i32
    %c0_i32_1 = arith.constant 0 : i32
    return %c0_i32, %c0_i32_0 : i32, i32
  }
  func.func @transform_31(%arg0: i32) -> (i32, i32) {
    %c0_i32 = arith.constant 0 : i32
    %c0_i32_0 = arith.constant 0 : i32
    %c0_i32_1 = arith.constant 0 : i32
    return %c0_i32, %c0_i32_0 : i32, i32
  }
  func.func @transform_32(%arg0: i32) -> (i32, i32) {
    %c0_i32 = arith.constant 0 : i32
    %c0_i32_0 = arith.constant 0 : i32
    %c0_i32_1 = arith.constant 0 : i32
    return %c0_i32, %c0_i32_0 : i32, i32
  }
  func.func @transform_33(%arg0: i32) -> (i32, i32) {
    %c0_i32 = arith.constant 0 : i32
    %c0_i32_0 = arith.constant 0 : i32
    %c0_i32_1 = arith.constant 0 : i32
    return %c0_i32, %c0_i32_0 : i32, i32
  }
  func.func @transform_34(%arg0: i32) -> (i32, i32, i32) {
    %c0_i32 = arith.constant 0 : i32
    %c0_i32_0 = arith.constant 0 : i32
    %c0_i32_1 = arith.constant 0 : i32
    return %c0_i32, %arg0, %c0_i32_0 : i32, i32, i32
  }
  func.func @transform_35(%arg0: i32) -> (i32, i32) {
    %c0_i32 = arith.constant 0 : i32
    %c0_i32_0 = arith.constant 0 : i32
    return %arg0, %c0_i32 : i32, i32
  }
  func.func @transform_36(%arg0: i32) -> (i32, i32) {
    %c0_i32 = arith.constant 0 : i32
    %c0_i32_0 = arith.constant 0 : i32
    return %arg0, %c0_i32 : i32, i32
  }
}

</mosaic_0001>

<llo_original>
// kernel: tpu_custom_call.1
$region0: #{tpu_custom_call.1}
  #allocation0 [shape = 'u32[]', space=smem, size = 0x4, offset = 0x4, fixed_abs, tag = 'smem constant byte address 0x4 - core index']
  #allocation1 [shape = 'u32[144,128]{1,0:T(1,128)}', space=vmem, size = 0x12000, scoped, tag = 'internal scratch']
  #allocation2 [shape = 'f32[10,8,32]{2,1,0:T(8,128)}', space=vmem, size = 0xa000, scoped, tag = 'scratch operand']
  #allocation3 [shape = 'f32[10,8,32]{2,1,0:T(8,128)}', space=vmem, size = 0xa000, scoped, tag = 'scratch operand']
  #allocation4 [shape = 'f32[10,8,32]{2,1,0:T(8,128)}', space=vmem, size = 0xa000, scoped, tag = 'scratch operand']
  #allocation5 [shape = 'f32[10,8,32]{2,1,0:T(8,128)}', space=vmem, size = 0xa000, scoped, tag = 'scratch operand']
  #allocation6 [shape = 'f32[10,8,32]{2,1,0:T(8,128)}', space=vmem, size = 0xa000, scoped, tag = 'scratch operand']
  %s0 = inlined_call_operand.smem [shape: u32[37], index: -1, kind: input, shape index: {}]
  %s1 = sld [smem:[%s0]]
  %s2 = scalar_lea.smem %s0, 1
  %s3 = sld [smem:[%s2]]
  %s4 = scalar_lea.smem %s0, 2
  %s5 = sld [smem:[%s4]]
  %s6 = scalar_lea.smem %s0, 3
  %s7 = sld [smem:[%s6]]
  %s8 = scalar_lea.smem %s0, 4
  %s9 = sld [smem:[%s8]]
  %s10 = scalar_lea.smem %s0, 5
  %s11 = sld [smem:[%s10]]
  %s12 = scalar_lea.smem %s0, 6
  %s13 = sld [smem:[%s12]]
  %s14 = scalar_lea.smem %s0, 7
  %s15 = sld [smem:[%s14]]
  %s16 = scalar_lea.smem %s0, 8
  %s17 = sld [smem:[%s16]]
  %s18 = scalar_lea.smem %s0, 9
  %s19 = sld [smem:[%s18]]
  %s20 = scalar_lea.smem %s0, 10
  %s21 = sld [smem:[%s20]]
  %s22 = scalar_lea.smem %s0, 11
  %s23 = sld [smem:[%s22]]
  %s24 = scalar_lea.smem %s0, 12
  %s25 = sld [smem:[%s24]]
  %s26 = scalar_lea.smem %s0, 13
  %s27 = sld [smem:[%s26]]
  %s28 = scalar_lea.smem %s0, 14
  %s29 = sld [smem:[%s28]]
  %s30 = scalar_lea.smem %s0, 15
  %s31 = sld [smem:[%s30]]
  %s32 = scalar_lea.smem %s0, 16
  %s33 = sld [smem:[%s32]]
  %s34 = scalar_lea.smem %s0, 17
  %s35 = sld [smem:[%s34]]
  %s36 = scalar_lea.smem %s0, 18
  %s37 = sld [smem:[%s36]]
  %s38 = scalar_lea.smem %s0, 19
  %s39 = sld [smem:[%s38]]
  %s40 = scalar_lea.smem %s0, 20
  %s41 = sld [smem:[%s40]]
  %s42 = scalar_lea.smem %s0, 21
  %s43 = sld [smem:[%s42]]
  %s44 = scalar_lea.smem %s0, 22
  %s45 = sld [smem:[%s44]]
  %s46 = scalar_lea.smem %s0, 23
  %s47 = sld [smem:[%s46]]
  %s48 = scalar_lea.smem %s0, 24
  %s49 = sld [smem:[%s48]]
  %s50 = scalar_lea.smem %s0, 25
  %s51 = sld [smem:[%s50]]
  %s52 = scalar_lea.smem %s0, 26
  %s53 = sld [smem:[%s52]]
  %s54 = scalar_lea.smem %s0, 27
  %s55 = sld [smem:[%s54]]
  %s56 = scalar_lea.smem %s0, 28
  %s57 = sld [smem:[%s56]]
  %s58 = scalar_lea.smem %s0, 29
  %s59 = sld [smem:[%s58]]
  %s60 = scalar_lea.smem %s0, 30
  %s61 = sld [smem:[%s60]]
  %s62 = scalar_lea.smem %s0, 31
  %s63 = sld [smem:[%s62]]
  %s64 = scalar_lea.smem %s0, 32
  %s65 = sld [smem:[%s64]]
  %s66 = scalar_lea.smem %s0, 33
  %s67 = sld [smem:[%s66]]
  %s68 = scalar_lea.smem %s0, 34
  %s69 = sld [smem:[%s68]]
  %s70 = scalar_lea.smem %s0, 35
  %s71 = sld [smem:[%s70]]
  %s72 = scalar_lea.smem %s0, 36
  %s73 = sld [smem:[%s72]]
  %74 = xla_tuple %s69, %s71, %s73
  %s75 = sld [smem:[#allocation0]]
  $region162: #{tpu_custom_call.1} parent=0
    _
  %s77 = ssub.s32 1, %s75
  %s78 = scalar_select 0, %s77, %s75
  $region1: #{tpu_custom_call.1} parent=0
    #allocation7 [shape = 'u8[40960]{0}', space=vmem, size = 0xa000, scoped, tag = 'output window, operand 0, single buffered']
    #allocation8 [shape = 's32[1]{0}', space=sflag, size = 0x4, scoped, tag = 'scoped memory for tpu_custom_call.1']
    #allocation9 [shape = 'u8[512]{0}', space=vmem, size = 0x400, scoped, tag = 'output window, operand 1, single buffered']
    #allocation10 [shape = 's32[1]{0}', space=sflag, size = 0x4, scoped, tag = 'scoped memory for tpu_custom_call.1']
    #allocation11 [shape = 'u8[512]{0}', space=vmem, size = 0x400, scoped, tag = 'output window, operand 2, single buffered']
    %79 = vsyncpa [#allocation8], 0
    %80 = vsyncpa [#allocation10], 0
    // Predicated region
    $region2: #{tpu_custom_call.1} parent=1 // pred_check
      _
    $region3: #{tpu_custom_call.1} parent=1 // pred_check_branch
      %82 = sbr.rel (0) target = $region5
    $region4: #{tpu_custom_call.1} parent=1 // pred_region
      _
    $region5: #{tpu_custom_call.1} parent=1 // pred_fallthru
      _
    // Predicated region
    $region6: #{tpu_custom_call.1} parent=1 // pred_check
      _
    $region7: #{tpu_custom_call.1} parent=1 // pred_check_branch
      %84 = sbr.rel (0) target = $region9
    $region8: #{tpu_custom_call.1} parent=1 // pred_region
      _
    $region9: #{tpu_custom_call.1} parent=1 // pred_fallthru
      _
    // Predicated region
    $region10: #{tpu_custom_call.1} parent=1 // pred_check
      _
    $region11: #{tpu_custom_call.1} parent=1 // pred_check_branch
      %86 = sbr.rel (0) target = $region13
    $region12: #{tpu_custom_call.1} parent=1 // pred_region
      _
    $region13: #{tpu_custom_call.1} parent=1 // pred_fallthru
      _
    // Predicated region
    $region14: #{tpu_custom_call.1} parent=1 // pred_check
      _
    $region15: #{tpu_custom_call.1} parent=1 // pred_check_branch
      %88 = sbr.rel (0) target = $region17
    $region16: #{tpu_custom_call.1} parent=1 // pred_region
      _
    $region17: #{tpu_custom_call.1} parent=1 // pred_fallthru
      _
    // Predicated region
    $region18: #{tpu_custom_call.1} parent=1 // pred_check
      _
    $region19: #{tpu_custom_call.1} parent=1 // pred_check_branch
      %90 = sbr.rel (0) target = $region21
    $region20: #{tpu_custom_call.1} parent=1 // pred_region
      _
    $region21: #{tpu_custom_call.1} parent=1 // pred_fallthru
      _
    // Predicated region
    $region22: #{tpu_custom_call.1} parent=1 // pred_check
      _
    $region23: #{tpu_custom_call.1} parent=1 // pred_check_branch
      %92 = sbr.rel (0) target = $region25
    $region24: #{tpu_custom_call.1} parent=1 // pred_region
      _
    $region25: #{tpu_custom_call.1} parent=1 // pred_fallthru
      _
    // Predicated region
    $region26: #{tpu_custom_call.1} parent=1 // pred_check
      _
    $region27: #{tpu_custom_call.1} parent=1 // pred_check_branch
      %94 = sbr.rel (0) target = $region29
    $region28: #{tpu_custom_call.1} parent=1 // pred_region
      _
    $region29: #{tpu_custom_call.1} parent=1 // pred_fallthru
      _
    // Predicated region
    $region30: #{tpu_custom_call.1} parent=1 // pred_check
      _
    $region31: #{tpu_custom_call.1} parent=1 // pred_check_branch
      %96 = sbr.rel (0) target = $region33
    $region32: #{tpu_custom_call.1} parent=1 // pred_region
      _
    $region33: #{tpu_custom_call.1} parent=1 // pred_fallthru
      _
    // Predicated region
    $region34: #{tpu_custom_call.1} parent=1 // pred_check
      _
    $region35: #{tpu_custom_call.1} parent=1 // pred_check_branch
      %98 = sbr.rel (0) target = $region37
    $region36: #{tpu_custom_call.1} parent=1 // pred_region
      _
    $region37: #{tpu_custom_call.1} parent=1 // pred_fallthru
      _
    // Predicated region
    $region38: #{tpu_custom_call.1} parent=1 // pred_check
      _
    $region39: #{tpu_custom_call.1} parent=1 // pred_check_branch
      %100 = sbr.rel (0) target = $region41
    $region40: #{tpu_custom_call.1} parent=1 // pred_region
      _
    $region41: #{tpu_custom_call.1} parent=1 // pred_fallthru
      _
    // Predicated region
    $region42: #{tpu_custom_call.1} parent=1 // pred_check
      _
    $region43: #{tpu_custom_call.1} parent=1 // pred_check_branch
      %102 = sbr.rel (0) target = $region45
    $region44: #{tpu_custom_call.1} parent=1 // pred_region
      _
    $region45: #{tpu_custom_call.1} parent=1 // pred_fallthru
      _
    // Predicated region
    $region46: #{tpu_custom_call.1} parent=1 // pred_check
      _
    $region47: #{tpu_custom_call.1} parent=1 // pred_check_branch
      %104 = sbr.rel (0) target = $region49
    $region48: #{tpu_custom_call.1} parent=1 // pred_region
      _
    $region49: #{tpu_custom_call.1} parent=1 // pred_fallthru
      _
    // Predicated region
    $region50: #{tpu_custom_call.1} parent=1 // pred_check
      _
    $region51: #{tpu_custom_call.1} parent=1 // pred_check_branch
      %106 = sbr.rel (0) target = $region53
    $region52: #{tpu_custom_call.1} parent=1 // pred_region
      _
    $region53: #{tpu_custom_call.1} parent=1 // pred_fallthru
      _
    // Predicated region
    $region54: #{tpu_custom_call.1} parent=1 // pred_check
      _
    $region55: #{tpu_custom_call.1} parent=1 // pred_check_branch
      %108 = sbr.rel (0) target = $region57
    $region56: #{tpu_custom_call.1} parent=1 // pred_region
      _
    $region57: #{tpu_custom_call.1} parent=1 // pred_fallthru
      _
    // Predicated region
    $region58: #{tpu_custom_call.1} parent=1 // pred_check
      _
    $region59: #{tpu_custom_call.1} parent=1 // pred_check_branch
      %110 = sbr.rel (0) target = $region61
    $region60: #{tpu_custom_call.1} parent=1 // pred_region
      _
    $region61: #{tpu_custom_call.1} parent=1 // pred_fallthru
      _
    // Predicated region
    $region62: #{tpu_custom_call.1} parent=1 // pred_check
      _
    $region63: #{tpu_custom_call.1} parent=1 // pred_check_branch
      %112 = sbr.rel (0) target = $region65
    $region64: #{tpu_custom_call.1} parent=1 // pred_region
      _
    $region65: #{tpu_custom_call.1} parent=1 // pred_fallthru
      _
    // Predicated region
    $region66: #{tpu_custom_call.1} parent=1 // pred_check
      _
    $region67: #{tpu_custom_call.1} parent=1 // pred_check_branch
      %114 = sbr.rel (0) target = $region69
    $region68: #{tpu_custom_call.1} parent=1 // pred_region
      _
    $region69: #{tpu_custom_call.1} parent=1 // pred_fallthru
      _
    // Predicated region
    $region70: #{tpu_custom_call.1} parent=1 // pred_check
      _
    $region71: #{tpu_custom_call.1} parent=1 // pred_check_branch
      %116 = sbr.rel (0) target = $region73
    $region72: #{tpu_custom_call.1} parent=1 // pred_region
      _
    $region73: #{tpu_custom_call.1} parent=1 // pred_fallthru
      _
    // Predicated region
    $region74: #{tpu_custom_call.1} parent=1 // pred_check
      _
    $region75: #{tpu_custom_call.1} parent=1 // pred_check_branch
      %118 = sbr.rel (0) target = $region77
    $region76: #{tpu_custom_call.1} parent=1 // pred_region
      _
    $region77: #{tpu_custom_call.1} parent=1 // pred_fallthru
      _
    // Predicated region
    $region78: #{tpu_custom_call.1} parent=1 // pred_check
      _
    $region79: #{tpu_custom_call.1} parent=1 // pred_check_branch
      %120 = sbr.rel (0) target = $region81
    $region80: #{tpu_custom_call.1} parent=1 // pred_region
      _
    $region81: #{tpu_custom_call.1} parent=1 // pred_fallthru
      _
    // Predicated region
    $region82: #{tpu_custom_call.1} parent=1 // pred_check
      _
    $region83: #{tpu_custom_call.1} parent=1 // pred_check_branch
      %122 = sbr.rel (0) target = $region85
    $region84: #{tpu_custom_call.1} parent=1 // pred_region
      _
    $region85: #{tpu_custom_call.1} parent=1 // pred_fallthru
      _
    // Predicated region
    $region86: #{tpu_custom_call.1} parent=1 // pred_check
      _
    $region87: #{tpu_custom_call.1} parent=1 // pred_check_branch
      %124 = sbr.rel (0) target = $region89
    $region88: #{tpu_custom_call.1} parent=1 // pred_region
      _
    $region89: #{tpu_custom_call.1} parent=1 // pred_fallthru
      _
    // Predicated region
    $region90: #{tpu_custom_call.1} parent=1 // pred_check
      _
    $region91: #{tpu_custom_call.1} parent=1 // pred_check_branch
      %126 = sbr.rel (0) target = $region93
    $region92: #{tpu_custom_call.1} parent=1 // pred_region
      _
    $region93: #{tpu_custom_call.1} parent=1 // pred_fallthru
      _
    // Predicated region
    $region94: #{tpu_custom_call.1} parent=1 // pred_check
      _
    $region95: #{tpu_custom_call.1} parent=1 // pred_check_branch
      %128 = sbr.rel (0) target = $region97
    $region96: #{tpu_custom_call.1} parent=1 // pred_region
      _
    $region97: #{tpu_custom_call.1} parent=1 // pred_fallthru
      _
    // Predicated region
    $region98: #{tpu_custom_call.1} parent=1 // pred_check
      _
    $region99: #{tpu_custom_call.1} parent=1 // pred_check_branch
      %130 = sbr.rel (0) target = $region101
    $region100: #{tpu_custom_call.1} parent=1 // pred_region
      _
    $region101: #{tpu_custom_call.1} parent=1 // pred_fallthru
      _
    // Predicated region
    $region102: #{tpu_custom_call.1} parent=1 // pred_check
      _
    $region103: #{tpu_custom_call.1} parent=1 // pred_check_branch
      %132 = sbr.rel (0) target = $region105
    $region104: #{tpu_custom_call.1} parent=1 // pred_region
      _
    $region105: #{tpu_custom_call.1} parent=1 // pred_fallthru
      _
    // Predicated region
    $region106: #{tpu_custom_call.1} parent=1 // pred_check
      _
    $region107: #{tpu_custom_call.1} parent=1 // pred_check_branch
      %134 = sbr.rel (0) target = $region109
    $region108: #{tpu_custom_call.1} parent=1 // pred_region
      _
    $region109: #{tpu_custom_call.1} parent=1 // pred_fallthru
      _
    // Predicated region
    $region110: #{tpu_custom_call.1} parent=1 // pred_check
      _
    $region111: #{tpu_custom_call.1} parent=1 // pred_check_branch
      %136 = sbr.rel (0) target = $region113
    $region112: #{tpu_custom_call.1} parent=1 // pred_region
      _
    $region113: #{tpu_custom_call.1} parent=1 // pred_fallthru
      _
    // Predicated region
    $region114: #{tpu_custom_call.1} parent=1 // pred_check
      _
    $region115: #{tpu_custom_call.1} parent=1 // pred_check_branch
      %138 = sbr.rel (0) target = $region117
    $region116: #{tpu_custom_call.1} parent=1 // pred_region
      _
    $region117: #{tpu_custom_call.1} parent=1 // pred_fallthru
      _
    // Predicated region
    $region118: #{tpu_custom_call.1} parent=1 // pred_check
      _
    $region119: #{tpu_custom_call.1} parent=1 // pred_check_branch
      %140 = sbr.rel (0) target = $region121
    $region120: #{tpu_custom_call.1} parent=1 // pred_region
      _
    $region121: #{tpu_custom_call.1} parent=1 // pred_fallthru
      _
    // Predicated region
    $region122: #{tpu_custom_call.1} parent=1 // pred_check
      _
    $region123: #{tpu_custom_call.1} parent=1 // pred_check_branch
      %142 = sbr.rel (0) target = $region125
    $region124: #{tpu_custom_call.1} parent=1 // pred_region
      _
    $region125: #{tpu_custom_call.1} parent=1 // pred_fallthru
      _
    // Predicated region
    $region126: #{tpu_custom_call.1} parent=1 // pred_check
      _
    $region127: #{tpu_custom_call.1} parent=1 // pred_check_branch
      %144 = sbr.rel (0) target = $region129
    $region128: #{tpu_custom_call.1} parent=1 // pred_region
      _
    $region129: #{tpu_custom_call.1} parent=1 // pred_fallthru
      _
    // Predicated region
    $region130: #{tpu_custom_call.1} parent=1 // pred_check
      _
    $region131: #{tpu_custom_call.1} parent=1 // pred_check_branch
      %146 = sbr.rel (0) target = $region133
    $region132: #{tpu_custom_call.1} parent=1 // pred_region
      _
    $region133: #{tpu_custom_call.1} parent=1 // pred_fallthru
      _
    // Predicated region
    $region134: #{tpu_custom_call.1} parent=1 // pred_check
      _
    $region135: #{tpu_custom_call.1} parent=1 // pred_check_branch
      %148 = sbr.rel (0) target = $region137
    $region136: #{tpu_custom_call.1} parent=1 // pred_region
      _
    $region137: #{tpu_custom_call.1} parent=1 // pred_fallthru
      _
    %v150 = vld [vmem:[%s1] sm:$0xff]
    %v151 = vld [vmem:[%s1 + $0x8] sm:$0x3]
    %v152 = vld [vmem:[%s5] sm:$0xff]
    %v153 = vpack.c.bf16 %v152, %v152
    %v154 = vld [vmem:[%s7] sm:$0xf]
    %v155 = vld [vmem:[%s7 + $0x4] sm:$0xf]
    %v156 = vld [vmem:[%s9] sm:$0x1]
    %v158 = vlaneseq
    %v159 = vshrl.u32 %v158, 7
    %v160 = vsub.s32 0, %v159
    %v161 = vrot.slane %v156, %v160
    %v165 = vunpack.c.l.b16 %v154
    %v166 = vunpack.c.l.b16 %v155
    %v167 = vpack.c.b16 %v166, %v165
    %vm169 = vcmask 130048
    %v171 = vsel %vm169, %v153, 0
    %173 = vmatprep.subr.bf16.mxu0 0
    %174 = vmatpush1.bf16.msra.mxu0 %v167
    %175 = vmatprep.subr.bf16.mxu0 0
    %176 = vmatpush1.bf16.msra.mxu0 0
    %177 = vmatprep.subr.bf16.mxu0 0
    %178 = vmatpush1.bf16.msra.mxu0 0
    %179 = vmatprep.subr.bf16.mxu0 0
    %180 = vmatpush1.bf16.msra.mxu0 0
    %181 = vmatprep.subr.bf16.mxu0 0
    %182 = vmatpush1.bf16.msra.mxu0 0
    %183 = vmatprep.subr.bf16.mxu0 0
    %184 = vmatpush1.bf16.msra.mxu0 0
    %185 = vmatprep.subr.bf16.mxu0 0
    %186 = vmatpush1.bf16.msra.mxu0 0
    %187 = vmatprep.subr.bf16.mxu0 0
    %188 = vmatpush1.bf16.msra.mxu0 0
    %189 = vmatprep.subr.bf16.mxu0 0
    %190 = vmatpush1.bf16.msra.mxu0 0
    %191 = vmatprep.subr.bf16.mxu0 0
    %192 = vmatpush1.bf16.msra.mxu0 0
    %193 = vmatprep.subr.bf16.mxu0 0
    %194 = vmatpush1.bf16.msra.mxu0 0
    %195 = vmatprep.subr.bf16.mxu0 0
    %196 = vmatpush1.bf16.msra.mxu0 0
    %197 = vmatprep.subr.bf16.mxu0 0
    %198 = vmatpush1.bf16.msra.mxu0 0
    %199 = vmatprep.subr.bf16.mxu0 0
    %200 = vmatpush1.bf16.msra.mxu0 0
    %201 = vmatprep.subr.bf16.mxu0 0
    %202 = vmatpush1.bf16.msra.mxu0 0
    %203 = vmatprep.subr.bf16.mxu0 0
    %204 = vmatpush1.bf16.msra.mxu0 0
    %205 = vmatprep.mubr.bf16.mxu0 0
    %206 = vmatmul.mubr.bf16.gmra.mrb[0].mxu0 %v171
    %v207 = vpop.f32.mrb[0].mxu0
    %v208 = vadd.f32 %v161, %v207
    %v209 = vpop.f32.mrb[0].mxu0
    %v210 = vpop.f32.mrb[0].mxu0
    %v211 = vpop.f32.mrb[0].mxu0
    %212 = vdwg.mxu0
    %v213 = vlaneseq
    %v214 = vand.u32 %v213, 127
    %v215 = vlaneseq
    %v216 = vshrl.u32 %v215, 7
    %v217 = vsub.s32 0, %v216
    %v218 = vrot.slane %v150, %v217
    %220 = vbcast.lane.b32.xlu0 %v218, 256
    %v221 = vpop.permute.xlu0 %220
    %v222 = vlaneseq
    %v223 = vshrl.u32 %v222, 7
    %v224 = vsub.s32 1, %v223
    %v225 = vrot.slane %v150, %v224
    %227 = vbcast.lane.b32.xlu0 %v225, 256
    %v228 = vpop.permute.xlu0 %227
    %v229 = vlaneseq
    %v230 = vshrl.u32 %v229, 7
    %v231 = vsub.s32 2, %v230
    %v232 = vrot.slane %v150, %v231
    %234 = vbcast.lane.b32.xlu0 %v232, 256
    %v235 = vpop.permute.xlu0 %234
    %v236 = vlaneseq
    %v237 = vshrl.u32 %v236, 7
    %v238 = vsub.s32 3, %v237
    %v239 = vrot.slane %v150, %v238
    %241 = vbcast.lane.b32.xlu0 %v239, 256
    %v242 = vpop.permute.xlu0 %241
    %v243 = vlaneseq
    %v244 = vshrl.u32 %v243, 7
    %v245 = vsub.s32 4, %v244
    %v246 = vrot.slane %v150, %v245
    %248 = vbcast.lane.b32.xlu0 %v246, 256
    %v249 = vpop.permute.xlu0 %248
    %v250 = vlaneseq
    %v251 = vshrl.u32 %v250, 7
    %v252 = vsub.s32 5, %v251
    %v253 = vrot.slane %v150, %v252
    %255 = vbcast.lane.b32.xlu0 %v253, 256
    %v256 = vpop.permute.xlu0 %255
    %v257 = vlaneseq
    %v258 = vshrl.u32 %v257, 7
    %v259 = vsub.s32 6, %v258
    %v260 = vrot.slane %v150, %v259
    %262 = vbcast.lane.b32.xlu0 %v260, 256
    %v263 = vpop.permute.xlu0 %262
    %v264 = vlaneseq
    %v265 = vshrl.u32 %v264, 7
    %v266 = vsub.s32 7, %v265
    %v267 = vrot.slane %v150, %v266
    %269 = vbcast.lane.b32.xlu0 %v267, 256
    %v270 = vpop.permute.xlu0 %269
    %v271 = vlaneseq
    %v272 = vshrl.u32 %v271, 7
    %v273 = vsub.s32 0, %v272
    %v274 = vrot.slane %v151, %v273
    %276 = vbcast.lane.b32.xlu0 %v274, 256
    %v277 = vpop.permute.xlu0 %276
    %v278 = vlaneseq
    %v279 = vshrl.u32 %v278, 7
    %v280 = vsub.s32 1, %v279
    %v281 = vrot.slane %v151, %v280
    %283 = vbcast.lane.b32.xlu0 %v281, 256
    %v284 = vpop.permute.xlu0 %283
    %vm285 = vcmp.eq.s32.totalorder %v221, %v214
    %vm286 = vcmp.eq.s32.totalorder %v228, %v214
    %vm287 = vcmp.eq.s32.totalorder %v235, %v214
    %vm288 = vcmp.eq.s32.totalorder %v242, %v214
    %vm289 = vcmp.eq.s32.totalorder %v249, %v214
    %vm290 = vcmp.eq.s32.totalorder %v256, %v214
    %vm291 = vcmp.eq.s32.totalorder %v263, %v214
    %vm292 = vcmp.eq.s32.totalorder %v270, %v214
    %vm293 = vcmp.eq.s32.totalorder %v277, %v214
    %vm294 = vcmp.eq.s32.totalorder %v284, %v214
    %v295 = vsel %vm285, 1, 0
    %v296 = vsel %vm286, 1, 0
    %v297 = vsel %vm287, 1, 0
    %v298 = vsel %vm288, 1, 0
    %v299 = vsel %vm289, 1, 0
    %v300 = vsel %vm290, 1, 0
    %v301 = vsel %vm291, 1, 0
    %v302 = vsel %vm292, 1, 0
    %v303 = vsel %vm293, 1, 0
    %v304 = vsel %vm294, 1, 0
    %v305 = vcvt.s32.f32 %v295
    %v306 = vcvt.s32.f32 %v296
    %v307 = vcvt.s32.f32 %v297
    %v308 = vcvt.s32.f32 %v298
    %v309 = vcvt.s32.f32 %v299
    %v310 = vcvt.s32.f32 %v300
    %v311 = vcvt.s32.f32 %v301
    %v312 = vcvt.s32.f32 %v302
    %v313 = vcvt.s32.f32 %v303
    %v314 = vcvt.s32.f32 %v304
    %v315 = vpack.c.bf16 %v306, %v305
    %v316 = vpack.c.bf16 %v308, %v307
    %v317 = vpack.c.bf16 %v310, %v309
    %v318 = vpack.c.bf16 %v312, %v311
    %v319 = vpack.c.bf16 %v314, %v313
    %v320 = vld [vmem:[%s11] sm:$0xf]
    %v321 = vld [vmem:[%s11 + $0x4] sm:$0xf]
    %v322 = vld [vmem:[%s11 + $0x8] sm:$0xf]
    %v323 = vld [vmem:[%s11 + $0xc] sm:$0xf]
    %v324 = vld [vmem:[%s11 + $0x10] sm:$0xf]
    %v325 = vld [vmem:[%s11 + $0x14] sm:$0xf]
    %v326 = vld [vmem:[%s11 + $0x18] sm:$0xf]
    %v327 = vld [vmem:[%s11 + $0x1c] sm:$0xf]
    %v328 = vld [vmem:[%s11 + $0x20] sm:$0xf]
    %v329 = vld [vmem:[%s11 + $0x24] sm:$0xf]
    %v330 = vld [vmem:[%s11 + $0x28] sm:$0xf]
    %v331 = vld [vmem:[%s11 + $0x2c] sm:$0xf]
    %v332 = vld [vmem:[%s11 + $0x30] sm:$0xf]
    %v333 = vld [vmem:[%s11 + $0x34] sm:$0xf]
    %v334 = vld [vmem:[%s11 + $0x38] sm:$0xf]
    %v335 = vld [vmem:[%s11 + $0x3c] sm:$0xf]
    %v352 = vunpack.c.l.b16 %v320
    %v353 = vunpack.c.l.b16 %v321
    %v354 = vunpack.c.l.b16 %v322
    %v355 = vunpack.c.l.b16 %v323
    %v356 = vunpack.c.l.b16 %v324
    %v357 = vunpack.c.l.b16 %v325
    %v358 = vunpack.c.l.b16 %v326
    %v359 = vunpack.c.l.b16 %v327
    %v360 = vunpack.c.l.b16 %v328
    %v361 = vunpack.c.l.b16 %v329
    %v362 = vunpack.c.l.b16 %v330
    %v363 = vunpack.c.l.b16 %v331
    %v364 = vunpack.c.l.b16 %v332
    %v365 = vunpack.c.l.b16 %v333
    %v366 = vunpack.c.l.b16 %v334
    %v367 = vunpack.c.l.b16 %v335
    %v368 = vpack.c.b16 %v353, %v352
    %v369 = vpack.c.b16 %v355, %v354
    %v370 = vpack.c.b16 %v357, %v356
    %v371 = vpack.c.b16 %v359, %v358
    %v372 = vpack.c.b16 %v361, %v360
    %v373 = vpack.c.b16 %v363, %v362
    %v374 = vpack.c.b16 %v365, %v364
    %v375 = vpack.c.b16 %v367, %v366
    %384 = vmatprep.subr.bf16.mxu0 0
    %385 = vmatpush1.bf16.msra.mxu0 %v368
    %386 = vmatprep.subr.bf16.mxu0 0
    %387 = vmatpush1.bf16.msra.mxu0 %v369
    %388 = vmatprep.subr.bf16.mxu0 0
    %389 = vmatpush1.bf16.msra.mxu0 %v370
    %390 = vmatprep.subr.bf16.mxu0 0
    %391 = vmatpush1.bf16.msra.mxu0 %v371
    %392 = vmatprep.subr.bf16.mxu0 0
    %393 = vmatpush1.bf16.msra.mxu0 %v372
    %394 = vmatprep.subr.bf16.mxu0 0
    %395 = vmatpush1.bf16.msra.mxu0 %v373
    %396 = vmatprep.subr.bf16.mxu0 0
    %397 = vmatpush1.bf16.msra.mxu0 %v374
    %398 = vmatprep.subr.bf16.mxu0 0
    %399 = vmatpush1.bf16.msra.mxu0 %v375
    %400 = vmatprep.subr.bf16.mxu0 0
    %401 = vmatpush1.bf16.msra.mxu0 0
    %402 = vmatprep.subr.bf16.mxu0 0
    %403 = vmatpush1.bf16.msra.mxu0 0
    %404 = vmatprep.subr.bf16.mxu0 0
    %405 = vmatpush1.bf16.msra.mxu0 0
    %406 = vmatprep.subr.bf16.mxu0 0
    %407 = vmatpush1.bf16.msra.mxu0 0
    %408 = vmatprep.subr.bf16.mxu0 0
    %409 = vmatpush1.bf16.msra.mxu0 0
    %410 = vmatprep.subr.bf16.mxu0 0
    %411 = vmatpush1.bf16.msra.mxu0 0
    %412 = vmatprep.subr.bf16.mxu0 0
    %413 = vmatpush1.bf16.msra.mxu0 0
    %414 = vmatprep.subr.bf16.mxu0 0
    %415 = vmatpush1.bf16.msra.mxu0 0
    %416 = vmatprep.mubr.bf16.mxu0 0
    %417 = vmatmul.mubr.bf16.gmra.mrb[0].mxu0 %v315
    %v418 = vpop.f32.mrb[0].mxu0
    %v419 = vadd.f32 0.0, %v418
    %v420 = vpop.f32.mrb[0].mxu0
    %v421 = vpop.f32.mrb[0].mxu0
    %v422 = vadd.f32 0.0, %v421
    %v423 = vpop.f32.mrb[0].mxu0
    %424 = vmatprep.mubr.bf16.mxu0 0
    %425 = vmatmul.mubr.bf16.gmra.mrb[0].mxu0 %v316
    %v426 = vpop.f32.mrb[0].mxu0
    %v427 = vadd.f32 0.0, %v426
    %v428 = vpop.f32.mrb[0].mxu0
    %v429 = vpop.f32.mrb[0].mxu0
    %v430 = vadd.f32 0.0, %v429
    %v431 = vpop.f32.mrb[0].mxu0
    %432 = vmatprep.mubr.bf16.mxu0 0
    %433 = vmatmul.mubr.bf16.gmra.mrb[0].mxu0 %v317
    %v434 = vpop.f32.mrb[0].mxu0
    %v435 = vadd.f32 0.0, %v434
    %v436 = vpop.f32.mrb[0].mxu0
    %v437 = vpop.f32.mrb[0].mxu0
    %v438 = vadd.f32 0.0, %v437
    %v439 = vpop.f32.mrb[0].mxu0
    %440 = vmatprep.mubr.bf16.mxu0 0
    %441 = vmatmul.mubr.bf16.gmra.mrb[0].mxu0 %v318
    %v442 = vpop.f32.mrb[0].mxu0
    %v443 = vadd.f32 0.0, %v442
    %v444 = vpop.f32.mrb[0].mxu0
    %v445 = vpop.f32.mrb[0].mxu0
    %v446 = vadd.f32 0.0, %v445
    %v447 = vpop.f32.mrb[0].mxu0
    %448 = vmatprep.mubr.bf16.mxu0 0
    %449 = vmatmul.mubr.bf16.gmra.mrb[0].mxu0 %v319
    %v450 = vpop.f32.mrb[0].mxu0
    %v451 = vadd.f32 0.0, %v450
    %v452 = vpop.f32.mrb[0].mxu0
    %v453 = vpop.f32.mrb[0].mxu0
    %v454 = vadd.f32 0.0, %v453
    %v455 = vpop.f32.mrb[0].mxu0
    %456 = vdwg.mxu0
    %v457 = vld [vmem:[%s17] sm:$0xf]
    %v458 = vld [vmem:[%s17 + $0x4] sm:$0xf]
    %v461 = vunpack.c.l.b16 %v457
    %v462 = vunpack.c.l.b16 %v458
    %v463 = vpack.c.b16 %v462, %v461
    %465 = vmatprep.subr.bf16.mxu0 0
    %466 = vmatpush1.bf16.msra.mxu0 %v463
    %467 = vmatprep.subr.bf16.mxu0 0
    %468 = vmatpush1.bf16.msra.mxu0 0
    %469 = vmatprep.subr.bf16.mxu0 0
    %470 = vmatpush1.bf16.msra.mxu0 0
    %471 = vmatprep.subr.bf16.mxu0 0
    %472 = vmatpush1.bf16.msra.mxu0 0
    %473 = vmatprep.subr.bf16.mxu0 0
    %474 = vmatpush1.bf16.msra.mxu0 0
    %475 = vmatprep.subr.bf16.mxu0 0
    %476 = vmatpush1.bf16.msra.mxu0 0
    %477 = vmatprep.subr.bf16.mxu0 0
    %478 = vmatpush1.bf16.msra.mxu0 0
    %479 = vmatprep.subr.bf16.mxu0 0
    %480 = vmatpush1.bf16.msra.mxu0 0
    %481 = vmatprep.subr.bf16.mxu0 0
    %482 = vmatpush1.bf16.msra.mxu0 0
    %483 = vmatprep.subr.bf16.mxu0 0
    %484 = vmatpush1.bf16.msra.mxu0 0
    %485 = vmatprep.subr.bf16.mxu0 0
    %486 = vmatpush1.bf16.msra.mxu0 0
    %487 = vmatprep.subr.bf16.mxu0 0
    %488 = vmatpush1.bf16.msra.mxu0 0
    %489 = vmatprep.subr.bf16.mxu0 0
    %490 = vmatpush1.bf16.msra.mxu0 0
    %491 = vmatprep.subr.bf16.mxu0 0
    %492 = vmatpush1.bf16.msra.mxu0 0
    %493 = vmatprep.subr.bf16.mxu0 0
    %494 = vmatpush1.bf16.msra.mxu0 0
    %495 = vmatprep.subr.bf16.mxu0 0
    %496 = vmatpush1.bf16.msra.mxu0 0
    %497 = vmatprep.mubr.bf16.mxu0 0
    %498 = vmatmul.mubr.bf16.gmra.mrb[0].mxu0 %v171
    %v499 = vpop.f32.mrb[0].mxu0
    %v500 = vadd.f32 0.0, %v499
    %v501 = vpop.f32.mrb[0].mxu0
    %v502 = vpop.f32.mrb[0].mxu0
    %v503 = vpop.f32.mrb[0].mxu0
    %504 = vdwg.mxu0
    %v505 = vadd.f32 %v419, %v500
    %v506 = vadd.f32 %v422, %v500
    %v507 = vadd.f32 %v427, %v500
    %v508 = vadd.f32 %v430, %v500
    %v509 = vadd.f32 %v435, %v500
    %v510 = vadd.f32 %v438, %v500
    %v511 = vadd.f32 %v443, %v500
    %v512 = vadd.f32 %v446, %v500
    %v513 = vadd.f32 %v451, %v500
    %v514 = vadd.f32 %v454, %v500
    %v515 = vld [vmem:[%s29] sm:$0x1]
    %v517 = vlaneseq
    %v518 = vshrl.u32 %v517, 7
    %v519 = vsub.s32 0, %v518
    %v520 = vrot.slane %v515, %v519
    %v522 = vadd.f32 %v505, %v520
    %v523 = vadd.f32 %v506, %v520
    %v524 = vadd.f32 %v507, %v520
    %v525 = vadd.f32 %v508, %v520
    %v526 = vadd.f32 %v509, %v520
    %v527 = vadd.f32 %v510, %v520
    %v528 = vadd.f32 %v511, %v520
    %v529 = vadd.f32 %v512, %v520
    %v530 = vadd.f32 %v513, %v520
    %v531 = vadd.f32 %v514, %v520
    %vm532 = vcmask 261120
    %533 = vst.msk [vmem:[#allocation2] sm:$0xff] %vm532, %v522
    %534 = vst.msk [vmem:[#allocation2 + $0x8] sm:$0xff] %vm532, %v523
    %535 = vst.msk [vmem:[#allocation2 + $0x10] sm:$0xff] %vm532, %v524
    %536 = vst.msk [vmem:[#allocation2 + $0x18] sm:$0xff] %vm532, %v525
    %537 = vst.msk [vmem:[#allocation2 + $0x20] sm:$0xff] %vm532, %v526
    %538 = vst.msk [vmem:[#allocation2 + $0x28] sm:$0xff] %vm532, %v527
    %539 = vst.msk [vmem:[#allocation2 + $0x30] sm:$0xff] %vm532, %v528
    %540 = vst.msk [vmem:[#allocation2 + $0x38] sm:$0xff] %vm532, %v529
    %541 = vst.msk [vmem:[#allocation2 + $0x40] sm:$0xff] %vm532, %v530
    %542 = vst.msk [vmem:[#allocation2 + $0x48] sm:$0xff] %vm532, %v531
    %v543 = vld [vmem:[%s13] sm:$0xf]
    %v544 = vld [vmem:[%s13 + $0x4] sm:$0xf]
    %v545 = vld [vmem:[%s13 + $0x8] sm:$0xf]
    %v546 = vld [vmem:[%s13 + $0xc] sm:$0xf]
    %v547 = vld [vmem:[%s13 + $0x10] sm:$0xf]
    %v548 = vld [vmem:[%s13 + $0x14] sm:$0xf]
    %v549 = vld [vmem:[%s13 + $0x18] sm:$0xf]
    %v550 = vld [vmem:[%s13 + $0x1c] sm:$0xf]
    %v551 = vld [vmem:[%s13 + $0x20] sm:$0xf]
    %v552 = vld [vmem:[%s13 + $0x24] sm:$0xf]
    %v553 = vld [vmem:[%s13 + $0x28] sm:$0xf]
    %v554 = vld [vmem:[%s13 + $0x2c] sm:$0xf]
    %v555 = vld [vmem:[%s13 + $0x30] sm:$0xf]
    %v556 = vld [vmem:[%s13 + $0x34] sm:$0xf]
    %v557 = vld [vmem:[%s13 + $0x38] sm:$0xf]
    %v558 = vld [vmem:[%s13 + $0x3c] sm:$0xf]
    %v575 = vunpack.c.l.b16 %v543
    %v576 = vunpack.c.l.b16 %v544
    %v577 = vunpack.c.l.b16 %v545
    %v578 = vunpack.c.l.b16 %v546
    %v579 = vunpack.c.l.b16 %v547
    %v580 = vunpack.c.l.b16 %v548
    %v581 = vunpack.c.l.b16 %v549
    %v582 = vunpack.c.l.b16 %v550
    %v583 = vunpack.c.l.b16 %v551
    %v584 = vunpack.c.l.b16 %v552
    %v585 = vunpack.c.l.b16 %v553
    %v586 = vunpack.c.l.b16 %v554
    %v587 = vunpack.c.l.b16 %v555
    %v588 = vunpack.c.l.b16 %v556
    %v589 = vunpack.c.l.b16 %v557
    %v590 = vunpack.c.l.b16 %v558
    %v591 = vpack.c.b16 %v576, %v575
    %v592 = vpack.c.b16 %v578, %v577
    %v593 = vpack.c.b16 %v580, %v579
    %v594 = vpack.c.b16 %v582, %v581
    %v595 = vpack.c.b16 %v584, %v583
    %v596 = vpack.c.b16 %v586, %v585
    %v597 = vpack.c.b16 %v588, %v587
    %v598 = vpack.c.b16 %v590, %v589
    %607 = vmatprep.subr.bf16.mxu0 0
    %608 = vmatpush1.bf16.msra.mxu0 %v591
    %609 = vmatprep.subr.bf16.mxu0 0
    %610 = vmatpush1.bf16.msra.mxu0 %v592
    %611 = vmatprep.subr.bf16.mxu0 0
    %612 = vmatpush1.bf16.msra.mxu0 %v593
    %613 = vmatprep.subr.bf16.mxu0 0
    %614 = vmatpush1.bf16.msra.mxu0 %v594
    %615 = vmatprep.subr.bf16.mxu0 0
    %616 = vmatpush1.bf16.msra.mxu0 %v595
    %617 = vmatprep.subr.bf16.mxu0 0
    %618 = vmatpush1.bf16.msra.mxu0 %v596
    %619 = vmatprep.subr.bf16.mxu0 0
    %620 = vmatpush1.bf16.msra.mxu0 %v597
    %621 = vmatprep.subr.bf16.mxu0 0
    %622 = vmatpush1.bf16.msra.mxu0 %v598
    %623 = vmatprep.subr.bf16.mxu0 0
    %624 = vmatpush1.bf16.msra.mxu0 0
    %625 = vmatprep.subr.bf16.mxu0 0
    %626 = vmatpush1.bf16.msra.mxu0 0
    %627 = vmatprep.subr.bf16.mxu0 0
    %628 = vmatpush1.bf16.msra.mxu0 0
    %629 = vmatprep.subr.bf16.mxu0 0
    %630 = vmatpush1.bf16.msra.mxu0 0
    %631 = vmatprep.subr.bf16.mxu0 0
    %632 = vmatpush1.bf16.msra.mxu0 0
    %633 = vmatprep.subr.bf16.mxu0 0
    %634 = vmatpush1.bf16.msra.mxu0 0
    %635 = vmatprep.subr.bf16.mxu0 0
    %636 = vmatpush1.bf16.msra.mxu0 0
    %637 = vmatprep.subr.bf16.mxu0 0
    %638 = vmatpush1.bf16.msra.mxu0 0
    %639 = vmatprep.mubr.bf16.mxu0 0
    %640 = vmatmul.mubr.bf16.gmra.mrb[0].mxu0 %v315
    %v641 = vpop.f32.mrb[0].mxu0
    %v642 = vadd.f32 0.0, %v641
    %v643 = vpop.f32.mrb[0].mxu0
    %v644 = vpop.f32.mrb[0].mxu0
    %v645 = vadd.f32 0.0, %v644
    %v646 = vpop.f32.mrb[0].mxu0
    %647 = vmatprep.mubr.bf16.mxu0 0
    %648 = vmatmul.mubr.bf16.gmra.mrb[0].mxu0 %v316
    %v649 = vpop.f32.mrb[0].mxu0
    %v650 = vadd.f32 0.0, %v649
    %v651 = vpop.f32.mrb[0].mxu0
    %v652 = vpop.f32.mrb[0].mxu0
    %v653 = vadd.f32 0.0, %v652
    %v654 = vpop.f32.mrb[0].mxu0
    %655 = vmatprep.mubr.bf16.mxu0 0
    %656 = vmatmul.mubr.bf16.gmra.mrb[0].mxu0 %v317
    %v657 = vpop.f32.mrb[0].mxu0
    %v658 = vadd.f32 0.0, %v657
    %v659 = vpop.f32.mrb[0].mxu0
    %v660 = vpop.f32.mrb[0].mxu0
    %v661 = vadd.f32 0.0, %v660
    %v662 = vpop.f32.mrb[0].mxu0
    %663 = vmatprep.mubr.bf16.mxu0 0
    %664 = vmatmul.mubr.bf16.gmra.mrb[0].mxu0 %v318
    %v665 = vpop.f32.mrb[0].mxu0
    %v666 = vadd.f32 0.0, %v665
    %v667 = vpop.f32.mrb[0].mxu0
    %v668 = vpop.f32.mrb[0].mxu0
    %v669 = vadd.f32 0.0, %v668
    %v670 = vpop.f32.mrb[0].mxu0
    %671 = vmatprep.mubr.bf16.mxu0 0
    %672 = vmatmul.mubr.bf16.gmra.mrb[0].mxu0 %v319
    %v673 = vpop.f32.mrb[0].mxu0
    %v674 = vadd.f32 0.0, %v673
    %v675 = vpop.f32.mrb[0].mxu0
    %v676 = vpop.f32.mrb[0].mxu0
    %v677 = vadd.f32 0.0, %v676
    %v678 = vpop.f32.mrb[0].mxu0
    %679 = vdwg.mxu0
    %v680 = vld [vmem:[%s19] sm:$0xf]
    %v681 = vld [vmem:[%s19 + $0x4] sm:$0xf]
    %v684 = vunpack.c.l.b16 %v680
    %v685 = vunpack.c.l.b16 %v681
    %v686 = vpack.c.b16 %v685, %v684
    %688 = vmatprep.subr.bf16.mxu0 0
    %689 = vmatpush1.bf16.msra.mxu0 %v686
    %690 = vmatprep.subr.bf16.mxu0 0
    %691 = vmatpush1.bf16.msra.mxu0 0
    %692 = vmatprep.subr.bf16.mxu0 0
    %693 = vmatpush1.bf16.msra.mxu0 0
    %694 = vmatprep.subr.bf16.mxu0 0
    %695 = vmatpush1.bf16.msra.mxu0 0
    %696 = vmatprep.subr.bf16.mxu0 0
    %697 = vmatpush1.bf16.msra.mxu0 0
    %698 = vmatprep.subr.bf16.mxu0 0
    %699 = vmatpush1.bf16.msra.mxu0 0
    %700 = vmatprep.subr.bf16.mxu0 0
    %701 = vmatpush1.bf16.msra.mxu0 0
    %702 = vmatprep.subr.bf16.mxu0 0
    %703 = vmatpush1.bf16.msra.mxu0 0
    %704 = vmatprep.subr.bf16.mxu0 0
    %705 = vmatpush1.bf16.msra.mxu0 0
    %706 = vmatprep.subr.bf16.mxu0 0
    %707 = vmatpush1.bf16.msra.mxu0 0
    %708 = vmatprep.subr.bf16.mxu0 0
    %709 = vmatpush1.bf16.msra.mxu0 0
    %710 = vmatprep.subr.bf16.mxu0 0
    %711 = vmatpush1.bf16.msra.mxu0 0
    %712 = vmatprep.subr.bf16.mxu0 0
    %713 = vmatpush1.bf16.msra.mxu0 0
    %714 = vmatprep.subr.bf16.mxu0 0
    %715 = vmatpush1.bf16.msra.mxu0 0
    %716 = vmatprep.subr.bf16.mxu0 0
    %717 = vmatpush1.bf16.msra.mxu0 0
    %718 = vmatprep.subr.bf16.mxu0 0
    %719 = vmatpush1.bf16.msra.mxu0 0
    %720 = vmatprep.mubr.bf16.mxu0 0
    %721 = vmatmul.mubr.bf16.gmra.mrb[0].mxu0 %v171
    %v722 = vpop.f32.mrb[0].mxu0
    %v723 = vadd.f32 0.0, %v722
    %v724 = vpop.f32.mrb[0].mxu0
    %v725 = vpop.f32.mrb[0].mxu0
    %v726 = vpop.f32.mrb[0].mxu0
    %727 = vdwg.mxu0
    %v728 = vadd.f32 %v642, %v723
    %v729 = vadd.f32 %v645, %v723
    %v730 = vadd.f32 %v650, %v723
    %v731 = vadd.f32 %v653, %v723
    %v732 = vadd.f32 %v658, %v723
    %v733 = vadd.f32 %v661, %v723
    %v734 = vadd.f32 %v666, %v723
    %v735 = vadd.f32 %v669, %v723
    %v736 = vadd.f32 %v674, %v723
    %v737 = vadd.f32 %v677, %v723
    %v738 = vld [vmem:[%s31] sm:$0x1]
    %v740 = vlaneseq
    %v741 = vshrl.u32 %v740, 7
    %v742 = vsub.s32 0, %v741
    %v743 = vrot.slane %v738, %v742
    %v745 = vadd.f32 %v728, %v743
    %v746 = vadd.f32 %v729, %v743
    %v747 = vadd.f32 %v730, %v743
    %v748 = vadd.f32 %v731, %v743
    %v749 = vadd.f32 %v732, %v743
    %v750 = vadd.f32 %v733, %v743
    %v751 = vadd.f32 %v734, %v743
    %v752 = vadd.f32 %v735, %v743
    %v753 = vadd.f32 %v736, %v743
    %v754 = vadd.f32 %v737, %v743
    %755 = vst.msk [vmem:[#allocation3] sm:$0xff] %vm532, %v745
    %756 = vst.msk [vmem:[#allocation3 + $0x8] sm:$0xff] %vm532, %v746
    %757 = vst.msk [vmem:[#allocation3 + $0x10] sm:$0xff] %vm532, %v747
    %758 = vst.msk [vmem:[#allocation3 + $0x18] sm:$0xff] %vm532, %v748
    %759 = vst.msk [vmem:[#allocation3 + $0x20] sm:$0xff] %vm532, %v749
    %760 = vst.msk [vmem:[#allocation3 + $0x28] sm:$0xff] %vm532, %v750
    %761 = vst.msk [vmem:[#allocation3 + $0x30] sm:$0xff] %vm532, %v751
    %762 = vst.msk [vmem:[#allocation3 + $0x38] sm:$0xff] %vm532, %v752
    %763 = vst.msk [vmem:[#allocation3 + $0x40] sm:$0xff] %vm532, %v753
    %764 = vst.msk [vmem:[#allocation3 + $0x48] sm:$0xff] %vm532, %v754
    %v765 = vld [vmem:[%s15] sm:$0xf]
    %v766 = vld [vmem:[%s15 + $0x4] sm:$0xf]
    %v767 = vld [vmem:[%s15 + $0x8] sm:$0xf]
    %v768 = vld [vmem:[%s15 + $0xc] sm:$0xf]
    %v769 = vld [vmem:[%s15 + $0x10] sm:$0xf]
    %v770 = vld [vmem:[%s15 + $0x14] sm:$0xf]
    %v771 = vld [vmem:[%s15 + $0x18] sm:$0xf]
    %v772 = vld [vmem:[%s15 + $0x1c] sm:$0xf]
    %v773 = vld [vmem:[%s15 + $0x20] sm:$0xf]
    %v774 = vld [vmem:[%s15 + $0x24] sm:$0xf]
    %v775 = vld [vmem:[%s15 + $0x28] sm:$0xf]
    %v776 = vld [vmem:[%s15 + $0x2c] sm:$0xf]
    %v777 = vld [vmem:[%s15 + $0x30] sm:$0xf]
    %v778 = vld [vmem:[%s15 + $0x34] sm:$0xf]
    %v779 = vld [vmem:[%s15 + $0x38] sm:$0xf]
    %v780 = vld [vmem:[%s15 + $0x3c] sm:$0xf]
    %v797 = vunpack.c.l.b16 %v765
    %v798 = vunpack.c.l.b16 %v766
    %v799 = vunpack.c.l.b16 %v767
    %v800 = vunpack.c.l.b16 %v768
    %v801 = vunpack.c.l.b16 %v769
    %v802 = vunpack.c.l.b16 %v770
    %v803 = vunpack.c.l.b16 %v771
    %v804 = vunpack.c.l.b16 %v772
    %v805 = vunpack.c.l.b16 %v773
    %v806 = vunpack.c.l.b16 %v774
    %v807 = vunpack.c.l.b16 %v775
    %v808 = vunpack.c.l.b16 %v776
    %v809 = vunpack.c.l.b16 %v777
    %v810 = vunpack.c.l.b16 %v778
    %v811 = vunpack.c.l.b16 %v779
    %v812 = vunpack.c.l.b16 %v780
    %v813 = vpack.c.b16 %v798, %v797
    %v814 = vpack.c.b16 %v800, %v799
    %v815 = vpack.c.b16 %v802, %v801
    %v816 = vpack.c.b16 %v804, %v803
    %v817 = vpack.c.b16 %v806, %v805
    %v818 = vpack.c.b16 %v808, %v807
    %v819 = vpack.c.b16 %v810, %v809
    %v820 = vpack.c.b16 %v812, %v811
    %829 = vmatprep.subr.bf16.mxu0 0
    %830 = vmatpush1.bf16.msra.mxu0 %v813
    %831 = vmatprep.subr.bf16.mxu0 0
    %832 = vmatpush1.bf16.msra.mxu0 %v814
    %833 = vmatprep.subr.bf16.mxu0 0
    %834 = vmatpush1.bf16.msra.mxu0 %v815
    %835 = vmatprep.subr.bf16.mxu0 0
    %836 = vmatpush1.bf16.msra.mxu0 %v816
    %837 = vmatprep.subr.bf16.mxu0 0
    %838 = vmatpush1.bf16.msra.mxu0 %v817
    %839 = vmatprep.subr.bf16.mxu0 0
    %840 = vmatpush1.bf16.msra.mxu0 %v818
    %841 = vmatprep.subr.bf16.mxu0 0
    %842 = vmatpush1.bf16.msra.mxu0 %v819
    %843 = vmatprep.subr.bf16.mxu0 0
    %844 = vmatpush1.bf16.msra.mxu0 %v820
    %845 = vmatprep.subr.bf16.mxu0 0
    %846 = vmatpush1.bf16.msra.mxu0 0
    %847 = vmatprep.subr.bf16.mxu0 0
    %848 = vmatpush1.bf16.msra.mxu0 0
    %849 = vmatprep.subr.bf16.mxu0 0
    %850 = vmatpush1.bf16.msra.mxu0 0
    %851 = vmatprep.subr.bf16.mxu0 0
    %852 = vmatpush1.bf16.msra.mxu0 0
    %853 = vmatprep.subr.bf16.mxu0 0
    %854 = vmatpush1.bf16.msra.mxu0 0
    %855 = vmatprep.subr.bf16.mxu0 0
    %856 = vmatpush1.bf16.msra.mxu0 0
    %857 = vmatprep.subr.bf16.mxu0 0
    %858 = vmatpush1.bf16.msra.mxu0 0
    %859 = vmatprep.subr.bf16.mxu0 0
    %860 = vmatpush1.bf16.msra.mxu0 0
    %861 = vmatprep.mubr.bf16.mxu0 0
    %862 = vmatmul.mubr.bf16.gmra.mrb[0].mxu0 %v315
    %v863 = vpop.f32.mrb[0].mxu0
    %v864 = vadd.f32 0.0, %v863
    %v865 = vpop.f32.mrb[0].mxu0
    %v866 = vpop.f32.mrb[0].mxu0
    %v867 = vadd.f32 0.0, %v866
    %v868 = vpop.f32.mrb[0].mxu0
    %869 = vmatprep.mubr.bf16.mxu0 0
    %870 = vmatmul.mubr.bf16.gmra.mrb[0].mxu0 %v316
    %v871 = vpop.f32.mrb[0].mxu0
    %v872 = vadd.f32 0.0, %v871
    %v873 = vpop.f32.mrb[0].mxu0
    %v874 = vpop.f32.mrb[0].mxu0
    %v875 = vadd.f32 0.0, %v874
    %v876 = vpop.f32.mrb[0].mxu0
    %877 = vmatprep.mubr.bf16.mxu0 0
    %878 = vmatmul.mubr.bf16.gmra.mrb[0].mxu0 %v317
    %v879 = vpop.f32.mrb[0].mxu0
    %v880 = vadd.f32 0.0, %v879
    %v881 = vpop.f32.mrb[0].mxu0
    %v882 = vpop.f32.mrb[0].mxu0
    %v883 = vadd.f32 0.0, %v882
    %v884 = vpop.f32.mrb[0].mxu0
    %885 = vmatprep.mubr.bf16.mxu0 0
    %886 = vmatmul.mubr.bf16.gmra.mrb[0].mxu0 %v318
    %v887 = vpop.f32.mrb[0].mxu0
    %v888 = vadd.f32 0.0, %v887
    %v889 = vpop.f32.mrb[0].mxu0
    %v890 = vpop.f32.mrb[0].mxu0
    %v891 = vadd.f32 0.0, %v890
    %v892 = vpop.f32.mrb[0].mxu0
    %893 = vmatprep.mubr.bf16.mxu0 0
    %894 = vmatmul.mubr.bf16.gmra.mrb[0].mxu0 %v319
    %v895 = vpop.f32.mrb[0].mxu0
    %v896 = vadd.f32 0.0, %v895
    %v897 = vpop.f32.mrb[0].mxu0
    %v898 = vpop.f32.mrb[0].mxu0
    %v899 = vadd.f32 0.0, %v898
    %v900 = vpop.f32.mrb[0].mxu0
    %901 = vdwg.mxu0
    %v902 = vld [vmem:[%s21] sm:$0xf]
    %v903 = vld [vmem:[%s21 + $0x4] sm:$0xf]
    %v906 = vunpack.c.l.b16 %v902
    %v907 = vunpack.c.l.b16 %v903
    %v908 = vpack.c.b16 %v907, %v906
    %910 = vmatprep.subr.bf16.mxu0 0
    %911 = vmatpush1.bf16.msra.mxu0 %v908
    %912 = vmatprep.subr.bf16.mxu0 0
    %913 = vmatpush1.bf16.msra.mxu0 0
    %914 = vmatprep.subr.bf16.mxu0 0
    %915 = vmatpush1.bf16.msra.mxu0 0
    %916 = vmatprep.subr.bf16.mxu0 0
    %917 = vmatpush1.bf16.msra.mxu0 0
    %918 = vmatprep.subr.bf16.mxu0 0
    %919 = vmatpush1.bf16.msra.mxu0 0
    %920 = vmatprep.subr.bf16.mxu0 0
    %921 = vmatpush1.bf16.msra.mxu0 0
    %922 = vmatprep.subr.bf16.mxu0 0
    %923 = vmatpush1.bf16.msra.mxu0 0
    %924 = vmatprep.subr.bf16.mxu0 0
    %925 = vmatpush1.bf16.msra.mxu0 0
    %926 = vmatprep.subr.bf16.mxu0 0
    %927 = vmatpush1.bf16.msra.mxu0 0
    %928 = vmatprep.subr.bf16.mxu0 0
    %929 = vmatpush1.bf16.msra.mxu0 0
    %930 = vmatprep.subr.bf16.mxu0 0
    %931 = vmatpush1.bf16.msra.mxu0 0
    %932 = vmatprep.subr.bf16.mxu0 0
    %933 = vmatpush1.bf16.msra.mxu0 0
    %934 = vmatprep.subr.bf16.mxu0 0
    %935 = vmatpush1.bf16.msra.mxu0 0
    %936 = vmatprep.subr.bf16.mxu0 0
    %937 = vmatpush1.bf16.msra.mxu0 0
    %938 = vmatprep.subr.bf16.mxu0 0
    %939 = vmatpush1.bf16.msra.mxu0 0
    %940 = vmatprep.subr.bf16.mxu0 0
    %941 = vmatpush1.bf16.msra.mxu0 0
    %942 = vmatprep.mubr.bf16.mxu0 0
    %943 = vmatmul.mubr.bf16.gmra.mrb[0].mxu0 %v171
    %v944 = vpop.f32.mrb[0].mxu0
    %v945 = vadd.f32 0.0, %v944
    %v946 = vpop.f32.mrb[0].mxu0
    %v947 = vpop.f32.mrb[0].mxu0
    %v948 = vpop.f32.mrb[0].mxu0
    %949 = vdwg.mxu0
    %v950 = vadd.f32 %v864, %v945
    %v951 = vadd.f32 %v867, %v945
    %v952 = vadd.f32 %v872, %v945
    %v953 = vadd.f32 %v875, %v945
    %v954 = vadd.f32 %v880, %v945
    %v955 = vadd.f32 %v883, %v945
    %v956 = vadd.f32 %v888, %v945
    %v957 = vadd.f32 %v891, %v945
    %v958 = vadd.f32 %v896, %v945
    %v959 = vadd.f32 %v899, %v945
    %v960 = vld [vmem:[%s33] sm:$0x1]
    %v962 = vlaneseq
    %v963 = vshrl.u32 %v962, 7
    %v964 = vsub.s32 0, %v963
    %v965 = vrot.slane %v960, %v964
    %v967 = vadd.f32 %v950, %v965
    %v968 = vadd.f32 %v951, %v965
    %v969 = vadd.f32 %v952, %v965
    %v970 = vadd.f32 %v953, %v965
    %v971 = vadd.f32 %v954, %v965
    %v972 = vadd.f32 %v955, %v965
    %v973 = vadd.f32 %v956, %v965
    %v974 = vadd.f32 %v957, %v965
    %v975 = vadd.f32 %v958, %v965
    %v976 = vadd.f32 %v959, %v965
    %977 = vst.msk [vmem:[#allocation4] sm:$0xff] %vm532, %v967
    %978 = vst.msk [vmem:[#allocation4 + $0x8] sm:$0xff] %vm532, %v968
    %979 = vst.msk [vmem:[#allocation4 + $0x10] sm:$0xff] %vm532, %v969
    %980 = vst.msk [vmem:[#allocation4 + $0x18] sm:$0xff] %vm532, %v970
    %981 = vst.msk [vmem:[#allocation4 + $0x20] sm:$0xff] %vm532, %v971
    %982 = vst.msk [vmem:[#allocation4 + $0x28] sm:$0xff] %vm532, %v972
    %983 = vst.msk [vmem:[#allocation4 + $0x30] sm:$0xff] %vm532, %v973
    %984 = vst.msk [vmem:[#allocation4 + $0x38] sm:$0xff] %vm532, %v974
    %985 = vst.msk [vmem:[#allocation4 + $0x40] sm:$0xff] %vm532, %v975
    %986 = vst.msk [vmem:[#allocation4 + $0x48] sm:$0xff] %vm532, %v976
    %v987 = vld [vmem:[%s23] sm:$0xf]
    %v988 = vld [vmem:[%s23 + $0x4] sm:$0xf]
    %v989 = vld [vmem:[%s23 + $0x8] sm:$0xf]
    %v990 = vld [vmem:[%s23 + $0xc] sm:$0xf]
    %v991 = vld [vmem:[%s25] sm:$0xf]
    %v992 = vld [vmem:[%s25 + $0x4] sm:$0xf]
    %v993 = vld [vmem:[%s25 + $0x8] sm:$0xf]
    %v994 = vld [vmem:[%s25 + $0xc] sm:$0xf]
    %v995 = vld [vmem:[%s27] sm:$0xf]
    %v996 = vld [vmem:[%s27 + $0x4] sm:$0xf]
    %v997 = vld [vmem:[%s27 + $0x8] sm:$0xf]
    %v998 = vld [vmem:[%s27 + $0xc] sm:$0xf]
    %v999 = vld [vmem:[%s35] sm:$0x1]
    %v1000 = vld [vmem:[%s37] sm:$0x1]
    %v1001 = vld [vmem:[%s39] sm:$0x1]
    %v1002 = vpack.c.bf16 %v208, %v208
    %v1004 = vlaneseq
    %v1005 = vshrl.u32 %v1004, 7
    %v1006 = vsub.s32 0, %v1005
    %v1007 = vrot.slane %v999, %v1006
    %v1013 = vunpack.c.l.b16 %v987
    %v1014 = vunpack.c.l.b16 %v988
    %v1015 = vunpack.c.l.b16 %v989
    %v1016 = vunpack.c.l.b16 %v990
    %v1017 = vpack.c.b16 %v1014, %v1013
    %v1018 = vpack.c.b16 %v1016, %v1015
    %v1022 = vsel %vm532, %v1002, 0
    %1024 = vmatprep.subr.bf16.mxu0 0
    %1025 = vmatpush1.bf16.msra.mxu0 %v1017
    %1026 = vmatprep.subr.bf16.mxu0 0
    %1027 = vmatpush1.bf16.msra.mxu0 %v1018
    %1028 = vmatprep.subr.bf16.mxu0 0
    %1029 = vmatpush1.bf16.msra.mxu0 0
    %1030 = vmatprep.subr.bf16.mxu0 0
    %1031 = vmatpush1.bf16.msra.mxu0 0
    %1032 = vmatprep.subr.bf16.mxu0 0
    %1033 = vmatpush1.bf16.msra.mxu0 0
    %1034 = vmatprep.subr.bf16.mxu0 0
    %1035 = vmatpush1.bf16.msra.mxu0 0
    %1036 = vmatprep.subr.bf16.mxu0 0
    %1037 = vmatpush1.bf16.msra.mxu0 0
    %1038 = vmatprep.subr.bf16.mxu0 0
    %1039 = vmatpush1.bf16.msra.mxu0 0
    %1040 = vmatprep.subr.bf16.mxu0 0
    %1041 = vmatpush1.bf16.msra.mxu0 0
    %1042 = vmatprep.subr.bf16.mxu0 0
    %1043 = vmatpush1.bf16.msra.mxu0 0
    %1044 = vmatprep.subr.bf16.mxu0 0
    %1045 = vmatpush1.bf16.msra.mxu0 0
    %1046 = vmatprep.subr.bf16.mxu0 0
    %1047 = vmatpush1.bf16.msra.mxu0 0
    %1048 = vmatprep.subr.bf16.mxu0 0
    %1049 = vmatpush1.bf16.msra.mxu0 0
    %1050 = vmatprep.subr.bf16.mxu0 0
    %1051 = vmatpush1.bf16.msra.mxu0 0
    %1052 = vmatprep.subr.bf16.mxu0 0
    %1053 = vmatpush1.bf16.msra.mxu0 0
    %1054 = vmatprep.subr.bf16.mxu0 0
    %1055 = vmatpush1.bf16.msra.mxu0 0
    %1056 = vmatprep.mubr.bf16.mxu0 0
    %1057 = vmatmul.mubr.bf16.gmra.mrb[0].mxu0 %v1022
    %v1058 = vpop.f32.mrb[0].mxu0
    %v1059 = vadd.f32 %v1007, %v1058
    %v1060 = vpop.f32.mrb[0].mxu0
    %v1061 = vpop.f32.mrb[0].mxu0
    %v1062 = vpop.f32.mrb[0].mxu0
    %1063 = vdwg.mxu0
    %v1065 = vlaneseq
    %v1066 = vshrl.u32 %v1065, 7
    %v1067 = vsub.s32 0, %v1066
    %v1068 = vrot.slane %v1000, %v1067
    %v1074 = vunpack.c.l.b16 %v991
    %v1075 = vunpack.c.l.b16 %v992
    %v1076 = vunpack.c.l.b16 %v993
    %v1077 = vunpack.c.l.b16 %v994
    %v1078 = vpack.c.b16 %v1075, %v1074
    %v1079 = vpack.c.b16 %v1077, %v1076
    %1082 = vmatprep.subr.bf16.mxu0 0
    %1083 = vmatpush1.bf16.msra.mxu0 %v1078
    %1084 = vmatprep.subr.bf16.mxu0 0
    %1085 = vmatpush1.bf16.msra.mxu0 %v1079
    %1086 = vmatprep.subr.bf16.mxu0 0
    %1087 = vmatpush1.bf16.msra.mxu0 0
    %1088 = vmatprep.subr.bf16.mxu0 0
    %1089 = vmatpush1.bf16.msra.mxu0 0
    %1090 = vmatprep.subr.bf16.mxu0 0
    %1091 = vmatpush1.bf16.msra.mxu0 0
    %1092 = vmatprep.subr.bf16.mxu0 0
    %1093 = vmatpush1.bf16.msra.mxu0 0
    %1094 = vmatprep.subr.bf16.mxu0 0
    %1095 = vmatpush1.bf16.msra.mxu0 0
    %1096 = vmatprep.subr.bf16.mxu0 0
    %1097 = vmatpush1.bf16.msra.mxu0 0
    %1098 = vmatprep.subr.bf16.mxu0 0
    %1099 = vmatpush1.bf16.msra.mxu0 0
    %1100 = vmatprep.subr.bf16.mxu0 0
    %1101 = vmatpush1.bf16.msra.mxu0 0
    %1102 = vmatprep.subr.bf16.mxu0 0
    %1103 = vmatpush1.bf16.msra.mxu0 0
    %1104 = vmatprep.subr.bf16.mxu0 0
    %1105 = vmatpush1.bf16.msra.mxu0 0
    %1106 = vmatprep.subr.bf16.mxu0 0
    %1107 = vmatpush1.bf16.msra.mxu0 0
    %1108 = vmatprep.subr.bf16.mxu0 0
    %1109 = vmatpush1.bf16.msra.mxu0 0
    %1110 = vmatprep.subr.bf16.mxu0 0
    %1111 = vmatpush1.bf16.msra.mxu0 0
    %1112 = vmatprep.subr.bf16.mxu0 0
    %1113 = vmatpush1.bf16.msra.mxu0 0
    %1114 = vmatprep.mubr.bf16.mxu0 0
    %1115 = vmatmul.mubr.bf16.gmra.mrb[0].mxu0 %v1022
    %v1116 = vpop.f32.mrb[0].mxu0
    %v1117 = vadd.f32 %v1068, %v1116
    %v1118 = vpop.f32.mrb[0].mxu0
    %v1119 = vpop.f32.mrb[0].mxu0
    %v1120 = vpop.f32.mrb[0].mxu0
    %1121 = vdwg.mxu0
    %v1123 = vlaneseq
    %v1124 = vshrl.u32 %v1123, 7
    %v1125 = vsub.s32 0, %v1124
    %v1126 = vrot.slane %v1001, %v1125
    %v1132 = vunpack.c.l.b16 %v995
    %v1133 = vunpack.c.l.b16 %v996
    %v1134 = vunpack.c.l.b16 %v997
    %v1135 = vunpack.c.l.b16 %v998
    %v1136 = vpack.c.b16 %v1133, %v1132
    %v1137 = vpack.c.b16 %v1135, %v1134
    %1140 = vmatprep.subr.bf16.mxu0 0
    %1141 = vmatpush1.bf16.msra.mxu0 %v1136
    %1142 = vmatprep.subr.bf16.mxu0 0
    %1143 = vmatpush1.bf16.msra.mxu0 %v1137
    %1144 = vmatprep.subr.bf16.mxu0 0
    %1145 = vmatpush1.bf16.msra.mxu0 0
    %1146 = vmatprep.subr.bf16.mxu0 0
    %1147 = vmatpush1.bf16.msra.mxu0 0
    %1148 = vmatprep.subr.bf16.mxu0 0
    %1149 = vmatpush1.bf16.msra.mxu0 0
    %1150 = vmatprep.subr.bf16.mxu0 0
    %1151 = vmatpush1.bf16.msra.mxu0 0
    %1152 = vmatprep.subr.bf16.mxu0 0
    %1153 = vmatpush1.bf16.msra.mxu0 0
    %1154 = vmatprep.subr.bf16.mxu0 0
    %1155 = vmatpush1.bf16.msra.mxu0 0
    %1156 = vmatprep.subr.bf16.mxu0 0
    %1157 = vmatpush1.bf16.msra.mxu0 0
    %1158 = vmatprep.subr.bf16.mxu0 0
    %1159 = vmatpush1.bf16.msra.mxu0 0
    %1160 = vmatprep.subr.bf16.mxu0 0
    %1161 = vmatpush1.bf16.msra.mxu0 0
    %1162 = vmatprep.subr.bf16.mxu0 0
    %1163 = vmatpush1.bf16.msra.mxu0 0
    %1164 = vmatprep.subr.bf16.mxu0 0
    %1165 = vmatpush1.bf16.msra.mxu0 0
    %1166 = vmatprep.subr.bf16.mxu0 0
    %1167 = vmatpush1.bf16.msra.mxu0 0
    %1168 = vmatprep.subr.bf16.mxu0 0
    %1169 = vmatpush1.bf16.msra.mxu0 0
    %1170 = vmatprep.subr.bf16.mxu0 0
    %1171 = vmatpush1.bf16.msra.mxu0 0
    %1172 = vmatprep.mubr.bf16.mxu0 0
    %1173 = vmatmul.mubr.bf16.gmra.mrb[0].mxu0 %v1022
    %v1174 = vpop.f32.mrb[0].mxu0
    %v1175 = vadd.f32 %v1126, %v1174
    %v1176 = vpop.f32.mrb[0].mxu0
    %v1177 = vpop.f32.mrb[0].mxu0
    %v1178 = vpop.f32.mrb[0].mxu0
    %1179 = vdwg.mxu0
    %v1180 = vld [vmem:[#allocation2] sm:$0xff]
    %v1181 = vadd.f32 %v1180, %v1059
    %v1182 = vxor.u32 %v1181, 2147483648
    %v1183 = vmul.f32 %v1182, 1.442695
    %v1184 = vpow.pop %v1183
    %v1185 = vadd.f32 %v1184, 1.0
    %v1186 = vrcp.pop %v1185
    %v1187 = vmul.f32 1.0, %v1186
    %v1188 = vld [vmem:[#allocation3] sm:$0xff]
    %v1189 = vadd.f32 %v1188, %v1117
    %v1190 = vxor.u32 %v1189, 2147483648
    %v1191 = vmul.f32 %v1190, 1.442695
    %v1192 = vpow.pop %v1191
    %v1193 = vadd.f32 %v1192, 1.0
    %v1194 = vrcp.pop %v1193
    %v1195 = vmul.f32 1.0, %v1194
    %v1196 = vld [vmem:[#allocation4] sm:$0xff]
    %v1197 = vmul.f32 %v1187, %v1175
    %v1198 = vadd.f32 %v1196, %v1197
    %v1199 = vtanh.pop %v1198
    %v1200 = vsub.f32 1.0, %v1195
    %v1201 = vmul.f32 %v1200, %v1199
    %v1202 = vmul.f32 %v1195, %v208
    %v1203 = vadd.f32 %v1201, %v1202
    %1204 = vst.msk [vmem:[#allocation5] sm:$0xff] %vm532, %v1203
    %v1205 = vpack.c.bf16 %v1203, %v1203
    %v1207 = vsel %vm532, %v1205, 0
    %1209 = vmatprep.subr.bf16.mxu0 0
    %1210 = vmatpush1.bf16.msra.mxu0 %v1017
    %1211 = vmatprep.subr.bf16.mxu0 0
    %1212 = vmatpush1.bf16.msra.mxu0 %v1018
    %1213 = vmatprep.subr.bf16.mxu0 0
    %1214 = vmatpush1.bf16.msra.mxu0 0
    %1215 = vmatprep.subr.bf16.mxu0 0
    %1216 = vmatpush1.bf16.msra.mxu0 0
    %1217 = vmatprep.subr.bf16.mxu0 0
    %1218 = vmatpush1.bf16.msra.mxu0 0
    %1219 = vmatprep.subr.bf16.mxu0 0
    %1220 = vmatpush1.bf16.msra.mxu0 0
    %1221 = vmatprep.subr.bf16.mxu0 0
    %1222 = vmatpush1.bf16.msra.mxu0 0
    %1223 = vmatprep.subr.bf16.mxu0 0
    %1224 = vmatpush1.bf16.msra.mxu0 0
    %1225 = vmatprep.subr.bf16.mxu0 0
    %1226 = vmatpush1.bf16.msra.mxu0 0
    %1227 = vmatprep.subr.bf16.mxu0 0
    %1228 = vmatpush1.bf16.msra.mxu0 0
    %1229 = vmatprep.subr.bf16.mxu0 0
    %1230 = vmatpush1.bf16.msra.mxu0 0
    %1231 = vmatprep.subr.bf16.mxu0 0
    %1232 = vmatpush1.bf16.msra.mxu0 0
    %1233 = vmatprep.subr.bf16.mxu0 0
    %1234 = vmatpush1.bf16.msra.mxu0 0
    %1235 = vmatprep.subr.bf16.mxu0 0
    %1236 = vmatpush1.bf16.msra.mxu0 0
    %1237 = vmatprep.subr.bf16.mxu0 0
    %1238 = vmatpush1.bf16.msra.mxu0 0
    %1239 = vmatprep.subr.bf16.mxu0 0
    %1240 = vmatpush1.bf16.msra.mxu0 0
    %1241 = vmatprep.mubr.bf16.mxu0 0
    %1242 = vmatmul.mubr.bf16.gmra.mrb[0].mxu0 %v1207
    %v1243 = vpop.f32.mrb[0].mxu0
    %v1244 = vadd.f32 %v1007, %v1243
    %v1245 = vpop.f32.mrb[0].mxu0
    %v1246 = vpop.f32.mrb[0].mxu0
    %v1247 = vpop.f32.mrb[0].mxu0
    %1248 = vdwg.mxu0
    %1249 = vmatprep.subr.bf16.mxu0 0
    %1250 = vmatpush1.bf16.msra.mxu0 %v1078
    %1251 = vmatprep.subr.bf16.mxu0 0
    %1252 = vmatpush1.bf16.msra.mxu0 %v1079
    %1253 = vmatprep.subr.bf16.mxu0 0
    %1254 = vmatpush1.bf16.msra.mxu0 0
    %1255 = vmatprep.subr.bf16.mxu0 0
    %1256 = vmatpush1.bf16.msra.mxu0 0
    %1257 = vmatprep.subr.bf16.mxu0 0
    %1258 = vmatpush1.bf16.msra.mxu0 0
    %1259 = vmatprep.subr.bf16.mxu0 0
    %1260 = vmatpush1.bf16.msra.mxu0 0
    %1261 = vmatprep.subr.bf16.mxu0 0
    %1262 = vmatpush1.bf16.msra.mxu0 0
    %1263 = vmatprep.subr.bf16.mxu0 0
    %1264 = vmatpush1.bf16.msra.mxu0 0
    %1265 = vmatprep.subr.bf16.mxu0 0
    %1266 = vmatpush1.bf16.msra.mxu0 0
    %1267 = vmatprep.subr.bf16.mxu0 0
    %1268 = vmatpush1.bf16.msra.mxu0 0
    %1269 = vmatprep.subr.bf16.mxu0 0
    %1270 = vmatpush1.bf16.msra.mxu0 0
    %1271 = vmatprep.subr.bf16.mxu0 0
    %1272 = vmatpush1.bf16.msra.mxu0 0
    %1273 = vmatprep.subr.bf16.mxu0 0
    %1274 = vmatpush1.bf16.msra.mxu0 0
    %1275 = vmatprep.subr.bf16.mxu0 0
    %1276 = vmatpush1.bf16.msra.mxu0 0
    %1277 = vmatprep.subr.bf16.mxu0 0
    %1278 = vmatpush1.bf16.msra.mxu0 0
    %1279 = vmatprep.subr.bf16.mxu0 0
    %1280 = vmatpush1.bf16.msra.mxu0 0
    %1281 = vmatprep.mubr.bf16.mxu0 0
    %1282 = vmatmul.mubr.bf16.gmra.mrb[0].mxu0 %v1207
    %v1283 = vpop.f32.mrb[0].mxu0
    %v1284 = vadd.f32 %v1068, %v1283
    %v1285 = vpop.f32.mrb[0].mxu0
    %v1286 = vpop.f32.mrb[0].mxu0
    %v1287 = vpop.f32.mrb[0].mxu0
    %1288 = vdwg.mxu0
    %1289 = vmatprep.subr.bf16.mxu0 0
    %1290 = vmatpush1.bf16.msra.mxu0 %v1136
    %1291 = vmatprep.subr.bf16.mxu0 0
    %1292 = vmatpush1.bf16.msra.mxu0 %v1137
    %1293 = vmatprep.subr.bf16.mxu0 0
    %1294 = vmatpush1.bf16.msra.mxu0 0
    %1295 = vmatprep.subr.bf16.mxu0 0
    %1296 = vmatpush1.bf16.msra.mxu0 0
    %1297 = vmatprep.subr.bf16.mxu0 0
    %1298 = vmatpush1.bf16.msra.mxu0 0
    %1299 = vmatprep.subr.bf16.mxu0 0
    %1300 = vmatpush1.bf16.msra.mxu0 0
    %1301 = vmatprep.subr.bf16.mxu0 0
    %1302 = vmatpush1.bf16.msra.mxu0 0
    %1303 = vmatprep.subr.bf16.mxu0 0
    %1304 = vmatpush1.bf16.msra.mxu0 0
    %1305 = vmatprep.subr.bf16.mxu0 0
    %1306 = vmatpush1.bf16.msra.mxu0 0
    %1307 = vmatprep.subr.bf16.mxu0 0
    %1308 = vmatpush1.bf16.msra.mxu0 0
    %1309 = vmatprep.subr.bf16.mxu0 0
    %1310 = vmatpush1.bf16.msra.mxu0 0
    %1311 = vmatprep.subr.bf16.mxu0 0
    %1312 = vmatpush1.bf16.msra.mxu0 0
    %1313 = vmatprep.subr.bf16.mxu0 0
    %1314 = vmatpush1.bf16.msra.mxu0 0
    %1315 = vmatprep.subr.bf16.mxu0 0
    %1316 = vmatpush1.bf16.msra.mxu0 0
    %1317 = vmatprep.subr.bf16.mxu0 0
    %1318 = vmatpush1.bf16.msra.mxu0 0
    %1319 = vmatprep.subr.bf16.mxu0 0
    %1320 = vmatpush1.bf16.msra.mxu0 0
    %1321 = vmatprep.mubr.bf16.mxu0 0
    %1322 = vmatmul.mubr.bf16.gmra.mrb[0].mxu0 %v1207
    %v1323 = vpop.f32.mrb[0].mxu0
    %v1324 = vadd.f32 %v1126, %v1323
    %v1325 = vpop.f32.mrb[0].mxu0
    %v1326 = vpop.f32.mrb[0].mxu0
    %v1327 = vpop.f32.mrb[0].mxu0
    %1328 = vdwg.mxu0
    %s1329 = scalar_lea.vmem [#allocation2], 8
    %v1330 = vld [vmem:[%s1329] sm:$0xff]
    %v1331 = vadd.f32 %v1330, %v1244
    %v1332 = vxor.u32 %v1331, 2147483648
    %v1333 = vmul.f32 %v1332, 1.442695
    %v1334 = vpow.pop %v1333
    %v1335 = vadd.f32 %v1334, 1.0
    %v1336 = vrcp.pop %v1335
    %v1337 = vmul.f32 1.0, %v1336
    %s1338 = scalar_lea.vmem [#allocation3], 8
    %v1339 = vld [vmem:[%s1338] sm:$0xff]
    %v1340 = vadd.f32 %v1339, %v1284
    %v1341 = vxor.u32 %v1340, 2147483648
    %v1342 = vmul.f32 %v1341, 1.442695
    %v1343 = vpow.pop %v1342
    %v1344 = vadd.f32 %v1343, 1.0
    %v1345 = vrcp.pop %v1344
    %v1346 = vmul.f32 1.0, %v1345
    %s1347 = scalar_lea.vmem [#allocation4], 8
    %v1348 = vld [vmem:[%s1347] sm:$0xff]
    %v1349 = vmul.f32 %v1337, %v1324
    %v1350 = vadd.f32 %v1348, %v1349
    %v1351 = vtanh.pop %v1350
    %v1352 = vsub.f32 1.0, %v1346
    %v1353 = vmul.f32 %v1352, %v1351
    %v1354 = vmul.f32 %v1346, %v1203
    %v1355 = vadd.f32 %v1353, %v1354
    %s1356 = scalar_lea.vmem [#allocation5], 8
    %1357 = vst.msk [vmem:[%s1356] sm:$0xff] %vm532, %v1355
    %v1358 = vpack.c.bf16 %v1355, %v1355
    %v1360 = vsel %vm532, %v1358, 0
    %1362 = vmatprep.subr.bf16.mxu0 0
    %1363 = vmatpush1.bf16.msra.mxu0 %v1017
    %1364 = vmatprep.subr.bf16.mxu0 0
    %1365 = vmatpush1.bf16.msra.mxu0 %v1018
    %1366 = vmatprep.subr.bf16.mxu0 0
    %1367 = vmatpush1.bf16.msra.mxu0 0
    %1368 = vmatprep.subr.bf16.mxu0 0
    %1369 = vmatpush1.bf16.msra.mxu0 0
    %1370 = vmatprep.subr.bf16.mxu0 0
    %1371 = vmatpush1.bf16.msra.mxu0 0
    %1372 = vmatprep.subr.bf16.mxu0 0
    %1373 = vmatpush1.bf16.msra.mxu0 0
    %1374 = vmatprep.subr.bf16.mxu0 0
    %1375 = vmatpush1.bf16.msra.mxu0 0
    %1376 = vmatprep.subr.bf16.mxu0 0
    %1377 = vmatpush1.bf16.msra.mxu0 0
    %1378 = vmatprep.subr.bf16.mxu0 0
    %1379 = vmatpush1.bf16.msra.mxu0 0
    %1380 = vmatprep.subr.bf16.mxu0 0
    %1381 = vmatpush1.bf16.msra.mxu0 0
    %1382 = vmatprep.subr.bf16.mxu0 0
    %1383 = vmatpush1.bf16.msra.mxu0 0
    %1384 = vmatprep.subr.bf16.mxu0 0
    %1385 = vmatpush1.bf16.msra.mxu0 0
    %1386 = vmatprep.subr.bf16.mxu0 0
    %1387 = vmatpush1.bf16.msra.mxu0 0
    %1388 = vmatprep.subr.bf16.mxu0 0
    %1389 = vmatpush1.bf16.msra.mxu0 0
    %1390 = vmatprep.subr.bf16.mxu0 0
    %1391 = vmatpush1.bf16.msra.mxu0 0
    %1392 = vmatprep.subr.bf16.mxu0 0
    %1393 = vmatpush1.bf16.msra.mxu0 0
    %1394 = vmatprep.mubr.bf16.mxu0 0
    %1395 = vmatmul.mubr.bf16.gmra.mrb[0].mxu0 %v1360
    %v1396 = vpop.f32.mrb[0].mxu0
    %v1397 = vadd.f32 %v1007, %v1396
    %v1398 = vpop.f32.mrb[0].mxu0
    %v1399 = vpop.f32.mrb[0].mxu0
    %v1400 = vpop.f32.mrb[0].mxu0
    %1401 = vdwg.mxu0
    %1402 = vmatprep.subr.bf16.mxu0 0
    %1403 = vmatpush1.bf16.msra.mxu0 %v1078
    %1404 = vmatprep.subr.bf16.mxu0 0
    %1405 = vmatpush1.bf16.msra.mxu0 %v1079
    %1406 = vmatprep.subr.bf16.mxu0 0
    %1407 = vmatpush1.bf16.msra.mxu0 0
    %1408 = vmatprep.subr.bf16.mxu0 0
    %1409 = vmatpush1.bf16.msra.mxu0 0
    %1410 = vmatprep.subr.bf16.mxu0 0
    %1411 = vmatpush1.bf16.msra.mxu0 0
    %1412 = vmatprep.subr.bf16.mxu0 0
    %1413 = vmatpush1.bf16.msra.mxu0 0
    %1414 = vmatprep.subr.bf16.mxu0 0
    %1415 = vmatpush1.bf16.msra.mxu0 0
    %1416 = vmatprep.subr.bf16.mxu0 0
    %1417 = vmatpush1.bf16.msra.mxu0 0
    %1418 = vmatprep.subr.bf16.mxu0 0
    %1419 = vmatpush1.bf16.msra.mxu0 0
    %1420 = vmatprep.subr.bf16.mxu0 0
    %1421 = vmatpush1.bf16.msra.mxu0 0
    %1422 = vmatprep.subr.bf16.mxu0 0
    %1423 = vmatpush1.bf16.msra.mxu0 0
    %1424 = vmatprep.subr.bf16.mxu0 0
    %1425 = vmatpush1.bf16.msra.mxu0 0
    %1426 = vmatprep.subr.bf16.mxu0 0
    %1427 = vmatpush1.bf16.msra.mxu0 0
    %1428 = vmatprep.subr.bf16.mxu0 0
    %1429 = vmatpush1.bf16.msra.mxu0 0
    %1430 = vmatprep.subr.bf16.mxu0 0
    %1431 = vmatpush1.bf16.msra.mxu0 0
    %1432 = vmatprep.subr.bf16.mxu0 0
    %1433 = vmatpush1.bf16.msra.mxu0 0
    %1434 = vmatprep.mubr.bf16.mxu0 0
    %1435 = vmatmul.mubr.bf16.gmra.mrb[0].mxu0 %v1360
    %v1436 = vpop.f32.mrb[0].mxu0
    %v1437 = vadd.f32 %v1068, %v1436
    %v1438 = vpop.f32.mrb[0].mxu0
    %v1439 = vpop.f32.mrb[0].mxu0
    %v1440 = vpop.f32.mrb[0].mxu0
    %1441 = vdwg.mxu0
    %1442 = vmatprep.subr.bf16.mxu0 0
    %1443 = vmatpush1.bf16.msra.mxu0 %v1136
    %1444 = vmatprep.subr.bf16.mxu0 0
    %1445 = vmatpush1.bf16.msra.mxu0 %v1137
    %1446 = vmatprep.subr.bf16.mxu0 0
    %1447 = vmatpush1.bf16.msra.mxu0 0
    %1448 = vmatprep.subr.bf16.mxu0 0
    %1449 = vmatpush1.bf16.msra.mxu0 0
    %1450 = vmatprep.subr.bf16.mxu0 0
    %1451 = vmatpush1.bf16.msra.mxu0 0
    %1452 = vmatprep.subr.bf16.mxu0 0
    %1453 = vmatpush1.bf16.msra.mxu0 0
    %1454 = vmatprep.subr.bf16.mxu0 0
    %1455 = vmatpush1.bf16.msra.mxu0 0
    %1456 = vmatprep.subr.bf16.mxu0 0
    %1457 = vmatpush1.bf16.msra.mxu0 0
    %1458 = vmatprep.subr.bf16.mxu0 0
    %1459 = vmatpush1.bf16.msra.mxu0 0
    %1460 = vmatprep.subr.bf16.mxu0 0
    %1461 = vmatpush1.bf16.msra.mxu0 0
    %1462 = vmatprep.subr.bf16.mxu0 0
    %1463 = vmatpush1.bf16.msra.mxu0 0
    %1464 = vmatprep.subr.bf16.mxu0 0
    %1465 = vmatpush1.bf16.msra.mxu0 0
    %1466 = vmatprep.subr.bf16.mxu0 0
    %1467 = vmatpush1.bf16.msra.mxu0 0
    %1468 = vmatprep.subr.bf16.mxu0 0
    %1469 = vmatpush1.bf16.msra.mxu0 0
    %1470 = vmatprep.subr.bf16.mxu0 0
    %1471 = vmatpush1.bf16.msra.mxu0 0
    %1472 = vmatprep.subr.bf16.mxu0 0
    %1473 = vmatpush1.bf16.msra.mxu0 0
    %1474 = vmatprep.mubr.bf16.mxu0 0
    %1475 = vmatmul.mubr.bf16.gmra.mrb[0].mxu0 %v1360
    %v1476 = vpop.f32.mrb[0].mxu0
    %v1477 = vadd.f32 %v1126, %v1476
    %v1478 = vpop.f32.mrb[0].mxu0
    %v1479 = vpop.f32.mrb[0].mxu0
    %v1480 = vpop.f32.mrb[0].mxu0
    %1481 = vdwg.mxu0
    %s1482 = scalar_lea.vmem [#allocation2], 16
    %v1483 = vld [vmem:[%s1482] sm:$0xff]
    %v1484 = vadd.f32 %v1483, %v1397
    %v1485 = vxor.u32 %v1484, 2147483648
    %v1486 = vmul.f32 %v1485, 1.442695
    %v1487 = vpow.pop %v1486
    %v1488 = vadd.f32 %v1487, 1.0
    %v1489 = vrcp.pop %v1488
    %v1490 = vmul.f32 1.0, %v1489
    %s1491 = scalar_lea.vmem [#allocation3], 16
    %v1492 = vld [vmem:[%s1491] sm:$0xff]
    %v1493 = vadd.f32 %v1492, %v1437
    %v1494 = vxor.u32 %v1493, 2147483648
    %v1495 = vmul.f32 %v1494, 1.442695
    %v1496 = vpow.pop %v1495
    %v1497 = vadd.f32 %v1496, 1.0
    %v1498 = vrcp.pop %v1497
    %v1499 = vmul.f32 1.0, %v1498
    %s1500 = scalar_lea.vmem [#allocation4], 16
    %v1501 = vld [vmem:[%s1500] sm:$0xff]
    %v1502 = vmul.f32 %v1490, %v1477
    %v1503 = vadd.f32 %v1501, %v1502
    %v1504 = vtanh.pop %v1503
    %v1505 = vsub.f32 1.0, %v1499
    %v1506 = vmul.f32 %v1505, %v1504
    %v1507 = vmul.f32 %v1499, %v1355
    %v1508 = vadd.f32 %v1506, %v1507
    %s1509 = scalar_lea.vmem [#allocation5], 16
    %1510 = vst.msk [vmem:[%s1509] sm:$0xff] %vm532, %v1508
    %v1511 = vpack.c.bf16 %v1508, %v1508
    %v1513 = vsel %vm532, %v1511, 0
    %1515 = vmatprep.subr.bf16.mxu0 0
    %1516 = vmatpush1.bf16.msra.mxu0 %v1017
    %1517 = vmatprep.subr.bf16.mxu0 0
    %1518 = vmatpush1.bf16.msra.mxu0 %v1018
    %1519 = vmatprep.subr.bf16.mxu0 0
    %1520 = vmatpush1.bf16.msra.mxu0 0
    %1521 = vmatprep.subr.bf16.mxu0 0
    %1522 = vmatpush1.bf16.msra.mxu0 0
    %1523 = vmatprep.subr.bf16.mxu0 0
    %1524 = vmatpush1.bf16.msra.mxu0 0
    %1525 = vmatprep.subr.bf16.mxu0 0
    %1526 = vmatpush1.bf16.msra.mxu0 0
    %1527 = vmatprep.subr.bf16.mxu0 0
    %1528 = vmatpush1.bf16.msra.mxu0 0
    %1529 = vmatprep.subr.bf16.mxu0 0
    %1530 = vmatpush1.bf16.msra.mxu0 0
    %1531 = vmatprep.subr.bf16.mxu0 0
    %1532 = vmatpush1.bf16.msra.mxu0 0
    %1533 = vmatprep.subr.bf16.mxu0 0
    %1534 = vmatpush1.bf16.msra.mxu0 0
    %1535 = vmatprep.subr.bf16.mxu0 0
    %1536 = vmatpush1.bf16.msra.mxu0 0
    %1537 = vmatprep.subr.bf16.mxu0 0
    %1538 = vmatpush1.bf16.msra.mxu0 0
    %1539 = vmatprep.subr.bf16.mxu0 0
    %1540 = vmatpush1.bf16.msra.mxu0 0
    %1541 = vmatprep.subr.bf16.mxu0 0
    %1542 = vmatpush1.bf16.msra.mxu0 0
    %1543 = vmatprep.subr.bf16.mxu0 0
    %1544 = vmatpush1.bf16.msra.mxu0 0
    %1545 = vmatprep.subr.bf16.mxu0 0
    %1546 = vmatpush1.bf16.msra.mxu0 0
    %1547 = vmatprep.mubr.bf16.mxu0 0
    %1548 = vmatmul.mubr.bf16.gmra.mrb[0].mxu0 %v1513
    %v1549 = vpop.f32.mrb[0].mxu0
    %v1550 = vadd.f32 %v1007, %v1549
    %v1551 = vpop.f32.mrb[0].mxu0
    %v1552 = vpop.f32.mrb[0].mxu0
    %v1553 = vpop.f32.mrb[0].mxu0
    %1554 = vdwg.mxu0
    %1555 = vmatprep.subr.bf16.mxu0 0
    %1556 = vmatpush1.bf16.msra.mxu0 %v1078
    %1557 = vmatprep.subr.bf16.mxu0 0
    %1558 = vmatpush1.bf16.msra.mxu0 %v1079
    %1559 = vmatprep.subr.bf16.mxu0 0
    %1560 = vmatpush1.bf16.msra.mxu0 0
    %1561 = vmatprep.subr.bf16.mxu0 0
    %1562 = vmatpush1.bf16.msra.mxu0 0
    %1563 = vmatprep.subr.bf16.mxu0 0
    %1564 = vmatpush1.bf16.msra.mxu0 0
    %1565 = vmatprep.subr.bf16.mxu0 0
    %1566 = vmatpush1.bf16.msra.mxu0 0
    %1567 = vmatprep.subr.bf16.mxu0 0
    %1568 = vmatpush1.bf16.msra.mxu0 0
    %1569 = vmatprep.subr.bf16.mxu0 0
    %1570 = vmatpush1.bf16.msra.mxu0 0
    %1571 = vmatprep.subr.bf16.mxu0 0
    %1572 = vmatpush1.bf16.msra.mxu0 0
    %1573 = vmatprep.subr.bf16.mxu0 0
    %1574 = vmatpush1.bf16.msra.mxu0 0
    %1575 = vmatprep.subr.bf16.mxu0 0
    %1576 = vmatpush1.bf16.msra.mxu0 0
    %1577 = vmatprep.subr.bf16.mxu0 0
    %1578 = vmatpush1.bf16.msra.mxu0 0
    %1579 = vmatprep.subr.bf16.mxu0 0
    %1580 = vmatpush1.bf16.msra.mxu0 0
    %1581 = vmatprep.subr.bf16.mxu0 0
    %1582 = vmatpush1.bf16.msra.mxu0 0
    %1583 = vmatprep.subr.bf16.mxu0 0
    %1584 = vmatpush1.bf16.msra.mxu0 0
    %1585 = vmatprep.subr.bf16.mxu0 0
    %1586 = vmatpush1.bf16.msra.mxu0 0
    %1587 = vmatprep.mubr.bf16.mxu0 0
    %1588 = vmatmul.mubr.bf16.gmra.mrb[0].mxu0 %v1513
    %v1589 = vpop.f32.mrb[0].mxu0
    %v1590 = vadd.f32 %v1068, %v1589
    %v1591 = vpop.f32.mrb[0].mxu0
    %v1592 = vpop.f32.mrb[0].mxu0
    %v1593 = vpop.f32.mrb[0].mxu0
    %1594 = vdwg.mxu0
    %1595 = vmatprep.subr.bf16.mxu0 0
    %1596 = vmatpush1.bf16.msra.mxu0 %v1136
    %1597 = vmatprep.subr.bf16.mxu0 0
    %1598 = vmatpush1.bf16.msra.mxu0 %v1137
    %1599 = vmatprep.subr.bf16.mxu0 0
    %1600 = vmatpush1.bf16.msra.mxu0 0
    %1601 = vmatprep.subr.bf16.mxu0 0
    %1602 = vmatpush1.bf16.msra.mxu0 0
    %1603 = vmatprep.subr.bf16.mxu0 0
    %1604 = vmatpush1.bf16.msra.mxu0 0
    %1605 = vmatprep.subr.bf16.mxu0 0
    %1606 = vmatpush1.bf16.msra.mxu0 0
    %1607 = vmatprep.subr.bf16.mxu0 0
    %1608 = vmatpush1.bf16.msra.mxu0 0
    %1609 = vmatprep.subr.bf16.mxu0 0
    %1610 = vmatpush1.bf16.msra.mxu0 0
    %1611 = vmatprep.subr.bf16.mxu0 0
    %1612 = vmatpush1.bf16.msra.mxu0 0
    %1613 = vmatprep.subr.bf16.mxu0 0
    %1614 = vmatpush1.bf16.msra.mxu0 0
    %1615 = vmatprep.subr.bf16.mxu0 0
    %1616 = vmatpush1.bf16.msra.mxu0 0
    %1617 = vmatprep.subr.bf16.mxu0 0
    %1618 = vmatpush1.bf16.msra.mxu0 0
    %1619 = vmatprep.subr.bf16.mxu0 0
    %1620 = vmatpush1.bf16.msra.mxu0 0
    %1621 = vmatprep.subr.bf16.mxu0 0
    %1622 = vmatpush1.bf16.msra.mxu0 0
    %1623 = vmatprep.subr.bf16.mxu0 0
    %1624 = vmatpush1.bf16.msra.mxu0 0
    %1625 = vmatprep.subr.bf16.mxu0 0
    %1626 = vmatpush1.bf16.msra.mxu0 0
    %1627 = vmatprep.mubr.bf16.mxu0 0
    %1628 = vmatmul.mubr.bf16.gmra.mrb[0].mxu0 %v1513
    %v1629 = vpop.f32.mrb[0].mxu0
    %v1630 = vadd.f32 %v1126, %v1629
    %v1631 = vpop.f32.mrb[0].mxu0
    %v1632 = vpop.f32.mrb[0].mxu0
    %v1633 = vpop.f32.mrb[0].mxu0
    %1634 = vdwg.mxu0
    %s1635 = scalar_lea.vmem [#allocation2], 24
    %v1636 = vld [vmem:[%s1635] sm:$0xff]
    %v1637 = vadd.f32 %v1636, %v1550
    %v1638 = vxor.u32 %v1637, 2147483648
    %v1639 = vmul.f32 %v1638, 1.442695
    %v1640 = vpow.pop %v1639
    %v1641 = vadd.f32 %v1640, 1.0
    %v1642 = vrcp.pop %v1641
    %v1643 = vmul.f32 1.0, %v1642
    %s1644 = scalar_lea.vmem [#allocation3], 24
    %v1645 = vld [vmem:[%s1644] sm:$0xff]
    %v1646 = vadd.f32 %v1645, %v1590
    %v1647 = vxor.u32 %v1646, 2147483648
    %v1648 = vmul.f32 %v1647, 1.442695
    %v1649 = vpow.pop %v1648
    %v1650 = vadd.f32 %v1649, 1.0
    %v1651 = vrcp.pop %v1650
    %v1652 = vmul.f32 1.0, %v1651
    %s1653 = scalar_lea.vmem [#allocation4], 24
    %v1654 = vld [vmem:[%s1653] sm:$0xff]
    %v1655 = vmul.f32 %v1643, %v1630
    %v1656 = vadd.f32 %v1654, %v1655
    %v1657 = vtanh.pop %v1656
    %v1658 = vsub.f32 1.0, %v1652
    %v1659 = vmul.f32 %v1658, %v1657
    %v1660 = vmul.f32 %v1652, %v1508
    %v1661 = vadd.f32 %v1659, %v1660
    %s1662 = scalar_lea.vmem [#allocation5], 24
    %1663 = vst.msk [vmem:[%s1662] sm:$0xff] %vm532, %v1661
    %v1664 = vpack.c.bf16 %v1661, %v1661
    %v1666 = vsel %vm532, %v1664, 0
    %1668 = vmatprep.subr.bf16.mxu0 0
    %1669 = vmatpush1.bf16.msra.mxu0 %v1017
    %1670 = vmatprep.subr.bf16.mxu0 0
    %1671 = vmatpush1.bf16.msra.mxu0 %v1018
    %1672 = vmatprep.subr.bf16.mxu0 0
    %1673 = vmatpush1.bf16.msra.mxu0 0
    %1674 = vmatprep.subr.bf16.mxu0 0
    %1675 = vmatpush1.bf16.msra.mxu0 0
    %1676 = vmatprep.subr.bf16.mxu0 0
    %1677 = vmatpush1.bf16.msra.mxu0 0
    %1678 = vmatprep.subr.bf16.mxu0 0
    %1679 = vmatpush1.bf16.msra.mxu0 0
    %1680 = vmatprep.subr.bf16.mxu0 0
    %1681 = vmatpush1.bf16.msra.mxu0 0
    %1682 = vmatprep.subr.bf16.mxu0 0
    %1683 = vmatpush1.bf16.msra.mxu0 0
    %1684 = vmatprep.subr.bf16.mxu0 0
    %1685 = vmatpush1.bf16.msra.mxu0 0
    %1686 = vmatprep.subr.bf16.mxu0 0
    %1687 = vmatpush1.bf16.msra.mxu0 0
    %1688 = vmatprep.subr.bf16.mxu0 0
    %1689 = vmatpush1.bf16.msra.mxu0 0
    %1690 = vmatprep.subr.bf16.mxu0 0
    %1691 = vmatpush1.bf16.msra.mxu0 0
    %1692 = vmatprep.subr.bf16.mxu0 0
    %1693 = vmatpush1.bf16.msra.mxu0 0
    %1694 = vmatprep.subr.bf16.mxu0 0
    %1695 = vmatpush1.bf16.msra.mxu0 0
    %1696 = vmatprep.subr.bf16.mxu0 0
    %1697 = vmatpush1.bf16.msra.mxu0 0
    %1698 = vmatprep.subr.bf16.mxu0 0
    %1699 = vmatpush1.bf16.msra.mxu0 0
    %1700 = vmatprep.mubr.bf16.mxu0 0
    %1701 = vmatmul.mubr.bf16.gmra.mrb[0].mxu0 %v1666
    %v1702 = vpop.f32.mrb[0].mxu0
    %v1703 = vadd.f32 %v1007, %v1702
    %v1704 = vpop.f32.mrb[0].mxu0
    %v1705 = vpop.f32.mrb[0].mxu0
    %v1706 = vpop.f32.mrb[0].mxu0
    %1707 = vdwg.mxu0
    %1708 = vmatprep.subr.bf16.mxu0 0
    %1709 = vmatpush1.bf16.msra.mxu0 %v1078
    %1710 = vmatprep.subr.bf16.mxu0 0
    %1711 = vmatpush1.bf16.msra.mxu0 %v1079
    %1712 = vmatprep.subr.bf16.mxu0 0
    %1713 = vmatpush1.bf16.msra.mxu0 0
    %1714 = vmatprep.subr.bf16.mxu0 0
    %1715 = vmatpush1.bf16.msra.mxu0 0
    %1716 = vmatprep.subr.bf16.mxu0 0
    %1717 = vmatpush1.bf16.msra.mxu0 0
    %1718 = vmatprep.subr.bf16.mxu0 0
    %1719 = vmatpush1.bf16.msra.mxu0 0
    %1720 = vmatprep.subr.bf16.mxu0 0
    %1721 = vmatpush1.bf16.msra.mxu0 0
    %1722 = vmatprep.subr.bf16.mxu0 0
    %1723 = vmatpush1.bf16.msra.mxu0 0
    %1724 = vmatprep.subr.bf16.mxu0 0
    %1725 = vmatpush1.bf16.msra.mxu0 0
    %1726 = vmatprep.subr.bf16.mxu0 0
    %1727 = vmatpush1.bf16.msra.mxu0 0
    %1728 = vmatprep.subr.bf16.mxu0 0
    %1729 = vmatpush1.bf16.msra.mxu0 0
    %1730 = vmatprep.subr.bf16.mxu0 0
    %1731 = vmatpush1.bf16.msra.mxu0 0
    %1732 = vmatprep.subr.bf16.mxu0 0
    %1733 = vmatpush1.bf16.msra.mxu0 0
    %1734 = vmatprep.subr.bf16.mxu0 0
    %1735 = vmatpush1.bf16.msra.mxu0 0
    %1736 = vmatprep.subr.bf16.mxu0 0
    %1737 = vmatpush1.bf16.msra.mxu0 0
    %1738 = vmatprep.subr.bf16.mxu0 0
    %1739 = vmatpush1.bf16.msra.mxu0 0
    %1740 = vmatprep.mubr.bf16.mxu0 0
    %1741 = vmatmul.mubr.bf16.gmra.mrb[0].mxu0 %v1666
    %v1742 = vpop.f32.mrb[0].mxu0
    %v1743 = vadd.f32 %v1068, %v1742
    %v1744 = vpop.f32.mrb[0].mxu0
    %v1745 = vpop.f32.mrb[0].mxu0
    %v1746 = vpop.f32.mrb[0].mxu0
    %1747 = vdwg.mxu0
    %1748 = vmatprep.subr.bf16.mxu0 0
    %1749 = vmatpush1.bf16.msra.mxu0 %v1136
    %1750 = vmatprep.subr.bf16.mxu0 0
    %1751 = vmatpush1.bf16.msra.mxu0 %v1137
    %1752 = vmatprep.subr.bf16.mxu0 0
    %1753 = vmatpush1.bf16.msra.mxu0 0
    %1754 = vmatprep.subr.bf16.mxu0 0
    %1755 = vmatpush1.bf16.msra.mxu0 0
    %1756 = vmatprep.subr.bf16.mxu0 0
    %1757 = vmatpush1.bf16.msra.mxu0 0
    %1758 = vmatprep.subr.bf16.mxu0 0
    %1759 = vmatpush1.bf16.msra.mxu0 0
    %1760 = vmatprep.subr.bf16.mxu0 0
    %1761 = vmatpush1.bf16.msra.mxu0 0
    %1762 = vmatprep.subr.bf16.mxu0 0
    %1763 = vmatpush1.bf16.msra.mxu0 0
    %1764 = vmatprep.subr.bf16.mxu0 0
    %1765 = vmatpush1.bf16.msra.mxu0 0
    %1766 = vmatprep.subr.bf16.mxu0 0
    %1767 = vmatpush1.bf16.msra.mxu0 0
    %1768 = vmatprep.subr.bf16.mxu0 0
    %1769 = vmatpush1.bf16.msra.mxu0 0
    %1770 = vmatprep.subr.bf16.mxu0 0
    %1771 = vmatpush1.bf16.msra.mxu0 0
    %1772 = vmatprep.subr.bf16.mxu0 0
    %1773 = vmatpush1.bf16.msra.mxu0 0
    %1774 = vmatprep.subr.bf16.mxu0 0
    %1775 = vmatpush1.bf16.msra.mxu0 0
    %1776 = vmatprep.subr.bf16.mxu0 0
    %1777 = vmatpush1.bf16.msra.mxu0 0
    %1778 = vmatprep.subr.bf16.mxu0 0
    %1779 = vmatpush1.bf16.msra.mxu0 0
    %1780 = vmatprep.mubr.bf16.mxu0 0
    %1781 = vmatmul.mubr.bf16.gmra.mrb[0].mxu0 %v1666
    %v1782 = vpop.f32.mrb[0].mxu0
    %v1783 = vadd.f32 %v1126, %v1782
    %v1784 = vpop.f32.mrb[0].mxu0
    %v1785 = vpop.f32.mrb[0].mxu0
    %v1786 = vpop.f32.mrb[0].mxu0
    %1787 = vdwg.mxu0
    %s1788 = scalar_lea.vmem [#allocation2], 32
    %v1789 = vld [vmem:[%s1788] sm:$0xff]
    %v1790 = vadd.f32 %v1789, %v1703
    %v1791 = vxor.u32 %v1790, 2147483648
    %v1792 = vmul.f32 %v1791, 1.442695
    %v1793 = vpow.pop %v1792
    %v1794 = vadd.f32 %v1793, 1.0
    %v1795 = vrcp.pop %v1794
    %v1796 = vmul.f32 1.0, %v1795
    %s1797 = scalar_lea.vmem [#allocation3], 32
    %v1798 = vld [vmem:[%s1797] sm:$0xff]
    %v1799 = vadd.f32 %v1798, %v1743
    %v1800 = vxor.u32 %v1799, 2147483648
    %v1801 = vmul.f32 %v1800, 1.442695
    %v1802 = vpow.pop %v1801
    %v1803 = vadd.f32 %v1802, 1.0
    %v1804 = vrcp.pop %v1803
    %v1805 = vmul.f32 1.0, %v1804
    %s1806 = scalar_lea.vmem [#allocation4], 32
    %v1807 = vld [vmem:[%s1806] sm:$0xff]
    %v1808 = vmul.f32 %v1796, %v1783
    %v1809 = vadd.f32 %v1807, %v1808
    %v1810 = vtanh.pop %v1809
    %v1811 = vsub.f32 1.0, %v1805
    %v1812 = vmul.f32 %v1811, %v1810
    %v1813 = vmul.f32 %v1805, %v1661
    %v1814 = vadd.f32 %v1812, %v1813
    %s1815 = scalar_lea.vmem [#allocation5], 32
    %1816 = vst.msk [vmem:[%s1815] sm:$0xff] %vm532, %v1814
    %v1817 = vpack.c.bf16 %v1814, %v1814
    %v1819 = vsel %vm532, %v1817, 0
    %1821 = vmatprep.subr.bf16.mxu0 0
    %1822 = vmatpush1.bf16.msra.mxu0 %v1017
    %1823 = vmatprep.subr.bf16.mxu0 0
    %1824 = vmatpush1.bf16.msra.mxu0 %v1018
    %1825 = vmatprep.subr.bf16.mxu0 0
    %1826 = vmatpush1.bf16.msra.mxu0 0
    %1827 = vmatprep.subr.bf16.mxu0 0
    %1828 = vmatpush1.bf16.msra.mxu0 0
    %1829 = vmatprep.subr.bf16.mxu0 0
    %1830 = vmatpush1.bf16.msra.mxu0 0
    %1831 = vmatprep.subr.bf16.mxu0 0
    %1832 = vmatpush1.bf16.msra.mxu0 0
    %1833 = vmatprep.subr.bf16.mxu0 0
    %1834 = vmatpush1.bf16.msra.mxu0 0
    %1835 = vmatprep.subr.bf16.mxu0 0
    %1836 = vmatpush1.bf16.msra.mxu0 0
    %1837 = vmatprep.subr.bf16.mxu0 0
    %1838 = vmatpush1.bf16.msra.mxu0 0
    %1839 = vmatprep.subr.bf16.mxu0 0
    %1840 = vmatpush1.bf16.msra.mxu0 0
    %1841 = vmatprep.subr.bf16.mxu0 0
    %1842 = vmatpush1.bf16.msra.mxu0 0
    %1843 = vmatprep.subr.bf16.mxu0 0
    %1844 = vmatpush1.bf16.msra.mxu0 0
    %1845 = vmatprep.subr.bf16.mxu0 0
    %1846 = vmatpush1.bf16.msra.mxu0 0
    %1847 = vmatprep.subr.bf16.mxu0 0
    %1848 = vmatpush1.bf16.msra.mxu0 0
    %1849 = vmatprep.subr.bf16.mxu0 0
    %1850 = vmatpush1.bf16.msra.mxu0 0
    %1851 = vmatprep.subr.bf16.mxu0 0
    %1852 = vmatpush1.bf16.msra.mxu0 0
    %1853 = vmatprep.mubr.bf16.mxu0 0
    %1854 = vmatmul.mubr.bf16.gmra.mrb[0].mxu0 %v1819
    %v1855 = vpop.f32.mrb[0].mxu0
    %v1856 = vadd.f32 %v1007, %v1855
    %v1857 = vpop.f32.mrb[0].mxu0
    %v1858 = vpop.f32.mrb[0].mxu0
    %v1859 = vpop.f32.mrb[0].mxu0
    %1860 = vdwg.mxu0
    %1861 = vmatprep.subr.bf16.mxu0 0
    %1862 = vmatpush1.bf16.msra.mxu0 %v1078
    %1863 = vmatprep.subr.bf16.mxu0 0
    %1864 = vmatpush1.bf16.msra.mxu0 %v1079
    %1865 = vmatprep.subr.bf16.mxu0 0
    %1866 = vmatpush1.bf16.msra.mxu0 0
    %1867 = vmatprep.subr.bf16.mxu0 0
    %1868 = vmatpush1.bf16.msra.mxu0 0
    %1869 = vmatprep.subr.bf16.mxu0 0
    %1870 = vmatpush1.bf16.msra.mxu0 0
    %1871 = vmatprep.subr.bf16.mxu0 0
    %1872 = vmatpush1.bf16.msra.mxu0 0
    %1873 = vmatprep.subr.bf16.mxu0 0
    %1874 = vmatpush1.bf16.msra.mxu0 0
    %1875 = vmatprep.subr.bf16.mxu0 0
    %1876 = vmatpush1.bf16.msra.mxu0 0
    %1877 = vmatprep.subr.bf16.mxu0 0
    %1878 = vmatpush1.bf16.msra.mxu0 0
    %1879 = vmatprep.subr.bf16.mxu0 0
    %1880 = vmatpush1.bf16.msra.mxu0 0
    %1881 = vmatprep.subr.bf16.mxu0 0
    %1882 = vmatpush1.bf16.msra.mxu0 0
    %1883 = vmatprep.subr.bf16.mxu0 0
    %1884 = vmatpush1.bf16.msra.mxu0 0
    %1885 = vmatprep.subr.bf16.mxu0 0
    %1886 = vmatpush1.bf16.msra.mxu0 0
    %1887 = vmatprep.subr.bf16.mxu0 0
    %1888 = vmatpush1.bf16.msra.mxu0 0
    %1889 = vmatprep.subr.bf16.mxu0 0
    %1890 = vmatpush1.bf16.msra.mxu0 0
    %1891 = vmatprep.subr.bf16.mxu0 0
    %1892 = vmatpush1.bf16.msra.mxu0 0
    %1893 = vmatprep.mubr.bf16.mxu0 0
    %1894 = vmatmul.mubr.bf16.gmra.mrb[0].mxu0 %v1819
    %v1895 = vpop.f32.mrb[0].mxu0
    %v1896 = vadd.f32 %v1068, %v1895
    %v1897 = vpop.f32.mrb[0].mxu0
    %v1898 = vpop.f32.mrb[0].mxu0
    %v1899 = vpop.f32.mrb[0].mxu0
    %1900 = vdwg.mxu0
    %1901 = vmatprep.subr.bf16.mxu0 0
    %1902 = vmatpush1.bf16.msra.mxu0 %v1136
    %1903 = vmatprep.subr.bf16.mxu0 0
    %1904 = vmatpush1.bf16.msra.mxu0 %v1137
    %1905 = vmatprep.subr.bf16.mxu0 0
    %1906 = vmatpush1.bf16.msra.mxu0 0
    %1907 = vmatprep.subr.bf16.mxu0 0
    %1908 = vmatpush1.bf16.msra.mxu0 0
    %1909 = vmatprep.subr.bf16.mxu0 0
    %1910 = vmatpush1.bf16.msra.mxu0 0
    %1911 = vmatprep.subr.bf16.mxu0 0
    %1912 = vmatpush1.bf16.msra.mxu0 0
    %1913 = vmatprep.subr.bf16.mxu0 0
    %1914 = vmatpush1.bf16.msra.mxu0 0
    %1915 = vmatprep.subr.bf16.mxu0 0
    %1916 = vmatpush1.bf16.msra.mxu0 0
    %1917 = vmatprep.subr.bf16.mxu0 0
    %1918 = vmatpush1.bf16.msra.mxu0 0
    %1919 = vmatprep.subr.bf16.mxu0 0
    %1920 = vmatpush1.bf16.msra.mxu0 0
    %1921 = vmatprep.subr.bf16.mxu0 0
    %1922 = vmatpush1.bf16.msra.mxu0 0
    %1923 = vmatprep.subr.bf16.mxu0 0
    %1924 = vmatpush1.bf16.msra.mxu0 0
    %1925 = vmatprep.subr.bf16.mxu0 0
    %1926 = vmatpush1.bf16.msra.mxu0 0
    %1927 = vmatprep.subr.bf16.mxu0 0
    %1928 = vmatpush1.bf16.msra.mxu0 0
    %1929 = vmatprep.subr.bf16.mxu0 0
    %1930 = vmatpush1.bf16.msra.mxu0 0
    %1931 = vmatprep.subr.bf16.mxu0 0
    %1932 = vmatpush1.bf16.msra.mxu0 0
    %1933 = vmatprep.mubr.bf16.mxu0 0
    %1934 = vmatmul.mubr.bf16.gmra.mrb[0].mxu0 %v1819
    %v1935 = vpop.f32.mrb[0].mxu0
    %v1936 = vadd.f32 %v1126, %v1935
    %v1937 = vpop.f32.mrb[0].mxu0
    %v1938 = vpop.f32.mrb[0].mxu0
    %v1939 = vpop.f32.mrb[0].mxu0
    %1940 = vdwg.mxu0
    %s1941 = scalar_lea.vmem [#allocation2], 40
    %v1942 = vld [vmem:[%s1941] sm:$0xff]
    %v1943 = vadd.f32 %v1942, %v1856
    %v1944 = vxor.u32 %v1943, 2147483648
    %v1945 = vmul.f32 %v1944, 1.442695
    %v1946 = vpow.pop %v1945
    %v1947 = vadd.f32 %v1946, 1.0
    %v1948 = vrcp.pop %v1947
    %v1949 = vmul.f32 1.0, %v1948
    %s1950 = scalar_lea.vmem [#allocation3], 40
    %v1951 = vld [vmem:[%s1950] sm:$0xff]
    %v1952 = vadd.f32 %v1951, %v1896
    %v1953 = vxor.u32 %v1952, 2147483648
    %v1954 = vmul.f32 %v1953, 1.442695
    %v1955 = vpow.pop %v1954
    %v1956 = vadd.f32 %v1955, 1.0
    %v1957 = vrcp.pop %v1956
    %v1958 = vmul.f32 1.0, %v1957
    %s1959 = scalar_lea.vmem [#allocation4], 40
    %v1960 = vld [vmem:[%s1959] sm:$0xff]
    %v1961 = vmul.f32 %v1949, %v1936
    %v1962 = vadd.f32 %v1960, %v1961
    %v1963 = vtanh.pop %v1962
    %v1964 = vsub.f32 1.0, %v1958
    %v1965 = vmul.f32 %v1964, %v1963
    %v1966 = vmul.f32 %v1958, %v1814
    %v1967 = vadd.f32 %v1965, %v1966
    %s1968 = scalar_lea.vmem [#allocation5], 40
    %1969 = vst.msk [vmem:[%s1968] sm:$0xff] %vm532, %v1967
    %v1970 = vpack.c.bf16 %v1967, %v1967
    %v1972 = vsel %vm532, %v1970, 0
    %1974 = vmatprep.subr.bf16.mxu0 0
    %1975 = vmatpush1.bf16.msra.mxu0 %v1017
    %1976 = vmatprep.subr.bf16.mxu0 0
    %1977 = vmatpush1.bf16.msra.mxu0 %v1018
    %1978 = vmatprep.subr.bf16.mxu0 0
    %1979 = vmatpush1.bf16.msra.mxu0 0
    %1980 = vmatprep.subr.bf16.mxu0 0
    %1981 = vmatpush1.bf16.msra.mxu0 0
    %1982 = vmatprep.subr.bf16.mxu0 0
    %1983 = vmatpush1.bf16.msra.mxu0 0
    %1984 = vmatprep.subr.bf16.mxu0 0
    %1985 = vmatpush1.bf16.msra.mxu0 0
    %1986 = vmatprep.subr.bf16.mxu0 0
    %1987 = vmatpush1.bf16.msra.mxu0 0
    %1988 = vmatprep.subr.bf16.mxu0 0
    %1989 = vmatpush1.bf16.msra.mxu0 0
    %1990 = vmatprep.subr.bf16.mxu0 0
    %1991 = vmatpush1.bf16.msra.mxu0 0
    %1992 = vmatprep.subr.bf16.mxu0 0
    %1993 = vmatpush1.bf16.msra.mxu0 0
    %1994 = vmatprep.subr.bf16.mxu0 0
    %1995 = vmatpush1.bf16.msra.mxu0 0
    %1996 = vmatprep.subr.bf16.mxu0 0
    %1997 = vmatpush1.bf16.msra.mxu0 0
    %1998 = vmatprep.subr.bf16.mxu0 0
    %1999 = vmatpush1.bf16.msra.mxu0 0
    %2000 = vmatprep.subr.bf16.mxu0 0
    %2001 = vmatpush1.bf16.msra.mxu0 0
    %2002 = vmatprep.subr.bf16.mxu0 0
    %2003 = vmatpush1.bf16.msra.mxu0 0
    %2004 = vmatprep.subr.bf16.mxu0 0
    %2005 = vmatpush1.bf16.msra.mxu0 0
    %2006 = vmatprep.mubr.bf16.mxu0 0
    %2007 = vmatmul.mubr.bf16.gmra.mrb[0].mxu0 %v1972
    %v2008 = vpop.f32.mrb[0].mxu0
    %v2009 = vadd.f32 %v1007, %v2008
    %v2010 = vpop.f32.mrb[0].mxu0
    %v2011 = vpop.f32.mrb[0].mxu0
    %v2012 = vpop.f32.mrb[0].mxu0
    %2013 = vdwg.mxu0
    %2014 = vmatprep.subr.bf16.mxu0 0
    %2015 = vmatpush1.bf16.msra.mxu0 %v1078
    %2016 = vmatprep.subr.bf16.mxu0 0
    %2017 = vmatpush1.bf16.msra.mxu0 %v1079
    %2018 = vmatprep.subr.bf16.mxu0 0
    %2019 = vmatpush1.bf16.msra.mxu0 0
    %2020 = vmatprep.subr.bf16.mxu0 0
    %2021 = vmatpush1.bf16.msra.mxu0 0
    %2022 = vmatprep.subr.bf16.mxu0 0
    %2023 = vmatpush1.bf16.msra.mxu0 0
    %2024 = vmatprep.subr.bf16.mxu0 0
    %2025 = vmatpush1.bf16.msra.mxu0 0
    %2026 = vmatprep.subr.bf16.mxu0 0
    %2027 = vmatpush1.bf16.msra.mxu0 0
    %2028 = vmatprep.subr.bf16.mxu0 0
    %2029 = vmatpush1.bf16.msra.mxu0 0
    %2030 = vmatprep.subr.bf16.mxu0 0
    %2031 = vmatpush1.bf16.msra.mxu0 0
    %2032 = vmatprep.subr.bf16.mxu0 0
    %2033 = vmatpush1.bf16.msra.mxu0 0
    %2034 = vmatprep.subr.bf16.mxu0 0
    %2035 = vmatpush1.bf16.msra.mxu0 0
    %2036 = vmatprep.subr.bf16.mxu0 0
    %2037 = vmatpush1.bf16.msra.mxu0 0
    %2038 = vmatprep.subr.bf16.mxu0 0
    %2039 = vmatpush1.bf16.msra.mxu0 0
    %2040 = vmatprep.subr.bf16.mxu0 0
    %2041 = vmatpush1.bf16.msra.mxu0 0
    %2042 = vmatprep.subr.bf16.mxu0 0
    %2043 = vmatpush1.bf16.msra.mxu0 0
    %2044 = vmatprep.subr.bf16.mxu0 0
    %2045 = vmatpush1.bf16.msra.mxu0 0
    %2046 = vmatprep.mubr.bf16.mxu0 0
    %2047 = vmatmul.mubr.bf16.gmra.mrb[0].mxu0 %v1972
    %v2048 = vpop.f32.mrb[0].mxu0
    %v2049 = vadd.f32 %v1068, %v2048
    %v2050 = vpop.f32.mrb[0].mxu0
    %v2051 = vpop.f32.mrb[0].mxu0
    %v2052 = vpop.f32.mrb[0].mxu0
    %2053 = vdwg.mxu0
    %2054 = vmatprep.subr.bf16.mxu0 0
    %2055 = vmatpush1.bf16.msra.mxu0 %v1136
    %2056 = vmatprep.subr.bf16.mxu0 0
    %2057 = vmatpush1.bf16.msra.mxu0 %v1137
    %2058 = vmatprep.subr.bf16.mxu0 0
    %2059 = vmatpush1.bf16.msra.mxu0 0
    %2060 = vmatprep.subr.bf16.mxu0 0
    %2061 = vmatpush1.bf16.msra.mxu0 0
    %2062 = vmatprep.subr.bf16.mxu0 0
    %2063 = vmatpush1.bf16.msra.mxu0 0
    %2064 = vmatprep.subr.bf16.mxu0 0
    %2065 = vmatpush1.bf16.msra.mxu0 0
    %2066 = vmatprep.subr.bf16.mxu0 0
    %2067 = vmatpush1.bf16.msra.mxu0 0
    %2068 = vmatprep.subr.bf16.mxu0 0
    %2069 = vmatpush1.bf16.msra.mxu0 0
    %2070 = vmatprep.subr.bf16.mxu0 0
    %2071 = vmatpush1.bf16.msra.mxu0 0
    %2072 = vmatprep.subr.bf16.mxu0 0
    %2073 = vmatpush1.bf16.msra.mxu0 0
    %2074 = vmatprep.subr.bf16.mxu0 0
    %2075 = vmatpush1.bf16.msra.mxu0 0
    %2076 = vmatprep.subr.bf16.mxu0 0
    %2077 = vmatpush1.bf16.msra.mxu0 0
    %2078 = vmatprep.subr.bf16.mxu0 0
    %2079 = vmatpush1.bf16.msra.mxu0 0
    %2080 = vmatprep.subr.bf16.mxu0 0
    %2081 = vmatpush1.bf16.msra.mxu0 0
    %2082 = vmatprep.subr.bf16.mxu0 0
    %2083 = vmatpush1.bf16.msra.mxu0 0
    %2084 = vmatprep.subr.bf16.mxu0 0
    %2085 = vmatpush1.bf16.msra.mxu0 0
    %2086 = vmatprep.mubr.bf16.mxu0 0
    %2087 = vmatmul.mubr.bf16.gmra.mrb[0].mxu0 %v1972
    %v2088 = vpop.f32.mrb[0].mxu0
    %v2089 = vadd.f32 %v1126, %v2088
    %v2090 = vpop.f32.mrb[0].mxu0
    %v2091 = vpop.f32.mrb[0].mxu0
    %v2092 = vpop.f32.mrb[0].mxu0
    %2093 = vdwg.mxu0
    %s2094 = scalar_lea.vmem [#allocation2], 48
    %v2095 = vld [vmem:[%s2094] sm:$0xff]
    %v2096 = vadd.f32 %v2095, %v2009
    %v2097 = vxor.u32 %v2096, 2147483648
    %v2098 = vmul.f32 %v2097, 1.442695
    %v2099 = vpow.pop %v2098
    %v2100 = vadd.f32 %v2099, 1.0
    %v2101 = vrcp.pop %v2100
    %v2102 = vmul.f32 1.0, %v2101
    %s2103 = scalar_lea.vmem [#allocation3], 48
    %v2104 = vld [vmem:[%s2103] sm:$0xff]
    %v2105 = vadd.f32 %v2104, %v2049
    %v2106 = vxor.u32 %v2105, 2147483648
    %v2107 = vmul.f32 %v2106, 1.442695
    %v2108 = vpow.pop %v2107
    %v2109 = vadd.f32 %v2108, 1.0
    %v2110 = vrcp.pop %v2109
    %v2111 = vmul.f32 1.0, %v2110
    %s2112 = scalar_lea.vmem [#allocation4], 48
    %v2113 = vld [vmem:[%s2112] sm:$0xff]
    %v2114 = vmul.f32 %v2102, %v2089
    %v2115 = vadd.f32 %v2113, %v2114
    %v2116 = vtanh.pop %v2115
    %v2117 = vsub.f32 1.0, %v2111
    %v2118 = vmul.f32 %v2117, %v2116
    %v2119 = vmul.f32 %v2111, %v1967
    %v2120 = vadd.f32 %v2118, %v2119
    %s2121 = scalar_lea.vmem [#allocation5], 48
    %2122 = vst.msk [vmem:[%s2121] sm:$0xff] %vm532, %v2120
    %v2123 = vpack.c.bf16 %v2120, %v2120
    %v2125 = vsel %vm532, %v2123, 0
    %2127 = vmatprep.subr.bf16.mxu0 0
    %2128 = vmatpush1.bf16.msra.mxu0 %v1017
    %2129 = vmatprep.subr.bf16.mxu0 0
    %2130 = vmatpush1.bf16.msra.mxu0 %v1018
    %2131 = vmatprep.subr.bf16.mxu0 0
    %2132 = vmatpush1.bf16.msra.mxu0 0
    %2133 = vmatprep.subr.bf16.mxu0 0
    %2134 = vmatpush1.bf16.msra.mxu0 0
    %2135 = vmatprep.subr.bf16.mxu0 0
    %2136 = vmatpush1.bf16.msra.mxu0 0
    %2137 = vmatprep.subr.bf16.mxu0 0
    %2138 = vmatpush1.bf16.msra.mxu0 0
    %2139 = vmatprep.subr.bf16.mxu0 0
    %2140 = vmatpush1.bf16.msra.mxu0 0
    %2141 = vmatprep.subr.bf16.mxu0 0
    %2142 = vmatpush1.bf16.msra.mxu0 0
    %2143 = vmatprep.subr.bf16.mxu0 0
    %2144 = vmatpush1.bf16.msra.mxu0 0
    %2145 = vmatprep.subr.bf16.mxu0 0
    %2146 = vmatpush1.bf16.msra.mxu0 0
    %2147 = vmatprep.subr.bf16.mxu0 0
    %2148 = vmatpush1.bf16.msra.mxu0 0
    %2149 = vmatprep.subr.bf16.mxu0 0
    %2150 = vmatpush1.bf16.msra.mxu0 0
    %2151 = vmatprep.subr.bf16.mxu0 0
    %2152 = vmatpush1.bf16.msra.mxu0 0
    %2153 = vmatprep.subr.bf16.mxu0 0
    %2154 = vmatpush1.bf16.msra.mxu0 0
    %2155 = vmatprep.subr.bf16.mxu0 0
    %2156 = vmatpush1.bf16.msra.mxu0 0
    %2157 = vmatprep.subr.bf16.mxu0 0
    %2158 = vmatpush1.bf16.msra.mxu0 0
    %2159 = vmatprep.mubr.bf16.mxu0 0
    %2160 = vmatmul.mubr.bf16.gmra.mrb[0].mxu0 %v2125
    %v2161 = vpop.f32.mrb[0].mxu0
    %v2162 = vadd.f32 %v1007, %v2161
    %v2163 = vpop.f32.mrb[0].mxu0
    %v2164 = vpop.f32.mrb[0].mxu0
    %v2165 = vpop.f32.mrb[0].mxu0
    %2166 = vdwg.mxu0
    %2167 = vmatprep.subr.bf16.mxu0 0
    %2168 = vmatpush1.bf16.msra.mxu0 %v1078
    %2169 = vmatprep.subr.bf16.mxu0 0
    %2170 = vmatpush1.bf16.msra.mxu0 %v1079
    %2171 = vmatprep.subr.bf16.mxu0 0
    %2172 = vmatpush1.bf16.msra.mxu0 0
    %2173 = vmatprep.subr.bf16.mxu0 0
    %2174 = vmatpush1.bf16.msra.mxu0 0
    %2175 = vmatprep.subr.bf16.mxu0 0
    %2176 = vmatpush1.bf16.msra.mxu0 0
    %2177 = vmatprep.subr.bf16.mxu0 0
    %2178 = vmatpush1.bf16.msra.mxu0 0
    %2179 = vmatprep.subr.bf16.mxu0 0
    %2180 = vmatpush1.bf16.msra.mxu0 0
    %2181 = vmatprep.subr.bf16.mxu0 0
    %2182 = vmatpush1.bf16.msra.mxu0 0
    %2183 = vmatprep.subr.bf16.mxu0 0
    %2184 = vmatpush1.bf16.msra.mxu0 0
    %2185 = vmatprep.subr.bf16.mxu0 0
    %2186 = vmatpush1.bf16.msra.mxu0 0
    %2187 = vmatprep.subr.bf16.mxu0 0
    %2188 = vmatpush1.bf16.msra.mxu0 0
    %2189 = vmatprep.subr.bf16.mxu0 0
    %2190 = vmatpush1.bf16.msra.mxu0 0
    %2191 = vmatprep.subr.bf16.mxu0 0
    %2192 = vmatpush1.bf16.msra.mxu0 0
    %2193 = vmatprep.subr.bf16.mxu0 0
    %2194 = vmatpush1.bf16.msra.mxu0 0
    %2195 = vmatprep.subr.bf16.mxu0 0
    %2196 = vmatpush1.bf16.msra.mxu0 0
    %2197 = vmatprep.subr.bf16.mxu0 0
    %2198 = vmatpush1.bf16.msra.mxu0 0
    %2199 = vmatprep.mubr.bf16.mxu0 0
    %2200 = vmatmul.mubr.bf16.gmra.mrb[0].mxu0 %v2125
    %v2201 = vpop.f32.mrb[0].mxu0
    %v2202 = vadd.f32 %v1068, %v2201
    %v2203 = vpop.f32.mrb[0].mxu0
    %v2204 = vpop.f32.mrb[0].mxu0
    %v2205 = vpop.f32.mrb[0].mxu0
    %2206 = vdwg.mxu0
    %2207 = vmatprep.subr.bf16.mxu0 0
    %2208 = vmatpush1.bf16.msra.mxu0 %v1136
    %2209 = vmatprep.subr.bf16.mxu0 0
    %2210 = vmatpush1.bf16.msra.mxu0 %v1137
    %2211 = vmatprep.subr.bf16.mxu0 0
    %2212 = vmatpush1.bf16.msra.mxu0 0
    %2213 = vmatprep.subr.bf16.mxu0 0
    %2214 = vmatpush1.bf16.msra.mxu0 0
    %2215 = vmatprep.subr.bf16.mxu0 0
    %2216 = vmatpush1.bf16.msra.mxu0 0
    %2217 = vmatprep.subr.bf16.mxu0 0
    %2218 = vmatpush1.bf16.msra.mxu0 0
    %2219 = vmatprep.subr.bf16.mxu0 0
    %2220 = vmatpush1.bf16.msra.mxu0 0
    %2221 = vmatprep.subr.bf16.mxu0 0
    %2222 = vmatpush1.bf16.msra.mxu0 0
    %2223 = vmatprep.subr.bf16.mxu0 0
    %2224 = vmatpush1.bf16.msra.mxu0 0
    %2225 = vmatprep.subr.bf16.mxu0 0
    %2226 = vmatpush1.bf16.msra.mxu0 0
    %2227 = vmatprep.subr.bf16.mxu0 0
    %2228 = vmatpush1.bf16.msra.mxu0 0
    %2229 = vmatprep.subr.bf16.mxu0 0
    %2230 = vmatpush1.bf16.msra.mxu0 0
    %2231 = vmatprep.subr.bf16.mxu0 0
    %2232 = vmatpush1.bf16.msra.mxu0 0
    %2233 = vmatprep.subr.bf16.mxu0 0
    %2234 = vmatpush1.bf16.msra.mxu0 0
    %2235 = vmatprep.subr.bf16.mxu0 0
    %2236 = vmatpush1.bf16.msra.mxu0 0
    %2237 = vmatprep.subr.bf16.mxu0 0
    %2238 = vmatpush1.bf16.msra.mxu0 0
    %2239 = vmatprep.mubr.bf16.mxu0 0
    %2240 = vmatmul.mubr.bf16.gmra.mrb[0].mxu0 %v2125
    %v2241 = vpop.f32.mrb[0].mxu0
    %v2242 = vadd.f32 %v1126, %v2241
    %v2243 = vpop.f32.mrb[0].mxu0
    %v2244 = vpop.f32.mrb[0].mxu0
    %v2245 = vpop.f32.mrb[0].mxu0
    %2246 = vdwg.mxu0
    %s2247 = scalar_lea.vmem [#allocation2], 56
    %v2248 = vld [vmem:[%s2247] sm:$0xff]
    %v2249 = vadd.f32 %v2248, %v2162
    %v2250 = vxor.u32 %v2249, 2147483648
    %v2251 = vmul.f32 %v2250, 1.442695
    %v2252 = vpow.pop %v2251
    %v2253 = vadd.f32 %v2252, 1.0
    %v2254 = vrcp.pop %v2253
    %v2255 = vmul.f32 1.0, %v2254
    %s2256 = scalar_lea.vmem [#allocation3], 56
    %v2257 = vld [vmem:[%s2256] sm:$0xff]
    %v2258 = vadd.f32 %v2257, %v2202
    %v2259 = vxor.u32 %v2258, 2147483648
    %v2260 = vmul.f32 %v2259, 1.442695
    %v2261 = vpow.pop %v2260
    %v2262 = vadd.f32 %v2261, 1.0
    %v2263 = vrcp.pop %v2262
    %v2264 = vmul.f32 1.0, %v2263
    %s2265 = scalar_lea.vmem [#allocation4], 56
    %v2266 = vld [vmem:[%s2265] sm:$0xff]
    %v2267 = vmul.f32 %v2255, %v2242
    %v2268 = vadd.f32 %v2266, %v2267
    %v2269 = vtanh.pop %v2268
    %v2270 = vsub.f32 1.0, %v2264
    %v2271 = vmul.f32 %v2270, %v2269
    %v2272 = vmul.f32 %v2264, %v2120
    %v2273 = vadd.f32 %v2271, %v2272
    %s2274 = scalar_lea.vmem [#allocation5], 56
    %2275 = vst.msk [vmem:[%s2274] sm:$0xff] %vm532, %v2273
    %v2276 = vpack.c.bf16 %v2273, %v2273
    %v2278 = vsel %vm532, %v2276, 0
    %2280 = vmatprep.subr.bf16.mxu0 0
    %2281 = vmatpush1.bf16.msra.mxu0 %v1017
    %2282 = vmatprep.subr.bf16.mxu0 0
    %2283 = vmatpush1.bf16.msra.mxu0 %v1018
    %2284 = vmatprep.subr.bf16.mxu0 0
    %2285 = vmatpush1.bf16.msra.mxu0 0
    %2286 = vmatprep.subr.bf16.mxu0 0
    %2287 = vmatpush1.bf16.msra.mxu0 0
    %2288 = vmatprep.subr.bf16.mxu0 0
    %2289 = vmatpush1.bf16.msra.mxu0 0
    %2290 = vmatprep.subr.bf16.mxu0 0
    %2291 = vmatpush1.bf16.msra.mxu0 0
    %2292 = vmatprep.subr.bf16.mxu0 0
    %2293 = vmatpush1.bf16.msra.mxu0 0
    %2294 = vmatprep.subr.bf16.mxu0 0
    %2295 = vmatpush1.bf16.msra.mxu0 0
    %2296 = vmatprep.subr.bf16.mxu0 0
    %2297 = vmatpush1.bf16.msra.mxu0 0
    %2298 = vmatprep.subr.bf16.mxu0 0
    %2299 = vmatpush1.bf16.msra.mxu0 0
    %2300 = vmatprep.subr.bf16.mxu0 0
    %2301 = vmatpush1.bf16.msra.mxu0 0
    %2302 = vmatprep.subr.bf16.mxu0 0
    %2303 = vmatpush1.bf16.msra.mxu0 0
    %2304 = vmatprep.subr.bf16.mxu0 0
    %2305 = vmatpush1.bf16.msra.mxu0 0
    %2306 = vmatprep.subr.bf16.mxu0 0
    %2307 = vmatpush1.bf16.msra.mxu0 0
    %2308 = vmatprep.subr.bf16.mxu0 0
    %2309 = vmatpush1.bf16.msra.mxu0 0
    %2310 = vmatprep.subr.bf16.mxu0 0
    %2311 = vmatpush1.bf16.msra.mxu0 0
    %2312 = vmatprep.mubr.bf16.mxu0 0
    %2313 = vmatmul.mubr.bf16.gmra.mrb[0].mxu0 %v2278
    %v2314 = vpop.f32.mrb[0].mxu0
    %v2315 = vadd.f32 %v1007, %v2314
    %v2316 = vpop.f32.mrb[0].mxu0
    %v2317 = vpop.f32.mrb[0].mxu0
    %v2318 = vpop.f32.mrb[0].mxu0
    %2319 = vdwg.mxu0
    %2320 = vmatprep.subr.bf16.mxu0 0
    %2321 = vmatpush1.bf16.msra.mxu0 %v1078
    %2322 = vmatprep.subr.bf16.mxu0 0
    %2323 = vmatpush1.bf16.msra.mxu0 %v1079
    %2324 = vmatprep.subr.bf16.mxu0 0
    %2325 = vmatpush1.bf16.msra.mxu0 0
    %2326 = vmatprep.subr.bf16.mxu0 0
    %2327 = vmatpush1.bf16.msra.mxu0 0
    %2328 = vmatprep.subr.bf16.mxu0 0
    %2329 = vmatpush1.bf16.msra.mxu0 0
    %2330 = vmatprep.subr.bf16.mxu0 0
    %2331 = vmatpush1.bf16.msra.mxu0 0
    %2332 = vmatprep.subr.bf16.mxu0 0
    %2333 = vmatpush1.bf16.msra.mxu0 0
    %2334 = vmatprep.subr.bf16.mxu0 0
    %2335 = vmatpush1.bf16.msra.mxu0 0
    %2336 = vmatprep.subr.bf16.mxu0 0
    %2337 = vmatpush1.bf16.msra.mxu0 0
    %2338 = vmatprep.subr.bf16.mxu0 0
    %2339 = vmatpush1.bf16.msra.mxu0 0
    %2340 = vmatprep.subr.bf16.mxu0 0
    %2341 = vmatpush1.bf16.msra.mxu0 0
    %2342 = vmatprep.subr.bf16.mxu0 0
    %2343 = vmatpush1.bf16.msra.mxu0 0
    %2344 = vmatprep.subr.bf16.mxu0 0
    %2345 = vmatpush1.bf16.msra.mxu0 0
    %2346 = vmatprep.subr.bf16.mxu0 0
    %2347 = vmatpush1.bf16.msra.mxu0 0
    %2348 = vmatprep.subr.bf16.mxu0 0
    %2349 = vmatpush1.bf16.msra.mxu0 0
    %2350 = vmatprep.subr.bf16.mxu0 0
    %2351 = vmatpush1.bf16.msra.mxu0 0
    %2352 = vmatprep.mubr.bf16.mxu0 0
    %2353 = vmatmul.mubr.bf16.gmra.mrb[0].mxu0 %v2278
    %v2354 = vpop.f32.mrb[0].mxu0
    %v2355 = vadd.f32 %v1068, %v2354
    %v2356 = vpop.f32.mrb[0].mxu0
    %v2357 = vpop.f32.mrb[0].mxu0
    %v2358 = vpop.f32.mrb[0].mxu0
    %2359 = vdwg.mxu0
    %2360 = vmatprep.subr.bf16.mxu0 0
    %2361 = vmatpush1.bf16.msra.mxu0 %v1136
    %2362 = vmatprep.subr.bf16.mxu0 0
    %2363 = vmatpush1.bf16.msra.mxu0 %v1137
    %2364 = vmatprep.subr.bf16.mxu0 0
    %2365 = vmatpush1.bf16.msra.mxu0 0
    %2366 = vmatprep.subr.bf16.mxu0 0
    %2367 = vmatpush1.bf16.msra.mxu0 0
    %2368 = vmatprep.subr.bf16.mxu0 0
    %2369 = vmatpush1.bf16.msra.mxu0 0
    %2370 = vmatprep.subr.bf16.mxu0 0
    %2371 = vmatpush1.bf16.msra.mxu0 0
    %2372 = vmatprep.subr.bf16.mxu0 0
    %2373 = vmatpush1.bf16.msra.mxu0 0
    %2374 = vmatprep.subr.bf16.mxu0 0
    %2375 = vmatpush1.bf16.msra.mxu0 0
    %2376 = vmatprep.subr.bf16.mxu0 0
    %2377 = vmatpush1.bf16.msra.mxu0 0
    %2378 = vmatprep.subr.bf16.mxu0 0
    %2379 = vmatpush1.bf16.msra.mxu0 0
    %2380 = vmatprep.subr.bf16.mxu0 0
    %2381 = vmatpush1.bf16.msra.mxu0 0
    %2382 = vmatprep.subr.bf16.mxu0 0
    %2383 = vmatpush1.bf16.msra.mxu0 0
    %2384 = vmatprep.subr.bf16.mxu0 0
    %2385 = vmatpush1.bf16.msra.mxu0 0
    %2386 = vmatprep.subr.bf16.mxu0 0
    %2387 = vmatpush1.bf16.msra.mxu0 0
    %2388 = vmatprep.subr.bf16.mxu0 0
    %2389 = vmatpush1.bf16.msra.mxu0 0
    %2390 = vmatprep.subr.bf16.mxu0 0
    %2391 = vmatpush1.bf16.msra.mxu0 0
    %2392 = vmatprep.mubr.bf16.mxu0 0
    %2393 = vmatmul.mubr.bf16.gmra.mrb[0].mxu0 %v2278
    %v2394 = vpop.f32.mrb[0].mxu0
    %v2395 = vadd.f32 %v1126, %v2394
    %v2396 = vpop.f32.mrb[0].mxu0
    %v2397 = vpop.f32.mrb[0].mxu0
    %v2398 = vpop.f32.mrb[0].mxu0
    %2399 = vdwg.mxu0
    %s2400 = scalar_lea.vmem [#allocation2], 64
    %v2401 = vld [vmem:[%s2400] sm:$0xff]
    %v2402 = vadd.f32 %v2401, %v2315
    %v2403 = vxor.u32 %v2402, 2147483648
    %v2404 = vmul.f32 %v2403, 1.442695
    %v2405 = vpow.pop %v2404
    %v2406 = vadd.f32 %v2405, 1.0
    %v2407 = vrcp.pop %v2406
    %v2408 = vmul.f32 1.0, %v2407
    %s2409 = scalar_lea.vmem [#allocation3], 64
    %v2410 = vld [vmem:[%s2409] sm:$0xff]
    %v2411 = vadd.f32 %v2410, %v2355
    %v2412 = vxor.u32 %v2411, 2147483648
    %v2413 = vmul.f32 %v2412, 1.442695
    %v2414 = vpow.pop %v2413
    %v2415 = vadd.f32 %v2414, 1.0
    %v2416 = vrcp.pop %v2415
    %v2417 = vmul.f32 1.0, %v2416
    %s2418 = scalar_lea.vmem [#allocation4], 64
    %v2419 = vld [vmem:[%s2418] sm:$0xff]
    %v2420 = vmul.f32 %v2408, %v2395
    %v2421 = vadd.f32 %v2419, %v2420
    %v2422 = vtanh.pop %v2421
    %v2423 = vsub.f32 1.0, %v2417
    %v2424 = vmul.f32 %v2423, %v2422
    %v2425 = vmul.f32 %v2417, %v2273
    %v2426 = vadd.f32 %v2424, %v2425
    %s2427 = scalar_lea.vmem [#allocation5], 64
    %2428 = vst.msk [vmem:[%s2427] sm:$0xff] %vm532, %v2426
    %v2429 = vpack.c.bf16 %v2426, %v2426
    %v2431 = vsel %vm532, %v2429, 0
    %2433 = vmatprep.subr.bf16.mxu0 0
    %2434 = vmatpush1.bf16.msra.mxu0 %v1017
    %2435 = vmatprep.subr.bf16.mxu0 0
    %2436 = vmatpush1.bf16.msra.mxu0 %v1018
    %2437 = vmatprep.subr.bf16.mxu0 0
    %2438 = vmatpush1.bf16.msra.mxu0 0
    %2439 = vmatprep.subr.bf16.mxu0 0
    %2440 = vmatpush1.bf16.msra.mxu0 0
    %2441 = vmatprep.subr.bf16.mxu0 0
    %2442 = vmatpush1.bf16.msra.mxu0 0
    %2443 = vmatprep.subr.bf16.mxu0 0
    %2444 = vmatpush1.bf16.msra.mxu0 0
    %2445 = vmatprep.subr.bf16.mxu0 0
    %2446 = vmatpush1.bf16.msra.mxu0 0
    %2447 = vmatprep.subr.bf16.mxu0 0
    %2448 = vmatpush1.bf16.msra.mxu0 0
    %2449 = vmatprep.subr.bf16.mxu0 0
    %2450 = vmatpush1.bf16.msra.mxu0 0
    %2451 = vmatprep.subr.bf16.mxu0 0
    %2452 = vmatpush1.bf16.msra.mxu0 0
    %2453 = vmatprep.subr.bf16.mxu0 0
    %2454 = vmatpush1.bf16.msra.mxu0 0
    %2455 = vmatprep.subr.bf16.mxu0 0
    %2456 = vmatpush1.bf16.msra.mxu0 0
    %2457 = vmatprep.subr.bf16.mxu0 0
    %2458 = vmatpush1.bf16.msra.mxu0 0
    %2459 = vmatprep.subr.bf16.mxu0 0
    %2460 = vmatpush1.bf16.msra.mxu0 0
    %2461 = vmatprep.subr.bf16.mxu0 0
    %2462 = vmatpush1.bf16.msra.mxu0 0
    %2463 = vmatprep.subr.bf16.mxu0 0
    %2464 = vmatpush1.bf16.msra.mxu0 0
    %2465 = vmatprep.mubr.bf16.mxu0 0
    %2466 = vmatmul.mubr.bf16.gmra.mrb[0].mxu0 %v2431
    %v2467 = vpop.f32.mrb[0].mxu0
    %v2468 = vadd.f32 %v1007, %v2467
    %v2469 = vpop.f32.mrb[0].mxu0
    %v2470 = vpop.f32.mrb[0].mxu0
    %v2471 = vpop.f32.mrb[0].mxu0
    %2472 = vdwg.mxu0
    %2473 = vmatprep.subr.bf16.mxu0 0
    %2474 = vmatpush1.bf16.msra.mxu0 %v1078
    %2475 = vmatprep.subr.bf16.mxu0 0
    %2476 = vmatpush1.bf16.msra.mxu0 %v1079
    %2477 = vmatprep.subr.bf16.mxu0 0
    %2478 = vmatpush1.bf16.msra.mxu0 0
    %2479 = vmatprep.subr.bf16.mxu0 0
    %2480 = vmatpush1.bf16.msra.mxu0 0
    %2481 = vmatprep.subr.bf16.mxu0 0
    %2482 = vmatpush1.bf16.msra.mxu0 0
    %2483 = vmatprep.subr.bf16.mxu0 0
    %2484 = vmatpush1.bf16.msra.mxu0 0
    %2485 = vmatprep.subr.bf16.mxu0 0
    %2486 = vmatpush1.bf16.msra.mxu0 0
    %2487 = vmatprep.subr.bf16.mxu0 0
    %2488 = vmatpush1.bf16.msra.mxu0 0
    %2489 = vmatprep.subr.bf16.mxu0 0
    %2490 = vmatpush1.bf16.msra.mxu0 0
    %2491 = vmatprep.subr.bf16.mxu0 0
    %2492 = vmatpush1.bf16.msra.mxu0 0
    %2493 = vmatprep.subr.bf16.mxu0 0
    %2494 = vmatpush1.bf16.msra.mxu0 0
    %2495 = vmatprep.subr.bf16.mxu0 0
    %2496 = vmatpush1.bf16.msra.mxu0 0
    %2497 = vmatprep.subr.bf16.mxu0 0
    %2498 = vmatpush1.bf16.msra.mxu0 0
    %2499 = vmatprep.subr.bf16.mxu0 0
    %2500 = vmatpush1.bf16.msra.mxu0 0
    %2501 = vmatprep.subr.bf16.mxu0 0
    %2502 = vmatpush1.bf16.msra.mxu0 0
    %2503 = vmatprep.subr.bf16.mxu0 0
    %2504 = vmatpush1.bf16.msra.mxu0 0
    %2505 = vmatprep.mubr.bf16.mxu0 0
    %2506 = vmatmul.mubr.bf16.gmra.mrb[0].mxu0 %v2431
    %v2507 = vpop.f32.mrb[0].mxu0
    %v2508 = vadd.f32 %v1068, %v2507
    %v2509 = vpop.f32.mrb[0].mxu0
    %v2510 = vpop.f32.mrb[0].mxu0
    %v2511 = vpop.f32.mrb[0].mxu0
    %2512 = vdwg.mxu0
    %2513 = vmatprep.subr.bf16.mxu0 0
    %2514 = vmatpush1.bf16.msra.mxu0 %v1136
    %2515 = vmatprep.subr.bf16.mxu0 0
    %2516 = vmatpush1.bf16.msra.mxu0 %v1137
    %2517 = vmatprep.subr.bf16.mxu0 0
    %2518 = vmatpush1.bf16.msra.mxu0 0
    %2519 = vmatprep.subr.bf16.mxu0 0
    %2520 = vmatpush1.bf16.msra.mxu0 0
    %2521 = vmatprep.subr.bf16.mxu0 0
    %2522 = vmatpush1.bf16.msra.mxu0 0
    %2523 = vmatprep.subr.bf16.mxu0 0
    %2524 = vmatpush1.bf16.msra.mxu0 0
    %2525 = vmatprep.subr.bf16.mxu0 0
    %2526 = vmatpush1.bf16.msra.mxu0 0
    %2527 = vmatprep.subr.bf16.mxu0 0
    %2528 = vmatpush1.bf16.msra.mxu0 0
    %2529 = vmatprep.subr.bf16.mxu0 0
    %2530 = vmatpush1.bf16.msra.mxu0 0
    %2531 = vmatprep.subr.bf16.mxu0 0
    %2532 = vmatpush1.bf16.msra.mxu0 0
    %2533 = vmatprep.subr.bf16.mxu0 0
    %2534 = vmatpush1.bf16.msra.mxu0 0
    %2535 = vmatprep.subr.bf16.mxu0 0
    %2536 = vmatpush1.bf16.msra.mxu0 0
    %2537 = vmatprep.subr.bf16.mxu0 0
    %2538 = vmatpush1.bf16.msra.mxu0 0
    %2539 = vmatprep.subr.bf16.mxu0 0
    %2540 = vmatpush1.bf16.msra.mxu0 0
    %2541 = vmatprep.subr.bf16.mxu0 0
    %2542 = vmatpush1.bf16.msra.mxu0 0
    %2543 = vmatprep.subr.bf16.mxu0 0
    %2544 = vmatpush1.bf16.msra.mxu0 0
    %2545 = vmatprep.mubr.bf16.mxu0 0
    %2546 = vmatmul.mubr.bf16.gmra.mrb[0].mxu0 %v2431
    %v2547 = vpop.f32.mrb[0].mxu0
    %v2548 = vadd.f32 %v1126, %v2547
    %v2549 = vpop.f32.mrb[0].mxu0
    %v2550 = vpop.f32.mrb[0].mxu0
    %v2551 = vpop.f32.mrb[0].mxu0
    %2552 = vdwg.mxu0
    %s2553 = scalar_lea.vmem [#allocation2], 72
    %v2554 = vld [vmem:[%s2553] sm:$0xff]
    %v2555 = vadd.f32 %v2554, %v2468
    %v2556 = vxor.u32 %v2555, 2147483648
    %v2557 = vmul.f32 %v2556, 1.442695
    %v2558 = vpow.pop %v2557
    %v2559 = vadd.f32 %v2558, 1.0
    %v2560 = vrcp.pop %v2559
    %v2561 = vmul.f32 1.0, %v2560
    %s2562 = scalar_lea.vmem [#allocation3], 72
    %v2563 = vld [vmem:[%s2562] sm:$0xff]
    %v2564 = vadd.f32 %v2563, %v2508
    %v2565 = vxor.u32 %v2564, 2147483648
    %v2566 = vmul.f32 %v2565, 1.442695
    %v2567 = vpow.pop %v2566
    %v2568 = vadd.f32 %v2567, 1.0
    %v2569 = vrcp.pop %v2568
    %v2570 = vmul.f32 1.0, %v2569
    %s2571 = scalar_lea.vmem [#allocation4], 72
    %v2572 = vld [vmem:[%s2571] sm:$0xff]
    %v2573 = vmul.f32 %v2561, %v2548
    %v2574 = vadd.f32 %v2572, %v2573
    %v2575 = vtanh.pop %v2574
    %v2576 = vsub.f32 1.0, %v2570
    %v2577 = vmul.f32 %v2576, %v2575
    %v2578 = vmul.f32 %v2570, %v2426
    %v2579 = vadd.f32 %v2577, %v2578
    %s2580 = scalar_lea.vmem [#allocation5], 72
    %2581 = vst.msk [vmem:[%s2580] sm:$0xff] %vm532, %v2579
    %v2582 = vld [vmem:[#allocation5] sm:$0xff]
    %v2583 = vld [vmem:[#allocation5 + $0x8] sm:$0xff]
    %v2584 = vld [vmem:[#allocation5 + $0x10] sm:$0xff]
    %v2585 = vld [vmem:[#allocation5 + $0x18] sm:$0xff]
    %v2586 = vld [vmem:[#allocation5 + $0x20] sm:$0xff]
    %v2587 = vld [vmem:[#allocation5 + $0x28] sm:$0xff]
    %v2588 = vld [vmem:[#allocation5 + $0x30] sm:$0xff]
    %v2589 = vld [vmem:[#allocation5 + $0x38] sm:$0xff]
    %v2590 = vld [vmem:[#allocation5 + $0x40] sm:$0xff]
    %v2591 = vld [vmem:[#allocation5 + $0x48] sm:$0xff]
    %v2592 = vpack.c.bf16 %v2583, %v2582
    %v2593 = vpack.c.bf16 %v2585, %v2584
    %v2594 = vpack.c.bf16 %v2587, %v2586
    %v2595 = vpack.c.bf16 %v2589, %v2588
    %v2596 = vpack.c.bf16 %v2591, %v2590
    %v2597 = vld [vmem:[%s41] sm:$0xf]
    %v2598 = vld [vmem:[%s41 + $0x4] sm:$0xf]
    %v2599 = vld [vmem:[%s41 + $0x8] sm:$0xf]
    %v2600 = vld [vmem:[%s41 + $0xc] sm:$0xf]
    %v2605 = vunpack.c.l.b16 %v2597
    %v2606 = vunpack.c.l.b16 %v2598
    %v2607 = vunpack.c.l.b16 %v2599
    %v2608 = vunpack.c.l.b16 %v2600
    %v2609 = vpack.c.b16 %v2606, %v2605
    %v2610 = vpack.c.b16 %v2608, %v2607
    %v2614 = vsel %vm532, %v2592, 0
    %v2617 = vsel %vm532, %v2593, 0
    %v2620 = vsel %vm532, %v2594, 0
    %v2623 = vsel %vm532, %v2595, 0
    %v2626 = vsel %vm532, %v2596, 0
    %2628 = vmatprep.subr.bf16.mxu0 0
    %2629 = vmatpush1.bf16.msra.mxu0 %v2609
    %2630 = vmatprep.subr.bf16.mxu0 0
    %2631 = vmatpush1.bf16.msra.mxu0 %v2610
    %2632 = vmatprep.subr.bf16.mxu0 0
    %2633 = vmatpush1.bf16.msra.mxu0 0
    %2634 = vmatprep.subr.bf16.mxu0 0
    %2635 = vmatpush1.bf16.msra.mxu0 0
    %2636 = vmatprep.subr.bf16.mxu0 0
    %2637 = vmatpush1.bf16.msra.mxu0 0
    %2638 = vmatprep.subr.bf16.mxu0 0
    %2639 = vmatpush1.bf16.msra.mxu0 0
    %2640 = vmatprep.subr.bf16.mxu0 0
    %2641 = vmatpush1.bf16.msra.mxu0 0
    %2642 = vmatprep.subr.bf16.mxu0 0
    %2643 = vmatpush1.bf16.msra.mxu0 0
    %2644 = vmatprep.subr.bf16.mxu0 0
    %2645 = vmatpush1.bf16.msra.mxu0 0
    %2646 = vmatprep.subr.bf16.mxu0 0
    %2647 = vmatpush1.bf16.msra.mxu0 0
    %2648 = vmatprep.subr.bf16.mxu0 0
    %2649 = vmatpush1.bf16.msra.mxu0 0
    %2650 = vmatprep.subr.bf16.mxu0 0
    %2651 = vmatpush1.bf16.msra.mxu0 0
    %2652 = vmatprep.subr.bf16.mxu0 0
    %2653 = vmatpush1.bf16.msra.mxu0 0
    %2654 = vmatprep.subr.bf16.mxu0 0
    %2655 = vmatpush1.bf16.msra.mxu0 0
    %2656 = vmatprep.subr.bf16.mxu0 0
    %2657 = vmatpush1.bf16.msra.mxu0 0
    %2658 = vmatprep.subr.bf16.mxu0 0
    %2659 = vmatpush1.bf16.msra.mxu0 0
    %2660 = vmatprep.mubr.bf16.mxu0 0
    %2661 = vmatmul.mubr.bf16.gmra.mrb[0].mxu0 %v2614
    %v2662 = vpop.f32.mrb[0].mxu0
    %v2663 = vadd.f32 0.0, %v2662
    %v2664 = vpop.f32.mrb[0].mxu0
    %v2665 = vpop.f32.mrb[0].mxu0
    %v2666 = vadd.f32 0.0, %v2665
    %v2667 = vpop.f32.mrb[0].mxu0
    %2668 = vmatprep.mubr.bf16.mxu0 0
    %2669 = vmatmul.mubr.bf16.gmra.mrb[0].mxu0 %v2617
    %v2670 = vpop.f32.mrb[0].mxu0
    %v2671 = vadd.f32 0.0, %v2670
    %v2672 = vpop.f32.mrb[0].mxu0
    %v2673 = vpop.f32.mrb[0].mxu0
    %v2674 = vadd.f32 0.0, %v2673
    %v2675 = vpop.f32.mrb[0].mxu0
    %2676 = vmatprep.mubr.bf16.mxu0 0
    %2677 = vmatmul.mubr.bf16.gmra.mrb[0].mxu0 %v2620
    %v2678 = vpop.f32.mrb[0].mxu0
    %v2679 = vadd.f32 0.0, %v2678
    %v2680 = vpop.f32.mrb[0].mxu0
    %v2681 = vpop.f32.mrb[0].mxu0
    %v2682 = vadd.f32 0.0, %v2681
    %v2683 = vpop.f32.mrb[0].mxu0
    %2684 = vmatprep.mubr.bf16.mxu0 0
    %2685 = vmatmul.mubr.bf16.gmra.mrb[0].mxu0 %v2623
    %v2686 = vpop.f32.mrb[0].mxu0
    %v2687 = vadd.f32 0.0, %v2686
    %v2688 = vpop.f32.mrb[0].mxu0
    %v2689 = vpop.f32.mrb[0].mxu0
    %v2690 = vadd.f32 0.0, %v2689
    %v2691 = vpop.f32.mrb[0].mxu0
    %2692 = vmatprep.mubr.bf16.mxu0 0
    %2693 = vmatmul.mubr.bf16.gmra.mrb[0].mxu0 %v2626
    %v2694 = vpop.f32.mrb[0].mxu0
    %v2695 = vadd.f32 0.0, %v2694
    %v2696 = vpop.f32.mrb[0].mxu0
    %v2697 = vpop.f32.mrb[0].mxu0
    %v2698 = vadd.f32 0.0, %v2697
    %v2699 = vpop.f32.mrb[0].mxu0
    %2700 = vdwg.mxu0
    %v2701 = vld [vmem:[%s53] sm:$0x1]
    %v2703 = vlaneseq
    %v2704 = vshrl.u32 %v2703, 7
    %v2705 = vsub.s32 0, %v2704
    %v2706 = vrot.slane %v2701, %v2705
    %v2708 = vadd.f32 %v2663, %v2706
    %v2709 = vadd.f32 %v2666, %v2706
    %v2710 = vadd.f32 %v2671, %v2706
    %v2711 = vadd.f32 %v2674, %v2706
    %v2712 = vadd.f32 %v2679, %v2706
    %v2713 = vadd.f32 %v2682, %v2706
    %v2714 = vadd.f32 %v2687, %v2706
    %v2715 = vadd.f32 %v2690, %v2706
    %v2716 = vadd.f32 %v2695, %v2706
    %v2717 = vadd.f32 %v2698, %v2706
    %2718 = vst.msk [vmem:[#allocation2] sm:$0xff] %vm532, %v2708
    %2719 = vst.msk [vmem:[#allocation2 + $0x8] sm:$0xff] %vm532, %v2709
    %2720 = vst.msk [vmem:[#allocation2 + $0x10] sm:$0xff] %vm532, %v2710
    %2721 = vst.msk [vmem:[#allocation2 + $0x18] sm:$0xff] %vm532, %v2711
    %2722 = vst.msk [vmem:[#allocation2 + $0x20] sm:$0xff] %vm532, %v2712
    %2723 = vst.msk [vmem:[#allocation2 + $0x28] sm:$0xff] %vm532, %v2713
    %2724 = vst.msk [vmem:[#allocation2 + $0x30] sm:$0xff] %vm532, %v2714
    %2725 = vst.msk [vmem:[#allocation2 + $0x38] sm:$0xff] %vm532, %v2715
    %2726 = vst.msk [vmem:[#allocation2 + $0x40] sm:$0xff] %vm532, %v2716
    %2727 = vst.msk [vmem:[#allocation2 + $0x48] sm:$0xff] %vm532, %v2717
    %v2728 = vld [vmem:[%s43] sm:$0xf]
    %v2729 = vld [vmem:[%s43 + $0x4] sm:$0xf]
    %v2730 = vld [vmem:[%s43 + $0x8] sm:$0xf]
    %v2731 = vld [vmem:[%s43 + $0xc] sm:$0xf]
    %v2736 = vunpack.c.l.b16 %v2728
    %v2737 = vunpack.c.l.b16 %v2729
    %v2738 = vunpack.c.l.b16 %v2730
    %v2739 = vunpack.c.l.b16 %v2731
    %v2740 = vpack.c.b16 %v2737, %v2736
    %v2741 = vpack.c.b16 %v2739, %v2738
    %2744 = vmatprep.subr.bf16.mxu0 0
    %2745 = vmatpush1.bf16.msra.mxu0 %v2740
    %2746 = vmatprep.subr.bf16.mxu0 0
    %2747 = vmatpush1.bf16.msra.mxu0 %v2741
    %2748 = vmatprep.subr.bf16.mxu0 0
    %2749 = vmatpush1.bf16.msra.mxu0 0
    %2750 = vmatprep.subr.bf16.mxu0 0
    %2751 = vmatpush1.bf16.msra.mxu0 0
    %2752 = vmatprep.subr.bf16.mxu0 0
    %2753 = vmatpush1.bf16.msra.mxu0 0
    %2754 = vmatprep.subr.bf16.mxu0 0
    %2755 = vmatpush1.bf16.msra.mxu0 0
    %2756 = vmatprep.subr.bf16.mxu0 0
    %2757 = vmatpush1.bf16.msra.mxu0 0
    %2758 = vmatprep.subr.bf16.mxu0 0
    %2759 = vmatpush1.bf16.msra.mxu0 0
    %2760 = vmatprep.subr.bf16.mxu0 0
    %2761 = vmatpush1.bf16.msra.mxu0 0
    %2762 = vmatprep.subr.bf16.mxu0 0
    %2763 = vmatpush1.bf16.msra.mxu0 0
    %2764 = vmatprep.subr.bf16.mxu0 0
    %2765 = vmatpush1.bf16.msra.mxu0 0
    %2766 = vmatprep.subr.bf16.mxu0 0
    %2767 = vmatpush1.bf16.msra.mxu0 0
    %2768 = vmatprep.subr.bf16.mxu0 0
    %2769 = vmatpush1.bf16.msra.mxu0 0
    %2770 = vmatprep.subr.bf16.mxu0 0
    %2771 = vmatpush1.bf16.msra.mxu0 0
    %2772 = vmatprep.subr.bf16.mxu0 0
    %2773 = vmatpush1.bf16.msra.mxu0 0
    %2774 = vmatprep.subr.bf16.mxu0 0
    %2775 = vmatpush1.bf16.msra.mxu0 0
    %2776 = vmatprep.mubr.bf16.mxu0 0
    %2777 = vmatmul.mubr.bf16.gmra.mrb[0].mxu0 %v2614
    %v2778 = vpop.f32.mrb[0].mxu0
    %v2779 = vadd.f32 0.0, %v2778
    %v2780 = vpop.f32.mrb[0].mxu0
    %v2781 = vpop.f32.mrb[0].mxu0
    %v2782 = vadd.f32 0.0, %v2781
    %v2783 = vpop.f32.mrb[0].mxu0
    %2784 = vmatprep.mubr.bf16.mxu0 0
    %2785 = vmatmul.mubr.bf16.gmra.mrb[0].mxu0 %v2617
    %v2786 = vpop.f32.mrb[0].mxu0
    %v2787 = vadd.f32 0.0, %v2786
    %v2788 = vpop.f32.mrb[0].mxu0
    %v2789 = vpop.f32.mrb[0].mxu0
    %v2790 = vadd.f32 0.0, %v2789
    %v2791 = vpop.f32.mrb[0].mxu0
    %2792 = vmatprep.mubr.bf16.mxu0 0
    %2793 = vmatmul.mubr.bf16.gmra.mrb[0].mxu0 %v2620
    %v2794 = vpop.f32.mrb[0].mxu0
    %v2795 = vadd.f32 0.0, %v2794
    %v2796 = vpop.f32.mrb[0].mxu0
    %v2797 = vpop.f32.mrb[0].mxu0
    %v2798 = vadd.f32 0.0, %v2797
    %v2799 = vpop.f32.mrb[0].mxu0
    %2800 = vmatprep.mubr.bf16.mxu0 0
    %2801 = vmatmul.mubr.bf16.gmra.mrb[0].mxu0 %v2623
    %v2802 = vpop.f32.mrb[0].mxu0
    %v2803 = vadd.f32 0.0, %v2802
    %v2804 = vpop.f32.mrb[0].mxu0
    %v2805 = vpop.f32.mrb[0].mxu0
    %v2806 = vadd.f32 0.0, %v2805
    %v2807 = vpop.f32.mrb[0].mxu0
    %2808 = vmatprep.mubr.bf16.mxu0 0
    %2809 = vmatmul.mubr.bf16.gmra.mrb[0].mxu0 %v2626
    %v2810 = vpop.f32.mrb[0].mxu0
    %v2811 = vadd.f32 0.0, %v2810
    %v2812 = vpop.f32.mrb[0].mxu0
    %v2813 = vpop.f32.mrb[0].mxu0
    %v2814 = vadd.f32 0.0, %v2813
    %v2815 = vpop.f32.mrb[0].mxu0
    %2816 = vdwg.mxu0
    %v2817 = vld [vmem:[%s55] sm:$0x1]
    %v2819 = vlaneseq
    %v2820 = vshrl.u32 %v2819, 7
    %v2821 = vsub.s32 0, %v2820
    %v2822 = vrot.slane %v2817, %v2821
    %v2824 = vadd.f32 %v2779, %v2822
    %v2825 = vadd.f32 %v2782, %v2822
    %v2826 = vadd.f32 %v2787, %v2822
    %v2827 = vadd.f32 %v2790, %v2822
    %v2828 = vadd.f32 %v2795, %v2822
    %v2829 = vadd.f32 %v2798, %v2822
    %v2830 = vadd.f32 %v2803, %v2822
    %v2831 = vadd.f32 %v2806, %v2822
    %v2832 = vadd.f32 %v2811, %v2822
    %v2833 = vadd.f32 %v2814, %v2822
    %2834 = vst.msk [vmem:[#allocation3] sm:$0xff] %vm532, %v2824
    %2835 = vst.msk [vmem:[#allocation3 + $0x8] sm:$0xff] %vm532, %v2825
    %2836 = vst.msk [vmem:[#allocation3 + $0x10] sm:$0xff] %vm532, %v2826
    %2837 = vst.msk [vmem:[#allocation3 + $0x18] sm:$0xff] %vm532, %v2827
    %2838 = vst.msk [vmem:[#allocation3 + $0x20] sm:$0xff] %vm532, %v2828
    %2839 = vst.msk [vmem:[#allocation3 + $0x28] sm:$0xff] %vm532, %v2829
    %2840 = vst.msk [vmem:[#allocation3 + $0x30] sm:$0xff] %vm532, %v2830
    %2841 = vst.msk [vmem:[#allocation3 + $0x38] sm:$0xff] %vm532, %v2831
    %2842 = vst.msk [vmem:[#allocation3 + $0x40] sm:$0xff] %vm532, %v2832
    %2843 = vst.msk [vmem:[#allocation3 + $0x48] sm:$0xff] %vm532, %v2833
    %v2844 = vld [vmem:[%s45] sm:$0xf]
    %v2845 = vld [vmem:[%s45 + $0x4] sm:$0xf]
    %v2846 = vld [vmem:[%s45 + $0x8] sm:$0xf]
    %v2847 = vld [vmem:[%s45 + $0xc] sm:$0xf]
    %v2852 = vunpack.c.l.b16 %v2844
    %v2853 = vunpack.c.l.b16 %v2845
    %v2854 = vunpack.c.l.b16 %v2846
    %v2855 = vunpack.c.l.b16 %v2847
    %v2856 = vpack.c.b16 %v2853, %v2852
    %v2857 = vpack.c.b16 %v2855, %v2854
    %2860 = vmatprep.subr.bf16.mxu0 0
    %2861 = vmatpush1.bf16.msra.mxu0 %v2856
    %2862 = vmatprep.subr.bf16.mxu0 0
    %2863 = vmatpush1.bf16.msra.mxu0 %v2857
    %2864 = vmatprep.subr.bf16.mxu0 0
    %2865 = vmatpush1.bf16.msra.mxu0 0
    %2866 = vmatprep.subr.bf16.mxu0 0
    %2867 = vmatpush1.bf16.msra.mxu0 0
    %2868 = vmatprep.subr.bf16.mxu0 0
    %2869 = vmatpush1.bf16.msra.mxu0 0
    %2870 = vmatprep.subr.bf16.mxu0 0
    %2871 = vmatpush1.bf16.msra.mxu0 0
    %2872 = vmatprep.subr.bf16.mxu0 0
    %2873 = vmatpush1.bf16.msra.mxu0 0
    %2874 = vmatprep.subr.bf16.mxu0 0
    %2875 = vmatpush1.bf16.msra.mxu0 0
    %2876 = vmatprep.subr.bf16.mxu0 0
    %2877 = vmatpush1.bf16.msra.mxu0 0
    %2878 = vmatprep.subr.bf16.mxu0 0
    %2879 = vmatpush1.bf16.msra.mxu0 0
    %2880 = vmatprep.subr.bf16.mxu0 0
    %2881 = vmatpush1.bf16.msra.mxu0 0
    %2882 = vmatprep.subr.bf16.mxu0 0
    %2883 = vmatpush1.bf16.msra.mxu0 0
    %2884 = vmatprep.subr.bf16.mxu0 0
    %2885 = vmatpush1.bf16.msra.mxu0 0
    %2886 = vmatprep.subr.bf16.mxu0 0
    %2887 = vmatpush1.bf16.msra.mxu0 0
    %2888 = vmatprep.subr.bf16.mxu0 0
    %2889 = vmatpush1.bf16.msra.mxu0 0
    %2890 = vmatprep.subr.bf16.mxu0 0
    %2891 = vmatpush1.bf16.msra.mxu0 0
    %2892 = vmatprep.mubr.bf16.mxu0 0
    %2893 = vmatmul.mubr.bf16.gmra.mrb[0].mxu0 %v2614
    %v2894 = vpop.f32.mrb[0].mxu0
    %v2895 = vadd.f32 0.0, %v2894
    %v2896 = vpop.f32.mrb[0].mxu0
    %v2897 = vpop.f32.mrb[0].mxu0
    %v2898 = vadd.f32 0.0, %v2897
    %v2899 = vpop.f32.mrb[0].mxu0
    %2900 = vmatprep.mubr.bf16.mxu0 0
    %2901 = vmatmul.mubr.bf16.gmra.mrb[0].mxu0 %v2617
    %v2902 = vpop.f32.mrb[0].mxu0
    %v2903 = vadd.f32 0.0, %v2902
    %v2904 = vpop.f32.mrb[0].mxu0
    %v2905 = vpop.f32.mrb[0].mxu0
    %v2906 = vadd.f32 0.0, %v2905
    %v2907 = vpop.f32.mrb[0].mxu0
    %2908 = vmatprep.mubr.bf16.mxu0 0
    %2909 = vmatmul.mubr.bf16.gmra.mrb[0].mxu0 %v2620
    %v2910 = vpop.f32.mrb[0].mxu0
    %v2911 = vadd.f32 0.0, %v2910
    %v2912 = vpop.f32.mrb[0].mxu0
    %v2913 = vpop.f32.mrb[0].mxu0
    %v2914 = vadd.f32 0.0, %v2913
    %v2915 = vpop.f32.mrb[0].mxu0
    %2916 = vmatprep.mubr.bf16.mxu0 0
    %2917 = vmatmul.mubr.bf16.gmra.mrb[0].mxu0 %v2623
    %v2918 = vpop.f32.mrb[0].mxu0
    %v2919 = vadd.f32 0.0, %v2918
    %v2920 = vpop.f32.mrb[0].mxu0
    %v2921 = vpop.f32.mrb[0].mxu0
    %v2922 = vadd.f32 0.0, %v2921
    %v2923 = vpop.f32.mrb[0].mxu0
    %2924 = vmatprep.mubr.bf16.mxu0 0
    %2925 = vmatmul.mubr.bf16.gmra.mrb[0].mxu0 %v2626
    %v2926 = vpop.f32.mrb[0].mxu0
    %v2927 = vadd.f32 0.0, %v2926
    %v2928 = vpop.f32.mrb[0].mxu0
    %v2929 = vpop.f32.mrb[0].mxu0
    %v2930 = vadd.f32 0.0, %v2929
    %v2931 = vpop.f32.mrb[0].mxu0
    %2932 = vdwg.mxu0
    %v2933 = vld [vmem:[%s57] sm:$0x1]
    %v2935 = vlaneseq
    %v2936 = vshrl.u32 %v2935, 7
    %v2937 = vsub.s32 0, %v2936
    %v2938 = vrot.slane %v2933, %v2937
    %v2940 = vadd.f32 %v2895, %v2938
    %v2941 = vadd.f32 %v2898, %v2938
    %v2942 = vadd.f32 %v2903, %v2938
    %v2943 = vadd.f32 %v2906, %v2938
    %v2944 = vadd.f32 %v2911, %v2938
    %v2945 = vadd.f32 %v2914, %v2938
    %v2946 = vadd.f32 %v2919, %v2938
    %v2947 = vadd.f32 %v2922, %v2938
    %v2948 = vadd.f32 %v2927, %v2938
    %v2949 = vadd.f32 %v2930, %v2938
    %2950 = vst.msk [vmem:[#allocation4] sm:$0xff] %vm532, %v2940
    %2951 = vst.msk [vmem:[#allocation4 + $0x8] sm:$0xff] %vm532, %v2941
    %2952 = vst.msk [vmem:[#allocation4 + $0x10] sm:$0xff] %vm532, %v2942
    %2953 = vst.msk [vmem:[#allocation4 + $0x18] sm:$0xff] %vm532, %v2943
    %2954 = vst.msk [vmem:[#allocation4 + $0x20] sm:$0xff] %vm532, %v2944
    %2955 = vst.msk [vmem:[#allocation4 + $0x28] sm:$0xff] %vm532, %v2945
    %2956 = vst.msk [vmem:[#allocation4 + $0x30] sm:$0xff] %vm532, %v2946
    %2957 = vst.msk [vmem:[#allocation4 + $0x38] sm:$0xff] %vm532, %v2947
    %2958 = vst.msk [vmem:[#allocation4 + $0x40] sm:$0xff] %vm532, %v2948
    %2959 = vst.msk [vmem:[#allocation4 + $0x48] sm:$0xff] %vm532, %v2949
    %v2960 = vld [vmem:[%s47] sm:$0xf]
    %v2961 = vld [vmem:[%s47 + $0x4] sm:$0xf]
    %v2962 = vld [vmem:[%s47 + $0x8] sm:$0xf]
    %v2963 = vld [vmem:[%s47 + $0xc] sm:$0xf]
    %v2964 = vld [vmem:[%s49] sm:$0xf]
    %v2965 = vld [vmem:[%s49 + $0x4] sm:$0xf]
    %v2966 = vld [vmem:[%s49 + $0x8] sm:$0xf]
    %v2967 = vld [vmem:[%s49 + $0xc] sm:$0xf]
    %v2968 = vld [vmem:[%s51] sm:$0xf]
    %v2969 = vld [vmem:[%s51 + $0x4] sm:$0xf]
    %v2970 = vld [vmem:[%s51 + $0x8] sm:$0xf]
    %v2971 = vld [vmem:[%s51 + $0xc] sm:$0xf]
    %v2972 = vld [vmem:[%s59] sm:$0x1]
    %v2973 = vld [vmem:[%s61] sm:$0x1]
    %v2974 = vld [vmem:[%s63] sm:$0x1]
    %v2976 = vlaneseq
    %v2977 = vshrl.u32 %v2976, 7
    %v2978 = vsub.s32 0, %v2977
    %v2979 = vrot.slane %v2972, %v2978
    %v2985 = vunpack.c.l.b16 %v2960
    %v2986 = vunpack.c.l.b16 %v2961
    %v2987 = vunpack.c.l.b16 %v2962
    %v2988 = vunpack.c.l.b16 %v2963
    %v2989 = vpack.c.b16 %v2986, %v2985
    %v2990 = vpack.c.b16 %v2988, %v2987
    %2993 = vmatprep.subr.bf16.mxu0 0
    %2994 = vmatpush1.bf16.msra.mxu0 %v2989
    %2995 = vmatprep.subr.bf16.mxu0 0
    %2996 = vmatpush1.bf16.msra.mxu0 %v2990
    %2997 = vmatprep.subr.bf16.mxu0 0
    %2998 = vmatpush1.bf16.msra.mxu0 0
    %2999 = vmatprep.subr.bf16.mxu0 0
    %3000 = vmatpush1.bf16.msra.mxu0 0
    %3001 = vmatprep.subr.bf16.mxu0 0
    %3002 = vmatpush1.bf16.msra.mxu0 0
    %3003 = vmatprep.subr.bf16.mxu0 0
    %3004 = vmatpush1.bf16.msra.mxu0 0
    %3005 = vmatprep.subr.bf16.mxu0 0
    %3006 = vmatpush1.bf16.msra.mxu0 0
    %3007 = vmatprep.subr.bf16.mxu0 0
    %3008 = vmatpush1.bf16.msra.mxu0 0
    %3009 = vmatprep.subr.bf16.mxu0 0
    %3010 = vmatpush1.bf16.msra.mxu0 0
    %3011 = vmatprep.subr.bf16.mxu0 0
    %3012 = vmatpush1.bf16.msra.mxu0 0
    %3013 = vmatprep.subr.bf16.mxu0 0
    %3014 = vmatpush1.bf16.msra.mxu0 0
    %3015 = vmatprep.subr.bf16.mxu0 0
    %3016 = vmatpush1.bf16.msra.mxu0 0
    %3017 = vmatprep.subr.bf16.mxu0 0
    %3018 = vmatpush1.bf16.msra.mxu0 0
    %3019 = vmatprep.subr.bf16.mxu0 0
    %3020 = vmatpush1.bf16.msra.mxu0 0
    %3021 = vmatprep.subr.bf16.mxu0 0
    %3022 = vmatpush1.bf16.msra.mxu0 0
    %3023 = vmatprep.subr.bf16.mxu0 0
    %3024 = vmatpush1.bf16.msra.mxu0 0
    %3025 = vmatprep.mubr.bf16.mxu0 0
    %3026 = vmatmul.mubr.bf16.gmra.mrb[0].mxu0 %v1022
    %v3027 = vpop.f32.mrb[0].mxu0
    %v3028 = vadd.f32 %v2979, %v3027
    %v3029 = vpop.f32.mrb[0].mxu0
    %v3030 = vpop.f32.mrb[0].mxu0
    %v3031 = vpop.f32.mrb[0].mxu0
    %3032 = vdwg.mxu0
    %v3034 = vlaneseq
    %v3035 = vshrl.u32 %v3034, 7
    %v3036 = vsub.s32 0, %v3035
    %v3037 = vrot.slane %v2973, %v3036
    %v3043 = vunpack.c.l.b16 %v2964
    %v3044 = vunpack.c.l.b16 %v2965
    %v3045 = vunpack.c.l.b16 %v2966
    %v3046 = vunpack.c.l.b16 %v2967
    %v3047 = vpack.c.b16 %v3044, %v3043
    %v3048 = vpack.c.b16 %v3046, %v3045
    %3051 = vmatprep.subr.bf16.mxu0 0
    %3052 = vmatpush1.bf16.msra.mxu0 %v3047
    %3053 = vmatprep.subr.bf16.mxu0 0
    %3054 = vmatpush1.bf16.msra.mxu0 %v3048
    %3055 = vmatprep.subr.bf16.mxu0 0
    %3056 = vmatpush1.bf16.msra.mxu0 0
    %3057 = vmatprep.subr.bf16.mxu0 0
    %3058 = vmatpush1.bf16.msra.mxu0 0
    %3059 = vmatprep.subr.bf16.mxu0 0
    %3060 = vmatpush1.bf16.msra.mxu0 0
    %3061 = vmatprep.subr.bf16.mxu0 0
    %3062 = vmatpush1.bf16.msra.mxu0 0
    %3063 = vmatprep.subr.bf16.mxu0 0
    %3064 = vmatpush1.bf16.msra.mxu0 0
    %3065 = vmatprep.subr.bf16.mxu0 0
    %3066 = vmatpush1.bf16.msra.mxu0 0
    %3067 = vmatprep.subr.bf16.mxu0 0
    %3068 = vmatpush1.bf16.msra.mxu0 0
    %3069 = vmatprep.subr.bf16.mxu0 0
    %3070 = vmatpush1.bf16.msra.mxu0 0
    %3071 = vmatprep.subr.bf16.mxu0 0
    %3072 = vmatpush1.bf16.msra.mxu0 0
    %3073 = vmatprep.subr.bf16.mxu0 0
    %3074 = vmatpush1.bf16.msra.mxu0 0
    %3075 = vmatprep.subr.bf16.mxu0 0
    %3076 = vmatpush1.bf16.msra.mxu0 0
    %3077 = vmatprep.subr.bf16.mxu0 0
    %3078 = vmatpush1.bf16.msra.mxu0 0
    %3079 = vmatprep.subr.bf16.mxu0 0
    %3080 = vmatpush1.bf16.msra.mxu0 0
    %3081 = vmatprep.subr.bf16.mxu0 0
    %3082 = vmatpush1.bf16.msra.mxu0 0
    %3083 = vmatprep.mubr.bf16.mxu0 0
    %3084 = vmatmul.mubr.bf16.gmra.mrb[0].mxu0 %v1022
    %v3085 = vpop.f32.mrb[0].mxu0
    %v3086 = vadd.f32 %v3037, %v3085
    %v3087 = vpop.f32.mrb[0].mxu0
    %v3088 = vpop.f32.mrb[0].mxu0
    %v3089 = vpop.f32.mrb[0].mxu0
    %3090 = vdwg.mxu0
    %v3092 = vlaneseq
    %v3093 = vshrl.u32 %v3092, 7
    %v3094 = vsub.s32 0, %v3093
    %v3095 = vrot.slane %v2974, %v3094
    %v3101 = vunpack.c.l.b16 %v2968
    %v3102 = vunpack.c.l.b16 %v2969
    %v3103 = vunpack.c.l.b16 %v2970
    %v3104 = vunpack.c.l.b16 %v2971
    %v3105 = vpack.c.b16 %v3102, %v3101
    %v3106 = vpack.c.b16 %v3104, %v3103
    %3109 = vmatprep.subr.bf16.mxu0 0
    %3110 = vmatpush1.bf16.msra.mxu0 %v3105
    %3111 = vmatprep.subr.bf16.mxu0 0
    %3112 = vmatpush1.bf16.msra.mxu0 %v3106
    %3113 = vmatprep.subr.bf16.mxu0 0
    %3114 = vmatpush1.bf16.msra.mxu0 0
    %3115 = vmatprep.subr.bf16.mxu0 0
    %3116 = vmatpush1.bf16.msra.mxu0 0
    %3117 = vmatprep.subr.bf16.mxu0 0
    %3118 = vmatpush1.bf16.msra.mxu0 0
    %3119 = vmatprep.subr.bf16.mxu0 0
    %3120 = vmatpush1.bf16.msra.mxu0 0
    %3121 = vmatprep.subr.bf16.mxu0 0
    %3122 = vmatpush1.bf16.msra.mxu0 0
    %3123 = vmatprep.subr.bf16.mxu0 0
    %3124 = vmatpush1.bf16.msra.mxu0 0
    %3125 = vmatprep.subr.bf16.mxu0 0
    %3126 = vmatpush1.bf16.msra.mxu0 0
    %3127 = vmatprep.subr.bf16.mxu0 0
    %3128 = vmatpush1.bf16.msra.mxu0 0
    %3129 = vmatprep.subr.bf16.mxu0 0
    %3130 = vmatpush1.bf16.msra.mxu0 0
    %3131 = vmatprep.subr.bf16.mxu0 0
    %3132 = vmatpush1.bf16.msra.mxu0 0
    %3133 = vmatprep.subr.bf16.mxu0 0
    %3134 = vmatpush1.bf16.msra.mxu0 0
    %3135 = vmatprep.subr.bf16.mxu0 0
    %3136 = vmatpush1.bf16.msra.mxu0 0
    %3137 = vmatprep.subr.bf16.mxu0 0
    %3138 = vmatpush1.bf16.msra.mxu0 0
    %3139 = vmatprep.subr.bf16.mxu0 0
    %3140 = vmatpush1.bf16.msra.mxu0 0
    %3141 = vmatprep.mubr.bf16.mxu0 0
    %3142 = vmatmul.mubr.bf16.gmra.mrb[0].mxu0 %v1022
    %v3143 = vpop.f32.mrb[0].mxu0
    %v3144 = vadd.f32 %v3095, %v3143
    %v3145 = vpop.f32.mrb[0].mxu0
    %v3146 = vpop.f32.mrb[0].mxu0
    %v3147 = vpop.f32.mrb[0].mxu0
    %3148 = vdwg.mxu0
    %v3149 = vld [vmem:[#allocation2] sm:$0xff]
    %v3150 = vadd.f32 %v3149, %v3028
    %v3151 = vxor.u32 %v3150, 2147483648
    %v3152 = vmul.f32 %v3151, 1.442695
    %v3153 = vpow.pop %v3152
    %v3154 = vadd.f32 %v3153, 1.0
    %v3155 = vrcp.pop %v3154
    %v3156 = vmul.f32 1.0, %v3155
    %v3157 = vld [vmem:[#allocation3] sm:$0xff]
    %v3158 = vadd.f32 %v3157, %v3086
    %v3159 = vxor.u32 %v3158, 2147483648
    %v3160 = vmul.f32 %v3159, 1.442695
    %v3161 = vpow.pop %v3160
    %v3162 = vadd.f32 %v3161, 1.0
    %v3163 = vrcp.pop %v3162
    %v3164 = vmul.f32 1.0, %v3163
    %v3165 = vld [vmem:[#allocation4] sm:$0xff]
    %v3166 = vmul.f32 %v3156, %v3144
    %v3167 = vadd.f32 %v3165, %v3166
    %v3168 = vtanh.pop %v3167
    %v3169 = vsub.f32 1.0, %v3164
    %v3170 = vmul.f32 %v3169, %v3168
    %v3171 = vmul.f32 %v3164, %v208
    %v3172 = vadd.f32 %v3170, %v3171
    %3173 = vst.msk [vmem:[#allocation6] sm:$0xff] %vm532, %v3172
    %v3174 = vpack.c.bf16 %v3172, %v3172
    %v3176 = vsel %vm532, %v3174, 0
    %3178 = vmatprep.subr.bf16.mxu0 0
    %3179 = vmatpush1.bf16.msra.mxu0 %v2989
    %3180 = vmatprep.subr.bf16.mxu0 0
    %3181 = vmatpush1.bf16.msra.mxu0 %v2990
    %3182 = vmatprep.subr.bf16.mxu0 0
    %3183 = vmatpush1.bf16.msra.mxu0 0
    %3184 = vmatprep.subr.bf16.mxu0 0
    %3185 = vmatpush1.bf16.msra.mxu0 0
    %3186 = vmatprep.subr.bf16.mxu0 0
    %3187 = vmatpush1.bf16.msra.mxu0 0
    %3188 = vmatprep.subr.bf16.mxu0 0
    %3189 = vmatpush1.bf16.msra.mxu0 0
    %3190 = vmatprep.subr.bf16.mxu0 0
    %3191 = vmatpush1.bf16.msra.mxu0 0
    %3192 = vmatprep.subr.bf16.mxu0 0
    %3193 = vmatpush1.bf16.msra.mxu0 0
    %3194 = vmatprep.subr.bf16.mxu0 0
    %3195 = vmatpush1.bf16.msra.mxu0 0
    %3196 = vmatprep.subr.bf16.mxu0 0
    %3197 = vmatpush1.bf16.msra.mxu0 0
    %3198 = vmatprep.subr.bf16.mxu0 0
    %3199 = vmatpush1.bf16.msra.mxu0 0
    %3200 = vmatprep.subr.bf16.mxu0 0
    %3201 = vmatpush1.bf16.msra.mxu0 0
    %3202 = vmatprep.subr.bf16.mxu0 0
    %3203 = vmatpush1.bf16.msra.mxu0 0
    %3204 = vmatprep.subr.bf16.mxu0 0
    %3205 = vmatpush1.bf16.msra.mxu0 0
    %3206 = vmatprep.subr.bf16.mxu0 0
    %3207 = vmatpush1.bf16.msra.mxu0 0
    %3208 = vmatprep.subr.bf16.mxu0 0
    %3209 = vmatpush1.bf16.msra.mxu0 0
    %3210 = vmatprep.mubr.bf16.mxu0 0
    %3211 = vmatmul.mubr.bf16.gmra.mrb[0].mxu0 %v3176
    %v3212 = vpop.f32.mrb[0].mxu0
    %v3213 = vadd.f32 %v2979, %v3212
    %v3214 = vpop.f32.mrb[0].mxu0
    %v3215 = vpop.f32.mrb[0].mxu0
    %v3216 = vpop.f32.mrb[0].mxu0
    %3217 = vdwg.mxu0
    %3218 = vmatprep.subr.bf16.mxu0 0
    %3219 = vmatpush1.bf16.msra.mxu0 %v3047
    %3220 = vmatprep.subr.bf16.mxu0 0
    %3221 = vmatpush1.bf16.msra.mxu0 %v3048
    %3222 = vmatprep.subr.bf16.mxu0 0
    %3223 = vmatpush1.bf16.msra.mxu0 0
    %3224 = vmatprep.subr.bf16.mxu0 0
    %3225 = vmatpush1.bf16.msra.mxu0 0
    %3226 = vmatprep.subr.bf16.mxu0 0
    %3227 = vmatpush1.bf16.msra.mxu0 0
    %3228 = vmatprep.subr.bf16.mxu0 0
    %3229 = vmatpush1.bf16.msra.mxu0 0
    %3230 = vmatprep.subr.bf16.mxu0 0
    %3231 = vmatpush1.bf16.msra.mxu0 0
    %3232 = vmatprep.subr.bf16.mxu0 0
    %3233 = vmatpush1.bf16.msra.mxu0 0
    %3234 = vmatprep.subr.bf16.mxu0 0
    %3235 = vmatpush1.bf16.msra.mxu0 0
    %3236 = vmatprep.subr.bf16.mxu0 0
    %3237 = vmatpush1.bf16.msra.mxu0 0
    %3238 = vmatprep.subr.bf16.mxu0 0
    %3239 = vmatpush1.bf16.msra.mxu0 0
    %3240 = vmatprep.subr.bf16.mxu0 0
    %3241 = vmatpush1.bf16.msra.mxu0 0
    %3242 = vmatprep.subr.bf16.mxu0 0
    %3243 = vmatpush1.bf16.msra.mxu0 0
    %3244 = vmatprep.subr.bf16.mxu0 0
    %3245 = vmatpush1.bf16.msra.mxu0 0
    %3246 = vmatprep.subr.bf16.mxu0 0
    %3247 = vmatpush1.bf16.msra.mxu0 0
    %3248 = vmatprep.subr.bf16.mxu0 0
    %3249 = vmatpush1.bf16.msra.mxu0 0
    %3250 = vmatprep.mubr.bf16.mxu0 0
    %3251 = vmatmul.mubr.bf16.gmra.mrb[0].mxu0 %v3176
    %v3252 = vpop.f32.mrb[0].mxu0
    %v3253 = vadd.f32 %v3037, %v3252
    %v3254 = vpop.f32.mrb[0].mxu0
    %v3255 = vpop.f32.mrb[0].mxu0
    %v3256 = vpop.f32.mrb[0].mxu0
    %3257 = vdwg.mxu0
    %3258 = vmatprep.subr.bf16.mxu0 0
    %3259 = vmatpush1.bf16.msra.mxu0 %v3105
    %3260 = vmatprep.subr.bf16.mxu0 0
    %3261 = vmatpush1.bf16.msra.mxu0 %v3106
    %3262 = vmatprep.subr.bf16.mxu0 0
    %3263 = vmatpush1.bf16.msra.mxu0 0
    %3264 = vmatprep.subr.bf16.mxu0 0
    %3265 = vmatpush1.bf16.msra.mxu0 0
    %3266 = vmatprep.subr.bf16.mxu0 0
    %3267 = vmatpush1.bf16.msra.mxu0 0
    %3268 = vmatprep.subr.bf16.mxu0 0
    %3269 = vmatpush1.bf16.msra.mxu0 0
    %3270 = vmatprep.subr.bf16.mxu0 0
    %3271 = vmatpush1.bf16.msra.mxu0 0
    %3272 = vmatprep.subr.bf16.mxu0 0
    %3273 = vmatpush1.bf16.msra.mxu0 0
    %3274 = vmatprep.subr.bf16.mxu0 0
    %3275 = vmatpush1.bf16.msra.mxu0 0
    %3276 = vmatprep.subr.bf16.mxu0 0
    %3277 = vmatpush1.bf16.msra.mxu0 0
    %3278 = vmatprep.subr.bf16.mxu0 0
    %3279 = vmatpush1.bf16.msra.mxu0 0
    %3280 = vmatprep.subr.bf16.mxu0 0
    %3281 = vmatpush1.bf16.msra.mxu0 0
    %3282 = vmatprep.subr.bf16.mxu0 0
    %3283 = vmatpush1.bf16.msra.mxu0 0
    %3284 = vmatprep.subr.bf16.mxu0 0
    %3285 = vmatpush1.bf16.msra.mxu0 0
    %3286 = vmatprep.subr.bf16.mxu0 0
    %3287 = vmatpush1.bf16.msra.mxu0 0
    %3288 = vmatprep.subr.bf16.mxu0 0
    %3289 = vmatpush1.bf16.msra.mxu0 0
    %3290 = vmatprep.mubr.bf16.mxu0 0
    %3291 = vmatmul.mubr.bf16.gmra.mrb[0].mxu0 %v3176
    %v3292 = vpop.f32.mrb[0].mxu0
    %v3293 = vadd.f32 %v3095, %v3292
    %v3294 = vpop.f32.mrb[0].mxu0
    %v3295 = vpop.f32.mrb[0].mxu0
    %v3296 = vpop.f32.mrb[0].mxu0
    %3297 = vdwg.mxu0
    %v3298 = vld [vmem:[%s1329] sm:$0xff]
    %v3299 = vadd.f32 %v3298, %v3213
    %v3300 = vxor.u32 %v3299, 2147483648
    %v3301 = vmul.f32 %v3300, 1.442695
    %v3302 = vpow.pop %v3301
    %v3303 = vadd.f32 %v3302, 1.0
    %v3304 = vrcp.pop %v3303
    %v3305 = vmul.f32 1.0, %v3304
    %v3306 = vld [vmem:[%s1338] sm:$0xff]
    %v3307 = vadd.f32 %v3306, %v3253
    %v3308 = vxor.u32 %v3307, 2147483648
    %v3309 = vmul.f32 %v3308, 1.442695
    %v3310 = vpow.pop %v3309
    %v3311 = vadd.f32 %v3310, 1.0
    %v3312 = vrcp.pop %v3311
    %v3313 = vmul.f32 1.0, %v3312
    %v3314 = vld [vmem:[%s1347] sm:$0xff]
    %v3315 = vmul.f32 %v3305, %v3293
    %v3316 = vadd.f32 %v3314, %v3315
    %v3317 = vtanh.pop %v3316
    %v3318 = vsub.f32 1.0, %v3313
    %v3319 = vmul.f32 %v3318, %v3317
    %v3320 = vmul.f32 %v3313, %v3172
    %v3321 = vadd.f32 %v3319, %v3320
    %s3322 = scalar_lea.vmem [#allocation6], 8
    %3323 = vst.msk [vmem:[%s3322] sm:$0xff] %vm532, %v3321
    %v3324 = vpack.c.bf16 %v3321, %v3321
    %v3326 = vsel %vm532, %v3324, 0
    %3328 = vmatprep.subr.bf16.mxu0 0
    %3329 = vmatpush1.bf16.msra.mxu0 %v2989
    %3330 = vmatprep.subr.bf16.mxu0 0
    %3331 = vmatpush1.bf16.msra.mxu0 %v2990
    %3332 = vmatprep.subr.bf16.mxu0 0
    %3333 = vmatpush1.bf16.msra.mxu0 0
    %3334 = vmatprep.subr.bf16.mxu0 0
    %3335 = vmatpush1.bf16.msra.mxu0 0
    %3336 = vmatprep.subr.bf16.mxu0 0
    %3337 = vmatpush1.bf16.msra.mxu0 0
    %3338 = vmatprep.subr.bf16.mxu0 0
    %3339 = vmatpush1.bf16.msra.mxu0 0
    %3340 = vmatprep.subr.bf16.mxu0 0
    %3341 = vmatpush1.bf16.msra.mxu0 0
    %3342 = vmatprep.subr.bf16.mxu0 0
    %3343 = vmatpush1.bf16.msra.mxu0 0
    %3344 = vmatprep.subr.bf16.mxu0 0
    %3345 = vmatpush1.bf16.msra.mxu0 0
    %3346 = vmatprep.subr.bf16.mxu0 0
    %3347 = vmatpush1.bf16.msra.mxu0 0
    %3348 = vmatprep.subr.bf16.mxu0 0
    %3349 = vmatpush1.bf16.msra.mxu0 0
    %3350 = vmatprep.subr.bf16.mxu0 0
    %3351 = vmatpush1.bf16.msra.mxu0 0
    %3352 = vmatprep.subr.bf16.mxu0 0
    %3353 = vmatpush1.bf16.msra.mxu0 0
    %3354 = vmatprep.subr.bf16.mxu0 0
    %3355 = vmatpush1.bf16.msra.mxu0 0
    %3356 = vmatprep.subr.bf16.mxu0 0
    %3357 = vmatpush1.bf16.msra.mxu0 0
    %3358 = vmatprep.subr.bf16.mxu0 0
    %3359 = vmatpush1.bf16.msra.mxu0 0
    %3360 = vmatprep.mubr.bf16.mxu0 0
    %3361 = vmatmul.mubr.bf16.gmra.mrb[0].mxu0 %v3326
    %v3362 = vpop.f32.mrb[0].mxu0
    %v3363 = vadd.f32 %v2979, %v3362
    %v3364 = vpop.f32.mrb[0].mxu0
    %v3365 = vpop.f32.mrb[0].mxu0
    %v3366 = vpop.f32.mrb[0].mxu0
    %3367 = vdwg.mxu0
    %3368 = vmatprep.subr.bf16.mxu0 0
    %3369 = vmatpush1.bf16.msra.mxu0 %v3047
    %3370 = vmatprep.subr.bf16.mxu0 0
    %3371 = vmatpush1.bf16.msra.mxu0 %v3048
    %3372 = vmatprep.subr.bf16.mxu0 0
    %3373 = vmatpush1.bf16.msra.mxu0 0
    %3374 = vmatprep.subr.bf16.mxu0 0
    %3375 = vmatpush1.bf16.msra.mxu0 0
    %3376 = vmatprep.subr.bf16.mxu0 0
    %3377 = vmatpush1.bf16.msra.mxu0 0
    %3378 = vmatprep.subr.bf16.mxu0 0
    %3379 = vmatpush1.bf16.msra.mxu0 0
    %3380 = vmatprep.subr.bf16.mxu0 0
    %3381 = vmatpush1.bf16.msra.mxu0 0
    %3382 = vmatprep.subr.bf16.mxu0 0
    %3383 = vmatpush1.bf16.msra.mxu0 0
    %3384 = vmatprep.subr.bf16.mxu0 0
    %3385 = vmatpush1.bf16.msra.mxu0 0
    %3386 = vmatprep.subr.bf16.mxu0 0
    %3387 = vmatpush1.bf16.msra.mxu0 0
    %3388 = vmatprep.subr.bf16.mxu0 0
    %3389 = vmatpush1.bf16.msra.mxu0 0
    %3390 = vmatprep.subr.bf16.mxu0 0
    %3391 = vmatpush1.bf16.msra.mxu0 0
    %3392 = vmatprep.subr.bf16.mxu0 0
    %3393 = vmatpush1.bf16.msra.mxu0 0
    %3394 = vmatprep.subr.bf16.mxu0 0
    %3395 = vmatpush1.bf16.msra.mxu0 0
    %3396 = vmatprep.subr.bf16.mxu0 0
    %3397 = vmatpush1.bf16.msra.mxu0 0
    %3398 = vmatprep.subr.bf16.mxu0 0
    %3399 = vmatpush1.bf16.msra.mxu0 0
    %3400 = vmatprep.mubr.bf16.mxu0 0
    %3401 = vmatmul.mubr.bf16.gmra.mrb[0].mxu0 %v3326
    %v3402 = vpop.f32.mrb[0].mxu0
    %v3403 = vadd.f32 %v3037, %v3402
    %v3404 = vpop.f32.mrb[0].mxu0
    %v3405 = vpop.f32.mrb[0].mxu0
    %v3406 = vpop.f32.mrb[0].mxu0
    %3407 = vdwg.mxu0
    %3408 = vmatprep.subr.bf16.mxu0 0
    %3409 = vmatpush1.bf16.msra.mxu0 %v3105
    %3410 = vmatprep.subr.bf16.mxu0 0
    %3411 = vmatpush1.bf16.msra.mxu0 %v3106
    %3412 = vmatprep.subr.bf16.mxu0 0
    %3413 = vmatpush1.bf16.msra.mxu0 0
    %3414 = vmatprep.subr.bf16.mxu0 0
    %3415 = vmatpush1.bf16.msra.mxu0 0
    %3416 = vmatprep.subr.bf16.mxu0 0
    %3417 = vmatpush1.bf16.msra.mxu0 0
    %3418 = vmatprep.subr.bf16.mxu0 0
    %3419 = vmatpush1.bf16.msra.mxu0 0
    %3420 = vmatprep.subr.bf16.mxu0 0
    %3421 = vmatpush1.bf16.msra.mxu0 0
    %3422 = vmatprep.subr.bf16.mxu0 0
    %3423 = vmatpush1.bf16.msra.mxu0 0
    %3424 = vmatprep.subr.bf16.mxu0 0
    %3425 = vmatpush1.bf16.msra.mxu0 0
    %3426 = vmatprep.subr.bf16.mxu0 0
    %3427 = vmatpush1.bf16.msra.mxu0 0
    %3428 = vmatprep.subr.bf16.mxu0 0
    %3429 = vmatpush1.bf16.msra.mxu0 0
    %3430 = vmatprep.subr.bf16.mxu0 0
    %3431 = vmatpush1.bf16.msra.mxu0 0
    %3432 = vmatprep.subr.bf16.mxu0 0
    %3433 = vmatpush1.bf16.msra.mxu0 0
    %3434 = vmatprep.subr.bf16.mxu0 0
    %3435 = vmatpush1.bf16.msra.mxu0 0
    %3436 = vmatprep.subr.bf16.mxu0 0
    %3437 = vmatpush1.bf16.msra.mxu0 0
    %3438 = vmatprep.subr.bf16.mxu0 0
    %3439 = vmatpush1.bf16.msra.mxu0 0
    %3440 = vmatprep.mubr.bf16.mxu0 0
    %3441 = vmatmul.mubr.bf16.gmra.mrb[0].mxu0 %v3326
    %v3442 = vpop.f32.mrb[0].mxu0
    %v3443 = vadd.f32 %v3095, %v3442
    %v3444 = vpop.f32.mrb[0].mxu0
    %v3445 = vpop.f32.mrb[0].mxu0
    %v3446 = vpop.f32.mrb[0].mxu0
    %3447 = vdwg.mxu0
    %v3448 = vld [vmem:[%s1482] sm:$0xff]
    %v3449 = vadd.f32 %v3448, %v3363
    %v3450 = vxor.u32 %v3449, 2147483648
    %v3451 = vmul.f32 %v3450, 1.442695
    %v3452 = vpow.pop %v3451
    %v3453 = vadd.f32 %v3452, 1.0
    %v3454 = vrcp.pop %v3453
    %v3455 = vmul.f32 1.0, %v3454
    %v3456 = vld [vmem:[%s1491] sm:$0xff]
    %v3457 = vadd.f32 %v3456, %v3403
    %v3458 = vxor.u32 %v3457, 2147483648
    %v3459 = vmul.f32 %v3458, 1.442695
    %v3460 = vpow.pop %v3459
    %v3461 = vadd.f32 %v3460, 1.0
    %v3462 = vrcp.pop %v3461
    %v3463 = vmul.f32 1.0, %v3462
    %v3464 = vld [vmem:[%s1500] sm:$0xff]
    %v3465 = vmul.f32 %v3455, %v3443
    %v3466 = vadd.f32 %v3464, %v3465
    %v3467 = vtanh.pop %v3466
    %v3468 = vsub.f32 1.0, %v3463
    %v3469 = vmul.f32 %v3468, %v3467
    %v3470 = vmul.f32 %v3463, %v3321
    %v3471 = vadd.f32 %v3469, %v3470
    %s3472 = scalar_lea.vmem [#allocation6], 16
    %3473 = vst.msk [vmem:[%s3472] sm:$0xff] %vm532, %v3471
    %v3474 = vpack.c.bf16 %v3471, %v3471
    %v3476 = vsel %vm532, %v3474, 0
    %3478 = vmatprep.subr.bf16.mxu0 0
    %3479 = vmatpush1.bf16.msra.mxu0 %v2989
    %3480 = vmatprep.subr.bf16.mxu0 0
    %3481 = vmatpush1.bf16.msra.mxu0 %v2990
    %3482 = vmatprep.subr.bf16.mxu0 0
    %3483 = vmatpush1.bf16.msra.mxu0 0
    %3484 = vmatprep.subr.bf16.mxu0 0
    %3485 = vmatpush1.bf16.msra.mxu0 0
    %3486 = vmatprep.subr.bf16.mxu0 0
    %3487 = vmatpush1.bf16.msra.mxu0 0
    %3488 = vmatprep.subr.bf16.mxu0 0
    %3489 = vmatpush1.bf16.msra.mxu0 0
    %3490 = vmatprep.subr.bf16.mxu0 0
    %3491 = vmatpush1.bf16.msra.mxu0 0
    %3492 = vmatprep.subr.bf16.mxu0 0
    %3493 = vmatpush1.bf16.msra.mxu0 0
    %3494 = vmatprep.subr.bf16.mxu0 0
    %3495 = vmatpush1.bf16.msra.mxu0 0
    %3496 = vmatprep.subr.bf16.mxu0 0
    %3497 = vmatpush1.bf16.msra.mxu0 0
    %3498 = vmatprep.subr.bf16.mxu0 0
    %3499 = vmatpush1.bf16.msra.mxu0 0
    %3500 = vmatprep.subr.bf16.mxu0 0
    %3501 = vmatpush1.bf16.msra.mxu0 0
    %3502 = vmatprep.subr.bf16.mxu0 0
    %3503 = vmatpush1.bf16.msra.mxu0 0
    %3504 = vmatprep.subr.bf16.mxu0 0
    %3505 = vmatpush1.bf16.msra.mxu0 0
    %3506 = vmatprep.subr.bf16.mxu0 0
    %3507 = vmatpush1.bf16.msra.mxu0 0
    %3508 = vmatprep.subr.bf16.mxu0 0
    %3509 = vmatpush1.bf16.msra.mxu0 0
    %3510 = vmatprep.mubr.bf16.mxu0 0
    %3511 = vmatmul.mubr.bf16.gmra.mrb[0].mxu0 %v3476
    %v3512 = vpop.f32.mrb[0].mxu0
    %v3513 = vadd.f32 %v2979, %v3512
    %v3514 = vpop.f32.mrb[0].mxu0
    %v3515 = vpop.f32.mrb[0].mxu0
    %v3516 = vpop.f32.mrb[0].mxu0
    %3517 = vdwg.mxu0
    %3518 = vmatprep.subr.bf16.mxu0 0
    %3519 = vmatpush1.bf16.msra.mxu0 %v3047
    %3520 = vmatprep.subr.bf16.mxu0 0
    %3521 = vmatpush1.bf16.msra.mxu0 %v3048
    %3522 = vmatprep.subr.bf16.mxu0 0
    %3523 = vmatpush1.bf16.msra.mxu0 0
    %3524 = vmatprep.subr.bf16.mxu0 0
    %3525 = vmatpush1.bf16.msra.mxu0 0
    %3526 = vmatprep.subr.bf16.mxu0 0
    %3527 = vmatpush1.bf16.msra.mxu0 0
    %3528 = vmatprep.subr.bf16.mxu0 0
    %3529 = vmatpush1.bf16.msra.mxu0 0
    %3530 = vmatprep.subr.bf16.mxu0 0
    %3531 = vmatpush1.bf16.msra.mxu0 0
    %3532 = vmatprep.subr.bf16.mxu0 0
    %3533 = vmatpush1.bf16.msra.mxu0 0
    %3534 = vmatprep.subr.bf16.mxu0 0
    %3535 = vmatpush1.bf16.msra.mxu0 0
    %3536 = vmatprep.subr.bf16.mxu0 0
    %3537 = vmatpush1.bf16.msra.mxu0 0
    %3538 = vmatprep.subr.bf16.mxu0 0
    %3539 = vmatpush1.bf16.msra.mxu0 0
    %3540 = vmatprep.subr.bf16.mxu0 0
    %3541 = vmatpush1.bf16.msra.mxu0 0
    %3542 = vmatprep.subr.bf16.mxu0 0
    %3543 = vmatpush1.bf16.msra.mxu0 0
    %3544 = vmatprep.subr.bf16.mxu0 0
    %3545 = vmatpush1.bf16.msra.mxu0 0
    %3546 = vmatprep.subr.bf16.mxu0 0
    %3547 = vmatpush1.bf16.msra.mxu0 0
    %3548 = vmatprep.subr.bf16.mxu0 0
    %3549 = vmatpush1.bf16.msra.mxu0 0
    %3550 = vmatprep.mubr.bf16.mxu0 0
    %3551 = vmatmul.mubr.bf16.gmra.mrb[0].mxu0 %v3476
    %v3552 = vpop.f32.mrb[0].mxu0
    %v3553 = vadd.f32 %v3037, %v3552
    %v3554 = vpop.f32.mrb[0].mxu0
    %v3555 = vpop.f32.mrb[0].mxu0
    %v3556 = vpop.f32.mrb[0].mxu0
    %3557 = vdwg.mxu0
    %3558 = vmatprep.subr.bf16.mxu0 0
    %3559 = vmatpush1.bf16.msra.mxu0 %v3105
    %3560 = vmatprep.subr.bf16.mxu0 0
    %3561 = vmatpush1.bf16.msra.mxu0 %v3106
    %3562 = vmatprep.subr.bf16.mxu0 0
    %3563 = vmatpush1.bf16.msra.mxu0 0
    %3564 = vmatprep.subr.bf16.mxu0 0
    %3565 = vmatpush1.bf16.msra.mxu0 0
    %3566 = vmatprep.subr.bf16.mxu0 0
    %3567 = vmatpush1.bf16.msra.mxu0 0
    %3568 = vmatprep.subr.bf16.mxu0 0
    %3569 = vmatpush1.bf16.msra.mxu0 0
    %3570 = vmatprep.subr.bf16.mxu0 0
    %3571 = vmatpush1.bf16.msra.mxu0 0
    %3572 = vmatprep.subr.bf16.mxu0 0
    %3573 = vmatpush1.bf16.msra.mxu0 0
    %3574 = vmatprep.subr.bf16.mxu0 0
    %3575 = vmatpush1.bf16.msra.mxu0 0
    %3576 = vmatprep.subr.bf16.mxu0 0
    %3577 = vmatpush1.bf16.msra.mxu0 0
    %3578 = vmatprep.subr.bf16.mxu0 0
    %3579 = vmatpush1.bf16.msra.mxu0 0
    %3580 = vmatprep.subr.bf16.mxu0 0
    %3581 = vmatpush1.bf16.msra.mxu0 0
    %3582 = vmatprep.subr.bf16.mxu0 0
    %3583 = vmatpush1.bf16.msra.mxu0 0
    %3584 = vmatprep.subr.bf16.mxu0 0
    %3585 = vmatpush1.bf16.msra.mxu0 0
    %3586 = vmatprep.subr.bf16.mxu0 0
    %3587 = vmatpush1.bf16.msra.mxu0 0
    %3588 = vmatprep.subr.bf16.mxu0 0
    %3589 = vmatpush1.bf16.msra.mxu0 0
    %3590 = vmatprep.mubr.bf16.mxu0 0
    %3591 = vmatmul.mubr.bf16.gmra.mrb[0].mxu0 %v3476
    %v3592 = vpop.f32.mrb[0].mxu0
    %v3593 = vadd.f32 %v3095, %v3592
    %v3594 = vpop.f32.mrb[0].mxu0
    %v3595 = vpop.f32.mrb[0].mxu0
    %v3596 = vpop.f32.mrb[0].mxu0
    %3597 = vdwg.mxu0
    %v3598 = vld [vmem:[%s1635] sm:$0xff]
    %v3599 = vadd.f32 %v3598, %v3513
    %v3600 = vxor.u32 %v3599, 2147483648
    %v3601 = vmul.f32 %v3600, 1.442695
    %v3602 = vpow.pop %v3601
    %v3603 = vadd.f32 %v3602, 1.0
    %v3604 = vrcp.pop %v3603
    %v3605 = vmul.f32 1.0, %v3604
    %v3606 = vld [vmem:[%s1644] sm:$0xff]
    %v3607 = vadd.f32 %v3606, %v3553
    %v3608 = vxor.u32 %v3607, 2147483648
    %v3609 = vmul.f32 %v3608, 1.442695
    %v3610 = vpow.pop %v3609
    %v3611 = vadd.f32 %v3610, 1.0
    %v3612 = vrcp.pop %v3611
    %v3613 = vmul.f32 1.0, %v3612
    %v3614 = vld [vmem:[%s1653] sm:$0xff]
    %v3615 = vmul.f32 %v3605, %v3593
    %v3616 = vadd.f32 %v3614, %v3615
    %v3617 = vtanh.pop %v3616
    %v3618 = vsub.f32 1.0, %v3613
    %v3619 = vmul.f32 %v3618, %v3617
    %v3620 = vmul.f32 %v3613, %v3471
    %v3621 = vadd.f32 %v3619, %v3620
    %s3622 = scalar_lea.vmem [#allocation6], 24
    %3623 = vst.msk [vmem:[%s3622] sm:$0xff] %vm532, %v3621
    %v3624 = vpack.c.bf16 %v3621, %v3621
    %v3626 = vsel %vm532, %v3624, 0
    %3628 = vmatprep.subr.bf16.mxu0 0
    %3629 = vmatpush1.bf16.msra.mxu0 %v2989
    %3630 = vmatprep.subr.bf16.mxu0 0
    %3631 = vmatpush1.bf16.msra.mxu0 %v2990
    %3632 = vmatprep.subr.bf16.mxu0 0
    %3633 = vmatpush1.bf16.msra.mxu0 0
    %3634 = vmatprep.subr.bf16.mxu0 0
    %3635 = vmatpush1.bf16.msra.mxu0 0
    %3636 = vmatprep.subr.bf16.mxu0 0
    %3637 = vmatpush1.bf16.msra.mxu0 0
    %3638 = vmatprep.subr.bf16.mxu0 0
    %3639 = vmatpush1.bf16.msra.mxu0 0
    %3640 = vmatprep.subr.bf16.mxu0 0
    %3641 = vmatpush1.bf16.msra.mxu0 0
    %3642 = vmatprep.subr.bf16.mxu0 0
    %3643 = vmatpush1.bf16.msra.mxu0 0
    %3644 = vmatprep.subr.bf16.mxu0 0
    %3645 = vmatpush1.bf16.msra.mxu0 0
    %3646 = vmatprep.subr.bf16.mxu0 0
    %3647 = vmatpush1.bf16.msra.mxu0 0
    %3648 = vmatprep.subr.bf16.mxu0 0
    %3649 = vmatpush1.bf16.msra.mxu0 0
    %3650 = vmatprep.subr.bf16.mxu0 0
    %3651 = vmatpush1.bf16.msra.mxu0 0
    %3652 = vmatprep.subr.bf16.mxu0 0
    %3653 = vmatpush1.bf16.msra.mxu0 0
    %3654 = vmatprep.subr.bf16.mxu0 0
    %3655 = vmatpush1.bf16.msra.mxu0 0
    %3656 = vmatprep.subr.bf16.mxu0 0
    %3657 = vmatpush1.bf16.msra.mxu0 0
    %3658 = vmatprep.subr.bf16.mxu0 0
    %3659 = vmatpush1.bf16.msra.mxu0 0
    %3660 = vmatprep.mubr.bf16.mxu0 0
    %3661 = vmatmul.mubr.bf16.gmra.mrb[0].mxu0 %v3626
    %v3662 = vpop.f32.mrb[0].mxu0
    %v3663 = vadd.f32 %v2979, %v3662
    %v3664 = vpop.f32.mrb[0].mxu0
    %v3665 = vpop.f32.mrb[0].mxu0
    %v3666 = vpop.f32.mrb[0].mxu0
    %3667 = vdwg.mxu0
    %3668 = vmatprep.subr.bf16.mxu0 0
    %3669 = vmatpush1.bf16.msra.mxu0 %v3047
    %3670 = vmatprep.subr.bf16.mxu0 0
    %3671 = vmatpush1.bf16.msra.mxu0 %v3048
    %3672 = vmatprep.subr.bf16.mxu0 0
    %3673 = vmatpush1.bf16.msra.mxu0 0
    %3674 = vmatprep.subr.bf16.mxu0 0
    %3675 = vmatpush1.bf16.msra.mxu0 0
    %3676 = vmatprep.subr.bf16.mxu0 0
    %3677 = vmatpush1.bf16.msra.mxu0 0
    %3678 = vmatprep.subr.bf16.mxu0 0
    %3679 = vmatpush1.bf16.msra.mxu0 0
    %3680 = vmatprep.subr.bf16.mxu0 0
    %3681 = vmatpush1.bf16.msra.mxu0 0
    %3682 = vmatprep.subr.bf16.mxu0 0
    %3683 = vmatpush1.bf16.msra.mxu0 0
    %3684 = vmatprep.subr.bf16.mxu0 0
    %3685 = vmatpush1.bf16.msra.mxu0 0
    %3686 = vmatprep.subr.bf16.mxu0 0
    %3687 = vmatpush1.bf16.msra.mxu0 0
    %3688 = vmatprep.subr.bf16.mxu0 0
    %3689 = vmatpush1.bf16.msra.mxu0 0
    %3690 = vmatprep.subr.bf16.mxu0 0
    %3691 = vmatpush1.bf16.msra.mxu0 0
    %3692 = vmatprep.subr.bf16.mxu0 0
    %3693 = vmatpush1.bf16.msra.mxu0 0
    %3694 = vmatprep.subr.bf16.mxu0 0
    %3695 = vmatpush1.bf16.msra.mxu0 0
    %3696 = vmatprep.subr.bf16.mxu0 0
    %3697 = vmatpush1.bf16.msra.mxu0 0
    %3698 = vmatprep.subr.bf16.mxu0 0
    %3699 = vmatpush1.bf16.msra.mxu0 0
    %3700 = vmatprep.mubr.bf16.mxu0 0
    %3701 = vmatmul.mubr.bf16.gmra.mrb[0].mxu0 %v3626
    %v3702 = vpop.f32.mrb[0].mxu0
    %v3703 = vadd.f32 %v3037, %v3702
    %v3704 = vpop.f32.mrb[0].mxu0
    %v3705 = vpop.f32.mrb[0].mxu0
    %v3706 = vpop.f32.mrb[0].mxu0
    %3707 = vdwg.mxu0
    %3708 = vmatprep.subr.bf16.mxu0 0
    %3709 = vmatpush1.bf16.msra.mxu0 %v3105
    %3710 = vmatprep.subr.bf16.mxu0 0
    %3711 = vmatpush1.bf16.msra.mxu0 %v3106
    %3712 = vmatprep.subr.bf16.mxu0 0
    %3713 = vmatpush1.bf16.msra.mxu0 0
    %3714 = vmatprep.subr.bf16.mxu0 0
    %3715 = vmatpush1.bf16.msra.mxu0 0
    %3716 = vmatprep.subr.bf16.mxu0 0
    %3717 = vmatpush1.bf16.msra.mxu0 0
    %3718 = vmatprep.subr.bf16.mxu0 0
    %3719 = vmatpush1.bf16.msra.mxu0 0
    %3720 = vmatprep.subr.bf16.mxu0 0
    %3721 = vmatpush1.bf16.msra.mxu0 0
    %3722 = vmatprep.subr.bf16.mxu0 0
    %3723 = vmatpush1.bf16.msra.mxu0 0
    %3724 = vmatprep.subr.bf16.mxu0 0
    %3725 = vmatpush1.bf16.msra.mxu0 0
    %3726 = vmatprep.subr.bf16.mxu0 0
    %3727 = vmatpush1.bf16.msra.mxu0 0
    %3728 = vmatprep.subr.bf16.mxu0 0
    %3729 = vmatpush1.bf16.msra.mxu0 0
    %3730 = vmatprep.subr.bf16.mxu0 0
    %3731 = vmatpush1.bf16.msra.mxu0 0
    %3732 = vmatprep.subr.bf16.mxu0 0
    %3733 = vmatpush1.bf16.msra.mxu0 0
    %3734 = vmatprep.subr.bf16.mxu0 0
    %3735 = vmatpush1.bf16.msra.mxu0 0
    %3736 = vmatprep.subr.bf16.mxu0 0
    %3737 = vmatpush1.bf16.msra.mxu0 0
    %3738 = vmatprep.subr.bf16.mxu0 0
    %3739 = vmatpush1.bf16.msra.mxu0 0
    %3740 = vmatprep.mubr.bf16.mxu0 0
    %3741 = vmatmul.mubr.bf16.gmra.mrb[0].mxu0 %v3626
    %v3742 = vpop.f32.mrb[0].mxu0
    %v3743 = vadd.f32 %v3095, %v3742
    %v3744 = vpop.f32.mrb[0].mxu0
    %v3745 = vpop.f32.mrb[0].mxu0
    %v3746 = vpop.f32.mrb[0].mxu0
    %3747 = vdwg.mxu0
    %v3748 = vld [vmem:[%s1788] sm:$0xff]
    %v3749 = vadd.f32 %v3748, %v3663
    %v3750 = vxor.u32 %v3749, 2147483648
    %v3751 = vmul.f32 %v3750, 1.442695
    %v3752 = vpow.pop %v3751
    %v3753 = vadd.f32 %v3752, 1.0
    %v3754 = vrcp.pop %v3753
    %v3755 = vmul.f32 1.0, %v3754
    %v3756 = vld [vmem:[%s1797] sm:$0xff]
    %v3757 = vadd.f32 %v3756, %v3703
    %v3758 = vxor.u32 %v3757, 2147483648
    %v3759 = vmul.f32 %v3758, 1.442695
    %v3760 = vpow.pop %v3759
    %v3761 = vadd.f32 %v3760, 1.0
    %v3762 = vrcp.pop %v3761
    %v3763 = vmul.f32 1.0, %v3762
    %v3764 = vld [vmem:[%s1806] sm:$0xff]
    %v3765 = vmul.f32 %v3755, %v3743
    %v3766 = vadd.f32 %v3764, %v3765
    %v3767 = vtanh.pop %v3766
    %v3768 = vsub.f32 1.0, %v3763
    %v3769 = vmul.f32 %v3768, %v3767
    %v3770 = vmul.f32 %v3763, %v3621
    %v3771 = vadd.f32 %v3769, %v3770
    %s3772 = scalar_lea.vmem [#allocation6], 32
    %3773 = vst.msk [vmem:[%s3772] sm:$0xff] %vm532, %v3771
    %v3774 = vpack.c.bf16 %v3771, %v3771
    %v3776 = vsel %vm532, %v3774, 0
    %3778 = vmatprep.subr.bf16.mxu0 0
    %3779 = vmatpush1.bf16.msra.mxu0 %v2989
    %3780 = vmatprep.subr.bf16.mxu0 0
    %3781 = vmatpush1.bf16.msra.mxu0 %v2990
    %3782 = vmatprep.subr.bf16.mxu0 0
    %3783 = vmatpush1.bf16.msra.mxu0 0
    %3784 = vmatprep.subr.bf16.mxu0 0
    %3785 = vmatpush1.bf16.msra.mxu0 0
    %3786 = vmatprep.subr.bf16.mxu0 0
    %3787 = vmatpush1.bf16.msra.mxu0 0
    %3788 = vmatprep.subr.bf16.mxu0 0
    %3789 = vmatpush1.bf16.msra.mxu0 0
    %3790 = vmatprep.subr.bf16.mxu0 0
    %3791 = vmatpush1.bf16.msra.mxu0 0
    %3792 = vmatprep.subr.bf16.mxu0 0
    %3793 = vmatpush1.bf16.msra.mxu0 0
    %3794 = vmatprep.subr.bf16.mxu0 0
    %3795 = vmatpush1.bf16.msra.mxu0 0
    %3796 = vmatprep.subr.bf16.mxu0 0
    %3797 = vmatpush1.bf16.msra.mxu0 0
    %3798 = vmatprep.subr.bf16.mxu0 0
    %3799 = vmatpush1.bf16.msra.mxu0 0
    %3800 = vmatprep.subr.bf16.mxu0 0
    %3801 = vmatpush1.bf16.msra.mxu0 0
    %3802 = vmatprep.subr.bf16.mxu0 0
    %3803 = vmatpush1.bf16.msra.mxu0 0
    %3804 = vmatprep.subr.bf16.mxu0 0
    %3805 = vmatpush1.bf16.msra.mxu0 0
    %3806 = vmatprep.subr.bf16.mxu0 0
    %3807 = vmatpush1.bf16.msra.mxu0 0
    %3808 = vmatprep.subr.bf16.mxu0 0
    %3809 = vmatpush1.bf16.msra.mxu0 0
    %3810 = vmatprep.mubr.bf16.mxu0 0
    %3811 = vmatmul.mubr.bf16.gmra.mrb[0].mxu0 %v3776
    %v3812 = vpop.f32.mrb[0].mxu0
    %v3813 = vadd.f32 %v2979, %v3812
    %v3814 = vpop.f32.mrb[0].mxu0
    %v3815 = vpop.f32.mrb[0].mxu0
    %v3816 = vpop.f32.mrb[0].mxu0
    %3817 = vdwg.mxu0
    %3818 = vmatprep.subr.bf16.mxu0 0
    %3819 = vmatpush1.bf16.msra.mxu0 %v3047
    %3820 = vmatprep.subr.bf16.mxu0 0
    %3821 = vmatpush1.bf16.msra.mxu0 %v3048
    %3822 = vmatprep.subr.bf16.mxu0 0
    %3823 = vmatpush1.bf16.msra.mxu0 0
    %3824 = vmatprep.subr.bf16.mxu0 0
    %3825 = vmatpush1.bf16.msra.mxu0 0
    %3826 = vmatprep.subr.bf16.mxu0 0
    %3827 = vmatpush1.bf16.msra.mxu0 0
    %3828 = vmatprep.subr.bf16.mxu0 0
    %3829 = vmatpush1.bf16.msra.mxu0 0
    %3830 = vmatprep.subr.bf16.mxu0 0
    %3831 = vmatpush1.bf16.msra.mxu0 0
    %3832 = vmatprep.subr.bf16.mxu0 0
    %3833 = vmatpush1.bf16.msra.mxu0 0
    %3834 = vmatprep.subr.bf16.mxu0 0
    %3835 = vmatpush1.bf16.msra.mxu0 0
    %3836 = vmatprep.subr.bf16.mxu0 0
    %3837 = vmatpush1.bf16.msra.mxu0 0
    %3838 = vmatprep.subr.bf16.mxu0 0
    %3839 = vmatpush1.bf16.msra.mxu0 0
    %3840 = vmatprep.subr.bf16.mxu0 0
    %3841 = vmatpush1.bf16.msra.mxu0 0
    %3842 = vmatprep.subr.bf16.mxu0 0
    %3843 = vmatpush1.bf16.msra.mxu0 0
    %3844 = vmatprep.subr.bf16.mxu0 0
    %3845 = vmatpush1.bf16.msra.mxu0 0
    %3846 = vmatprep.subr.bf16.mxu0 0
    %3847 = vmatpush1.bf16.msra.mxu0 0
    %3848 = vmatprep.subr.bf16.mxu0 0
    %3849 = vmatpush1.bf16.msra.mxu0 0
    %3850 = vmatprep.mubr.bf16.mxu0 0
    %3851 = vmatmul.mubr.bf16.gmra.mrb[0].mxu0 %v3776
    %v3852 = vpop.f32.mrb[0].mxu0
    %v3853 = vadd.f32 %v3037, %v3852
    %v3854 = vpop.f32.mrb[0].mxu0
    %v3855 = vpop.f32.mrb[0].mxu0
    %v3856 = vpop.f32.mrb[0].mxu0
    %3857 = vdwg.mxu0
    %3858 = vmatprep.subr.bf16.mxu0 0
    %3859 = vmatpush1.bf16.msra.mxu0 %v3105
    %3860 = vmatprep.subr.bf16.mxu0 0
    %3861 = vmatpush1.bf16.msra.mxu0 %v3106
    %3862 = vmatprep.subr.bf16.mxu0 0
    %3863 = vmatpush1.bf16.msra.mxu0 0
    %3864 = vmatprep.subr.bf16.mxu0 0
    %3865 = vmatpush1.bf16.msra.mxu0 0
    %3866 = vmatprep.subr.bf16.mxu0 0
    %3867 = vmatpush1.bf16.msra.mxu0 0
    %3868 = vmatprep.subr.bf16.mxu0 0
    %3869 = vmatpush1.bf16.msra.mxu0 0
    %3870 = vmatprep.subr.bf16.mxu0 0
    %3871 = vmatpush1.bf16.msra.mxu0 0
    %3872 = vmatprep.subr.bf16.mxu0 0
    %3873 = vmatpush1.bf16.msra.mxu0 0
    %3874 = vmatprep.subr.bf16.mxu0 0
    %3875 = vmatpush1.bf16.msra.mxu0 0
    %3876 = vmatprep.subr.bf16.mxu0 0
    %3877 = vmatpush1.bf16.msra.mxu0 0
    %3878 = vmatprep.subr.bf16.mxu0 0
    %3879 = vmatpush1.bf16.msra.mxu0 0
    %3880 = vmatprep.subr.bf16.mxu0 0
    %3881 = vmatpush1.bf16.msra.mxu0 0
    %3882 = vmatprep.subr.bf16.mxu0 0
    %3883 = vmatpush1.bf16.msra.mxu0 0
    %3884 = vmatprep.subr.bf16.mxu0 0
    %3885 = vmatpush1.bf16.msra.mxu0 0
    %3886 = vmatprep.subr.bf16.mxu0 0
    %3887 = vmatpush1.bf16.msra.mxu0 0
    %3888 = vmatprep.subr.bf16.mxu0 0
    %3889 = vmatpush1.bf16.msra.mxu0 0
    %3890 = vmatprep.mubr.bf16.mxu0 0
    %3891 = vmatmul.mubr.bf16.gmra.mrb[0].mxu0 %v3776
    %v3892 = vpop.f32.mrb[0].mxu0
    %v3893 = vadd.f32 %v3095, %v3892
    %v3894 = vpop.f32.mrb[0].mxu0
    %v3895 = vpop.f32.mrb[0].mxu0
    %v3896 = vpop.f32.mrb[0].mxu0
    %3897 = vdwg.mxu0
    %v3898 = vld [vmem:[%s1941] sm:$0xff]
    %v3899 = vadd.f32 %v3898, %v3813
    %v3900 = vxor.u32 %v3899, 2147483648
    %v3901 = vmul.f32 %v3900, 1.442695
    %v3902 = vpow.pop %v3901
    %v3903 = vadd.f32 %v3902, 1.0
    %v3904 = vrcp.pop %v3903
    %v3905 = vmul.f32 1.0, %v3904
    %v3906 = vld [vmem:[%s1950] sm:$0xff]
    %v3907 = vadd.f32 %v3906, %v3853
    %v3908 = vxor.u32 %v3907, 2147483648
    %v3909 = vmul.f32 %v3908, 1.442695
    %v3910 = vpow.pop %v3909
    %v3911 = vadd.f32 %v3910, 1.0
    %v3912 = vrcp.pop %v3911
    %v3913 = vmul.f32 1.0, %v3912
    %v3914 = vld [vmem:[%s1959] sm:$0xff]
    %v3915 = vmul.f32 %v3905, %v3893
    %v3916 = vadd.f32 %v3914, %v3915
    %v3917 = vtanh.pop %v3916
    %v3918 = vsub.f32 1.0, %v3913
    %v3919 = vmul.f32 %v3918, %v3917
    %v3920 = vmul.f32 %v3913, %v3771
    %v3921 = vadd.f32 %v3919, %v3920
    %s3922 = scalar_lea.vmem [#allocation6], 40
    %3923 = vst.msk [vmem:[%s3922] sm:$0xff] %vm532, %v3921
    %v3924 = vpack.c.bf16 %v3921, %v3921
    %v3926 = vsel %vm532, %v3924, 0
    %3928 = vmatprep.subr.bf16.mxu0 0
    %3929 = vmatpush1.bf16.msra.mxu0 %v2989
    %3930 = vmatprep.subr.bf16.mxu0 0
    %3931 = vmatpush1.bf16.msra.mxu0 %v2990
    %3932 = vmatprep.subr.bf16.mxu0 0
    %3933 = vmatpush1.bf16.msra.mxu0 0
    %3934 = vmatprep.subr.bf16.mxu0 0
    %3935 = vmatpush1.bf16.msra.mxu0 0
    %3936 = vmatprep.subr.bf16.mxu0 0
    %3937 = vmatpush1.bf16.msra.mxu0 0
    %3938 = vmatprep.subr.bf16.mxu0 0
    %3939 = vmatpush1.bf16.msra.mxu0 0
    %3940 = vmatprep.subr.bf16.mxu0 0
    %3941 = vmatpush1.bf16.msra.mxu0 0
    %3942 = vmatprep.subr.bf16.mxu0 0
    %3943 = vmatpush1.bf16.msra.mxu0 0
    %3944 = vmatprep.subr.bf16.mxu0 0
    %3945 = vmatpush1.bf16.msra.mxu0 0
    %3946 = vmatprep.subr.bf16.mxu0 0
    %3947 = vmatpush1.bf16.msra.mxu0 0
    %3948 = vmatprep.subr.bf16.mxu0 0
    %3949 = vmatpush1.bf16.msra.mxu0 0
    %3950 = vmatprep.subr.bf16.mxu0 0
    %3951 = vmatpush1.bf16.msra.mxu0 0
    %3952 = vmatprep.subr.bf16.mxu0 0
    %3953 = vmatpush1.bf16.msra.mxu0 0
    %3954 = vmatprep.subr.bf16.mxu0 0
    %3955 = vmatpush1.bf16.msra.mxu0 0
    %3956 = vmatprep.subr.bf16.mxu0 0
    %3957 = vmatpush1.bf16.msra.mxu0 0
    %3958 = vmatprep.subr.bf16.mxu0 0
    %3959 = vmatpush1.bf16.msra.mxu0 0
    %3960 = vmatprep.mubr.bf16.mxu0 0
    %3961 = vmatmul.mubr.bf16.gmra.mrb[0].mxu0 %v3926
    %v3962 = vpop.f32.mrb[0].mxu0
    %v3963 = vadd.f32 %v2979, %v3962
    %v3964 = vpop.f32.mrb[0].mxu0
    %v3965 = vpop.f32.mrb[0].mxu0
    %v3966 = vpop.f32.mrb[0].mxu0
    %3967 = vdwg.mxu0
    %3968 = vmatprep.subr.bf16.mxu0 0
    %3969 = vmatpush1.bf16.msra.mxu0 %v3047
    %3970 = vmatprep.subr.bf16.mxu0 0
    %3971 = vmatpush1.bf16.msra.mxu0 %v3048
    %3972 = vmatprep.subr.bf16.mxu0 0
    %3973 = vmatpush1.bf16.msra.mxu0 0
    %3974 = vmatprep.subr.bf16.mxu0 0
    %3975 = vmatpush1.bf16.msra.mxu0 0
    %3976 = vmatprep.subr.bf16.mxu0 0
    %3977 = vmatpush1.bf16.msra.mxu0 0
    %3978 = vmatprep.subr.bf16.mxu0 0
    %3979 = vmatpush1.bf16.msra.mxu0 0
    %3980 = vmatprep.subr.bf16.mxu0 0
    %3981 = vmatpush1.bf16.msra.mxu0 0
    %3982 = vmatprep.subr.bf16.mxu0 0
    %3983 = vmatpush1.bf16.msra.mxu0 0
    %3984 = vmatprep.subr.bf16.mxu0 0
    %3985 = vmatpush1.bf16.msra.mxu0 0
    %3986 = vmatprep.subr.bf16.mxu0 0
    %3987 = vmatpush1.bf16.msra.mxu0 0
    %3988 = vmatprep.subr.bf16.mxu0 0
    %3989 = vmatpush1.bf16.msra.mxu0 0
    %3990 = vmatprep.subr.bf16.mxu0 0
    %3991 = vmatpush1.bf16.msra.mxu0 0
    %3992 = vmatprep.subr.bf16.mxu0 0
    %3993 = vmatpush1.bf16.msra.mxu0 0
    %3994 = vmatprep.subr.bf16.mxu0 0
    %3995 = vmatpush1.bf16.msra.mxu0 0
    %3996 = vmatprep.subr.bf16.mxu0 0
    %3997 = vmatpush1.bf16.msra.mxu0 0
    %3998 = vmatprep.subr.bf16.mxu0 0
    %3999 = vmatpush1.bf16.msra.mxu0 0
    %4000 = vmatprep.mubr.bf16.mxu0 0
    %4001 = vmatmul.mubr.bf16.gmra.mrb[0].mxu0 %v3926
    %v4002 = vpop.f32.mrb[0].mxu0
    %v4003 = vadd.f32 %v3037, %v4002
    %v4004 = vpop.f32.mrb[0].mxu0
    %v4005 = vpop.f32.mrb[0].mxu0
    %v4006 = vpop.f32.mrb[0].mxu0
    %4007 = vdwg.mxu0
    %4008 = vmatprep.subr.bf16.mxu0 0
    %4009 = vmatpush1.bf16.msra.mxu0 %v3105
    %4010 = vmatprep.subr.bf16.mxu0 0
    %4011 = vmatpush1.bf16.msra.mxu0 %v3106
    %4012 = vmatprep.subr.bf16.mxu0 0
    %4013 = vmatpush1.bf16.msra.mxu0 0
    %4014 = vmatprep.subr.bf16.mxu0 0
    %4015 = vmatpush1.bf16.msra.mxu0 0
    %4016 = vmatprep.subr.bf16.mxu0 0
    %4017 = vmatpush1.bf16.msra.mxu0 0
    %4018 = vmatprep.subr.bf16.mxu0 0
    %4019 = vmatpush1.bf16.msra.mxu0 0
    %4020 = vmatprep.subr.bf16.mxu0 0
    %4021 = vmatpush1.bf16.msra.mxu0 0
    %4022 = vmatprep.subr.bf16.mxu0 0
    %4023 = vmatpush1.bf16.msra.mxu0 0
    %4024 = vmatprep.subr.bf16.mxu0 0
    %4025 = vmatpush1.bf16.msra.mxu0 0
    %4026 = vmatprep.subr.bf16.mxu0 0
    %4027 = vmatpush1.bf16.msra.mxu0 0
    %4028 = vmatprep.subr.bf16.mxu0 0
    %4029 = vmatpush1.bf16.msra.mxu0 0
    %4030 = vmatprep.subr.bf16.mxu0 0
    %4031 = vmatpush1.bf16.msra.mxu0 0
    %4032 = vmatprep.subr.bf16.mxu0 0
    %4033 = vmatpush1.bf16.msra.mxu0 0
    %4034 = vmatprep.subr.bf16.mxu0 0
    %4035 = vmatpush1.bf16.msra.mxu0 0
    %4036 = vmatprep.subr.bf16.mxu0 0
    %4037 = vmatpush1.bf16.msra.mxu0 0
    %4038 = vmatprep.subr.bf16.mxu0 0
    %4039 = vmatpush1.bf16.msra.mxu0 0
    %4040 = vmatprep.mubr.bf16.mxu0 0
    %4041 = vmatmul.mubr.bf16.gmra.mrb[0].mxu0 %v3926
    %v4042 = vpop.f32.mrb[0].mxu0
    %v4043 = vadd.f32 %v3095, %v4042
    %v4044 = vpop.f32.mrb[0].mxu0
    %v4045 = vpop.f32.mrb[0].mxu0
    %v4046 = vpop.f32.mrb[0].mxu0
    %4047 = vdwg.mxu0
    %v4048 = vld [vmem:[%s2094] sm:$0xff]
    %v4049 = vadd.f32 %v4048, %v3963
    %v4050 = vxor.u32 %v4049, 2147483648
    %v4051 = vmul.f32 %v4050, 1.442695
    %v4052 = vpow.pop %v4051
    %v4053 = vadd.f32 %v4052, 1.0
    %v4054 = vrcp.pop %v4053
    %v4055 = vmul.f32 1.0, %v4054
    %v4056 = vld [vmem:[%s2103] sm:$0xff]
    %v4057 = vadd.f32 %v4056, %v4003
    %v4058 = vxor.u32 %v4057, 2147483648
    %v4059 = vmul.f32 %v4058, 1.442695
    %v4060 = vpow.pop %v4059
    %v4061 = vadd.f32 %v4060, 1.0
    %v4062 = vrcp.pop %v4061
    %v4063 = vmul.f32 1.0, %v4062
    %v4064 = vld [vmem:[%s2112] sm:$0xff]
    %v4065 = vmul.f32 %v4055, %v4043
    %v4066 = vadd.f32 %v4064, %v4065
    %v4067 = vtanh.pop %v4066
    %v4068 = vsub.f32 1.0, %v4063
    %v4069 = vmul.f32 %v4068, %v4067
    %v4070 = vmul.f32 %v4063, %v3921
    %v4071 = vadd.f32 %v4069, %v4070
    %s4072 = scalar_lea.vmem [#allocation6], 48
    %4073 = vst.msk [vmem:[%s4072] sm:$0xff] %vm532, %v4071
    %v4074 = vpack.c.bf16 %v4071, %v4071
    %v4076 = vsel %vm532, %v4074, 0
    %4078 = vmatprep.subr.bf16.mxu0 0
    %4079 = vmatpush1.bf16.msra.mxu0 %v2989
    %4080 = vmatprep.subr.bf16.mxu0 0
    %4081 = vmatpush1.bf16.msra.mxu0 %v2990
    %4082 = vmatprep.subr.bf16.mxu0 0
    %4083 = vmatpush1.bf16.msra.mxu0 0
    %4084 = vmatprep.subr.bf16.mxu0 0
    %4085 = vmatpush1.bf16.msra.mxu0 0
    %4086 = vmatprep.subr.bf16.mxu0 0
    %4087 = vmatpush1.bf16.msra.mxu0 0
    %4088 = vmatprep.subr.bf16.mxu0 0
    %4089 = vmatpush1.bf16.msra.mxu0 0
    %4090 = vmatprep.subr.bf16.mxu0 0
    %4091 = vmatpush1.bf16.msra.mxu0 0
    %4092 = vmatprep.subr.bf16.mxu0 0
    %4093 = vmatpush1.bf16.msra.mxu0 0
    %4094 = vmatprep.subr.bf16.mxu0 0
    %4095 = vmatpush1.bf16.msra.mxu0 0
    %4096 = vmatprep.subr.bf16.mxu0 0
    %4097 = vmatpush1.bf16.msra.mxu0 0
    %4098 = vmatprep.subr.bf16.mxu0 0
    %4099 = vmatpush1.bf16.msra.mxu0 0
    %4100 = vmatprep.subr.bf16.mxu0 0
    %4101 = vmatpush1.bf16.msra.mxu0 0
    %4102 = vmatprep.subr.bf16.mxu0 0
    %4103 = vmatpush1.bf16.msra.mxu0 0
    %4104 = vmatprep.subr.bf16.mxu0 0
    %4105 = vmatpush1.bf16.msra.mxu0 0
    %4106 = vmatprep.subr.bf16.mxu0 0
    %4107 = vmatpush1.bf16.msra.mxu0 0
    %4108 = vmatprep.subr.bf16.mxu0 0
    %4109 = vmatpush1.bf16.msra.mxu0 0
    %4110 = vmatprep.mubr.bf16.mxu0 0
    %4111 = vmatmul.mubr.bf16.gmra.mrb[0].mxu0 %v4076
    %v4112 = vpop.f32.mrb[0].mxu0
    %v4113 = vadd.f32 %v2979, %v4112
    %v4114 = vpop.f32.mrb[0].mxu0
    %v4115 = vpop.f32.mrb[0].mxu0
    %v4116 = vpop.f32.mrb[0].mxu0
    %4117 = vdwg.mxu0
    %4118 = vmatprep.subr.bf16.mxu0 0
    %4119 = vmatpush1.bf16.msra.mxu0 %v3047
    %4120 = vmatprep.subr.bf16.mxu0 0
    %4121 = vmatpush1.bf16.msra.mxu0 %v3048
    %4122 = vmatprep.subr.bf16.mxu0 0
    %4123 = vmatpush1.bf16.msra.mxu0 0
    %4124 = vmatprep.subr.bf16.mxu0 0
    %4125 = vmatpush1.bf16.msra.mxu0 0
    %4126 = vmatprep.subr.bf16.mxu0 0
    %4127 = vmatpush1.bf16.msra.mxu0 0
    %4128 = vmatprep.subr.bf16.mxu0 0
    %4129 = vmatpush1.bf16.msra.mxu0 0
    %4130 = vmatprep.subr.bf16.mxu0 0
    %4131 = vmatpush1.bf16.msra.mxu0 0
    %4132 = vmatprep.subr.bf16.mxu0 0
    %4133 = vmatpush1.bf16.msra.mxu0 0
    %4134 = vmatprep.subr.bf16.mxu0 0
    %4135 = vmatpush1.bf16.msra.mxu0 0
    %4136 = vmatprep.subr.bf16.mxu0 0
    %4137 = vmatpush1.bf16.msra.mxu0 0
    %4138 = vmatprep.subr.bf16.mxu0 0
    %4139 = vmatpush1.bf16.msra.mxu0 0
    %4140 = vmatprep.subr.bf16.mxu0 0
    %4141 = vmatpush1.bf16.msra.mxu0 0
    %4142 = vmatprep.subr.bf16.mxu0 0
    %4143 = vmatpush1.bf16.msra.mxu0 0
    %4144 = vmatprep.subr.bf16.mxu0 0
    %4145 = vmatpush1.bf16.msra.mxu0 0
    %4146 = vmatprep.subr.bf16.mxu0 0
    %4147 = vmatpush1.bf16.msra.mxu0 0
    %4148 = vmatprep.subr.bf16.mxu0 0
    %4149 = vmatpush1.bf16.msra.mxu0 0
    %4150 = vmatprep.mubr.bf16.mxu0 0
    %4151 = vmatmul.mubr.bf16.gmra.mrb[0].mxu0 %v4076
    %v4152 = vpop.f32.mrb[0].mxu0
    %v4153 = vadd.f32 %v3037, %v4152
    %v4154 = vpop.f32.mrb[0].mxu0
    %v4155 = vpop.f32.mrb[0].mxu0
    %v4156 = vpop.f32.mrb[0].mxu0
    %4157 = vdwg.mxu0
    %4158 = vmatprep.subr.bf16.mxu0 0
    %4159 = vmatpush1.bf16.msra.mxu0 %v3105
    %4160 = vmatprep.subr.bf16.mxu0 0
    %4161 = vmatpush1.bf16.msra.mxu0 %v3106
    %4162 = vmatprep.subr.bf16.mxu0 0
    %4163 = vmatpush1.bf16.msra.mxu0 0
    %4164 = vmatprep.subr.bf16.mxu0 0
    %4165 = vmatpush1.bf16.msra.mxu0 0
    %4166 = vmatprep.subr.bf16.mxu0 0
    %4167 = vmatpush1.bf16.msra.mxu0 0
    %4168 = vmatprep.subr.bf16.mxu0 0
    %4169 = vmatpush1.bf16.msra.mxu0 0
    %4170 = vmatprep.subr.bf16.mxu0 0
    %4171 = vmatpush1.bf16.msra.mxu0 0
    %4172 = vmatprep.subr.bf16.mxu0 0
    %4173 = vmatpush1.bf16.msra.mxu0 0
    %4174 = vmatprep.subr.bf16.mxu0 0
    %4175 = vmatpush1.bf16.msra.mxu0 0
    %4176 = vmatprep.subr.bf16.mxu0 0
    %4177 = vmatpush1.bf16.msra.mxu0 0
    %4178 = vmatprep.subr.bf16.mxu0 0
    %4179 = vmatpush1.bf16.msra.mxu0 0
    %4180 = vmatprep.subr.bf16.mxu0 0
    %4181 = vmatpush1.bf16.msra.mxu0 0
    %4182 = vmatprep.subr.bf16.mxu0 0
    %4183 = vmatpush1.bf16.msra.mxu0 0
    %4184 = vmatprep.subr.bf16.mxu0 0
    %4185 = vmatpush1.bf16.msra.mxu0 0
    %4186 = vmatprep.subr.bf16.mxu0 0
    %4187 = vmatpush1.bf16.msra.mxu0 0
    %4188 = vmatprep.subr.bf16.mxu0 0
    %4189 = vmatpush1.bf16.msra.mxu0 0
    %4190 = vmatprep.mubr.bf16.mxu0 0
    %4191 = vmatmul.mubr.bf16.gmra.mrb[0].mxu0 %v4076
    %v4192 = vpop.f32.mrb[0].mxu0
    %v4193 = vadd.f32 %v3095, %v4192
    %v4194 = vpop.f32.mrb[0].mxu0
    %v4195 = vpop.f32.mrb[0].mxu0
    %v4196 = vpop.f32.mrb[0].mxu0
    %4197 = vdwg.mxu0
    %v4198 = vld [vmem:[%s2247] sm:$0xff]
    %v4199 = vadd.f32 %v4198, %v4113
    %v4200 = vxor.u32 %v4199, 2147483648
    %v4201 = vmul.f32 %v4200, 1.442695
    %v4202 = vpow.pop %v4201
    %v4203 = vadd.f32 %v4202, 1.0
    %v4204 = vrcp.pop %v4203
    %v4205 = vmul.f32 1.0, %v4204
    %v4206 = vld [vmem:[%s2256] sm:$0xff]
    %v4207 = vadd.f32 %v4206, %v4153
    %v4208 = vxor.u32 %v4207, 2147483648
    %v4209 = vmul.f32 %v4208, 1.442695
    %v4210 = vpow.pop %v4209
    %v4211 = vadd.f32 %v4210, 1.0
    %v4212 = vrcp.pop %v4211
    %v4213 = vmul.f32 1.0, %v4212
    %v4214 = vld [vmem:[%s2265] sm:$0xff]
    %v4215 = vmul.f32 %v4205, %v4193
    %v4216 = vadd.f32 %v4214, %v4215
    %v4217 = vtanh.pop %v4216
    %v4218 = vsub.f32 1.0, %v4213
    %v4219 = vmul.f32 %v4218, %v4217
    %v4220 = vmul.f32 %v4213, %v4071
    %v4221 = vadd.f32 %v4219, %v4220
    %s4222 = scalar_lea.vmem [#allocation6], 56
    %4223 = vst.msk [vmem:[%s4222] sm:$0xff] %vm532, %v4221
    %v4224 = vpack.c.bf16 %v4221, %v4221
    %v4226 = vsel %vm532, %v4224, 0
    %4228 = vmatprep.subr.bf16.mxu0 0
    %4229 = vmatpush1.bf16.msra.mxu0 %v2989
    %4230 = vmatprep.subr.bf16.mxu0 0
    %4231 = vmatpush1.bf16.msra.mxu0 %v2990
    %4232 = vmatprep.subr.bf16.mxu0 0
    %4233 = vmatpush1.bf16.msra.mxu0 0
    %4234 = vmatprep.subr.bf16.mxu0 0
    %4235 = vmatpush1.bf16.msra.mxu0 0
    %4236 = vmatprep.subr.bf16.mxu0 0
    %4237 = vmatpush1.bf16.msra.mxu0 0
    %4238 = vmatprep.subr.bf16.mxu0 0
    %4239 = vmatpush1.bf16.msra.mxu0 0
    %4240 = vmatprep.subr.bf16.mxu0 0
    %4241 = vmatpush1.bf16.msra.mxu0 0
    %4242 = vmatprep.subr.bf16.mxu0 0
    %4243 = vmatpush1.bf16.msra.mxu0 0
    %4244 = vmatprep.subr.bf16.mxu0 0
    %4245 = vmatpush1.bf16.msra.mxu0 0
    %4246 = vmatprep.subr.bf16.mxu0 0
    %4247 = vmatpush1.bf16.msra.mxu0 0
    %4248 = vmatprep.subr.bf16.mxu0 0
    %4249 = vmatpush1.bf16.msra.mxu0 0
    %4250 = vmatprep.subr.bf16.mxu0 0
    %4251 = vmatpush1.bf16.msra.mxu0 0
    %4252 = vmatprep.subr.bf16.mxu0 0
    %4253 = vmatpush1.bf16.msra.mxu0 0
    %4254 = vmatprep.subr.bf16.mxu0 0
    %4255 = vmatpush1.bf16.msra.mxu0 0
    %4256 = vmatprep.subr.bf16.mxu0 0
    %4257 = vmatpush1.bf16.msra.mxu0 0
    %4258 = vmatprep.subr.bf16.mxu0 0
    %4259 = vmatpush1.bf16.msra.mxu0 0
    %4260 = vmatprep.mubr.bf16.mxu0 0
    %4261 = vmatmul.mubr.bf16.gmra.mrb[0].mxu0 %v4226
    %v4262 = vpop.f32.mrb[0].mxu0
    %v4263 = vadd.f32 %v2979, %v4262
    %v4264 = vpop.f32.mrb[0].mxu0
    %v4265 = vpop.f32.mrb[0].mxu0
    %v4266 = vpop.f32.mrb[0].mxu0
    %4267 = vdwg.mxu0
    %4268 = vmatprep.subr.bf16.mxu0 0
    %4269 = vmatpush1.bf16.msra.mxu0 %v3047
    %4270 = vmatprep.subr.bf16.mxu0 0
    %4271 = vmatpush1.bf16.msra.mxu0 %v3048
    %4272 = vmatprep.subr.bf16.mxu0 0
    %4273 = vmatpush1.bf16.msra.mxu0 0
    %4274 = vmatprep.subr.bf16.mxu0 0
    %4275 = vmatpush1.bf16.msra.mxu0 0
    %4276 = vmatprep.subr.bf16.mxu0 0
    %4277 = vmatpush1.bf16.msra.mxu0 0
    %4278 = vmatprep.subr.bf16.mxu0 0
    %4279 = vmatpush1.bf16.msra.mxu0 0
    %4280 = vmatprep.subr.bf16.mxu0 0
    %4281 = vmatpush1.bf16.msra.mxu0 0
    %4282 = vmatprep.subr.bf16.mxu0 0
    %4283 = vmatpush1.bf16.msra.mxu0 0
    %4284 = vmatprep.subr.bf16.mxu0 0
    %4285 = vmatpush1.bf16.msra.mxu0 0
    %4286 = vmatprep.subr.bf16.mxu0 0
    %4287 = vmatpush1.bf16.msra.mxu0 0
    %4288 = vmatprep.subr.bf16.mxu0 0
    %4289 = vmatpush1.bf16.msra.mxu0 0
    %4290 = vmatprep.subr.bf16.mxu0 0
    %4291 = vmatpush1.bf16.msra.mxu0 0
    %4292 = vmatprep.subr.bf16.mxu0 0
    %4293 = vmatpush1.bf16.msra.mxu0 0
    %4294 = vmatprep.subr.bf16.mxu0 0
    %4295 = vmatpush1.bf16.msra.mxu0 0
    %4296 = vmatprep.subr.bf16.mxu0 0
    %4297 = vmatpush1.bf16.msra.mxu0 0
    %4298 = vmatprep.subr.bf16.mxu0 0
    %4299 = vmatpush1.bf16.msra.mxu0 0
    %4300 = vmatprep.mubr.bf16.mxu0 0
    %4301 = vmatmul.mubr.bf16.gmra.mrb[0].mxu0 %v4226
    %v4302 = vpop.f32.mrb[0].mxu0
    %v4303 = vadd.f32 %v3037, %v4302
    %v4304 = vpop.f32.mrb[0].mxu0
    %v4305 = vpop.f32.mrb[0].mxu0
    %v4306 = vpop.f32.mrb[0].mxu0
    %4307 = vdwg.mxu0
    %4308 = vmatprep.subr.bf16.mxu0 0
    %4309 = vmatpush1.bf16.msra.mxu0 %v3105
    %4310 = vmatprep.subr.bf16.mxu0 0
    %4311 = vmatpush1.bf16.msra.mxu0 %v3106
    %4312 = vmatprep.subr.bf16.mxu0 0
    %4313 = vmatpush1.bf16.msra.mxu0 0
    %4314 = vmatprep.subr.bf16.mxu0 0
    %4315 = vmatpush1.bf16.msra.mxu0 0
    %4316 = vmatprep.subr.bf16.mxu0 0
    %4317 = vmatpush1.bf16.msra.mxu0 0
    %4318 = vmatprep.subr.bf16.mxu0 0
    %4319 = vmatpush1.bf16.msra.mxu0 0
    %4320 = vmatprep.subr.bf16.mxu0 0
    %4321 = vmatpush1.bf16.msra.mxu0 0
    %4322 = vmatprep.subr.bf16.mxu0 0
    %4323 = vmatpush1.bf16.msra.mxu0 0
    %4324 = vmatprep.subr.bf16.mxu0 0
    %4325 = vmatpush1.bf16.msra.mxu0 0
    %4326 = vmatprep.subr.bf16.mxu0 0
    %4327 = vmatpush1.bf16.msra.mxu0 0
    %4328 = vmatprep.subr.bf16.mxu0 0
    %4329 = vmatpush1.bf16.msra.mxu0 0
    %4330 = vmatprep.subr.bf16.mxu0 0
    %4331 = vmatpush1.bf16.msra.mxu0 0
    %4332 = vmatprep.subr.bf16.mxu0 0
    %4333 = vmatpush1.bf16.msra.mxu0 0
    %4334 = vmatprep.subr.bf16.mxu0 0
    %4335 = vmatpush1.bf16.msra.mxu0 0
    %4336 = vmatprep.subr.bf16.mxu0 0
    %4337 = vmatpush1.bf16.msra.mxu0 0
    %4338 = vmatprep.subr.bf16.mxu0 0
    %4339 = vmatpush1.bf16.msra.mxu0 0
    %4340 = vmatprep.mubr.bf16.mxu0 0
    %4341 = vmatmul.mubr.bf16.gmra.mrb[0].mxu0 %v4226
    %v4342 = vpop.f32.mrb[0].mxu0
    %v4343 = vadd.f32 %v3095, %v4342
    %v4344 = vpop.f32.mrb[0].mxu0
    %v4345 = vpop.f32.mrb[0].mxu0
    %v4346 = vpop.f32.mrb[0].mxu0
    %4347 = vdwg.mxu0
    %v4348 = vld [vmem:[%s2400] sm:$0xff]
    %v4349 = vadd.f32 %v4348, %v4263
    %v4350 = vxor.u32 %v4349, 2147483648
    %v4351 = vmul.f32 %v4350, 1.442695
    %v4352 = vpow.pop %v4351
    %v4353 = vadd.f32 %v4352, 1.0
    %v4354 = vrcp.pop %v4353
    %v4355 = vmul.f32 1.0, %v4354
    %v4356 = vld [vmem:[%s2409] sm:$0xff]
    %v4357 = vadd.f32 %v4356, %v4303
    %v4358 = vxor.u32 %v4357, 2147483648
    %v4359 = vmul.f32 %v4358, 1.442695
    %v4360 = vpow.pop %v4359
    %v4361 = vadd.f32 %v4360, 1.0
    %v4362 = vrcp.pop %v4361
    %v4363 = vmul.f32 1.0, %v4362
    %v4364 = vld [vmem:[%s2418] sm:$0xff]
    %v4365 = vmul.f32 %v4355, %v4343
    %v4366 = vadd.f32 %v4364, %v4365
    %v4367 = vtanh.pop %v4366
    %v4368 = vsub.f32 1.0, %v4363
    %v4369 = vmul.f32 %v4368, %v4367
    %v4370 = vmul.f32 %v4363, %v4221
    %v4371 = vadd.f32 %v4369, %v4370
    %s4372 = scalar_lea.vmem [#allocation6], 64
    %4373 = vst.msk [vmem:[%s4372] sm:$0xff] %vm532, %v4371
    %v4374 = vpack.c.bf16 %v4371, %v4371
    %v4376 = vsel %vm532, %v4374, 0
    %4378 = vmatprep.subr.bf16.mxu0 0
    %4379 = vmatpush1.bf16.msra.mxu0 %v2989
    %4380 = vmatprep.subr.bf16.mxu0 0
    %4381 = vmatpush1.bf16.msra.mxu0 %v2990
    %4382 = vmatprep.subr.bf16.mxu0 0
    %4383 = vmatpush1.bf16.msra.mxu0 0
    %4384 = vmatprep.subr.bf16.mxu0 0
    %4385 = vmatpush1.bf16.msra.mxu0 0
    %4386 = vmatprep.subr.bf16.mxu0 0
    %4387 = vmatpush1.bf16.msra.mxu0 0
    %4388 = vmatprep.subr.bf16.mxu0 0
    %4389 = vmatpush1.bf16.msra.mxu0 0
    %4390 = vmatprep.subr.bf16.mxu0 0
    %4391 = vmatpush1.bf16.msra.mxu0 0
    %4392 = vmatprep.subr.bf16.mxu0 0
    %4393 = vmatpush1.bf16.msra.mxu0 0
    %4394 = vmatprep.subr.bf16.mxu0 0
    %4395 = vmatpush1.bf16.msra.mxu0 0
    %4396 = vmatprep.subr.bf16.mxu0 0
    %4397 = vmatpush1.bf16.msra.mxu0 0
    %4398 = vmatprep.subr.bf16.mxu0 0
    %4399 = vmatpush1.bf16.msra.mxu0 0
    %4400 = vmatprep.subr.bf16.mxu0 0
    %4401 = vmatpush1.bf16.msra.mxu0 0
    %4402 = vmatprep.subr.bf16.mxu0 0
    %4403 = vmatpush1.bf16.msra.mxu0 0
    %4404 = vmatprep.subr.bf16.mxu0 0
    %4405 = vmatpush1.bf16.msra.mxu0 0
    %4406 = vmatprep.subr.bf16.mxu0 0
    %4407 = vmatpush1.bf16.msra.mxu0 0
    %4408 = vmatprep.subr.bf16.mxu0 0
    %4409 = vmatpush1.bf16.msra.mxu0 0
    %4410 = vmatprep.mubr.bf16.mxu0 0
    %4411 = vmatmul.mubr.bf16.gmra.mrb[0].mxu0 %v4376
    %v4412 = vpop.f32.mrb[0].mxu0
    %v4413 = vadd.f32 %v2979, %v4412
    %v4414 = vpop.f32.mrb[0].mxu0
    %v4415 = vpop.f32.mrb[0].mxu0
    %v4416 = vpop.f32.mrb[0].mxu0
    %4417 = vdwg.mxu0
    %4418 = vmatprep.subr.bf16.mxu0 0
    %4419 = vmatpush1.bf16.msra.mxu0 %v3047
    %4420 = vmatprep.subr.bf16.mxu0 0
    %4421 = vmatpush1.bf16.msra.mxu0 %v3048
    %4422 = vmatprep.subr.bf16.mxu0 0
    %4423 = vmatpush1.bf16.msra.mxu0 0
    %4424 = vmatprep.subr.bf16.mxu0 0
    %4425 = vmatpush1.bf16.msra.mxu0 0
    %4426 = vmatprep.subr.bf16.mxu0 0
    %4427 = vmatpush1.bf16.msra.mxu0 0
    %4428 = vmatprep.subr.bf16.mxu0 0
    %4429 = vmatpush1.bf16.msra.mxu0 0
    %4430 = vmatprep.subr.bf16.mxu0 0
    %4431 = vmatpush1.bf16.msra.mxu0 0
    %4432 = vmatprep.subr.bf16.mxu0 0
    %4433 = vmatpush1.bf16.msra.mxu0 0
    %4434 = vmatprep.subr.bf16.mxu0 0
    %4435 = vmatpush1.bf16.msra.mxu0 0
    %4436 = vmatprep.subr.bf16.mxu0 0
    %4437 = vmatpush1.bf16.msra.mxu0 0
    %4438 = vmatprep.subr.bf16.mxu0 0
    %4439 = vmatpush1.bf16.msra.mxu0 0
    %4440 = vmatprep.subr.bf16.mxu0 0
    %4441 = vmatpush1.bf16.msra.mxu0 0
    %4442 = vmatprep.subr.bf16.mxu0 0
    %4443 = vmatpush1.bf16.msra.mxu0 0
    %4444 = vmatprep.subr.bf16.mxu0 0
    %4445 = vmatpush1.bf16.msra.mxu0 0
    %4446 = vmatprep.subr.bf16.mxu0 0
    %4447 = vmatpush1.bf16.msra.mxu0 0
    %4448 = vmatprep.subr.bf16.mxu0 0
    %4449 = vmatpush1.bf16.msra.mxu0 0
    %4450 = vmatprep.mubr.bf16.mxu0 0
    %4451 = vmatmul.mubr.bf16.gmra.mrb[0].mxu0 %v4376
    %v4452 = vpop.f32.mrb[0].mxu0
    %v4453 = vadd.f32 %v3037, %v4452
    %v4454 = vpop.f32.mrb[0].mxu0
    %v4455 = vpop.f32.mrb[0].mxu0
    %v4456 = vpop.f32.mrb[0].mxu0
    %4457 = vdwg.mxu0
    %4458 = vmatprep.subr.bf16.mxu0 0
    %4459 = vmatpush1.bf16.msra.mxu0 %v3105
    %4460 = vmatprep.subr.bf16.mxu0 0
    %4461 = vmatpush1.bf16.msra.mxu0 %v3106
    %4462 = vmatprep.subr.bf16.mxu0 0
    %4463 = vmatpush1.bf16.msra.mxu0 0
    %4464 = vmatprep.subr.bf16.mxu0 0
    %4465 = vmatpush1.bf16.msra.mxu0 0
    %4466 = vmatprep.subr.bf16.mxu0 0
    %4467 = vmatpush1.bf16.msra.mxu0 0
    %4468 = vmatprep.subr.bf16.mxu0 0
    %4469 = vmatpush1.bf16.msra.mxu0 0
    %4470 = vmatprep.subr.bf16.mxu0 0
    %4471 = vmatpush1.bf16.msra.mxu0 0
    %4472 = vmatprep.subr.bf16.mxu0 0
    %4473 = vmatpush1.bf16.msra.mxu0 0
    %4474 = vmatprep.subr.bf16.mxu0 0
    %4475 = vmatpush1.bf16.msra.mxu0 0
    %4476 = vmatprep.subr.bf16.mxu0 0
    %4477 = vmatpush1.bf16.msra.mxu0 0
    %4478 = vmatprep.subr.bf16.mxu0 0
    %4479 = vmatpush1.bf16.msra.mxu0 0
    %4480 = vmatprep.subr.bf16.mxu0 0
    %4481 = vmatpush1.bf16.msra.mxu0 0
    %4482 = vmatprep.subr.bf16.mxu0 0
    %4483 = vmatpush1.bf16.msra.mxu0 0
    %4484 = vmatprep.subr.bf16.mxu0 0
    %4485 = vmatpush1.bf16.msra.mxu0 0
    %4486 = vmatprep.subr.bf16.mxu0 0
    %4487 = vmatpush1.bf16.msra.mxu0 0
    %4488 = vmatprep.subr.bf16.mxu0 0
    %4489 = vmatpush1.bf16.msra.mxu0 0
    %4490 = vmatprep.mubr.bf16.mxu0 0
    %4491 = vmatmul.mubr.bf16.gmra.mrb[0].mxu0 %v4376
    %v4492 = vpop.f32.mrb[0].mxu0
    %v4493 = vadd.f32 %v3095, %v4492
    %v4494 = vpop.f32.mrb[0].mxu0
    %v4495 = vpop.f32.mrb[0].mxu0
    %v4496 = vpop.f32.mrb[0].mxu0
    %4497 = vdwg.mxu0
    %v4498 = vld [vmem:[%s2553] sm:$0xff]
    %v4499 = vadd.f32 %v4498, %v4413
    %v4500 = vxor.u32 %v4499, 2147483648
    %v4501 = vmul.f32 %v4500, 1.442695
    %v4502 = vpow.pop %v4501
    %v4503 = vadd.f32 %v4502, 1.0
    %v4504 = vrcp.pop %v4503
    %v4505 = vmul.f32 1.0, %v4504
    %v4506 = vld [vmem:[%s2562] sm:$0xff]
    %v4507 = vadd.f32 %v4506, %v4453
    %v4508 = vxor.u32 %v4507, 2147483648
    %v4509 = vmul.f32 %v4508, 1.442695
    %v4510 = vpow.pop %v4509
    %v4511 = vadd.f32 %v4510, 1.0
    %v4512 = vrcp.pop %v4511
    %v4513 = vmul.f32 1.0, %v4512
    %v4514 = vld [vmem:[%s2571] sm:$0xff]
    %v4515 = vmul.f32 %v4505, %v4493
    %v4516 = vadd.f32 %v4514, %v4515
    %v4517 = vtanh.pop %v4516
    %v4518 = vsub.f32 1.0, %v4513
    %v4519 = vmul.f32 %v4518, %v4517
    %v4520 = vmul.f32 %v4513, %v4371
    %v4521 = vadd.f32 %v4519, %v4520
    %s4522 = scalar_lea.vmem [#allocation6], 72
    %4523 = vst.msk [vmem:[%s4522] sm:$0xff] %vm532, %v4521
    %v4524 = vld [vmem:[#allocation6] sm:$0xff]
    %v4525 = vld [vmem:[#allocation6 + $0x8] sm:$0xff]
    %v4526 = vld [vmem:[#allocation6 + $0x10] sm:$0xff]
    %v4527 = vld [vmem:[#allocation6 + $0x18] sm:$0xff]
    %v4528 = vld [vmem:[#allocation6 + $0x20] sm:$0xff]
    %v4529 = vld [vmem:[#allocation6 + $0x28] sm:$0xff]
    %v4530 = vld [vmem:[#allocation6 + $0x30] sm:$0xff]
    %v4531 = vld [vmem:[#allocation6 + $0x38] sm:$0xff]
    %v4532 = vld [vmem:[#allocation6 + $0x40] sm:$0xff]
    %v4533 = vld [vmem:[#allocation6 + $0x48] sm:$0xff]
    %v4534 = vlaneseq
    %v4535 = vshrl.u32 %v4534, 7
    %v4536 = vadd.s32 %v4535, 8
    %v4537 = vld [vmem:[%s3] sm:$0x1]
    %v4538 = vlaneseq
    %v4539 = vshrl.u32 %v4538, 7
    %v4540 = vsub.s32 0, %v4539
    %v4541 = vrot.slane %v4537, %v4540
    %vm4542 = vcmp.lt.s32.totalorder %v4535, %v4541
    %vm4543 = vcmp.lt.s32.totalorder %v4536, %v4541
    %v4544 = vsel %vm4542, 1, 0
    %v4545 = vsel %vm4543, 1, 0
    %v4546 = vcvt.s32.f32 %v4544
    %v4547 = vcvt.s32.f32 %v4545
    %v4548 = vlaneseq
    %v4549 = vshrl.u32 %v4548, 7
    %v4550 = vsub.s32 0, %v4549
    %v4551 = vrot.slane %v4546, %v4550
    %4553 = vbcast.lane.b32.xlu0 %v4551, 256
    %v4554 = vpop.permute.xlu0 %4553
    %v4555 = vlaneseq
    %v4556 = vshrl.u32 %v4555, 7
    %v4557 = vsub.s32 1, %v4556
    %v4558 = vrot.slane %v4546, %v4557
    %4560 = vbcast.lane.b32.xlu0 %v4558, 256
    %v4561 = vpop.permute.xlu0 %4560
    %v4562 = vlaneseq
    %v4563 = vshrl.u32 %v4562, 7
    %v4564 = vsub.s32 2, %v4563
    %v4565 = vrot.slane %v4546, %v4564
    %4567 = vbcast.lane.b32.xlu0 %v4565, 256
    %v4568 = vpop.permute.xlu0 %4567
    %v4569 = vlaneseq
    %v4570 = vshrl.u32 %v4569, 7
    %v4571 = vsub.s32 3, %v4570
    %v4572 = vrot.slane %v4546, %v4571
    %4574 = vbcast.lane.b32.xlu0 %v4572, 256
    %v4575 = vpop.permute.xlu0 %4574
    %v4576 = vlaneseq
    %v4577 = vshrl.u32 %v4576, 7
    %v4578 = vsub.s32 4, %v4577
    %v4579 = vrot.slane %v4546, %v4578
    %4581 = vbcast.lane.b32.xlu0 %v4579, 256
    %v4582 = vpop.permute.xlu0 %4581
    %v4583 = vlaneseq
    %v4584 = vshrl.u32 %v4583, 7
    %v4585 = vsub.s32 5, %v4584
    %v4586 = vrot.slane %v4546, %v4585
    %4588 = vbcast.lane.b32.xlu0 %v4586, 256
    %v4589 = vpop.permute.xlu0 %4588
    %v4590 = vlaneseq
    %v4591 = vshrl.u32 %v4590, 7
    %v4592 = vsub.s32 6, %v4591
    %v4593 = vrot.slane %v4546, %v4592
    %4595 = vbcast.lane.b32.xlu0 %v4593, 256
    %v4596 = vpop.permute.xlu0 %4595
    %v4597 = vlaneseq
    %v4598 = vshrl.u32 %v4597, 7
    %v4599 = vsub.s32 7, %v4598
    %v4600 = vrot.slane %v4546, %v4599
    %4602 = vbcast.lane.b32.xlu0 %v4600, 256
    %v4603 = vpop.permute.xlu0 %4602
    %v4604 = vlaneseq
    %v4605 = vshrl.u32 %v4604, 7
    %v4606 = vsub.s32 0, %v4605
    %v4607 = vrot.slane %v4547, %v4606
    %4609 = vbcast.lane.b32.xlu0 %v4607, 256
    %v4610 = vpop.permute.xlu0 %4609
    %v4611 = vlaneseq
    %v4612 = vshrl.u32 %v4611, 7
    %v4613 = vsub.s32 1, %v4612
    %v4614 = vrot.slane %v4547, %v4613
    %4616 = vbcast.lane.b32.xlu0 %v4614, 256
    %v4617 = vpop.permute.xlu0 %4616
    %v4618 = vmul.f32 %v4524, %v4554
    %v4619 = vmul.f32 %v4525, %v4561
    %v4620 = vmul.f32 %v4526, %v4568
    %v4621 = vmul.f32 %v4527, %v4575
    %v4622 = vmul.f32 %v4528, %v4582
    %v4623 = vmul.f32 %v4529, %v4589
    %v4624 = vmul.f32 %v4530, %v4596
    %v4625 = vmul.f32 %v4531, %v4603
    %v4626 = vmul.f32 %v4532, %v4610
    %v4627 = vmul.f32 %v4533, %v4617
    %v4628 = vpack.c.bf16 %v4619, %v4618
    %v4629 = vpack.c.bf16 %v4621, %v4620
    %v4630 = vpack.c.bf16 %v4623, %v4622
    %v4631 = vpack.c.bf16 %v4625, %v4624
    %v4632 = vpack.c.bf16 %v4627, %v4626
    %v4633 = vld [vmem:[%s65] sm:$0xf]
    %v4634 = vld [vmem:[%s65 + $0x4] sm:$0xf]
    %v4635 = vld [vmem:[%s65 + $0x8] sm:$0xf]
    %v4636 = vld [vmem:[%s65 + $0xc] sm:$0xf]
    %v4637 = vld [vmem:[%s67] sm:$0x1]
    %v4639 = vlaneseq
    %v4640 = vshrl.u32 %v4639, 7
    %v4641 = vsub.s32 0, %v4640
    %v4642 = vrot.slane %v4637, %v4641
    %v4648 = vunpack.c.l.b16 %v4633
    %v4649 = vunpack.c.l.b16 %v4634
    %v4650 = vunpack.c.l.b16 %v4635
    %v4651 = vunpack.c.l.b16 %v4636
    %v4652 = vpack.c.b16 %v4649, %v4648
    %v4653 = vpack.c.b16 %v4651, %v4650
    %v4657 = vsel %vm532, %v4628, 0
    %v4660 = vsel %vm532, %v4629, 0
    %v4663 = vsel %vm532, %v4630, 0
    %v4666 = vsel %vm532, %v4631, 0
    %v4669 = vsel %vm532, %v4632, 0
    %4671 = vmatprep.subr.bf16.mxu0 0
    %4672 = vmatpush1.bf16.msra.mxu0 %v4652
    %4673 = vmatprep.subr.bf16.mxu0 0
    %4674 = vmatpush1.bf16.msra.mxu0 %v4653
    %4675 = vmatprep.subr.bf16.mxu0 0
    %4676 = vmatpush1.bf16.msra.mxu0 0
    %4677 = vmatprep.subr.bf16.mxu0 0
    %4678 = vmatpush1.bf16.msra.mxu0 0
    %4679 = vmatprep.subr.bf16.mxu0 0
    %4680 = vmatpush1.bf16.msra.mxu0 0
    %4681 = vmatprep.subr.bf16.mxu0 0
    %4682 = vmatpush1.bf16.msra.mxu0 0
    %4683 = vmatprep.subr.bf16.mxu0 0
    %4684 = vmatpush1.bf16.msra.mxu0 0
    %4685 = vmatprep.subr.bf16.mxu0 0
    %4686 = vmatpush1.bf16.msra.mxu0 0
    %4687 = vmatprep.subr.bf16.mxu0 0
    %4688 = vmatpush1.bf16.msra.mxu0 0
    %4689 = vmatprep.subr.bf16.mxu0 0
    %4690 = vmatpush1.bf16.msra.mxu0 0
    %4691 = vmatprep.subr.bf16.mxu0 0
    %4692 = vmatpush1.bf16.msra.mxu0 0
    %4693 = vmatprep.subr.bf16.mxu0 0
    %4694 = vmatpush1.bf16.msra.mxu0 0
    %4695 = vmatprep.subr.bf16.mxu0 0
    %4696 = vmatpush1.bf16.msra.mxu0 0
    %4697 = vmatprep.subr.bf16.mxu0 0
    %4698 = vmatpush1.bf16.msra.mxu0 0
    %4699 = vmatprep.subr.bf16.mxu0 0
    %4700 = vmatpush1.bf16.msra.mxu0 0
    %4701 = vmatprep.subr.bf16.mxu0 0
    %4702 = vmatpush1.bf16.msra.mxu0 0
    %4703 = vmatprep.mubr.bf16.mxu0 0
    %4704 = vmatmul.mubr.bf16.gmra.mrb[0].mxu0 %v4657
    %v4705 = vpop.f32.mrb[0].mxu0
    %v4706 = vadd.f32 %v4642, %v4705
    %v4707 = vpop.f32.mrb[0].mxu0
    %v4708 = vpop.f32.mrb[0].mxu0
    %v4709 = vadd.f32 %v4642, %v4708
    %v4710 = vpop.f32.mrb[0].mxu0
    %4711 = vmatprep.mubr.bf16.mxu0 0
    %4712 = vmatmul.mubr.bf16.gmra.mrb[0].mxu0 %v4660
    %v4713 = vpop.f32.mrb[0].mxu0
    %v4714 = vadd.f32 %v4642, %v4713
    %v4715 = vpop.f32.mrb[0].mxu0
    %v4716 = vpop.f32.mrb[0].mxu0
    %v4717 = vadd.f32 %v4642, %v4716
    %v4718 = vpop.f32.mrb[0].mxu0
    %4719 = vmatprep.mubr.bf16.mxu0 0
    %4720 = vmatmul.mubr.bf16.gmra.mrb[0].mxu0 %v4663
    %v4721 = vpop.f32.mrb[0].mxu0
    %v4722 = vadd.f32 %v4642, %v4721
    %v4723 = vpop.f32.mrb[0].mxu0
    %v4724 = vpop.f32.mrb[0].mxu0
    %v4725 = vadd.f32 %v4642, %v4724
    %v4726 = vpop.f32.mrb[0].mxu0
    %4727 = vmatprep.mubr.bf16.mxu0 0
    %4728 = vmatmul.mubr.bf16.gmra.mrb[0].mxu0 %v4666
    %v4729 = vpop.f32.mrb[0].mxu0
    %v4730 = vadd.f32 %v4642, %v4729
    %v4731 = vpop.f32.mrb[0].mxu0
    %v4732 = vpop.f32.mrb[0].mxu0
    %v4733 = vadd.f32 %v4642, %v4732
    %v4734 = vpop.f32.mrb[0].mxu0
    %4735 = vmatprep.mubr.bf16.mxu0 0
    %4736 = vmatmul.mubr.bf16.gmra.mrb[0].mxu0 %v4669
    %v4737 = vpop.f32.mrb[0].mxu0
    %v4738 = vadd.f32 %v4642, %v4737
    %v4739 = vpop.f32.mrb[0].mxu0
    %v4740 = vpop.f32.mrb[0].mxu0
    %v4741 = vadd.f32 %v4642, %v4740
    %v4742 = vpop.f32.mrb[0].mxu0
    %4743 = vdwg.mxu0
    %4744 = vst [vmem:[#allocation7] sm:$0xff] %v4706
    %4745 = vst [vmem:[#allocation7 + $0x8] sm:$0xff] %v4709
    %4746 = vst [vmem:[#allocation7 + $0x10] sm:$0xff] %v4714
    %4747 = vst [vmem:[#allocation7 + $0x18] sm:$0xff] %v4717
    %4748 = vst [vmem:[#allocation7 + $0x20] sm:$0xff] %v4722
    %4749 = vst [vmem:[#allocation7 + $0x28] sm:$0xff] %v4725
    %4750 = vst [vmem:[#allocation7 + $0x30] sm:$0xff] %v4730
    %4751 = vst [vmem:[#allocation7 + $0x38] sm:$0xff] %v4733
    %4752 = vst [vmem:[#allocation7 + $0x40] sm:$0xff] %v4738
    %4753 = vst [vmem:[#allocation7 + $0x48] sm:$0xff] %v4741
    %4754 = vmax.xlane.f32.xlu0 %v4706
    %v4755 = vpop.xlane.xlu0 %4754
    %4756 = vmax.xlane.f32.xlu0 %v4709
    %v4757 = vpop.xlane.xlu0 %4756
    %4758 = vmax.xlane.f32.xlu0 %v4714
    %v4759 = vpop.xlane.xlu0 %4758
    %4760 = vmax.xlane.f32.xlu0 %v4717
    %v4761 = vpop.xlane.xlu0 %4760
    %4762 = vmax.xlane.f32.xlu0 %v4722
    %v4763 = vpop.xlane.xlu0 %4762
    %4764 = vmax.xlane.f32.xlu0 %v4725
    %v4765 = vpop.xlane.xlu0 %4764
    %4766 = vmax.xlane.f32.xlu0 %v4730
    %v4767 = vpop.xlane.xlu0 %4766
    %4768 = vmax.xlane.f32.xlu0 %v4733
    %v4769 = vpop.xlane.xlu0 %4768
    %4770 = vmax.xlane.f32.xlu0 %v4738
    %v4771 = vpop.xlane.xlu0 %4770
    %v4772 = vsub.f32 %v4706, %v4755
    %v4773 = vsub.f32 %v4709, %v4757
    %v4774 = vsub.f32 %v4714, %v4759
    %v4775 = vsub.f32 %v4717, %v4761
    %v4776 = vsub.f32 %v4722, %v4763
    %v4777 = vsub.f32 %v4725, %v4765
    %v4778 = vsub.f32 %v4730, %v4767
    %v4779 = vsub.f32 %v4733, %v4769
    %v4780 = vsub.f32 %v4738, %v4771
    %v4781 = vmul.f32 %v4772, 1.442695
    %v4782 = vpow.pop %v4781
    %v4783 = vmul.f32 %v4773, 1.442695
    %v4784 = vpow.pop %v4783
    %v4785 = vmul.f32 %v4774, 1.442695
    %v4786 = vpow.pop %v4785
    %v4787 = vmul.f32 %v4775, 1.442695
    %v4788 = vpow.pop %v4787
    %v4789 = vmul.f32 %v4776, 1.442695
    %v4790 = vpow.pop %v4789
    %v4791 = vmul.f32 %v4777, 1.442695
    %v4792 = vpow.pop %v4791
    %v4793 = vmul.f32 %v4778, 1.442695
    %v4794 = vpow.pop %v4793
    %v4795 = vmul.f32 %v4779, 1.442695
    %v4796 = vpow.pop %v4795
    %v4797 = vmul.f32 %v4780, 1.442695
    %v4798 = vpow.pop %v4797
    %4799 = vadd.xlane.f32.xlu0 %v4782
    %v4800 = vpop.xlane.xlu0 %4799
    %4801 = vadd.xlane.f32.xlu0 %v4784
    %v4802 = vpop.xlane.xlu0 %4801
    %4803 = vadd.xlane.f32.xlu0 %v4786
    %v4804 = vpop.xlane.xlu0 %4803
    %4805 = vadd.xlane.f32.xlu0 %v4788
    %v4806 = vpop.xlane.xlu0 %4805
    %4807 = vadd.xlane.f32.xlu0 %v4790
    %v4808 = vpop.xlane.xlu0 %4807
    %4809 = vadd.xlane.f32.xlu0 %v4792
    %v4810 = vpop.xlane.xlu0 %4809
    %4811 = vadd.xlane.f32.xlu0 %v4794
    %v4812 = vpop.xlane.xlu0 %4811
    %4813 = vadd.xlane.f32.xlu0 %v4796
    %v4814 = vpop.xlane.xlu0 %4813
    %4815 = vadd.xlane.f32.xlu0 %v4798
    %v4816 = vpop.xlane.xlu0 %4815
    %v4817 = vlog2.pop %v4800
    %v4818 = vmul.f32 %v4817, 0.6931472
    %v4819 = vlog2.pop %v4802
    %v4820 = vmul.f32 %v4819, 0.6931472
    %v4821 = vlog2.pop %v4804
    %v4822 = vmul.f32 %v4821, 0.6931472
    %v4823 = vlog2.pop %v4806
    %v4824 = vmul.f32 %v4823, 0.6931472
    %v4825 = vlog2.pop %v4808
    %v4826 = vmul.f32 %v4825, 0.6931472
    %v4827 = vlog2.pop %v4810
    %v4828 = vmul.f32 %v4827, 0.6931472
    %v4829 = vlog2.pop %v4812
    %v4830 = vmul.f32 %v4829, 0.6931472
    %v4831 = vlog2.pop %v4814
    %v4832 = vmul.f32 %v4831, 0.6931472
    %v4833 = vlog2.pop %v4816
    %v4834 = vmul.f32 %v4833, 0.6931472
    %v4835 = vadd.f32 %v4818, %v4755
    %v4836 = vadd.f32 %v4820, %v4757
    %v4837 = vadd.f32 %v4822, %v4759
    %v4838 = vadd.f32 %v4824, %v4761
    %v4839 = vadd.f32 %v4826, %v4763
    %v4840 = vadd.f32 %v4828, %v4765
    %v4841 = vadd.f32 %v4830, %v4767
    %v4842 = vadd.f32 %v4832, %v4769
    %v4843 = vadd.f32 %v4834, %v4771
    %v4844 = vsel %vm286, %v4706, 0.0
    %v4845 = vsel %vm287, %v4709, 0.0
    %v4846 = vsel %vm288, %v4714, 0.0
    %v4847 = vsel %vm289, %v4717, 0.0
    %v4848 = vsel %vm290, %v4722, 0.0
    %v4849 = vsel %vm291, %v4725, 0.0
    %v4850 = vsel %vm292, %v4730, 0.0
    %v4851 = vsel %vm293, %v4733, 0.0
    %v4852 = vsel %vm294, %v4738, 0.0
    %4853 = vadd.xlane.f32.xlu0 %v4844
    %v4854 = vpop.xlane.xlu0 %4853
    %4855 = vadd.xlane.f32.xlu0 %v4845
    %v4856 = vpop.xlane.xlu0 %4855
    %4857 = vadd.xlane.f32.xlu0 %v4846
    %v4858 = vpop.xlane.xlu0 %4857
    %4859 = vadd.xlane.f32.xlu0 %v4847
    %v4860 = vpop.xlane.xlu0 %4859
    %4861 = vadd.xlane.f32.xlu0 %v4848
    %v4862 = vpop.xlane.xlu0 %4861
    %4863 = vadd.xlane.f32.xlu0 %v4849
    %v4864 = vpop.xlane.xlu0 %4863
    %4865 = vadd.xlane.f32.xlu0 %v4850
    %v4866 = vpop.xlane.xlu0 %4865
    %4867 = vadd.xlane.f32.xlu0 %v4851
    %v4868 = vpop.xlane.xlu0 %4867
    %4869 = vadd.xlane.f32.xlu0 %v4852
    %v4870 = vpop.xlane.xlu0 %4869
    %v4871 = vsub.f32 %v4835, %v4854
    %v4872 = vsub.f32 %v4836, %v4856
    %v4873 = vsub.f32 %v4837, %v4858
    %v4874 = vsub.f32 %v4838, %v4860
    %v4875 = vsub.f32 %v4839, %v4862
    %v4876 = vsub.f32 %v4840, %v4864
    %v4877 = vsub.f32 %v4841, %v4866
    %v4878 = vsub.f32 %v4842, %v4868
    %v4879 = vsub.f32 %v4843, %v4870
    %vm4880 = vcmp.ne.s32.totalorder %v150, 0
    %vm4881 = vcmp.ne.s32.totalorder %v151, 0
    %v4882 = vsel %vm4880, 1, 0
    %v4883 = vsel %vm4881, 1, 0
    %v4884 = vcvt.s32.f32 %v4882
    %v4885 = vcvt.s32.f32 %v4883
    %v4888 = vlaneseq
    %v4889 = vshrl.u32 %v4888, 7
    %v4890 = vsub.s32 1, %v4889
    %v4891 = vrot.slane %v4884, %v4890
    %4893 = vbcast.lane.b32.xlu0 %v4891, 256
    %v4894 = vpop.permute.xlu0 %4893
    %v4895 = vlaneseq
    %v4896 = vshrl.u32 %v4895, 7
    %v4897 = vsub.s32 2, %v4896
    %v4898 = vrot.slane %v4884, %v4897
    %4900 = vbcast.lane.b32.xlu0 %v4898, 256
    %v4901 = vpop.permute.xlu0 %4900
    %v4902 = vlaneseq
    %v4903 = vshrl.u32 %v4902, 7
    %v4904 = vsub.s32 3, %v4903
    %v4905 = vrot.slane %v4884, %v4904
    %4907 = vbcast.lane.b32.xlu0 %v4905, 256
    %v4908 = vpop.permute.xlu0 %4907
    %v4909 = vlaneseq
    %v4910 = vshrl.u32 %v4909, 7
    %v4911 = vsub.s32 4, %v4910
    %v4912 = vrot.slane %v4884, %v4911
    %4914 = vbcast.lane.b32.xlu0 %v4912, 256
    %v4915 = vpop.permute.xlu0 %4914
    %v4916 = vlaneseq
    %v4917 = vshrl.u32 %v4916, 7
    %v4918 = vsub.s32 5, %v4917
    %v4919 = vrot.slane %v4884, %v4918
    %4921 = vbcast.lane.b32.xlu0 %v4919, 256
    %v4922 = vpop.permute.xlu0 %4921
    %v4923 = vlaneseq
    %v4924 = vshrl.u32 %v4923, 7
    %v4925 = vsub.s32 6, %v4924
    %v4926 = vrot.slane %v4884, %v4925
    %4928 = vbcast.lane.b32.xlu0 %v4926, 256
    %v4929 = vpop.permute.xlu0 %4928
    %v4930 = vlaneseq
    %v4931 = vshrl.u32 %v4930, 7
    %v4932 = vsub.s32 7, %v4931
    %v4933 = vrot.slane %v4884, %v4932
    %4935 = vbcast.lane.b32.xlu0 %v4933, 256
    %v4936 = vpop.permute.xlu0 %4935
    %v4937 = vlaneseq
    %v4938 = vshrl.u32 %v4937, 7
    %v4939 = vsub.s32 0, %v4938
    %v4940 = vrot.slane %v4885, %v4939
    %4942 = vbcast.lane.b32.xlu0 %v4940, 256
    %v4943 = vpop.permute.xlu0 %4942
    %v4944 = vlaneseq
    %v4945 = vshrl.u32 %v4944, 7
    %v4946 = vsub.s32 1, %v4945
    %v4947 = vrot.slane %v4885, %v4946
    %4949 = vbcast.lane.b32.xlu0 %v4947, 256
    %v4950 = vpop.permute.xlu0 %4949
    %v4960 = vmul.f32 %v4871, %v4894
    %v4961 = vmul.f32 %v4872, %v4901
    %v4962 = vmul.f32 %v4873, %v4908
    %v4963 = vmul.f32 %v4874, %v4915
    %v4964 = vmul.f32 %v4875, %v4922
    %v4965 = vmul.f32 %v4876, %v4929
    %v4966 = vmul.f32 %v4877, %v4936
    %v4967 = vmul.f32 %v4878, %v4943
    %v4968 = vmul.f32 %v4879, %v4950
    %4978 = vset.pattern.permute.xlu0 0
    %4979 = vperm.xlu0 %4978, %v4960
    %v4980 = vpop.permute.xlu0 %4979
    %4981 = vset.pattern.permute.xlu0 0
    %4982 = vperm.xlu0 %4981, %v4961
    %v4983 = vpop.permute.xlu0 %4982
    %4984 = vset.pattern.permute.xlu0 0
    %4985 = vperm.xlu0 %4984, %v4962
    %v4986 = vpop.permute.xlu0 %4985
    %4987 = vset.pattern.permute.xlu0 0
    %4988 = vperm.xlu0 %4987, %v4963
    %v4989 = vpop.permute.xlu0 %4988
    %4990 = vset.pattern.permute.xlu0 0
    %4991 = vperm.xlu0 %4990, %v4964
    %v4992 = vpop.permute.xlu0 %4991
    %4993 = vset.pattern.permute.xlu0 0
    %4994 = vperm.xlu0 %4993, %v4965
    %v4995 = vpop.permute.xlu0 %4994
    %4996 = vset.pattern.permute.xlu0 0
    %4997 = vperm.xlu0 %4996, %v4966
    %v4998 = vpop.permute.xlu0 %4997
    %4999 = vset.pattern.permute.xlu0 0
    %5000 = vperm.xlu0 %4999, %v4967
    %v5001 = vpop.permute.xlu0 %5000
    %5002 = vset.pattern.permute.xlu0 0
    %5003 = vperm.xlu0 %5002, %v4968
    %v5004 = vpop.permute.xlu0 %5003
    %v5005 = vlaneseq
    %v5006 = vshrl.u32 %v5005, 7
    %v5007 = vsub.s32 %v214, %v5006
    %v5008 = vrot.slane %v4980, %v5007
    %v5009 = vlaneseq
    %v5010 = vshrl.u32 %v5009, 7
    %v5011 = vsub.s32 %v214, %v5010
    %v5012 = vrot.slane %v4983, %v5011
    %v5013 = vlaneseq
    %v5014 = vshrl.u32 %v5013, 7
    %v5015 = vsub.s32 %v214, %v5014
    %v5016 = vrot.slane %v4986, %v5015
    %v5017 = vlaneseq
    %v5018 = vshrl.u32 %v5017, 7
    %v5019 = vsub.s32 %v214, %v5018
    %v5020 = vrot.slane %v4989, %v5019
    %v5021 = vlaneseq
    %v5022 = vshrl.u32 %v5021, 7
    %v5023 = vsub.s32 %v214, %v5022
    %v5024 = vrot.slane %v4992, %v5023
    %v5025 = vlaneseq
    %v5026 = vshrl.u32 %v5025, 7
    %v5027 = vsub.s32 %v214, %v5026
    %v5028 = vrot.slane %v4995, %v5027
    %v5029 = vlaneseq
    %v5030 = vshrl.u32 %v5029, 7
    %v5031 = vsub.s32 %v214, %v5030
    %v5032 = vrot.slane %v4998, %v5031
    %v5033 = vlaneseq
    %v5034 = vshrl.u32 %v5033, 7
    %v5035 = vsub.s32 %v214, %v5034
    %v5036 = vrot.slane %v5001, %v5035
    %v5037 = vlaneseq
    %v5038 = vshrl.u32 %v5037, 7
    %v5039 = vsub.s32 %v214, %v5038
    %v5040 = vrot.slane %v5004, %v5039
    %vm5041 = vcmask 1041409
    %v5042 = vsel %vm5041, %v5012, %v5008
    %vm5043 = vcmask 1042434
    %v5044 = vsel %vm5043, %v5016, %v5042
    %vm5045 = vcmask 1043459
    %v5046 = vsel %vm5045, %v5020, %v5044
    %vm5047 = vcmask 1044484
    %v5048 = vsel %vm5047, %v5024, %v5046
    %vm5049 = vcmask 1045509
    %v5050 = vsel %vm5049, %v5028, %v5048
    %vm5051 = vcmask 1046534
    %v5052 = vsel %vm5051, %v5032, %v5050
    %vm5053 = vcmask 1047559
    %v5054 = vsel %vm5053, %v5036, %v5052
    %vm5057 = vcmask 64512
    %v5058 = vsel %vm5057, %v5054, 0.0
    %vm5059 = vcmask 57344
    %v5060 = vsel %vm5059, %v5040, 0.0
    %v5061 = vadd.f32 %v5058, %v5060
    %5062 = vadd.xlane.f32.xlu0 %v5061
    %v5063 = vpop.xlane.xlu0 %5062
    %v5064 = vrot.slane %v5063, 4
    %v5065 = vadd.f32 %v5063, %v5064
    %v5066 = vrot.slane %v5065, 2
    %v5067 = vadd.f32 %v5065, %v5066
    %v5068 = vrot.slane %v5067, 1
    %v5069 = vadd.f32 %v5067, %v5068
    %s5070 = vtos %v5069
    %v5071 = vstv %s5070
    %vm5072 = vcmask 0
    %5073 = vst.msk [vmem:[#allocation9] sm:$0x1] %vm5072, %v5071
    %vm5074 = vcmask 1046528
    %v5075 = vrot.slane %v4884, 1
    %v5076 = vrot.slane %v4885, 1
    %v5077 = vsel %vm5074, %v5075, %v5076
    %v5080 = vsel %vm5057, %v5077, 0.0
    %v5081 = vsel %vm5059, %v5076, 0.0
    %v5082 = vadd.f32 %v5080, %v5081
    %5083 = vadd.xlane.f32.xlu0 %v5082
    %v5084 = vpop.xlane.xlu0 %5083
    %v5085 = vrot.slane %v5084, 4
    %v5086 = vadd.f32 %v5084, %v5085
    %v5087 = vrot.slane %v5086, 2
    %v5088 = vadd.f32 %v5086, %v5087
    %v5089 = vrot.slane %v5088, 1
    %v5090 = vadd.f32 %v5088, %v5089
    %s5091 = vtos %v5090
    %v5092 = vstv %s5091
    %5093 = vst.msk [vmem:[#allocation11] sm:$0x1] %vm5072, %v5092
    // Predicated region
    $region138: #{tpu_custom_call.1} parent=1 // pred_check
      _
    $region139: #{tpu_custom_call.1} parent=1 // pred_check_branch
      %5095 = sbr.rel (0) target = $region141
    $region140: #{tpu_custom_call.1} parent=1 // pred_region
      %s5097 = ssub.s32 1280, 1280
      %5098 = vsyncadd [#allocation8], %s5097
      %s5099 = sshll.u32 [#allocation7], 4
      %s5100 = int_to_ptr.vmem [resolvable:$true] %s5099
      %5105 = dma.vmem_to_hbm [thread:$0]  %s5100, 1280, %s69, [#allocation8], 128, 128, 8
    $region141: #{tpu_custom_call.1} parent=1 // pred_fallthru
      _
    // Predicated region
    $region142: #{tpu_custom_call.1} parent=1 // pred_check
      _
    $region143: #{tpu_custom_call.1} parent=1 // pred_check_branch
      %5107 = sbr.rel (0) target = $region145
    $region144: #{tpu_custom_call.1} parent=1 // pred_region
      %s5109 = ssub.s32 16, 16
      %5110 = vsyncadd [#allocation10], %s5109
      %s5112 = sshll.u32 [#allocation9], 4
      %s5113 = int_to_ptr.vmem [resolvable:$true] %s5112
      %5115 = dma.vmem_to_hbm [thread:$0]  %s5113, 16, %s71, [#allocation10]
    $region145: #{tpu_custom_call.1} parent=1 // pred_fallthru
      _
    // Predicated region
    $region146: #{tpu_custom_call.1} parent=1 // pred_check
      _
    $region147: #{tpu_custom_call.1} parent=1 // pred_check_branch
      %5117 = sbr.rel (0) target = $region149
    $region148: #{tpu_custom_call.1} parent=1 // pred_region
      %s5119 = ssub.s32 16, 16
      %5120 = vsyncadd [#allocation10], %s5119
      %s5122 = sshll.u32 [#allocation11], 4
      %s5123 = int_to_ptr.vmem [resolvable:$true] %s5122
      %5125 = dma.vmem_to_hbm [thread:$0]  %s5123, 16, %s73, [#allocation10]
    $region149: #{tpu_custom_call.1} parent=1 // pred_fallthru
      _
    // Predicated region
    $region150: #{tpu_custom_call.1} parent=1 // pred_check
      _
    $region151: #{tpu_custom_call.1} parent=1 // pred_check_branch
      %5127 = sbr.rel (0) target = $region153
    $region152: #{tpu_custom_call.1} parent=1 // pred_region
      %5128 = dma.done [#allocation8], 1280
    $region153: #{tpu_custom_call.1} parent=1 // pred_fallthru
      _
    // Predicated region
    $region154: #{tpu_custom_call.1} parent=1 // pred_check
      _
    $region155: #{tpu_custom_call.1} parent=1 // pred_check_branch
      %5130 = sbr.rel (0) target = $region157
    $region156: #{tpu_custom_call.1} parent=1 // pred_region
      %5131 = dma.done [#allocation10], 16
    $region157: #{tpu_custom_call.1} parent=1 // pred_fallthru
      _
    // Predicated region
    $region158: #{tpu_custom_call.1} parent=1 // pred_check
      _
    $region159: #{tpu_custom_call.1} parent=1 // pred_check_branch
      %5133 = sbr.rel (0) target = $region161
    $region160: #{tpu_custom_call.1} parent=1 // pred_region
      %5134 = dma.done [#allocation10], 16
    $region161: #{tpu_custom_call.1} parent=1 // pred_fallthru
      _
    %5135 = vsyncpa [#allocation8], 1
    %5136 = vsyncpa [#allocation10], 1

</llo_original>
